<compile_context>
chip_gen: v7x
topology: tpu7x:2x2x1
jax: 0.10.0
libtpu: 0.0.40
codegen_flags: <defaults>
</compile_context>

<pallas_src>
import functools

import jax
import jax.numpy as jnp
from jax import lax
from jax.experimental import pallas as pl
from jax.experimental.pallas import tpu as pltpu


# ------------------------------ Pallas kernel ------------------------------- #

def _ain_resblock_kernel(x_ref, fm_ref, mask_ref,
                         w_in_ref, b_in_ref,
                         wg_ref, bg_ref,
                         wb_ref, bb_ref,
                         w1_ref, b1_ref,
                         w2_ref, b2_ref,
                         o_ref, pad_ref, *, H, W):
    HW = H * W
    PAD = (pad_ref.shape[1] - HW) // 2          # lane-aligned centre offset
    pmax = (mask_ref.shape[0] - 1) // 2

    # Zero the padded scratch once; only its centre is ever rewritten, so the
    # halo columns stay zero for every conv below.
    pad_ref[...] = jnp.zeros_like(pad_ref)

    def conv(v, w_taps_ref, b_ref, ksz):
        """'same' conv: v (Cin, HW) -> (Cout, HW); w_taps_ref: (ksz*ksz, Cout, Cin)."""
        cin = v.shape[0]
        p = (ksz - 1) // 2
        pad_ref[0:cin, PAD:PAD + HW] = v
        acc = None
        for i in range(ksz):
            dy = i - p
            for j in range(ksz):
                dx = j - p
                off = PAD + dy * W + dx
                msk = mask_ref[pmax + dx:pmax + dx + 1, :]       # (1, HW)
                win = pad_ref[0:cin, off:off + HW] * msk         # (Cin, HW)
                wt = w_taps_ref[i * ksz + j]                     # (Cout, Cin)
                if cin == 1:
                    contrib = wt * win                           # outer product (VPU)
                else:
                    contrib = jnp.dot(wt, win,
                                      preferred_element_type=jnp.float32)
                acc = contrib if acc is None else acc + contrib
        return acc + b_ref[...]                                  # (Cout,1) broadcast

    def ain(v, gmap, bmap):
        # torch: (x - mean(x)) / std(x + eps)  with unbiased std; the +eps shift
        # does not change std, so one mean pass suffices.
        mean = jnp.mean(v, axis=1, keepdims=True)                # (C, 1)
        d = v - mean
        var = jnp.sum(d * d, axis=1, keepdims=True) * (1.0 / (HW - 1))
        return d * lax.rsqrt(var) * (gmap + 1.0) + bmap

    x = x_ref[0]                       # (C, HW)
    fm = fm_ref[0]                     # (1, HW)

    # ain1 modulation maps (ain1 is used for BOTH AIN calls in forward(), and
    # depends only on feature_map, so compute once).
    h = jnp.maximum(conv(fm, w_in_ref, b_in_ref, 5), 0.0)
    g = conv(h, wg_ref, bg_ref, 3)                 # "out2" of AINBlock (gamma map)
    bt = conv(g, wb_ref, bb_ref, 3)                # "out3" (input is g, per torch)

    out1 = conv(x, w1_ref, b1_ref, 3)
    out2 = jnp.maximum(ain(out1, g, bt), 0.0)      # relu1(ain1(out1, fm))
    out3 = conv(out2, w2_ref, b2_ref, 3)
    o_ref[0] = jnp.maximum(x + ain(out3, g, bt), 0.0)   # relu2(x + ain1(out3, fm))


# ------------------------------ Python wrapper ------------------------------ #

def _taps(w_oihw):
    """torch (Cout, Cin, kh, kw) -> (kh*kw, Cout, Cin), tap-major."""
    co, ci, kh, kw = w_oihw.shape
    return jnp.transpose(w_oihw, (2, 3, 0, 1)).reshape(kh * kw, co, ci)


def ain_resblock_forward(x_nchw, fm_nchw, p):
    N, C, H, W = x_nchw.shape
    HW = H * W
    pmax = 2                                          # largest conv is 5x5
    # flat padding for the shifted windows; rounded to 128 so the centre write
    # of the scratch is lane-aligned.
    PAD = ((pmax * (W + 1) + 127) // 128) * 128

    x = x_nchw.reshape(N, C, HW)                      # free reshape, lane dim = HW
    fm = fm_nchw.reshape(N, 1, HW)

    # 0/1 lane masks fixing the W-axis wrap of flattened shifts (one per dx).
    col = jnp.arange(HW, dtype=jnp.int32) % W
    mask = jnp.stack([(col + d >= 0) & (col + d < W)
                      for d in range(-pmax, pmax + 1)], axis=0).astype(jnp.float32)

    args = (
        x, fm, mask,
        _taps(p['ain1_conv_in_w']), p['ain1_conv_in_b'].reshape(C, 1),
        _taps(p['ain1_gamma_w']),   p['ain1_gamma_b'].reshape(C, 1),
        _taps(p['ain1_beta_w']),    p['ain1_beta_b'].reshape(C, 1),
        _taps(p['conv1_w']),        p['conv1_b'].reshape(C, 1),
        _taps(p['conv2_w']),        p['conv2_b'].reshape(C, 1),
    )

    sample_spec = pl.BlockSpec((1, C, HW), lambda n: (n, 0, 0))
    fm_spec = pl.BlockSpec((1, 1, HW), lambda n: (n, 0, 0))
    const2 = lambda s: pl.BlockSpec(s, lambda n: (0, 0))
    const3 = lambda s: pl.BlockSpec(s, lambda n: (0, 0, 0))

    in_specs = [
        sample_spec, fm_spec, const2((2 * pmax + 1, HW)),
        const3((25, C, 1)), const2((C, 1)),
        const3((9, C, C)),  const2((C, 1)),
        const3((9, C, C)),  const2((C, 1)),
        const3((9, C, C)),  const2((C, 1)),
        const3((9, C, C)),  const2((C, 1)),
    ]

    kern = functools.partial(_ain_resblock_kernel, H=H, W=W)
    out = pl.pallas_call(
        kern,
        out_shape=jax.ShapeDtypeStruct((N, C, HW), jnp.float32),
        grid=(N,),
        in_specs=in_specs,
        out_specs=sample_spec,
        scratch_shapes=[pltpu.VMEM((C, HW + 2 * PAD), jnp.float32)],
        compiler_params=pltpu.CompilerParams(
            dimension_semantics=("parallel",)),
    )(*args)
    return out.reshape(N, C, H, W)


# ---------------------------- parameters / ref ------------------------------ #

def init_params(key, C):
    ks = jax.random.split(key, 10)

    def w(k, shape):
        return 0.1 * jax.random.normal(k, shape, jnp.float32)

    # TODO(synk): ain2 (and its conv_in/nm_gamma/nm_beta) is created in __init__
    # but never used in forward(), so no parameters are instantiated for it.
    return {
        'conv1_w': w(ks[0], (C, C, 3, 3)), 'conv1_b': w(ks[1], (C,)),
        'conv2_w': w(ks[2], (C, C, 3, 3)), 'conv2_b': w(ks[3], (C,)),
        'ain1_conv_in_w': w(ks[4], (C, 1, 5, 5)), 'ain1_conv_in_b': w(ks[5], (C,)),
        'ain1_gamma_w': w(ks[6], (C, C, 3, 3)), 'ain1_gamma_b': w(ks[7], (C,)),
        'ain1_beta_w': w(ks[8], (C, C, 3, 3)), 'ain1_beta_b': w(ks[9], (C,)),
    }


def _conv_ref(x, w, b, pad):
    y = lax.conv_general_dilated(
        x, w, window_strides=(1, 1), padding=[(pad, pad), (pad, pad)],
        dimension_numbers=('NCHW', 'OIHW', 'NCHW'))
    return y + b[None, :, None, None]


def _ain_ref(x, fm, p, eps=1e-5):
    xm = jnp.mean(x, axis=(2, 3), keepdims=True)
    y = x + eps
    ym = jnp.mean(y, axis=(2, 3), keepdims=True)
    n = x.shape[2] * x.shape[3]
    var = jnp.sum((y - ym) ** 2, axis=(2, 3), keepdims=True) / (n - 1)
    xn = (x - xm) / jnp.sqrt(var)
    o1 = jax.nn.relu(_conv_ref(fm, p['ain1_conv_in_w'], p['ain1_conv_in_b'], 2))
    o2 = _conv_ref(o1, p['ain1_gamma_w'], p['ain1_gamma_b'], 1)
    o3 = _conv_ref(o2, p['ain1_beta_w'], p['ain1_beta_b'], 1)
    return xn * (o2 + 1.0) + o3


def _resblock_ref(x, fm, p):
    out1 = _conv_ref(x, p['conv1_w'], p['conv1_b'], 1)
    out2 = jax.nn.relu(_ain_ref(out1, fm, p))
    out3 = _conv_ref(out2, p['conv2_w'], p['conv2_b'], 1)
    out4 = _ain_ref(out3, fm, p)
    return jax.nn.relu(x + out4)


# ---------------------------------- main ------------------------------------- #

if __name__ == "__main__":
    key = jax.random.PRNGKey(0)
    kx, kf, kp = jax.random.split(key, 3)

    N, C, H, W = 2, 4, 16, 16
    x = jax.random.normal(kx, (N, C, H, W), jnp.float32)
    fm = jax.random.normal(kf, (N, 1, H, W), jnp.float32)     # AINBlock in_channels=1
    params = init_params(kp, C)

    out = jax.jit(ain_resblock_forward)(x, fm, params)
    out = jax.block_until_ready(out)

    ref = _resblock_ref(x, fm, params)
    assert out.shape == (N, C, H, W)
    err = float(jnp.max(jnp.abs(out - ref)))
    assert bool(jnp.allclose(out, ref, atol=1e-3, rtol=1e-3)), err

    print("KERNEL_OK")
</pallas_src>

<mosaic_0001>
module attributes {stable_mosaic.version = 11 : i64} {
  func.func @_ain_resblock_kernel(%arg0: i32, %arg1: memref<1x4x256xf32, #tpu.memory_space<vmem>>, %arg2: memref<1x1x256xf32, #tpu.memory_space<vmem>>, %arg3: memref<5x256xf32, #tpu.memory_space<vmem>>, %arg4: memref<25x4x1xf32, #tpu.memory_space<vmem>>, %arg5: memref<4x1xf32, #tpu.memory_space<vmem>>, %arg6: memref<9x4x4xf32, #tpu.memory_space<vmem>>, %arg7: memref<4x1xf32, #tpu.memory_space<vmem>>, %arg8: memref<9x4x4xf32, #tpu.memory_space<vmem>>, %arg9: memref<4x1xf32, #tpu.memory_space<vmem>>, %arg10: memref<9x4x4xf32, #tpu.memory_space<vmem>>, %arg11: memref<4x1xf32, #tpu.memory_space<vmem>>, %arg12: memref<9x4x4xf32, #tpu.memory_space<vmem>>, %arg13: memref<4x1xf32, #tpu.memory_space<vmem>>, %arg14: memref<1x4x256xf32, #tpu.memory_space<vmem>>, %arg15: memref<4x512xf32, #tpu.memory_space<vmem>>) attributes {dimension_semantics = [#tpu.dimension_semantics<parallel>], iteration_bounds = array<i64: 2>, scalar_prefetch = 0 : i64, scratch_operands = 1 : i64, tpu.core_type = #tpu.core_type<tc>, window_params = [{transform_indices = @transform_0, window_bounds = array<i64: 1, 4, 256>}, {transform_indices = @transform_1, window_bounds = array<i64: 1, 1, 256>}, {pipeline_mode = #tpu.pipeline_mode<synchronous>, transform_indices = @transform_2, window_bounds = array<i64: 5, 256>}, {pipeline_mode = #tpu.pipeline_mode<synchronous>, transform_indices = @transform_3, window_bounds = array<i64: 25, 4, 1>}, {pipeline_mode = #tpu.pipeline_mode<synchronous>, transform_indices = @transform_4, window_bounds = array<i64: 4, 1>}, {pipeline_mode = #tpu.pipeline_mode<synchronous>, transform_indices = @transform_5, window_bounds = array<i64: 9, 4, 4>}, {pipeline_mode = #tpu.pipeline_mode<synchronous>, transform_indices = @transform_6, window_bounds = array<i64: 4, 1>}, {pipeline_mode = #tpu.pipeline_mode<synchronous>, transform_indices = @transform_7, window_bounds = array<i64: 9, 4, 4>}, {pipeline_mode = #tpu.pipeline_mode<synchronous>, transform_indices = @transform_8, window_bounds = array<i64: 4, 1>}, {pipeline_mode = #tpu.pipeline_mode<synchronous>, transform_indices = @transform_9, window_bounds = array<i64: 9, 4, 4>}, {pipeline_mode = #tpu.pipeline_mode<synchronous>, transform_indices = @transform_10, window_bounds = array<i64: 4, 1>}, {pipeline_mode = #tpu.pipeline_mode<synchronous>, transform_indices = @transform_11, window_bounds = array<i64: 9, 4, 4>}, {pipeline_mode = #tpu.pipeline_mode<synchronous>, transform_indices = @transform_12, window_bounds = array<i64: 4, 1>}, {transform_indices = @transform_13, window_bounds = array<i64: 1, 4, 256>}]} {
    %cst = arith.constant 0.000000e+00 : f32
    %0 = vector.broadcast %cst : f32 to vector<4x512xf32>
    %c0 = arith.constant 0 : index
    %c0_0 = arith.constant 0 : index
    %1 = vector.load %arg15[%c0, %c0_0] : memref<4x512xf32, #tpu.memory_space<vmem>>, vector<4x512xf32>
    tpu.vector_store %arg15[%c0, %c0_0], %0 {strides = array<i32>} : memref<4x512xf32, #tpu.memory_space<vmem>>, vector<4x512xf32>,
    %c0_1 = arith.constant 0 : index
    %c0_2 = arith.constant 0 : index
    %c0_3 = arith.constant 0 : index
    %2 = vector.load %arg1[%c0_1, %c0_2, %c0_3] : memref<1x4x256xf32, #tpu.memory_space<vmem>>, vector<1x4x256xf32>
    %3 = vector.shape_cast %2 : vector<1x4x256xf32> to vector<4x256xf32>
    %c0_4 = arith.constant 0 : index
    %c0_5 = arith.constant 0 : index
    %c0_6 = arith.constant 0 : index
    %4 = vector.load %arg2[%c0_4, %c0_5, %c0_6] : memref<1x1x256xf32, #tpu.memory_space<vmem>>, vector<1x1x256xf32>
    %5 = vector.shape_cast %4 : vector<1x1x256xf32> to vector<1x256xf32>
    %c0_7 = arith.constant 0 : index
    %c128 = arith.constant 128 : index
    %6 = vector.load %arg15[%c0_7, %c128] : memref<4x512xf32, #tpu.memory_space<vmem>>, vector<1x256xf32>
    tpu.vector_store %arg15[%c0_7, %c128], %5 {strides = array<i32>} : memref<4x512xf32, #tpu.memory_space<vmem>>, vector<1x256xf32>,
    %c0_8 = arith.constant 0 : index
    %c0_9 = arith.constant 0 : index
    %7 = vector.load %arg3[%c0_8, %c0_9] : memref<5x256xf32, #tpu.memory_space<vmem>>, vector<1x256xf32>
    %c0_10 = arith.constant 0 : index
    %c94 = arith.constant 94 : index
    %8 = vector.load %arg15[%c0_10, %c94] : memref<4x512xf32, #tpu.memory_space<vmem>>, vector<1x256xf32>
    %9 = arith.mulf %8, %7 : vector<1x256xf32>
    %c0_11 = arith.constant 0 : index
    %c0_12 = arith.constant 0 : index
    %c0_13 = arith.constant 0 : index
    %10 = vector.load %arg4[%c0_11, %c0_12, %c0_13] : memref<25x4x1xf32, #tpu.memory_space<vmem>>, vector<1x4x1xf32>
    %11 = vector.shape_cast %10 : vector<1x4x1xf32> to vector<4x1xf32>
    %12 = vector.broadcast %11 : vector<4x1xf32> to vector<4x256xf32>
    %13 = vector.broadcast %9 : vector<1x256xf32> to vector<4x256xf32>
    %14 = arith.mulf %12, %13 : vector<4x256xf32>
    %c1 = arith.constant 1 : index
    %c0_14 = arith.constant 0 : index
    %15 = vector.load %arg3[%c1, %c0_14] : memref<5x256xf32, #tpu.memory_space<vmem>>, vector<1x256xf32>
    %c0_15 = arith.constant 0 : index
    %c95 = arith.constant 95 : index
    %16 = vector.load %arg15[%c0_15, %c95] : memref<4x512xf32, #tpu.memory_space<vmem>>, vector<1x256xf32>
    %17 = arith.mulf %16, %15 : vector<1x256xf32>
    %c1_16 = arith.constant 1 : index
    %c0_17 = arith.constant 0 : index
    %c0_18 = arith.constant 0 : index
    %18 = vector.load %arg4[%c1_16, %c0_17, %c0_18] : memref<25x4x1xf32, #tpu.memory_space<vmem>>, vector<1x4x1xf32>
    %19 = vector.shape_cast %18 : vector<1x4x1xf32> to vector<4x1xf32>
    %20 = vector.broadcast %19 : vector<4x1xf32> to vector<4x256xf32>
    %21 = vector.broadcast %17 : vector<1x256xf32> to vector<4x256xf32>
    %22 = arith.mulf %20, %21 : vector<4x256xf32>
    %23 = arith.addf %14, %22 : vector<4x256xf32>
    %c2 = arith.constant 2 : index
    %c0_19 = arith.constant 0 : index
    %24 = vector.load %arg3[%c2, %c0_19] : memref<5x256xf32, #tpu.memory_space<vmem>>, vector<1x256xf32>
    %c0_20 = arith.constant 0 : index
    %c96 = arith.constant 96 : index
    %25 = vector.load %arg15[%c0_20, %c96] : memref<4x512xf32, #tpu.memory_space<vmem>>, vector<1x256xf32>
    %26 = arith.mulf %25, %24 : vector<1x256xf32>
    %c2_21 = arith.constant 2 : index
    %c0_22 = arith.constant 0 : index
    %c0_23 = arith.constant 0 : index
    %27 = vector.load %arg4[%c2_21, %c0_22, %c0_23] : memref<25x4x1xf32, #tpu.memory_space<vmem>>, vector<1x4x1xf32>
    %28 = vector.shape_cast %27 : vector<1x4x1xf32> to vector<4x1xf32>
    %29 = vector.broadcast %28 : vector<4x1xf32> to vector<4x256xf32>
    %30 = vector.broadcast %26 : vector<1x256xf32> to vector<4x256xf32>
    %31 = arith.mulf %29, %30 : vector<4x256xf32>
    %32 = arith.addf %23, %31 : vector<4x256xf32>
    %c3 = arith.constant 3 : index
    %c0_24 = arith.constant 0 : index
    %33 = vector.load %arg3[%c3, %c0_24] : memref<5x256xf32, #tpu.memory_space<vmem>>, vector<1x256xf32>
    %c0_25 = arith.constant 0 : index
    %c97 = arith.constant 97 : index
    %34 = vector.load %arg15[%c0_25, %c97] : memref<4x512xf32, #tpu.memory_space<vmem>>, vector<1x256xf32>
    %35 = arith.mulf %34, %33 : vector<1x256xf32>
    %c3_26 = arith.constant 3 : index
    %c0_27 = arith.constant 0 : index
    %c0_28 = arith.constant 0 : index
    %36 = vector.load %arg4[%c3_26, %c0_27, %c0_28] : memref<25x4x1xf32, #tpu.memory_space<vmem>>, vector<1x4x1xf32>
    %37 = vector.shape_cast %36 : vector<1x4x1xf32> to vector<4x1xf32>
    %38 = vector.broadcast %37 : vector<4x1xf32> to vector<4x256xf32>
    %39 = vector.broadcast %35 : vector<1x256xf32> to vector<4x256xf32>
    %40 = arith.mulf %38, %39 : vector<4x256xf32>
    %41 = arith.addf %32, %40 : vector<4x256xf32>
    %c4 = arith.constant 4 : index
    %c0_29 = arith.constant 0 : index
    %42 = vector.load %arg3[%c4, %c0_29] : memref<5x256xf32, #tpu.memory_space<vmem>>, vector<1x256xf32>
    %c0_30 = arith.constant 0 : index
    %c98 = arith.constant 98 : index
    %43 = vector.load %arg15[%c0_30, %c98] : memref<4x512xf32, #tpu.memory_space<vmem>>, vector<1x256xf32>
    %44 = arith.mulf %43, %42 : vector<1x256xf32>
    %c4_31 = arith.constant 4 : index
    %c0_32 = arith.constant 0 : index
    %c0_33 = arith.constant 0 : index
    %45 = vector.load %arg4[%c4_31, %c0_32, %c0_33] : memref<25x4x1xf32, #tpu.memory_space<vmem>>, vector<1x4x1xf32>
    %46 = vector.shape_cast %45 : vector<1x4x1xf32> to vector<4x1xf32>
    %47 = vector.broadcast %46 : vector<4x1xf32> to vector<4x256xf32>
    %48 = vector.broadcast %44 : vector<1x256xf32> to vector<4x256xf32>
    %49 = arith.mulf %47, %48 : vector<4x256xf32>
    %50 = arith.addf %41, %49 : vector<4x256xf32>
    %c0_34 = arith.constant 0 : index
    %c0_35 = arith.constant 0 : index
    %51 = vector.load %arg3[%c0_34, %c0_35] : memref<5x256xf32, #tpu.memory_space<vmem>>, vector<1x256xf32>
    %c0_36 = arith.constant 0 : index
    %c110 = arith.constant 110 : index
    %52 = vector.load %arg15[%c0_36, %c110] : memref<4x512xf32, #tpu.memory_space<vmem>>, vector<1x256xf32>
    %53 = arith.mulf %52, %51 : vector<1x256xf32>
    %c5 = arith.constant 5 : index
    %c0_37 = arith.constant 0 : index
    %c0_38 = arith.constant 0 : index
    %54 = vector.load %arg4[%c5, %c0_37, %c0_38] : memref<25x4x1xf32, #tpu.memory_space<vmem>>, vector<1x4x1xf32>
    %55 = vector.shape_cast %54 : vector<1x4x1xf32> to vector<4x1xf32>
    %56 = vector.broadcast %55 : vector<4x1xf32> to vector<4x256xf32>
    %57 = vector.broadcast %53 : vector<1x256xf32> to vector<4x256xf32>
    %58 = arith.mulf %56, %57 : vector<4x256xf32>
    %59 = arith.addf %50, %58 : vector<4x256xf32>
    %c1_39 = arith.constant 1 : index
    %c0_40 = arith.constant 0 : index
    %60 = vector.load %arg3[%c1_39, %c0_40] : memref<5x256xf32, #tpu.memory_space<vmem>>, vector<1x256xf32>
    %c0_41 = arith.constant 0 : index
    %c111 = arith.constant 111 : index
    %61 = vector.load %arg15[%c0_41, %c111] : memref<4x512xf32, #tpu.memory_space<vmem>>, vector<1x256xf32>
    %62 = arith.mulf %61, %60 : vector<1x256xf32>
    %c6 = arith.constant 6 : index
    %c0_42 = arith.constant 0 : index
    %c0_43 = arith.constant 0 : index
    %63 = vector.load %arg4[%c6, %c0_42, %c0_43] : memref<25x4x1xf32, #tpu.memory_space<vmem>>, vector<1x4x1xf32>
    %64 = vector.shape_cast %63 : vector<1x4x1xf32> to vector<4x1xf32>
    %65 = vector.broadcast %64 : vector<4x1xf32> to vector<4x256xf32>
    %66 = vector.broadcast %62 : vector<1x256xf32> to vector<4x256xf32>
    %67 = arith.mulf %65, %66 : vector<4x256xf32>
    %68 = arith.addf %59, %67 : vector<4x256xf32>
    %c2_44 = arith.constant 2 : index
    %c0_45 = arith.constant 0 : index
    %69 = vector.load %arg3[%c2_44, %c0_45] : memref<5x256xf32, #tpu.memory_space<vmem>>, vector<1x256xf32>
    %c0_46 = arith.constant 0 : index
    %c112 = arith.constant 112 : index
    %70 = vector.load %arg15[%c0_46, %c112] : memref<4x512xf32, #tpu.memory_space<vmem>>, vector<1x256xf32>
    %71 = arith.mulf %70, %69 : vector<1x256xf32>
    %c7 = arith.constant 7 : index
    %c0_47 = arith.constant 0 : index
    %c0_48 = arith.constant 0 : index
    %72 = vector.load %arg4[%c7, %c0_47, %c0_48] : memref<25x4x1xf32, #tpu.memory_space<vmem>>, vector<1x4x1xf32>
    %73 = vector.shape_cast %72 : vector<1x4x1xf32> to vector<4x1xf32>
    %74 = vector.broadcast %73 : vector<4x1xf32> to vector<4x256xf32>
    %75 = vector.broadcast %71 : vector<1x256xf32> to vector<4x256xf32>
    %76 = arith.mulf %74, %75 : vector<4x256xf32>
    %77 = arith.addf %68, %76 : vector<4x256xf32>
    %c3_49 = arith.constant 3 : index
    %c0_50 = arith.constant 0 : index
    %78 = vector.load %arg3[%c3_49, %c0_50] : memref<5x256xf32, #tpu.memory_space<vmem>>, vector<1x256xf32>
    %c0_51 = arith.constant 0 : index
    %c113 = arith.constant 113 : index
    %79 = vector.load %arg15[%c0_51, %c113] : memref<4x512xf32, #tpu.memory_space<vmem>>, vector<1x256xf32>
    %80 = arith.mulf %79, %78 : vector<1x256xf32>
    %c8 = arith.constant 8 : index
    %c0_52 = arith.constant 0 : index
    %c0_53 = arith.constant 0 : index
    %81 = vector.load %arg4[%c8, %c0_52, %c0_53] : memref<25x4x1xf32, #tpu.memory_space<vmem>>, vector<1x4x1xf32>
    %82 = vector.shape_cast %81 : vector<1x4x1xf32> to vector<4x1xf32>
    %83 = vector.broadcast %82 : vector<4x1xf32> to vector<4x256xf32>
    %84 = vector.broadcast %80 : vector<1x256xf32> to vector<4x256xf32>
    %85 = arith.mulf %83, %84 : vector<4x256xf32>
    %86 = arith.addf %77, %85 : vector<4x256xf32>
    %c4_54 = arith.constant 4 : index
    %c0_55 = arith.constant 0 : index
    %87 = vector.load %arg3[%c4_54, %c0_55] : memref<5x256xf32, #tpu.memory_space<vmem>>, vector<1x256xf32>
    %c0_56 = arith.constant 0 : index
    %c114 = arith.constant 114 : index
    %88 = vector.load %arg15[%c0_56, %c114] : memref<4x512xf32, #tpu.memory_space<vmem>>, vector<1x256xf32>
    %89 = arith.mulf %88, %87 : vector<1x256xf32>
    %c9 = arith.constant 9 : index
    %c0_57 = arith.constant 0 : index
    %c0_58 = arith.constant 0 : index
    %90 = vector.load %arg4[%c9, %c0_57, %c0_58] : memref<25x4x1xf32, #tpu.memory_space<vmem>>, vector<1x4x1xf32>
    %91 = vector.shape_cast %90 : vector<1x4x1xf32> to vector<4x1xf32>
    %92 = vector.broadcast %91 : vector<4x1xf32> to vector<4x256xf32>
    %93 = vector.broadcast %89 : vector<1x256xf32> to vector<4x256xf32>
    %94 = arith.mulf %92, %93 : vector<4x256xf32>
    %95 = arith.addf %86, %94 : vector<4x256xf32>
    %c0_59 = arith.constant 0 : index
    %c0_60 = arith.constant 0 : index
    %96 = vector.load %arg3[%c0_59, %c0_60] : memref<5x256xf32, #tpu.memory_space<vmem>>, vector<1x256xf32>
    %c0_61 = arith.constant 0 : index
    %c126 = arith.constant 126 : index
    %97 = vector.load %arg15[%c0_61, %c126] : memref<4x512xf32, #tpu.memory_space<vmem>>, vector<1x256xf32>
    %98 = arith.mulf %97, %96 : vector<1x256xf32>
    %c10 = arith.constant 10 : index
    %c0_62 = arith.constant 0 : index
    %c0_63 = arith.constant 0 : index
    %99 = vector.load %arg4[%c10, %c0_62, %c0_63] : memref<25x4x1xf32, #tpu.memory_space<vmem>>, vector<1x4x1xf32>
    %100 = vector.shape_cast %99 : vector<1x4x1xf32> to vector<4x1xf32>
    %101 = vector.broadcast %100 : vector<4x1xf32> to vector<4x256xf32>
    %102 = vector.broadcast %98 : vector<1x256xf32> to vector<4x256xf32>
    %103 = arith.mulf %101, %102 : vector<4x256xf32>
    %104 = arith.addf %95, %103 : vector<4x256xf32>
    %c1_64 = arith.constant 1 : index
    %c0_65 = arith.constant 0 : index
    %105 = vector.load %arg3[%c1_64, %c0_65] : memref<5x256xf32, #tpu.memory_space<vmem>>, vector<1x256xf32>
    %c0_66 = arith.constant 0 : index
    %c127 = arith.constant 127 : index
    %106 = vector.load %arg15[%c0_66, %c127] : memref<4x512xf32, #tpu.memory_space<vmem>>, vector<1x256xf32>
    %107 = arith.mulf %106, %105 : vector<1x256xf32>
    %c11 = arith.constant 11 : index
    %c0_67 = arith.constant 0 : index
    %c0_68 = arith.constant 0 : index
    %108 = vector.load %arg4[%c11, %c0_67, %c0_68] : memref<25x4x1xf32, #tpu.memory_space<vmem>>, vector<1x4x1xf32>
    %109 = vector.shape_cast %108 : vector<1x4x1xf32> to vector<4x1xf32>
    %110 = vector.broadcast %109 : vector<4x1xf32> to vector<4x256xf32>
    %111 = vector.broadcast %107 : vector<1x256xf32> to vector<4x256xf32>
    %112 = arith.mulf %110, %111 : vector<4x256xf32>
    %113 = arith.addf %104, %112 : vector<4x256xf32>
    %c2_69 = arith.constant 2 : index
    %c0_70 = arith.constant 0 : index
    %114 = vector.load %arg3[%c2_69, %c0_70] : memref<5x256xf32, #tpu.memory_space<vmem>>, vector<1x256xf32>
    %c0_71 = arith.constant 0 : index
    %c128_72 = arith.constant 128 : index
    %115 = vector.load %arg15[%c0_71, %c128_72] : memref<4x512xf32, #tpu.memory_space<vmem>>, vector<1x256xf32>
    %116 = arith.mulf %115, %114 : vector<1x256xf32>
    %c12 = arith.constant 12 : index
    %c0_73 = arith.constant 0 : index
    %c0_74 = arith.constant 0 : index
    %117 = vector.load %arg4[%c12, %c0_73, %c0_74] : memref<25x4x1xf32, #tpu.memory_space<vmem>>, vector<1x4x1xf32>
    %118 = vector.shape_cast %117 : vector<1x4x1xf32> to vector<4x1xf32>
    %119 = vector.broadcast %118 : vector<4x1xf32> to vector<4x256xf32>
    %120 = vector.broadcast %116 : vector<1x256xf32> to vector<4x256xf32>
    %121 = arith.mulf %119, %120 : vector<4x256xf32>
    %122 = arith.addf %113, %121 : vector<4x256xf32>
    %c3_75 = arith.constant 3 : index
    %c0_76 = arith.constant 0 : index
    %123 = vector.load %arg3[%c3_75, %c0_76] : memref<5x256xf32, #tpu.memory_space<vmem>>, vector<1x256xf32>
    %c0_77 = arith.constant 0 : index
    %c129 = arith.constant 129 : index
    %124 = vector.load %arg15[%c0_77, %c129] : memref<4x512xf32, #tpu.memory_space<vmem>>, vector<1x256xf32>
    %125 = arith.mulf %124, %123 : vector<1x256xf32>
    %c13 = arith.constant 13 : index
    %c0_78 = arith.constant 0 : index
    %c0_79 = arith.constant 0 : index
    %126 = vector.load %arg4[%c13, %c0_78, %c0_79] : memref<25x4x1xf32, #tpu.memory_space<vmem>>, vector<1x4x1xf32>
    %127 = vector.shape_cast %126 : vector<1x4x1xf32> to vector<4x1xf32>
    %128 = vector.broadcast %127 : vector<4x1xf32> to vector<4x256xf32>
    %129 = vector.broadcast %125 : vector<1x256xf32> to vector<4x256xf32>
    %130 = arith.mulf %128, %129 : vector<4x256xf32>
    %131 = arith.addf %122, %130 : vector<4x256xf32>
    %c4_80 = arith.constant 4 : index
    %c0_81 = arith.constant 0 : index
    %132 = vector.load %arg3[%c4_80, %c0_81] : memref<5x256xf32, #tpu.memory_space<vmem>>, vector<1x256xf32>
    %c0_82 = arith.constant 0 : index
    %c130 = arith.constant 130 : index
    %133 = vector.load %arg15[%c0_82, %c130] : memref<4x512xf32, #tpu.memory_space<vmem>>, vector<1x256xf32>
    %134 = arith.mulf %133, %132 : vector<1x256xf32>
    %c14 = arith.constant 14 : index
    %c0_83 = arith.constant 0 : index
    %c0_84 = arith.constant 0 : index
    %135 = vector.load %arg4[%c14, %c0_83, %c0_84] : memref<25x4x1xf32, #tpu.memory_space<vmem>>, vector<1x4x1xf32>
    %136 = vector.shape_cast %135 : vector<1x4x1xf32> to vector<4x1xf32>
    %137 = vector.broadcast %136 : vector<4x1xf32> to vector<4x256xf32>
    %138 = vector.broadcast %134 : vector<1x256xf32> to vector<4x256xf32>
    %139 = arith.mulf %137, %138 : vector<4x256xf32>
    %140 = arith.addf %131, %139 : vector<4x256xf32>
    %c0_85 = arith.constant 0 : index
    %c0_86 = arith.constant 0 : index
    %141 = vector.load %arg3[%c0_85, %c0_86] : memref<5x256xf32, #tpu.memory_space<vmem>>, vector<1x256xf32>
    %c0_87 = arith.constant 0 : index
    %c142 = arith.constant 142 : index
    %142 = vector.load %arg15[%c0_87, %c142] : memref<4x512xf32, #tpu.memory_space<vmem>>, vector<1x256xf32>
    %143 = arith.mulf %142, %141 : vector<1x256xf32>
    %c15 = arith.constant 15 : index
    %c0_88 = arith.constant 0 : index
    %c0_89 = arith.constant 0 : index
    %144 = vector.load %arg4[%c15, %c0_88, %c0_89] : memref<25x4x1xf32, #tpu.memory_space<vmem>>, vector<1x4x1xf32>
    %145 = vector.shape_cast %144 : vector<1x4x1xf32> to vector<4x1xf32>
    %146 = vector.broadcast %145 : vector<4x1xf32> to vector<4x256xf32>
    %147 = vector.broadcast %143 : vector<1x256xf32> to vector<4x256xf32>
    %148 = arith.mulf %146, %147 : vector<4x256xf32>
    %149 = arith.addf %140, %148 : vector<4x256xf32>
    %c1_90 = arith.constant 1 : index
    %c0_91 = arith.constant 0 : index
    %150 = vector.load %arg3[%c1_90, %c0_91] : memref<5x256xf32, #tpu.memory_space<vmem>>, vector<1x256xf32>
    %c0_92 = arith.constant 0 : index
    %c143 = arith.constant 143 : index
    %151 = vector.load %arg15[%c0_92, %c143] : memref<4x512xf32, #tpu.memory_space<vmem>>, vector<1x256xf32>
    %152 = arith.mulf %151, %150 : vector<1x256xf32>
    %c16 = arith.constant 16 : index
    %c0_93 = arith.constant 0 : index
    %c0_94 = arith.constant 0 : index
    %153 = vector.load %arg4[%c16, %c0_93, %c0_94] : memref<25x4x1xf32, #tpu.memory_space<vmem>>, vector<1x4x1xf32>
    %154 = vector.shape_cast %153 : vector<1x4x1xf32> to vector<4x1xf32>
    %155 = vector.broadcast %154 : vector<4x1xf32> to vector<4x256xf32>
    %156 = vector.broadcast %152 : vector<1x256xf32> to vector<4x256xf32>
    %157 = arith.mulf %155, %156 : vector<4x256xf32>
    %158 = arith.addf %149, %157 : vector<4x256xf32>
    %c2_95 = arith.constant 2 : index
    %c0_96 = arith.constant 0 : index
    %159 = vector.load %arg3[%c2_95, %c0_96] : memref<5x256xf32, #tpu.memory_space<vmem>>, vector<1x256xf32>
    %c0_97 = arith.constant 0 : index
    %c144 = arith.constant 144 : index
    %160 = vector.load %arg15[%c0_97, %c144] : memref<4x512xf32, #tpu.memory_space<vmem>>, vector<1x256xf32>
    %161 = arith.mulf %160, %159 : vector<1x256xf32>
    %c17 = arith.constant 17 : index
    %c0_98 = arith.constant 0 : index
    %c0_99 = arith.constant 0 : index
    %162 = vector.load %arg4[%c17, %c0_98, %c0_99] : memref<25x4x1xf32, #tpu.memory_space<vmem>>, vector<1x4x1xf32>
    %163 = vector.shape_cast %162 : vector<1x4x1xf32> to vector<4x1xf32>
    %164 = vector.broadcast %163 : vector<4x1xf32> to vector<4x256xf32>
    %165 = vector.broadcast %161 : vector<1x256xf32> to vector<4x256xf32>
    %166 = arith.mulf %164, %165 : vector<4x256xf32>
    %167 = arith.addf %158, %166 : vector<4x256xf32>
    %c3_100 = arith.constant 3 : index
    %c0_101 = arith.constant 0 : index
    %168 = vector.load %arg3[%c3_100, %c0_101] : memref<5x256xf32, #tpu.memory_space<vmem>>, vector<1x256xf32>
    %c0_102 = arith.constant 0 : index
    %c145 = arith.constant 145 : index
    %169 = vector.load %arg15[%c0_102, %c145] : memref<4x512xf32, #tpu.memory_space<vmem>>, vector<1x256xf32>
    %170 = arith.mulf %169, %168 : vector<1x256xf32>
    %c18 = arith.constant 18 : index
    %c0_103 = arith.constant 0 : index
    %c0_104 = arith.constant 0 : index
    %171 = vector.load %arg4[%c18, %c0_103, %c0_104] : memref<25x4x1xf32, #tpu.memory_space<vmem>>, vector<1x4x1xf32>
    %172 = vector.shape_cast %171 : vector<1x4x1xf32> to vector<4x1xf32>
    %173 = vector.broadcast %172 : vector<4x1xf32> to vector<4x256xf32>
    %174 = vector.broadcast %170 : vector<1x256xf32> to vector<4x256xf32>
    %175 = arith.mulf %173, %174 : vector<4x256xf32>
    %176 = arith.addf %167, %175 : vector<4x256xf32>
    %c4_105 = arith.constant 4 : index
    %c0_106 = arith.constant 0 : index
    %177 = vector.load %arg3[%c4_105, %c0_106] : memref<5x256xf32, #tpu.memory_space<vmem>>, vector<1x256xf32>
    %c0_107 = arith.constant 0 : index
    %c146 = arith.constant 146 : index
    %178 = vector.load %arg15[%c0_107, %c146] : memref<4x512xf32, #tpu.memory_space<vmem>>, vector<1x256xf32>
    %179 = arith.mulf %178, %177 : vector<1x256xf32>
    %c19 = arith.constant 19 : index
    %c0_108 = arith.constant 0 : index
    %c0_109 = arith.constant 0 : index
    %180 = vector.load %arg4[%c19, %c0_108, %c0_109] : memref<25x4x1xf32, #tpu.memory_space<vmem>>, vector<1x4x1xf32>
    %181 = vector.shape_cast %180 : vector<1x4x1xf32> to vector<4x1xf32>
    %182 = vector.broadcast %181 : vector<4x1xf32> to vector<4x256xf32>
    %183 = vector.broadcast %179 : vector<1x256xf32> to vector<4x256xf32>
    %184 = arith.mulf %182, %183 : vector<4x256xf32>
    %185 = arith.addf %176, %184 : vector<4x256xf32>
    %c0_110 = arith.constant 0 : index
    %c0_111 = arith.constant 0 : index
    %186 = vector.load %arg3[%c0_110, %c0_111] : memref<5x256xf32, #tpu.memory_space<vmem>>, vector<1x256xf32>
    %c0_112 = arith.constant 0 : index
    %c158 = arith.constant 158 : index
    %187 = vector.load %arg15[%c0_112, %c158] : memref<4x512xf32, #tpu.memory_space<vmem>>, vector<1x256xf32>
    %188 = arith.mulf %187, %186 : vector<1x256xf32>
    %c20 = arith.constant 20 : index
    %c0_113 = arith.constant 0 : index
    %c0_114 = arith.constant 0 : index
    %189 = vector.load %arg4[%c20, %c0_113, %c0_114] : memref<25x4x1xf32, #tpu.memory_space<vmem>>, vector<1x4x1xf32>
    %190 = vector.shape_cast %189 : vector<1x4x1xf32> to vector<4x1xf32>
    %191 = vector.broadcast %190 : vector<4x1xf32> to vector<4x256xf32>
    %192 = vector.broadcast %188 : vector<1x256xf32> to vector<4x256xf32>
    %193 = arith.mulf %191, %192 : vector<4x256xf32>
    %194 = arith.addf %185, %193 : vector<4x256xf32>
    %c1_115 = arith.constant 1 : index
    %c0_116 = arith.constant 0 : index
    %195 = vector.load %arg3[%c1_115, %c0_116] : memref<5x256xf32, #tpu.memory_space<vmem>>, vector<1x256xf32>
    %c0_117 = arith.constant 0 : index
    %c159 = arith.constant 159 : index
    %196 = vector.load %arg15[%c0_117, %c159] : memref<4x512xf32, #tpu.memory_space<vmem>>, vector<1x256xf32>
    %197 = arith.mulf %196, %195 : vector<1x256xf32>
    %c21 = arith.constant 21 : index
    %c0_118 = arith.constant 0 : index
    %c0_119 = arith.constant 0 : index
    %198 = vector.load %arg4[%c21, %c0_118, %c0_119] : memref<25x4x1xf32, #tpu.memory_space<vmem>>, vector<1x4x1xf32>
    %199 = vector.shape_cast %198 : vector<1x4x1xf32> to vector<4x1xf32>
    %200 = vector.broadcast %199 : vector<4x1xf32> to vector<4x256xf32>
    %201 = vector.broadcast %197 : vector<1x256xf32> to vector<4x256xf32>
    %202 = arith.mulf %200, %201 : vector<4x256xf32>
    %203 = arith.addf %194, %202 : vector<4x256xf32>
    %c2_120 = arith.constant 2 : index
    %c0_121 = arith.constant 0 : index
    %204 = vector.load %arg3[%c2_120, %c0_121] : memref<5x256xf32, #tpu.memory_space<vmem>>, vector<1x256xf32>
    %c0_122 = arith.constant 0 : index
    %c160 = arith.constant 160 : index
    %205 = vector.load %arg15[%c0_122, %c160] : memref<4x512xf32, #tpu.memory_space<vmem>>, vector<1x256xf32>
    %206 = arith.mulf %205, %204 : vector<1x256xf32>
    %c22 = arith.constant 22 : index
    %c0_123 = arith.constant 0 : index
    %c0_124 = arith.constant 0 : index
    %207 = vector.load %arg4[%c22, %c0_123, %c0_124] : memref<25x4x1xf32, #tpu.memory_space<vmem>>, vector<1x4x1xf32>
    %208 = vector.shape_cast %207 : vector<1x4x1xf32> to vector<4x1xf32>
    %209 = vector.broadcast %208 : vector<4x1xf32> to vector<4x256xf32>
    %210 = vector.broadcast %206 : vector<1x256xf32> to vector<4x256xf32>
    %211 = arith.mulf %209, %210 : vector<4x256xf32>
    %212 = arith.addf %203, %211 : vector<4x256xf32>
    %c3_125 = arith.constant 3 : index
    %c0_126 = arith.constant 0 : index
    %213 = vector.load %arg3[%c3_125, %c0_126] : memref<5x256xf32, #tpu.memory_space<vmem>>, vector<1x256xf32>
    %c0_127 = arith.constant 0 : index
    %c161 = arith.constant 161 : index
    %214 = vector.load %arg15[%c0_127, %c161] : memref<4x512xf32, #tpu.memory_space<vmem>>, vector<1x256xf32>
    %215 = arith.mulf %214, %213 : vector<1x256xf32>
    %c23 = arith.constant 23 : index
    %c0_128 = arith.constant 0 : index
    %c0_129 = arith.constant 0 : index
    %216 = vector.load %arg4[%c23, %c0_128, %c0_129] : memref<25x4x1xf32, #tpu.memory_space<vmem>>, vector<1x4x1xf32>
    %217 = vector.shape_cast %216 : vector<1x4x1xf32> to vector<4x1xf32>
    %218 = vector.broadcast %217 : vector<4x1xf32> to vector<4x256xf32>
    %219 = vector.broadcast %215 : vector<1x256xf32> to vector<4x256xf32>
    %220 = arith.mulf %218, %219 : vector<4x256xf32>
    %221 = arith.addf %212, %220 : vector<4x256xf32>
    %c4_130 = arith.constant 4 : index
    %c0_131 = arith.constant 0 : index
    %222 = vector.load %arg3[%c4_130, %c0_131] : memref<5x256xf32, #tpu.memory_space<vmem>>, vector<1x256xf32>
    %c0_132 = arith.constant 0 : index
    %c162 = arith.constant 162 : index
    %223 = vector.load %arg15[%c0_132, %c162] : memref<4x512xf32, #tpu.memory_space<vmem>>, vector<1x256xf32>
    %224 = arith.mulf %223, %222 : vector<1x256xf32>
    %c24 = arith.constant 24 : index
    %c0_133 = arith.constant 0 : index
    %c0_134 = arith.constant 0 : index
    %225 = vector.load %arg4[%c24, %c0_133, %c0_134] : memref<25x4x1xf32, #tpu.memory_space<vmem>>, vector<1x4x1xf32>
    %226 = vector.shape_cast %225 : vector<1x4x1xf32> to vector<4x1xf32>
    %227 = vector.broadcast %226 : vector<4x1xf32> to vector<4x256xf32>
    %228 = vector.broadcast %224 : vector<1x256xf32> to vector<4x256xf32>
    %229 = arith.mulf %227, %228 : vector<4x256xf32>
    %230 = arith.addf %221, %229 : vector<4x256xf32>
    %c0_135 = arith.constant 0 : index
    %c0_136 = arith.constant 0 : index
    %231 = vector.load %arg5[%c0_135, %c0_136] : memref<4x1xf32, #tpu.memory_space<vmem>>, vector<4x1xf32>
    %232 = vector.broadcast %231 : vector<4x1xf32> to vector<4x256xf32>
    %233 = arith.addf %230, %232 : vector<4x256xf32>
    %cst_137 = arith.constant 0.000000e+00 : f32
    %234 = vector.broadcast %cst_137 : f32 to vector<4x256xf32>
    %235 = arith.maximumf %233, %234 : vector<4x256xf32>
    %c0_138 = arith.constant 0 : index
    %c128_139 = arith.constant 128 : index
    %236 = vector.load %arg15[%c0_138, %c128_139] : memref<4x512xf32, #tpu.memory_space<vmem>>, vector<4x256xf32>
    tpu.vector_store %arg15[%c0_138, %c128_139], %235 {strides = array<i32>} : memref<4x512xf32, #tpu.memory_space<vmem>>, vector<4x256xf32>,
    %c1_140 = arith.constant 1 : index
    %c0_141 = arith.constant 0 : index
    %237 = vector.load %arg3[%c1_140, %c0_141] : memref<5x256xf32, #tpu.memory_space<vmem>>, vector<1x256xf32>
    %c0_142 = arith.constant 0 : index
    %c111_143 = arith.constant 111 : index
    %238 = vector.load %arg15[%c0_142, %c111_143] : memref<4x512xf32, #tpu.memory_space<vmem>>, vector<4x256xf32>
    %239 = vector.broadcast %237 : vector<1x256xf32> to vector<4x256xf32>
    %240 = arith.mulf %238, %239 : vector<4x256xf32>
    %c0_144 = arith.constant 0 : index
    %c0_145 = arith.constant 0 : index
    %c0_146 = arith.constant 0 : index
    %241 = vector.load %arg6[%c0_144, %c0_145, %c0_146] : memref<9x4x4xf32, #tpu.memory_space<vmem>>, vector<1x4x4xf32>
    %242 = vector.shape_cast %241 : vector<1x4x4xf32> to vector<4x4xf32>
    %cst_147 = arith.constant dense<0.000000e+00> : vector<4x256xf32>
    %243 = tpu.matmul %242, %240, %cst_147 {dimension_numbers = #tpu.dot_dimension_numbers<[1], [0], [0], [1], [0, 0, 1, 1], [], []>} : vector<4x4xf32>, vector<4x256xf32>, vector<4x256xf32> -> vector<4x256xf32>
    %c2_148 = arith.constant 2 : index
    %c0_149 = arith.constant 0 : index
    %244 = vector.load %arg3[%c2_148, %c0_149] : memref<5x256xf32, #tpu.memory_space<vmem>>, vector<1x256xf32>
    %c0_150 = arith.constant 0 : index
    %c112_151 = arith.constant 112 : index
    %245 = vector.load %arg15[%c0_150, %c112_151] : memref<4x512xf32, #tpu.memory_space<vmem>>, vector<4x256xf32>
    %246 = vector.broadcast %244 : vector<1x256xf32> to vector<4x256xf32>
    %247 = arith.mulf %245, %246 : vector<4x256xf32>
    %c1_152 = arith.constant 1 : index
    %c0_153 = arith.constant 0 : index
    %c0_154 = arith.constant 0 : index
    %248 = vector.load %arg6[%c1_152, %c0_153, %c0_154] : memref<9x4x4xf32, #tpu.memory_space<vmem>>, vector<1x4x4xf32>
    %249 = vector.shape_cast %248 : vector<1x4x4xf32> to vector<4x4xf32>
    %cst_155 = arith.constant dense<0.000000e+00> : vector<4x256xf32>
    %250 = tpu.matmul %249, %247, %cst_155 {dimension_numbers = #tpu.dot_dimension_numbers<[1], [0], [0], [1], [0, 0, 1, 1], [], []>} : vector<4x4xf32>, vector<4x256xf32>, vector<4x256xf32> -> vector<4x256xf32>
    %251 = arith.addf %243, %250 : vector<4x256xf32>
    %c3_156 = arith.constant 3 : index
    %c0_157 = arith.constant 0 : index
    %252 = vector.load %arg3[%c3_156, %c0_157] : memref<5x256xf32, #tpu.memory_space<vmem>>, vector<1x256xf32>
    %c0_158 = arith.constant 0 : index
    %c113_159 = arith.constant 113 : index
    %253 = vector.load %arg15[%c0_158, %c113_159] : memref<4x512xf32, #tpu.memory_space<vmem>>, vector<4x256xf32>
    %254 = vector.broadcast %252 : vector<1x256xf32> to vector<4x256xf32>
    %255 = arith.mulf %253, %254 : vector<4x256xf32>
    %c2_160 = arith.constant 2 : index
    %c0_161 = arith.constant 0 : index
    %c0_162 = arith.constant 0 : index
    %256 = vector.load %arg6[%c2_160, %c0_161, %c0_162] : memref<9x4x4xf32, #tpu.memory_space<vmem>>, vector<1x4x4xf32>
    %257 = vector.shape_cast %256 : vector<1x4x4xf32> to vector<4x4xf32>
    %cst_163 = arith.constant dense<0.000000e+00> : vector<4x256xf32>
    %258 = tpu.matmul %257, %255, %cst_163 {dimension_numbers = #tpu.dot_dimension_numbers<[1], [0], [0], [1], [0, 0, 1, 1], [], []>} : vector<4x4xf32>, vector<4x256xf32>, vector<4x256xf32> -> vector<4x256xf32>
    %259 = arith.addf %251, %258 : vector<4x256xf32>
    %c1_164 = arith.constant 1 : index
    %c0_165 = arith.constant 0 : index
    %260 = vector.load %arg3[%c1_164, %c0_165] : memref<5x256xf32, #tpu.memory_space<vmem>>, vector<1x256xf32>
    %c0_166 = arith.constant 0 : index
    %c127_167 = arith.constant 127 : index
    %261 = vector.load %arg15[%c0_166, %c127_167] : memref<4x512xf32, #tpu.memory_space<vmem>>, vector<4x256xf32>
    %262 = vector.broadcast %260 : vector<1x256xf32> to vector<4x256xf32>
    %263 = arith.mulf %261, %262 : vector<4x256xf32>
    %c3_168 = arith.constant 3 : index
    %c0_169 = arith.constant 0 : index
    %c0_170 = arith.constant 0 : index
    %264 = vector.load %arg6[%c3_168, %c0_169, %c0_170] : memref<9x4x4xf32, #tpu.memory_space<vmem>>, vector<1x4x4xf32>
    %265 = vector.shape_cast %264 : vector<1x4x4xf32> to vector<4x4xf32>
    %cst_171 = arith.constant dense<0.000000e+00> : vector<4x256xf32>
    %266 = tpu.matmul %265, %263, %cst_171 {dimension_numbers = #tpu.dot_dimension_numbers<[1], [0], [0], [1], [0, 0, 1, 1], [], []>} : vector<4x4xf32>, vector<4x256xf32>, vector<4x256xf32> -> vector<4x256xf32>
    %267 = arith.addf %259, %266 : vector<4x256xf32>
    %c2_172 = arith.constant 2 : index
    %c0_173 = arith.constant 0 : index
    %268 = vector.load %arg3[%c2_172, %c0_173] : memref<5x256xf32, #tpu.memory_space<vmem>>, vector<1x256xf32>
    %c0_174 = arith.constant 0 : index
    %c128_175 = arith.constant 128 : index
    %269 = vector.load %arg15[%c0_174, %c128_175] : memref<4x512xf32, #tpu.memory_space<vmem>>, vector<4x256xf32>
    %270 = vector.broadcast %268 : vector<1x256xf32> to vector<4x256xf32>
    %271 = arith.mulf %269, %270 : vector<4x256xf32>
    %c4_176 = arith.constant 4 : index
    %c0_177 = arith.constant 0 : index
    %c0_178 = arith.constant 0 : index
    %272 = vector.load %arg6[%c4_176, %c0_177, %c0_178] : memref<9x4x4xf32, #tpu.memory_space<vmem>>, vector<1x4x4xf32>
    %273 = vector.shape_cast %272 : vector<1x4x4xf32> to vector<4x4xf32>
    %cst_179 = arith.constant dense<0.000000e+00> : vector<4x256xf32>
    %274 = tpu.matmul %273, %271, %cst_179 {dimension_numbers = #tpu.dot_dimension_numbers<[1], [0], [0], [1], [0, 0, 1, 1], [], []>} : vector<4x4xf32>, vector<4x256xf32>, vector<4x256xf32> -> vector<4x256xf32>
    %275 = arith.addf %267, %274 : vector<4x256xf32>
    %c3_180 = arith.constant 3 : index
    %c0_181 = arith.constant 0 : index
    %276 = vector.load %arg3[%c3_180, %c0_181] : memref<5x256xf32, #tpu.memory_space<vmem>>, vector<1x256xf32>
    %c0_182 = arith.constant 0 : index
    %c129_183 = arith.constant 129 : index
    %277 = vector.load %arg15[%c0_182, %c129_183] : memref<4x512xf32, #tpu.memory_space<vmem>>, vector<4x256xf32>
    %278 = vector.broadcast %276 : vector<1x256xf32> to vector<4x256xf32>
    %279 = arith.mulf %277, %278 : vector<4x256xf32>
    %c5_184 = arith.constant 5 : index
    %c0_185 = arith.constant 0 : index
    %c0_186 = arith.constant 0 : index
    %280 = vector.load %arg6[%c5_184, %c0_185, %c0_186] : memref<9x4x4xf32, #tpu.memory_space<vmem>>, vector<1x4x4xf32>
    %281 = vector.shape_cast %280 : vector<1x4x4xf32> to vector<4x4xf32>
    %cst_187 = arith.constant dense<0.000000e+00> : vector<4x256xf32>
    %282 = tpu.matmul %281, %279, %cst_187 {dimension_numbers = #tpu.dot_dimension_numbers<[1], [0], [0], [1], [0, 0, 1, 1], [], []>} : vector<4x4xf32>, vector<4x256xf32>, vector<4x256xf32> -> vector<4x256xf32>
    %283 = arith.addf %275, %282 : vector<4x256xf32>
    %c1_188 = arith.constant 1 : index
    %c0_189 = arith.constant 0 : index
    %284 = vector.load %arg3[%c1_188, %c0_189] : memref<5x256xf32, #tpu.memory_space<vmem>>, vector<1x256xf32>
    %c0_190 = arith.constant 0 : index
    %c143_191 = arith.constant 143 : index
    %285 = vector.load %arg15[%c0_190, %c143_191] : memref<4x512xf32, #tpu.memory_space<vmem>>, vector<4x256xf32>
    %286 = vector.broadcast %284 : vector<1x256xf32> to vector<4x256xf32>
    %287 = arith.mulf %285, %286 : vector<4x256xf32>
    %c6_192 = arith.constant 6 : index
    %c0_193 = arith.constant 0 : index
    %c0_194 = arith.constant 0 : index
    %288 = vector.load %arg6[%c6_192, %c0_193, %c0_194] : memref<9x4x4xf32, #tpu.memory_space<vmem>>, vector<1x4x4xf32>
    %289 = vector.shape_cast %288 : vector<1x4x4xf32> to vector<4x4xf32>
    %cst_195 = arith.constant dense<0.000000e+00> : vector<4x256xf32>
    %290 = tpu.matmul %289, %287, %cst_195 {dimension_numbers = #tpu.dot_dimension_numbers<[1], [0], [0], [1], [0, 0, 1, 1], [], []>} : vector<4x4xf32>, vector<4x256xf32>, vector<4x256xf32> -> vector<4x256xf32>
    %291 = arith.addf %283, %290 : vector<4x256xf32>
    %c2_196 = arith.constant 2 : index
    %c0_197 = arith.constant 0 : index
    %292 = vector.load %arg3[%c2_196, %c0_197] : memref<5x256xf32, #tpu.memory_space<vmem>>, vector<1x256xf32>
    %c0_198 = arith.constant 0 : index
    %c144_199 = arith.constant 144 : index
    %293 = vector.load %arg15[%c0_198, %c144_199] : memref<4x512xf32, #tpu.memory_space<vmem>>, vector<4x256xf32>
    %294 = vector.broadcast %292 : vector<1x256xf32> to vector<4x256xf32>
    %295 = arith.mulf %293, %294 : vector<4x256xf32>
    %c7_200 = arith.constant 7 : index
    %c0_201 = arith.constant 0 : index
    %c0_202 = arith.constant 0 : index
    %296 = vector.load %arg6[%c7_200, %c0_201, %c0_202] : memref<9x4x4xf32, #tpu.memory_space<vmem>>, vector<1x4x4xf32>
    %297 = vector.shape_cast %296 : vector<1x4x4xf32> to vector<4x4xf32>
    %cst_203 = arith.constant dense<0.000000e+00> : vector<4x256xf32>
    %298 = tpu.matmul %297, %295, %cst_203 {dimension_numbers = #tpu.dot_dimension_numbers<[1], [0], [0], [1], [0, 0, 1, 1], [], []>} : vector<4x4xf32>, vector<4x256xf32>, vector<4x256xf32> -> vector<4x256xf32>
    %299 = arith.addf %291, %298 : vector<4x256xf32>
    %c3_204 = arith.constant 3 : index
    %c0_205 = arith.constant 0 : index
    %300 = vector.load %arg3[%c3_204, %c0_205] : memref<5x256xf32, #tpu.memory_space<vmem>>, vector<1x256xf32>
    %c0_206 = arith.constant 0 : index
    %c145_207 = arith.constant 145 : index
    %301 = vector.load %arg15[%c0_206, %c145_207] : memref<4x512xf32, #tpu.memory_space<vmem>>, vector<4x256xf32>
    %302 = vector.broadcast %300 : vector<1x256xf32> to vector<4x256xf32>
    %303 = arith.mulf %301, %302 : vector<4x256xf32>
    %c8_208 = arith.constant 8 : index
    %c0_209 = arith.constant 0 : index
    %c0_210 = arith.constant 0 : index
    %304 = vector.load %arg6[%c8_208, %c0_209, %c0_210] : memref<9x4x4xf32, #tpu.memory_space<vmem>>, vector<1x4x4xf32>
    %305 = vector.shape_cast %304 : vector<1x4x4xf32> to vector<4x4xf32>
    %cst_211 = arith.constant dense<0.000000e+00> : vector<4x256xf32>
    %306 = tpu.matmul %305, %303, %cst_211 {dimension_numbers = #tpu.dot_dimension_numbers<[1], [0], [0], [1], [0, 0, 1, 1], [], []>} : vector<4x4xf32>, vector<4x256xf32>, vector<4x256xf32> -> vector<4x256xf32>
    %307 = arith.addf %299, %306 : vector<4x256xf32>
    %c0_212 = arith.constant 0 : index
    %c0_213 = arith.constant 0 : index
    %308 = vector.load %arg7[%c0_212, %c0_213] : memref<4x1xf32, #tpu.memory_space<vmem>>, vector<4x1xf32>
    %309 = vector.broadcast %308 : vector<4x1xf32> to vector<4x256xf32>
    %310 = arith.addf %307, %309 : vector<4x256xf32>
    %c0_214 = arith.constant 0 : index
    %c128_215 = arith.constant 128 : index
    %311 = vector.load %arg15[%c0_214, %c128_215] : memref<4x512xf32, #tpu.memory_space<vmem>>, vector<4x256xf32>
    tpu.vector_store %arg15[%c0_214, %c128_215], %310 {strides = array<i32>} : memref<4x512xf32, #tpu.memory_space<vmem>>, vector<4x256xf32>,
    %c1_216 = arith.constant 1 : index
    %c0_217 = arith.constant 0 : index
    %312 = vector.load %arg3[%c1_216, %c0_217] : memref<5x256xf32, #tpu.memory_space<vmem>>, vector<1x256xf32>
    %c0_218 = arith.constant 0 : index
    %c111_219 = arith.constant 111 : index
    %313 = vector.load %arg15[%c0_218, %c111_219] : memref<4x512xf32, #tpu.memory_space<vmem>>, vector<4x256xf32>
    %314 = vector.broadcast %312 : vector<1x256xf32> to vector<4x256xf32>
    %315 = arith.mulf %313, %314 : vector<4x256xf32>
    %c0_220 = arith.constant 0 : index
    %c0_221 = arith.constant 0 : index
    %c0_222 = arith.constant 0 : index
    %316 = vector.load %arg8[%c0_220, %c0_221, %c0_222] : memref<9x4x4xf32, #tpu.memory_space<vmem>>, vector<1x4x4xf32>
    %317 = vector.shape_cast %316 : vector<1x4x4xf32> to vector<4x4xf32>
    %cst_223 = arith.constant dense<0.000000e+00> : vector<4x256xf32>
    %318 = tpu.matmul %317, %315, %cst_223 {dimension_numbers = #tpu.dot_dimension_numbers<[1], [0], [0], [1], [0, 0, 1, 1], [], []>} : vector<4x4xf32>, vector<4x256xf32>, vector<4x256xf32> -> vector<4x256xf32>
    %c2_224 = arith.constant 2 : index
    %c0_225 = arith.constant 0 : index
    %319 = vector.load %arg3[%c2_224, %c0_225] : memref<5x256xf32, #tpu.memory_space<vmem>>, vector<1x256xf32>
    %c0_226 = arith.constant 0 : index
    %c112_227 = arith.constant 112 : index
    %320 = vector.load %arg15[%c0_226, %c112_227] : memref<4x512xf32, #tpu.memory_space<vmem>>, vector<4x256xf32>
    %321 = vector.broadcast %319 : vector<1x256xf32> to vector<4x256xf32>
    %322 = arith.mulf %320, %321 : vector<4x256xf32>
    %c1_228 = arith.constant 1 : index
    %c0_229 = arith.constant 0 : index
    %c0_230 = arith.constant 0 : index
    %323 = vector.load %arg8[%c1_228, %c0_229, %c0_230] : memref<9x4x4xf32, #tpu.memory_space<vmem>>, vector<1x4x4xf32>
    %324 = vector.shape_cast %323 : vector<1x4x4xf32> to vector<4x4xf32>
    %cst_231 = arith.constant dense<0.000000e+00> : vector<4x256xf32>
    %325 = tpu.matmul %324, %322, %cst_231 {dimension_numbers = #tpu.dot_dimension_numbers<[1], [0], [0], [1], [0, 0, 1, 1], [], []>} : vector<4x4xf32>, vector<4x256xf32>, vector<4x256xf32> -> vector<4x256xf32>
    %326 = arith.addf %318, %325 : vector<4x256xf32>
    %c3_232 = arith.constant 3 : index
    %c0_233 = arith.constant 0 : index
    %327 = vector.load %arg3[%c3_232, %c0_233] : memref<5x256xf32, #tpu.memory_space<vmem>>, vector<1x256xf32>
    %c0_234 = arith.constant 0 : index
    %c113_235 = arith.constant 113 : index
    %328 = vector.load %arg15[%c0_234, %c113_235] : memref<4x512xf32, #tpu.memory_space<vmem>>, vector<4x256xf32>
    %329 = vector.broadcast %327 : vector<1x256xf32> to vector<4x256xf32>
    %330 = arith.mulf %328, %329 : vector<4x256xf32>
    %c2_236 = arith.constant 2 : index
    %c0_237 = arith.constant 0 : index
    %c0_238 = arith.constant 0 : index
    %331 = vector.load %arg8[%c2_236, %c0_237, %c0_238] : memref<9x4x4xf32, #tpu.memory_space<vmem>>, vector<1x4x4xf32>
    %332 = vector.shape_cast %331 : vector<1x4x4xf32> to vector<4x4xf32>
    %cst_239 = arith.constant dense<0.000000e+00> : vector<4x256xf32>
    %333 = tpu.matmul %332, %330, %cst_239 {dimension_numbers = #tpu.dot_dimension_numbers<[1], [0], [0], [1], [0, 0, 1, 1], [], []>} : vector<4x4xf32>, vector<4x256xf32>, vector<4x256xf32> -> vector<4x256xf32>
    %334 = arith.addf %326, %333 : vector<4x256xf32>
    %c1_240 = arith.constant 1 : index
    %c0_241 = arith.constant 0 : index
    %335 = vector.load %arg3[%c1_240, %c0_241] : memref<5x256xf32, #tpu.memory_space<vmem>>, vector<1x256xf32>
    %c0_242 = arith.constant 0 : index
    %c127_243 = arith.constant 127 : index
    %336 = vector.load %arg15[%c0_242, %c127_243] : memref<4x512xf32, #tpu.memory_space<vmem>>, vector<4x256xf32>
    %337 = vector.broadcast %335 : vector<1x256xf32> to vector<4x256xf32>
    %338 = arith.mulf %336, %337 : vector<4x256xf32>
    %c3_244 = arith.constant 3 : index
    %c0_245 = arith.constant 0 : index
    %c0_246 = arith.constant 0 : index
    %339 = vector.load %arg8[%c3_244, %c0_245, %c0_246] : memref<9x4x4xf32, #tpu.memory_space<vmem>>, vector<1x4x4xf32>
    %340 = vector.shape_cast %339 : vector<1x4x4xf32> to vector<4x4xf32>
    %cst_247 = arith.constant dense<0.000000e+00> : vector<4x256xf32>
    %341 = tpu.matmul %340, %338, %cst_247 {dimension_numbers = #tpu.dot_dimension_numbers<[1], [0], [0], [1], [0, 0, 1, 1], [], []>} : vector<4x4xf32>, vector<4x256xf32>, vector<4x256xf32> -> vector<4x256xf32>
    %342 = arith.addf %334, %341 : vector<4x256xf32>
    %c2_248 = arith.constant 2 : index
    %c0_249 = arith.constant 0 : index
    %343 = vector.load %arg3[%c2_248, %c0_249] : memref<5x256xf32, #tpu.memory_space<vmem>>, vector<1x256xf32>
    %c0_250 = arith.constant 0 : index
    %c128_251 = arith.constant 128 : index
    %344 = vector.load %arg15[%c0_250, %c128_251] : memref<4x512xf32, #tpu.memory_space<vmem>>, vector<4x256xf32>
    %345 = vector.broadcast %343 : vector<1x256xf32> to vector<4x256xf32>
    %346 = arith.mulf %344, %345 : vector<4x256xf32>
    %c4_252 = arith.constant 4 : index
    %c0_253 = arith.constant 0 : index
    %c0_254 = arith.constant 0 : index
    %347 = vector.load %arg8[%c4_252, %c0_253, %c0_254] : memref<9x4x4xf32, #tpu.memory_space<vmem>>, vector<1x4x4xf32>
    %348 = vector.shape_cast %347 : vector<1x4x4xf32> to vector<4x4xf32>
    %cst_255 = arith.constant dense<0.000000e+00> : vector<4x256xf32>
    %349 = tpu.matmul %348, %346, %cst_255 {dimension_numbers = #tpu.dot_dimension_numbers<[1], [0], [0], [1], [0, 0, 1, 1], [], []>} : vector<4x4xf32>, vector<4x256xf32>, vector<4x256xf32> -> vector<4x256xf32>
    %350 = arith.addf %342, %349 : vector<4x256xf32>
    %c3_256 = arith.constant 3 : index
    %c0_257 = arith.constant 0 : index
    %351 = vector.load %arg3[%c3_256, %c0_257] : memref<5x256xf32, #tpu.memory_space<vmem>>, vector<1x256xf32>
    %c0_258 = arith.constant 0 : index
    %c129_259 = arith.constant 129 : index
    %352 = vector.load %arg15[%c0_258, %c129_259] : memref<4x512xf32, #tpu.memory_space<vmem>>, vector<4x256xf32>
    %353 = vector.broadcast %351 : vector<1x256xf32> to vector<4x256xf32>
    %354 = arith.mulf %352, %353 : vector<4x256xf32>
    %c5_260 = arith.constant 5 : index
    %c0_261 = arith.constant 0 : index
    %c0_262 = arith.constant 0 : index
    %355 = vector.load %arg8[%c5_260, %c0_261, %c0_262] : memref<9x4x4xf32, #tpu.memory_space<vmem>>, vector<1x4x4xf32>
    %356 = vector.shape_cast %355 : vector<1x4x4xf32> to vector<4x4xf32>
    %cst_263 = arith.constant dense<0.000000e+00> : vector<4x256xf32>
    %357 = tpu.matmul %356, %354, %cst_263 {dimension_numbers = #tpu.dot_dimension_numbers<[1], [0], [0], [1], [0, 0, 1, 1], [], []>} : vector<4x4xf32>, vector<4x256xf32>, vector<4x256xf32> -> vector<4x256xf32>
    %358 = arith.addf %350, %357 : vector<4x256xf32>
    %c1_264 = arith.constant 1 : index
    %c0_265 = arith.constant 0 : index
    %359 = vector.load %arg3[%c1_264, %c0_265] : memref<5x256xf32, #tpu.memory_space<vmem>>, vector<1x256xf32>
    %c0_266 = arith.constant 0 : index
    %c143_267 = arith.constant 143 : index
    %360 = vector.load %arg15[%c0_266, %c143_267] : memref<4x512xf32, #tpu.memory_space<vmem>>, vector<4x256xf32>
    %361 = vector.broadcast %359 : vector<1x256xf32> to vector<4x256xf32>
    %362 = arith.mulf %360, %361 : vector<4x256xf32>
    %c6_268 = arith.constant 6 : index
    %c0_269 = arith.constant 0 : index
    %c0_270 = arith.constant 0 : index
    %363 = vector.load %arg8[%c6_268, %c0_269, %c0_270] : memref<9x4x4xf32, #tpu.memory_space<vmem>>, vector<1x4x4xf32>
    %364 = vector.shape_cast %363 : vector<1x4x4xf32> to vector<4x4xf32>
    %cst_271 = arith.constant dense<0.000000e+00> : vector<4x256xf32>
    %365 = tpu.matmul %364, %362, %cst_271 {dimension_numbers = #tpu.dot_dimension_numbers<[1], [0], [0], [1], [0, 0, 1, 1], [], []>} : vector<4x4xf32>, vector<4x256xf32>, vector<4x256xf32> -> vector<4x256xf32>
    %366 = arith.addf %358, %365 : vector<4x256xf32>
    %c2_272 = arith.constant 2 : index
    %c0_273 = arith.constant 0 : index
    %367 = vector.load %arg3[%c2_272, %c0_273] : memref<5x256xf32, #tpu.memory_space<vmem>>, vector<1x256xf32>
    %c0_274 = arith.constant 0 : index
    %c144_275 = arith.constant 144 : index
    %368 = vector.load %arg15[%c0_274, %c144_275] : memref<4x512xf32, #tpu.memory_space<vmem>>, vector<4x256xf32>
    %369 = vector.broadcast %367 : vector<1x256xf32> to vector<4x256xf32>
    %370 = arith.mulf %368, %369 : vector<4x256xf32>
    %c7_276 = arith.constant 7 : index
    %c0_277 = arith.constant 0 : index
    %c0_278 = arith.constant 0 : index
    %371 = vector.load %arg8[%c7_276, %c0_277, %c0_278] : memref<9x4x4xf32, #tpu.memory_space<vmem>>, vector<1x4x4xf32>
    %372 = vector.shape_cast %371 : vector<1x4x4xf32> to vector<4x4xf32>
    %cst_279 = arith.constant dense<0.000000e+00> : vector<4x256xf32>
    %373 = tpu.matmul %372, %370, %cst_279 {dimension_numbers = #tpu.dot_dimension_numbers<[1], [0], [0], [1], [0, 0, 1, 1], [], []>} : vector<4x4xf32>, vector<4x256xf32>, vector<4x256xf32> -> vector<4x256xf32>
    %374 = arith.addf %366, %373 : vector<4x256xf32>
    %c3_280 = arith.constant 3 : index
    %c0_281 = arith.constant 0 : index
    %375 = vector.load %arg3[%c3_280, %c0_281] : memref<5x256xf32, #tpu.memory_space<vmem>>, vector<1x256xf32>
    %c0_282 = arith.constant 0 : index
    %c145_283 = arith.constant 145 : index
    %376 = vector.load %arg15[%c0_282, %c145_283] : memref<4x512xf32, #tpu.memory_space<vmem>>, vector<4x256xf32>
    %377 = vector.broadcast %375 : vector<1x256xf32> to vector<4x256xf32>
    %378 = arith.mulf %376, %377 : vector<4x256xf32>
    %c8_284 = arith.constant 8 : index
    %c0_285 = arith.constant 0 : index
    %c0_286 = arith.constant 0 : index
    %379 = vector.load %arg8[%c8_284, %c0_285, %c0_286] : memref<9x4x4xf32, #tpu.memory_space<vmem>>, vector<1x4x4xf32>
    %380 = vector.shape_cast %379 : vector<1x4x4xf32> to vector<4x4xf32>
    %cst_287 = arith.constant dense<0.000000e+00> : vector<4x256xf32>
    %381 = tpu.matmul %380, %378, %cst_287 {dimension_numbers = #tpu.dot_dimension_numbers<[1], [0], [0], [1], [0, 0, 1, 1], [], []>} : vector<4x4xf32>, vector<4x256xf32>, vector<4x256xf32> -> vector<4x256xf32>
    %382 = arith.addf %374, %381 : vector<4x256xf32>
    %c0_288 = arith.constant 0 : index
    %c0_289 = arith.constant 0 : index
    %383 = vector.load %arg9[%c0_288, %c0_289] : memref<4x1xf32, #tpu.memory_space<vmem>>, vector<4x1xf32>
    %384 = vector.broadcast %383 : vector<4x1xf32> to vector<4x256xf32>
    %385 = arith.addf %382, %384 : vector<4x256xf32>
    %c0_290 = arith.constant 0 : index
    %c128_291 = arith.constant 128 : index
    %386 = vector.load %arg15[%c0_290, %c128_291] : memref<4x512xf32, #tpu.memory_space<vmem>>, vector<4x256xf32>
    tpu.vector_store %arg15[%c0_290, %c128_291], %3 {strides = array<i32>} : memref<4x512xf32, #tpu.memory_space<vmem>>, vector<4x256xf32>,
    %c1_292 = arith.constant 1 : index
    %c0_293 = arith.constant 0 : index
    %387 = vector.load %arg3[%c1_292, %c0_293] : memref<5x256xf32, #tpu.memory_space<vmem>>, vector<1x256xf32>
    %c0_294 = arith.constant 0 : index
    %c111_295 = arith.constant 111 : index
    %388 = vector.load %arg15[%c0_294, %c111_295] : memref<4x512xf32, #tpu.memory_space<vmem>>, vector<4x256xf32>
    %389 = vector.broadcast %387 : vector<1x256xf32> to vector<4x256xf32>
    %390 = arith.mulf %388, %389 : vector<4x256xf32>
    %c0_296 = arith.constant 0 : index
    %c0_297 = arith.constant 0 : index
    %c0_298 = arith.constant 0 : index
    %391 = vector.load %arg10[%c0_296, %c0_297, %c0_298] : memref<9x4x4xf32, #tpu.memory_space<vmem>>, vector<1x4x4xf32>
    %392 = vector.shape_cast %391 : vector<1x4x4xf32> to vector<4x4xf32>
    %cst_299 = arith.constant dense<0.000000e+00> : vector<4x256xf32>
    %393 = tpu.matmul %392, %390, %cst_299 {dimension_numbers = #tpu.dot_dimension_numbers<[1], [0], [0], [1], [0, 0, 1, 1], [], []>} : vector<4x4xf32>, vector<4x256xf32>, vector<4x256xf32> -> vector<4x256xf32>
    %c2_300 = arith.constant 2 : index
    %c0_301 = arith.constant 0 : index
    %394 = vector.load %arg3[%c2_300, %c0_301] : memref<5x256xf32, #tpu.memory_space<vmem>>, vector<1x256xf32>
    %c0_302 = arith.constant 0 : index
    %c112_303 = arith.constant 112 : index
    %395 = vector.load %arg15[%c0_302, %c112_303] : memref<4x512xf32, #tpu.memory_space<vmem>>, vector<4x256xf32>
    %396 = vector.broadcast %394 : vector<1x256xf32> to vector<4x256xf32>
    %397 = arith.mulf %395, %396 : vector<4x256xf32>
    %c1_304 = arith.constant 1 : index
    %c0_305 = arith.constant 0 : index
    %c0_306 = arith.constant 0 : index
    %398 = vector.load %arg10[%c1_304, %c0_305, %c0_306] : memref<9x4x4xf32, #tpu.memory_space<vmem>>, vector<1x4x4xf32>
    %399 = vector.shape_cast %398 : vector<1x4x4xf32> to vector<4x4xf32>
    %cst_307 = arith.constant dense<0.000000e+00> : vector<4x256xf32>
    %400 = tpu.matmul %399, %397, %cst_307 {dimension_numbers = #tpu.dot_dimension_numbers<[1], [0], [0], [1], [0, 0, 1, 1], [], []>} : vector<4x4xf32>, vector<4x256xf32>, vector<4x256xf32> -> vector<4x256xf32>
    %401 = arith.addf %393, %400 : vector<4x256xf32>
    %c3_308 = arith.constant 3 : index
    %c0_309 = arith.constant 0 : index
    %402 = vector.load %arg3[%c3_308, %c0_309] : memref<5x256xf32, #tpu.memory_space<vmem>>, vector<1x256xf32>
    %c0_310 = arith.constant 0 : index
    %c113_311 = arith.constant 113 : index
    %403 = vector.load %arg15[%c0_310, %c113_311] : memref<4x512xf32, #tpu.memory_space<vmem>>, vector<4x256xf32>
    %404 = vector.broadcast %402 : vector<1x256xf32> to vector<4x256xf32>
    %405 = arith.mulf %403, %404 : vector<4x256xf32>
    %c2_312 = arith.constant 2 : index
    %c0_313 = arith.constant 0 : index
    %c0_314 = arith.constant 0 : index
    %406 = vector.load %arg10[%c2_312, %c0_313, %c0_314] : memref<9x4x4xf32, #tpu.memory_space<vmem>>, vector<1x4x4xf32>
    %407 = vector.shape_cast %406 : vector<1x4x4xf32> to vector<4x4xf32>
    %cst_315 = arith.constant dense<0.000000e+00> : vector<4x256xf32>
    %408 = tpu.matmul %407, %405, %cst_315 {dimension_numbers = #tpu.dot_dimension_numbers<[1], [0], [0], [1], [0, 0, 1, 1], [], []>} : vector<4x4xf32>, vector<4x256xf32>, vector<4x256xf32> -> vector<4x256xf32>
    %409 = arith.addf %401, %408 : vector<4x256xf32>
    %c1_316 = arith.constant 1 : index
    %c0_317 = arith.constant 0 : index
    %410 = vector.load %arg3[%c1_316, %c0_317] : memref<5x256xf32, #tpu.memory_space<vmem>>, vector<1x256xf32>
    %c0_318 = arith.constant 0 : index
    %c127_319 = arith.constant 127 : index
    %411 = vector.load %arg15[%c0_318, %c127_319] : memref<4x512xf32, #tpu.memory_space<vmem>>, vector<4x256xf32>
    %412 = vector.broadcast %410 : vector<1x256xf32> to vector<4x256xf32>
    %413 = arith.mulf %411, %412 : vector<4x256xf32>
    %c3_320 = arith.constant 3 : index
    %c0_321 = arith.constant 0 : index
    %c0_322 = arith.constant 0 : index
    %414 = vector.load %arg10[%c3_320, %c0_321, %c0_322] : memref<9x4x4xf32, #tpu.memory_space<vmem>>, vector<1x4x4xf32>
    %415 = vector.shape_cast %414 : vector<1x4x4xf32> to vector<4x4xf32>
    %cst_323 = arith.constant dense<0.000000e+00> : vector<4x256xf32>
    %416 = tpu.matmul %415, %413, %cst_323 {dimension_numbers = #tpu.dot_dimension_numbers<[1], [0], [0], [1], [0, 0, 1, 1], [], []>} : vector<4x4xf32>, vector<4x256xf32>, vector<4x256xf32> -> vector<4x256xf32>
    %417 = arith.addf %409, %416 : vector<4x256xf32>
    %c2_324 = arith.constant 2 : index
    %c0_325 = arith.constant 0 : index
    %418 = vector.load %arg3[%c2_324, %c0_325] : memref<5x256xf32, #tpu.memory_space<vmem>>, vector<1x256xf32>
    %c0_326 = arith.constant 0 : index
    %c128_327 = arith.constant 128 : index
    %419 = vector.load %arg15[%c0_326, %c128_327] : memref<4x512xf32, #tpu.memory_space<vmem>>, vector<4x256xf32>
    %420 = vector.broadcast %418 : vector<1x256xf32> to vector<4x256xf32>
    %421 = arith.mulf %419, %420 : vector<4x256xf32>
    %c4_328 = arith.constant 4 : index
    %c0_329 = arith.constant 0 : index
    %c0_330 = arith.constant 0 : index
    %422 = vector.load %arg10[%c4_328, %c0_329, %c0_330] : memref<9x4x4xf32, #tpu.memory_space<vmem>>, vector<1x4x4xf32>
    %423 = vector.shape_cast %422 : vector<1x4x4xf32> to vector<4x4xf32>
    %cst_331 = arith.constant dense<0.000000e+00> : vector<4x256xf32>
    %424 = tpu.matmul %423, %421, %cst_331 {dimension_numbers = #tpu.dot_dimension_numbers<[1], [0], [0], [1], [0, 0, 1, 1], [], []>} : vector<4x4xf32>, vector<4x256xf32>, vector<4x256xf32> -> vector<4x256xf32>
    %425 = arith.addf %417, %424 : vector<4x256xf32>
    %c3_332 = arith.constant 3 : index
    %c0_333 = arith.constant 0 : index
    %426 = vector.load %arg3[%c3_332, %c0_333] : memref<5x256xf32, #tpu.memory_space<vmem>>, vector<1x256xf32>
    %c0_334 = arith.constant 0 : index
    %c129_335 = arith.constant 129 : index
    %427 = vector.load %arg15[%c0_334, %c129_335] : memref<4x512xf32, #tpu.memory_space<vmem>>, vector<4x256xf32>
    %428 = vector.broadcast %426 : vector<1x256xf32> to vector<4x256xf32>
    %429 = arith.mulf %427, %428 : vector<4x256xf32>
    %c5_336 = arith.constant 5 : index
    %c0_337 = arith.constant 0 : index
    %c0_338 = arith.constant 0 : index
    %430 = vector.load %arg10[%c5_336, %c0_337, %c0_338] : memref<9x4x4xf32, #tpu.memory_space<vmem>>, vector<1x4x4xf32>
    %431 = vector.shape_cast %430 : vector<1x4x4xf32> to vector<4x4xf32>
    %cst_339 = arith.constant dense<0.000000e+00> : vector<4x256xf32>
    %432 = tpu.matmul %431, %429, %cst_339 {dimension_numbers = #tpu.dot_dimension_numbers<[1], [0], [0], [1], [0, 0, 1, 1], [], []>} : vector<4x4xf32>, vector<4x256xf32>, vector<4x256xf32> -> vector<4x256xf32>
    %433 = arith.addf %425, %432 : vector<4x256xf32>
    %c1_340 = arith.constant 1 : index
    %c0_341 = arith.constant 0 : index
    %434 = vector.load %arg3[%c1_340, %c0_341] : memref<5x256xf32, #tpu.memory_space<vmem>>, vector<1x256xf32>
    %c0_342 = arith.constant 0 : index
    %c143_343 = arith.constant 143 : index
    %435 = vector.load %arg15[%c0_342, %c143_343] : memref<4x512xf32, #tpu.memory_space<vmem>>, vector<4x256xf32>
    %436 = vector.broadcast %434 : vector<1x256xf32> to vector<4x256xf32>
    %437 = arith.mulf %435, %436 : vector<4x256xf32>
    %c6_344 = arith.constant 6 : index
    %c0_345 = arith.constant 0 : index
    %c0_346 = arith.constant 0 : index
    %438 = vector.load %arg10[%c6_344, %c0_345, %c0_346] : memref<9x4x4xf32, #tpu.memory_space<vmem>>, vector<1x4x4xf32>
    %439 = vector.shape_cast %438 : vector<1x4x4xf32> to vector<4x4xf32>
    %cst_347 = arith.constant dense<0.000000e+00> : vector<4x256xf32>
    %440 = tpu.matmul %439, %437, %cst_347 {dimension_numbers = #tpu.dot_dimension_numbers<[1], [0], [0], [1], [0, 0, 1, 1], [], []>} : vector<4x4xf32>, vector<4x256xf32>, vector<4x256xf32> -> vector<4x256xf32>
    %441 = arith.addf %433, %440 : vector<4x256xf32>
    %c2_348 = arith.constant 2 : index
    %c0_349 = arith.constant 0 : index
    %442 = vector.load %arg3[%c2_348, %c0_349] : memref<5x256xf32, #tpu.memory_space<vmem>>, vector<1x256xf32>
    %c0_350 = arith.constant 0 : index
    %c144_351 = arith.constant 144 : index
    %443 = vector.load %arg15[%c0_350, %c144_351] : memref<4x512xf32, #tpu.memory_space<vmem>>, vector<4x256xf32>
    %444 = vector.broadcast %442 : vector<1x256xf32> to vector<4x256xf32>
    %445 = arith.mulf %443, %444 : vector<4x256xf32>
    %c7_352 = arith.constant 7 : index
    %c0_353 = arith.constant 0 : index
    %c0_354 = arith.constant 0 : index
    %446 = vector.load %arg10[%c7_352, %c0_353, %c0_354] : memref<9x4x4xf32, #tpu.memory_space<vmem>>, vector<1x4x4xf32>
    %447 = vector.shape_cast %446 : vector<1x4x4xf32> to vector<4x4xf32>
    %cst_355 = arith.constant dense<0.000000e+00> : vector<4x256xf32>
    %448 = tpu.matmul %447, %445, %cst_355 {dimension_numbers = #tpu.dot_dimension_numbers<[1], [0], [0], [1], [0, 0, 1, 1], [], []>} : vector<4x4xf32>, vector<4x256xf32>, vector<4x256xf32> -> vector<4x256xf32>
    %449 = arith.addf %441, %448 : vector<4x256xf32>
    %c3_356 = arith.constant 3 : index
    %c0_357 = arith.constant 0 : index
    %450 = vector.load %arg3[%c3_356, %c0_357] : memref<5x256xf32, #tpu.memory_space<vmem>>, vector<1x256xf32>
    %c0_358 = arith.constant 0 : index
    %c145_359 = arith.constant 145 : index
    %451 = vector.load %arg15[%c0_358, %c145_359] : memref<4x512xf32, #tpu.memory_space<vmem>>, vector<4x256xf32>
    %452 = vector.broadcast %450 : vector<1x256xf32> to vector<4x256xf32>
    %453 = arith.mulf %451, %452 : vector<4x256xf32>
    %c8_360 = arith.constant 8 : index
    %c0_361 = arith.constant 0 : index
    %c0_362 = arith.constant 0 : index
    %454 = vector.load %arg10[%c8_360, %c0_361, %c0_362] : memref<9x4x4xf32, #tpu.memory_space<vmem>>, vector<1x4x4xf32>
    %455 = vector.shape_cast %454 : vector<1x4x4xf32> to vector<4x4xf32>
    %cst_363 = arith.constant dense<0.000000e+00> : vector<4x256xf32>
    %456 = tpu.matmul %455, %453, %cst_363 {dimension_numbers = #tpu.dot_dimension_numbers<[1], [0], [0], [1], [0, 0, 1, 1], [], []>} : vector<4x4xf32>, vector<4x256xf32>, vector<4x256xf32> -> vector<4x256xf32>
    %457 = arith.addf %449, %456 : vector<4x256xf32>
    %c0_364 = arith.constant 0 : index
    %c0_365 = arith.constant 0 : index
    %458 = vector.load %arg11[%c0_364, %c0_365] : memref<4x1xf32, #tpu.memory_space<vmem>>, vector<4x1xf32>
    %459 = vector.broadcast %458 : vector<4x1xf32> to vector<4x256xf32>
    %460 = arith.addf %457, %459 : vector<4x256xf32>
    %cst_366 = arith.constant dense<0.000000e+00> : vector<4xf32>
    %461 = vector.multi_reduction <add>, %460, %cst_366 [1] : vector<4x256xf32> to vector<4xf32>
    %462 = vector.shape_cast %461 : vector<4xf32> to vector<4x1xf32>
    %cst_367 = arith.constant 2.560000e+02 : f32
    %463 = vector.broadcast %cst_367 : f32 to vector<4x1xf32>
    %464 = arith.divf %462, %463 : vector<4x1xf32>
    %465 = vector.broadcast %464 : vector<4x1xf32> to vector<4x256xf32>
    %466 = arith.subf %460, %465 : vector<4x256xf32>
    %467 = arith.mulf %466, %466 : vector<4x256xf32>
    %cst_368 = arith.constant dense<0.000000e+00> : vector<4xf32>
    %468 = vector.multi_reduction <add>, %467, %cst_368 [1] : vector<4x256xf32> to vector<4xf32>
    %469 = vector.shape_cast %468 : vector<4xf32> to vector<4x1xf32>
    %cst_369 = arith.constant 0.00392156886 : f32
    %470 = vector.broadcast %cst_369 : f32 to vector<4x1xf32>
    %471 = arith.mulf %469, %470 : vector<4x1xf32>
    %472 = math.rsqrt %471 : vector<4x1xf32>
    %473 = vector.broadcast %472 : vector<4x1xf32> to vector<4x256xf32>
    %474 = arith.mulf %466, %473 : vector<4x256xf32>
    %cst_370 = arith.constant 1.000000e+00 : f32
    %475 = vector.broadcast %cst_370 : f32 to vector<4x256xf32>
    %476 = arith.addf %310, %475 : vector<4x256xf32>
    %477 = arith.mulf %474, %476 : vector<4x256xf32>
    %478 = arith.addf %477, %385 : vector<4x256xf32>
    %cst_371 = arith.constant 0.000000e+00 : f32
    %479 = vector.broadcast %cst_371 : f32 to vector<4x256xf32>
    %480 = arith.maximumf %478, %479 : vector<4x256xf32>
    %c0_372 = arith.constant 0 : index
    %c128_373 = arith.constant 128 : index
    %481 = vector.load %arg15[%c0_372, %c128_373] : memref<4x512xf32, #tpu.memory_space<vmem>>, vector<4x256xf32>
    tpu.vector_store %arg15[%c0_372, %c128_373], %480 {strides = array<i32>} : memref<4x512xf32, #tpu.memory_space<vmem>>, vector<4x256xf32>,
    %c1_374 = arith.constant 1 : index
    %c0_375 = arith.constant 0 : index
    %482 = vector.load %arg3[%c1_374, %c0_375] : memref<5x256xf32, #tpu.memory_space<vmem>>, vector<1x256xf32>
    %c0_376 = arith.constant 0 : index
    %c111_377 = arith.constant 111 : index
    %483 = vector.load %arg15[%c0_376, %c111_377] : memref<4x512xf32, #tpu.memory_space<vmem>>, vector<4x256xf32>
    %484 = vector.broadcast %482 : vector<1x256xf32> to vector<4x256xf32>
    %485 = arith.mulf %483, %484 : vector<4x256xf32>
    %c0_378 = arith.constant 0 : index
    %c0_379 = arith.constant 0 : index
    %c0_380 = arith.constant 0 : index
    %486 = vector.load %arg12[%c0_378, %c0_379, %c0_380] : memref<9x4x4xf32, #tpu.memory_space<vmem>>, vector<1x4x4xf32>
    %487 = vector.shape_cast %486 : vector<1x4x4xf32> to vector<4x4xf32>
    %cst_381 = arith.constant dense<0.000000e+00> : vector<4x256xf32>
    %488 = tpu.matmul %487, %485, %cst_381 {dimension_numbers = #tpu.dot_dimension_numbers<[1], [0], [0], [1], [0, 0, 1, 1], [], []>} : vector<4x4xf32>, vector<4x256xf32>, vector<4x256xf32> -> vector<4x256xf32>
    %c2_382 = arith.constant 2 : index
    %c0_383 = arith.constant 0 : index
    %489 = vector.load %arg3[%c2_382, %c0_383] : memref<5x256xf32, #tpu.memory_space<vmem>>, vector<1x256xf32>
    %c0_384 = arith.constant 0 : index
    %c112_385 = arith.constant 112 : index
    %490 = vector.load %arg15[%c0_384, %c112_385] : memref<4x512xf32, #tpu.memory_space<vmem>>, vector<4x256xf32>
    %491 = vector.broadcast %489 : vector<1x256xf32> to vector<4x256xf32>
    %492 = arith.mulf %490, %491 : vector<4x256xf32>
    %c1_386 = arith.constant 1 : index
    %c0_387 = arith.constant 0 : index
    %c0_388 = arith.constant 0 : index
    %493 = vector.load %arg12[%c1_386, %c0_387, %c0_388] : memref<9x4x4xf32, #tpu.memory_space<vmem>>, vector<1x4x4xf32>
    %494 = vector.shape_cast %493 : vector<1x4x4xf32> to vector<4x4xf32>
    %cst_389 = arith.constant dense<0.000000e+00> : vector<4x256xf32>
    %495 = tpu.matmul %494, %492, %cst_389 {dimension_numbers = #tpu.dot_dimension_numbers<[1], [0], [0], [1], [0, 0, 1, 1], [], []>} : vector<4x4xf32>, vector<4x256xf32>, vector<4x256xf32> -> vector<4x256xf32>
    %496 = arith.addf %488, %495 : vector<4x256xf32>
    %c3_390 = arith.constant 3 : index
    %c0_391 = arith.constant 0 : index
    %497 = vector.load %arg3[%c3_390, %c0_391] : memref<5x256xf32, #tpu.memory_space<vmem>>, vector<1x256xf32>
    %c0_392 = arith.constant 0 : index
    %c113_393 = arith.constant 113 : index
    %498 = vector.load %arg15[%c0_392, %c113_393] : memref<4x512xf32, #tpu.memory_space<vmem>>, vector<4x256xf32>
    %499 = vector.broadcast %497 : vector<1x256xf32> to vector<4x256xf32>
    %500 = arith.mulf %498, %499 : vector<4x256xf32>
    %c2_394 = arith.constant 2 : index
    %c0_395 = arith.constant 0 : index
    %c0_396 = arith.constant 0 : index
    %501 = vector.load %arg12[%c2_394, %c0_395, %c0_396] : memref<9x4x4xf32, #tpu.memory_space<vmem>>, vector<1x4x4xf32>
    %502 = vector.shape_cast %501 : vector<1x4x4xf32> to vector<4x4xf32>
    %cst_397 = arith.constant dense<0.000000e+00> : vector<4x256xf32>
    %503 = tpu.matmul %502, %500, %cst_397 {dimension_numbers = #tpu.dot_dimension_numbers<[1], [0], [0], [1], [0, 0, 1, 1], [], []>} : vector<4x4xf32>, vector<4x256xf32>, vector<4x256xf32> -> vector<4x256xf32>
    %504 = arith.addf %496, %503 : vector<4x256xf32>
    %c1_398 = arith.constant 1 : index
    %c0_399 = arith.constant 0 : index
    %505 = vector.load %arg3[%c1_398, %c0_399] : memref<5x256xf32, #tpu.memory_space<vmem>>, vector<1x256xf32>
    %c0_400 = arith.constant 0 : index
    %c127_401 = arith.constant 127 : index
    %506 = vector.load %arg15[%c0_400, %c127_401] : memref<4x512xf32, #tpu.memory_space<vmem>>, vector<4x256xf32>
    %507 = vector.broadcast %505 : vector<1x256xf32> to vector<4x256xf32>
    %508 = arith.mulf %506, %507 : vector<4x256xf32>
    %c3_402 = arith.constant 3 : index
    %c0_403 = arith.constant 0 : index
    %c0_404 = arith.constant 0 : index
    %509 = vector.load %arg12[%c3_402, %c0_403, %c0_404] : memref<9x4x4xf32, #tpu.memory_space<vmem>>, vector<1x4x4xf32>
    %510 = vector.shape_cast %509 : vector<1x4x4xf32> to vector<4x4xf32>
    %cst_405 = arith.constant dense<0.000000e+00> : vector<4x256xf32>
    %511 = tpu.matmul %510, %508, %cst_405 {dimension_numbers = #tpu.dot_dimension_numbers<[1], [0], [0], [1], [0, 0, 1, 1], [], []>} : vector<4x4xf32>, vector<4x256xf32>, vector<4x256xf32> -> vector<4x256xf32>
    %512 = arith.addf %504, %511 : vector<4x256xf32>
    %c2_406 = arith.constant 2 : index
    %c0_407 = arith.constant 0 : index
    %513 = vector.load %arg3[%c2_406, %c0_407] : memref<5x256xf32, #tpu.memory_space<vmem>>, vector<1x256xf32>
    %c0_408 = arith.constant 0 : index
    %c128_409 = arith.constant 128 : index
    %514 = vector.load %arg15[%c0_408, %c128_409] : memref<4x512xf32, #tpu.memory_space<vmem>>, vector<4x256xf32>
    %515 = vector.broadcast %513 : vector<1x256xf32> to vector<4x256xf32>
    %516 = arith.mulf %514, %515 : vector<4x256xf32>
    %c4_410 = arith.constant 4 : index
    %c0_411 = arith.constant 0 : index
    %c0_412 = arith.constant 0 : index
    %517 = vector.load %arg12[%c4_410, %c0_411, %c0_412] : memref<9x4x4xf32, #tpu.memory_space<vmem>>, vector<1x4x4xf32>
    %518 = vector.shape_cast %517 : vector<1x4x4xf32> to vector<4x4xf32>
    %cst_413 = arith.constant dense<0.000000e+00> : vector<4x256xf32>
    %519 = tpu.matmul %518, %516, %cst_413 {dimension_numbers = #tpu.dot_dimension_numbers<[1], [0], [0], [1], [0, 0, 1, 1], [], []>} : vector<4x4xf32>, vector<4x256xf32>, vector<4x256xf32> -> vector<4x256xf32>
    %520 = arith.addf %512, %519 : vector<4x256xf32>
    %c3_414 = arith.constant 3 : index
    %c0_415 = arith.constant 0 : index
    %521 = vector.load %arg3[%c3_414, %c0_415] : memref<5x256xf32, #tpu.memory_space<vmem>>, vector<1x256xf32>
    %c0_416 = arith.constant 0 : index
    %c129_417 = arith.constant 129 : index
    %522 = vector.load %arg15[%c0_416, %c129_417] : memref<4x512xf32, #tpu.memory_space<vmem>>, vector<4x256xf32>
    %523 = vector.broadcast %521 : vector<1x256xf32> to vector<4x256xf32>
    %524 = arith.mulf %522, %523 : vector<4x256xf32>
    %c5_418 = arith.constant 5 : index
    %c0_419 = arith.constant 0 : index
    %c0_420 = arith.constant 0 : index
    %525 = vector.load %arg12[%c5_418, %c0_419, %c0_420] : memref<9x4x4xf32, #tpu.memory_space<vmem>>, vector<1x4x4xf32>
    %526 = vector.shape_cast %525 : vector<1x4x4xf32> to vector<4x4xf32>
    %cst_421 = arith.constant dense<0.000000e+00> : vector<4x256xf32>
    %527 = tpu.matmul %526, %524, %cst_421 {dimension_numbers = #tpu.dot_dimension_numbers<[1], [0], [0], [1], [0, 0, 1, 1], [], []>} : vector<4x4xf32>, vector<4x256xf32>, vector<4x256xf32> -> vector<4x256xf32>
    %528 = arith.addf %520, %527 : vector<4x256xf32>
    %c1_422 = arith.constant 1 : index
    %c0_423 = arith.constant 0 : index
    %529 = vector.load %arg3[%c1_422, %c0_423] : memref<5x256xf32, #tpu.memory_space<vmem>>, vector<1x256xf32>
    %c0_424 = arith.constant 0 : index
    %c143_425 = arith.constant 143 : index
    %530 = vector.load %arg15[%c0_424, %c143_425] : memref<4x512xf32, #tpu.memory_space<vmem>>, vector<4x256xf32>
    %531 = vector.broadcast %529 : vector<1x256xf32> to vector<4x256xf32>
    %532 = arith.mulf %530, %531 : vector<4x256xf32>
    %c6_426 = arith.constant 6 : index
    %c0_427 = arith.constant 0 : index
    %c0_428 = arith.constant 0 : index
    %533 = vector.load %arg12[%c6_426, %c0_427, %c0_428] : memref<9x4x4xf32, #tpu.memory_space<vmem>>, vector<1x4x4xf32>
    %534 = vector.shape_cast %533 : vector<1x4x4xf32> to vector<4x4xf32>
    %cst_429 = arith.constant dense<0.000000e+00> : vector<4x256xf32>
    %535 = tpu.matmul %534, %532, %cst_429 {dimension_numbers = #tpu.dot_dimension_numbers<[1], [0], [0], [1], [0, 0, 1, 1], [], []>} : vector<4x4xf32>, vector<4x256xf32>, vector<4x256xf32> -> vector<4x256xf32>
    %536 = arith.addf %528, %535 : vector<4x256xf32>
    %c2_430 = arith.constant 2 : index
    %c0_431 = arith.constant 0 : index
    %537 = vector.load %arg3[%c2_430, %c0_431] : memref<5x256xf32, #tpu.memory_space<vmem>>, vector<1x256xf32>
    %c0_432 = arith.constant 0 : index
    %c144_433 = arith.constant 144 : index
    %538 = vector.load %arg15[%c0_432, %c144_433] : memref<4x512xf32, #tpu.memory_space<vmem>>, vector<4x256xf32>
    %539 = vector.broadcast %537 : vector<1x256xf32> to vector<4x256xf32>
    %540 = arith.mulf %538, %539 : vector<4x256xf32>
    %c7_434 = arith.constant 7 : index
    %c0_435 = arith.constant 0 : index
    %c0_436 = arith.constant 0 : index
    %541 = vector.load %arg12[%c7_434, %c0_435, %c0_436] : memref<9x4x4xf32, #tpu.memory_space<vmem>>, vector<1x4x4xf32>
    %542 = vector.shape_cast %541 : vector<1x4x4xf32> to vector<4x4xf32>
    %cst_437 = arith.constant dense<0.000000e+00> : vector<4x256xf32>
    %543 = tpu.matmul %542, %540, %cst_437 {dimension_numbers = #tpu.dot_dimension_numbers<[1], [0], [0], [1], [0, 0, 1, 1], [], []>} : vector<4x4xf32>, vector<4x256xf32>, vector<4x256xf32> -> vector<4x256xf32>
    %544 = arith.addf %536, %543 : vector<4x256xf32>
    %c3_438 = arith.constant 3 : index
    %c0_439 = arith.constant 0 : index
    %545 = vector.load %arg3[%c3_438, %c0_439] : memref<5x256xf32, #tpu.memory_space<vmem>>, vector<1x256xf32>
    %c0_440 = arith.constant 0 : index
    %c145_441 = arith.constant 145 : index
    %546 = vector.load %arg15[%c0_440, %c145_441] : memref<4x512xf32, #tpu.memory_space<vmem>>, vector<4x256xf32>
    %547 = vector.broadcast %545 : vector<1x256xf32> to vector<4x256xf32>
    %548 = arith.mulf %546, %547 : vector<4x256xf32>
    %c8_442 = arith.constant 8 : index
    %c0_443 = arith.constant 0 : index
    %c0_444 = arith.constant 0 : index
    %549 = vector.load %arg12[%c8_442, %c0_443, %c0_444] : memref<9x4x4xf32, #tpu.memory_space<vmem>>, vector<1x4x4xf32>
    %550 = vector.shape_cast %549 : vector<1x4x4xf32> to vector<4x4xf32>
    %cst_445 = arith.constant dense<0.000000e+00> : vector<4x256xf32>
    %551 = tpu.matmul %550, %548, %cst_445 {dimension_numbers = #tpu.dot_dimension_numbers<[1], [0], [0], [1], [0, 0, 1, 1], [], []>} : vector<4x4xf32>, vector<4x256xf32>, vector<4x256xf32> -> vector<4x256xf32>
    %552 = arith.addf %544, %551 : vector<4x256xf32>
    %c0_446 = arith.constant 0 : index
    %c0_447 = arith.constant 0 : index
    %553 = vector.load %arg13[%c0_446, %c0_447] : memref<4x1xf32, #tpu.memory_space<vmem>>, vector<4x1xf32>
    %554 = vector.broadcast %553 : vector<4x1xf32> to vector<4x256xf32>
    %555 = arith.addf %552, %554 : vector<4x256xf32>
    %cst_448 = arith.constant dense<0.000000e+00> : vector<4xf32>
    %556 = vector.multi_reduction <add>, %555, %cst_448 [1] : vector<4x256xf32> to vector<4xf32>
    %557 = vector.shape_cast %556 : vector<4xf32> to vector<4x1xf32>
    %cst_449 = arith.constant 2.560000e+02 : f32
    %558 = vector.broadcast %cst_449 : f32 to vector<4x1xf32>
    %559 = arith.divf %557, %558 : vector<4x1xf32>
    %560 = vector.broadcast %559 : vector<4x1xf32> to vector<4x256xf32>
    %561 = arith.subf %555, %560 : vector<4x256xf32>
    %562 = arith.mulf %561, %561 : vector<4x256xf32>
    %cst_450 = arith.constant dense<0.000000e+00> : vector<4xf32>
    %563 = vector.multi_reduction <add>, %562, %cst_450 [1] : vector<4x256xf32> to vector<4xf32>
    %564 = vector.shape_cast %563 : vector<4xf32> to vector<4x1xf32>
    %cst_451 = arith.constant 0.00392156886 : f32
    %565 = vector.broadcast %cst_451 : f32 to vector<4x1xf32>
    %566 = arith.mulf %564, %565 : vector<4x1xf32>
    %567 = math.rsqrt %566 : vector<4x1xf32>
    %568 = vector.broadcast %567 : vector<4x1xf32> to vector<4x256xf32>
    %569 = arith.mulf %561, %568 : vector<4x256xf32>
    %cst_452 = arith.constant 1.000000e+00 : f32
    %570 = vector.broadcast %cst_452 : f32 to vector<4x256xf32>
    %571 = arith.addf %310, %570 : vector<4x256xf32>
    %572 = arith.mulf %569, %571 : vector<4x256xf32>
    %573 = arith.addf %572, %385 : vector<4x256xf32>
    %574 = arith.addf %3, %573 : vector<4x256xf32>
    %cst_453 = arith.constant 0.000000e+00 : f32
    %575 = vector.broadcast %cst_453 : f32 to vector<4x256xf32>
    %576 = arith.maximumf %574, %575 : vector<4x256xf32>
    %c0_454 = arith.constant 0 : index
    %c0_455 = arith.constant 0 : index
    %c0_456 = arith.constant 0 : index
    %577 = vector.load %arg14[%c0_454, %c0_455, %c0_456] : memref<1x4x256xf32, #tpu.memory_space<vmem>>, vector<1x4x256xf32>
    %578 = vector.shape_cast %577 : vector<1x4x256xf32> to vector<4x256xf32>
    %579 = vector.shape_cast %576 : vector<4x256xf32> to vector<1x4x256xf32>
    tpu.vector_store %arg14[%c0_454, %c0_455, %c0_456], %579 {strides = array<i32>} : memref<1x4x256xf32, #tpu.memory_space<vmem>>, vector<1x4x256xf32>,
    return
  }
  func.func @transform_0(%arg0: i32) -> (i32, i32, i32) {
    %c0_i32 = arith.constant 0 : i32
    %c0_i32_0 = arith.constant 0 : i32
    %c0_i32_1 = arith.constant 0 : i32
    return %arg0, %c0_i32, %c0_i32_0 : i32, i32, i32
  }
  func.func @transform_1(%arg0: i32) -> (i32, i32, i32) {
    %c0_i32 = arith.constant 0 : i32
    %c0_i32_0 = arith.constant 0 : i32
    %c0_i32_1 = arith.constant 0 : i32
    return %arg0, %c0_i32, %c0_i32_0 : i32, i32, i32
  }
  func.func @transform_2(%arg0: i32) -> (i32, i32) {
    %c0_i32 = arith.constant 0 : i32
    %c0_i32_0 = arith.constant 0 : i32
    %c0_i32_1 = arith.constant 0 : i32
    return %c0_i32, %c0_i32_0 : i32, i32
  }
  func.func @transform_3(%arg0: i32) -> (i32, i32, i32) {
    %c0_i32 = arith.constant 0 : i32
    %c0_i32_0 = arith.constant 0 : i32
    %c0_i32_1 = arith.constant 0 : i32
    %c0_i32_2 = arith.constant 0 : i32
    return %c0_i32, %c0_i32_0, %c0_i32_1 : i32, i32, i32
  }
  func.func @transform_4(%arg0: i32) -> (i32, i32) {
    %c0_i32 = arith.constant 0 : i32
    %c0_i32_0 = arith.constant 0 : i32
    %c0_i32_1 = arith.constant 0 : i32
    return %c0_i32, %c0_i32_0 : i32, i32
  }
  func.func @transform_5(%arg0: i32) -> (i32, i32, i32) {
    %c0_i32 = arith.constant 0 : i32
    %c0_i32_0 = arith.constant 0 : i32
    %c0_i32_1 = arith.constant 0 : i32
    %c0_i32_2 = arith.constant 0 : i32
    return %c0_i32, %c0_i32_0, %c0_i32_1 : i32, i32, i32
  }
  func.func @transform_6(%arg0: i32) -> (i32, i32) {
    %c0_i32 = arith.constant 0 : i32
    %c0_i32_0 = arith.constant 0 : i32
    %c0_i32_1 = arith.constant 0 : i32
    return %c0_i32, %c0_i32_0 : i32, i32
  }
  func.func @transform_7(%arg0: i32) -> (i32, i32, i32) {
    %c0_i32 = arith.constant 0 : i32
    %c0_i32_0 = arith.constant 0 : i32
    %c0_i32_1 = arith.constant 0 : i32
    %c0_i32_2 = arith.constant 0 : i32
    return %c0_i32, %c0_i32_0, %c0_i32_1 : i32, i32, i32
  }
  func.func @transform_8(%arg0: i32) -> (i32, i32) {
    %c0_i32 = arith.constant 0 : i32
    %c0_i32_0 = arith.constant 0 : i32
    %c0_i32_1 = arith.constant 0 : i32
    return %c0_i32, %c0_i32_0 : i32, i32
  }
  func.func @transform_9(%arg0: i32) -> (i32, i32, i32) {
    %c0_i32 = arith.constant 0 : i32
    %c0_i32_0 = arith.constant 0 : i32
    %c0_i32_1 = arith.constant 0 : i32
    %c0_i32_2 = arith.constant 0 : i32
    return %c0_i32, %c0_i32_0, %c0_i32_1 : i32, i32, i32
  }
  func.func @transform_10(%arg0: i32) -> (i32, i32) {
    %c0_i32 = arith.constant 0 : i32
    %c0_i32_0 = arith.constant 0 : i32
    %c0_i32_1 = arith.constant 0 : i32
    return %c0_i32, %c0_i32_0 : i32, i32
  }
  func.func @transform_11(%arg0: i32) -> (i32, i32, i32) {
    %c0_i32 = arith.constant 0 : i32
    %c0_i32_0 = arith.constant 0 : i32
    %c0_i32_1 = arith.constant 0 : i32
    %c0_i32_2 = arith.constant 0 : i32
    return %c0_i32, %c0_i32_0, %c0_i32_1 : i32, i32, i32
  }
  func.func @transform_12(%arg0: i32) -> (i32, i32) {
    %c0_i32 = arith.constant 0 : i32
    %c0_i32_0 = arith.constant 0 : i32
    %c0_i32_1 = arith.constant 0 : i32
    return %c0_i32, %c0_i32_0 : i32, i32
  }
  func.func @transform_13(%arg0: i32) -> (i32, i32, i32) {
    %c0_i32 = arith.constant 0 : i32
    %c0_i32_0 = arith.constant 0 : i32
    %c0_i32_1 = arith.constant 0 : i32
    return %arg0, %c0_i32, %c0_i32_0 : i32, i32, i32
  }
}

</mosaic_0001>

<llo_original>
// kernel: ain_resblock_forward.1
$region0: #{ain_resblock_forward.1}
  #allocation0 [shape = 'u32[]', space=smem, size = 0x4, offset = 0x4, fixed_abs, tag = 'smem constant byte address 0x4 - core index']
  #allocation1 [shape = 'u32[144,128]{1,0:T(1,128)}', space=vmem, size = 0x12000, scoped, tag = 'internal scratch']
  #allocation2 [shape = 'f32[4,512]{1,0:T(4,128)}', space=vmem, size = 0x2000, scoped, tag = 'scratch operand']
  %s0 = inlined_call_operand.vmem [shape: f32[2,4,256], index: 0, kind: input, shape index: {}]
  %s1 = inlined_call_operand.vmem [shape: f32[2,1,256], index: 1, kind: input, shape index: {}]
  %s2 = inlined_call_operand.vmem [shape: f32[5,256], index: 2, kind: input, shape index: {}]
  %s3 = inlined_call_operand.vmem [shape: f32[25,4,1], index: 3, kind: input, shape index: {}]
  %s4 = inlined_call_operand.vmem [shape: f32[4,1], index: 4, kind: input, shape index: {}]
  %s5 = inlined_call_operand.vmem [shape: f32[9,4,4], index: 5, kind: input, shape index: {}]
  %s6 = inlined_call_operand.vmem [shape: f32[4,1], index: 6, kind: input, shape index: {}]
  %s7 = inlined_call_operand.vmem [shape: f32[9,4,4], index: 7, kind: input, shape index: {}]
  %s8 = inlined_call_operand.vmem [shape: f32[4,1], index: 8, kind: input, shape index: {}]
  %s9 = inlined_call_operand.vmem [shape: f32[9,4,4], index: 9, kind: input, shape index: {}]
  %s10 = inlined_call_operand.vmem [shape: f32[4,1], index: 10, kind: input, shape index: {}]
  %s11 = inlined_call_operand.vmem [shape: f32[9,4,4], index: 11, kind: input, shape index: {}]
  %s12 = inlined_call_operand.vmem [shape: f32[4,1], index: 12, kind: input, shape index: {}]
  %s13 = inlined_call_operand.vmem [shape: f32[2,4,256], index: 13, kind: output, shape index: {}]
  %s14 = sld [smem:[#allocation0]]
  $region85: #{ain_resblock_forward.1} parent=0
    _
  %s16 = ssub.s32 1, %s14
  %s17 = scalar_select 0, %s16, %s14
  loop: start=0, step=1, limit=4
  $region2: #{ain_resblock_forward.1} parent=0 // loop_pre_header
    _
  $region3: #{ain_resblock_forward.1} parent=0 // loop_header
    %s19 = sphi 0, %s23
    %p20 = scmp.ge.s32.totalorder %s19, 4
    %s29 = sphi 0, %s31
    %s32 = sphi 0, %s29
    %s33 = sphi 0, %s32
    %s49 = sphi 0, %s33
    %s55 = sphi 0, %s57
    %s58 = sphi 0, %s55
    %s59 = sphi 0, %s58
    %s75 = sphi 0, %s59
    %s79 = sphi 0, %s79
    %s81 = sphi 0, %s79
    %s82 = sphi 0, %s81
    %s96 = sphi 0, %s82
    %s100 = sphi 0, %s100
    %s102 = sphi 0, %s100
    %s103 = sphi 0, %s102
    %s117 = sphi 0, %s103
    %s121 = sphi 0, %s121
    %s123 = sphi 0, %s121
    %s124 = sphi 0, %s123
    %s138 = sphi 0, %s124
    %s142 = sphi 0, %s142
    %s144 = sphi 0, %s142
    %s145 = sphi 0, %s144
    %s159 = sphi 0, %s145
    %s163 = sphi 0, %s163
    %s165 = sphi 0, %s163
    %s166 = sphi 0, %s165
    %s180 = sphi 0, %s166
    %s184 = sphi 0, %s184
    %s186 = sphi 0, %s184
    %s187 = sphi 0, %s186
    %s201 = sphi 0, %s187
    %s205 = sphi 0, %s205
    %s207 = sphi 0, %s205
    %s208 = sphi 0, %s207
    %s222 = sphi 0, %s208
    %s226 = sphi 0, %s226
    %s228 = sphi 0, %s226
    %s229 = sphi 0, %s228
    %s243 = sphi 0, %s229
    %s247 = sphi 0, %s247
    %s249 = sphi 0, %s247
    %s250 = sphi 0, %s249
    %s264 = sphi 0, %s250
    %s268 = sphi 0, %s268
    %s270 = sphi 0, %s268
    %s271 = sphi 0, %s270
    %s285 = sphi 0, %s271
    %s289 = sphi 0, %s289
    %s291 = sphi 0, %s289
    %s292 = sphi 0, %s291
    %s306 = sphi 0, %s292
    %s312 = sphi 0, %s314
    %s315 = sphi 0, %s312
    %s316 = sphi 0, %s315
    %s332 = sphi 0, %s316
  $region4: #{ain_resblock_forward.1} parent=0 // loop_header_branch
    %22 = sbr.rel (%p20) target = $region8
  $region5: #{ain_resblock_forward.1} parent=0 // loop_body
    %s24 = ssub.s32 %s19, 1
    %s25 = ssub.s32 %s19, 2
    %s26 = sadd.s32 %s19, 1
    %s27 = ssub.s32 %s19, %s26
    %p28 = scmp.eq.s32.totalorder %s27, 0
    %s30 = sadd.s32 %s29, 1
    %s31 = scalar_select %p28, %s29, %s30
    %p34 = pneg %p28
    %p35 = scmp.eq.s32.totalorder %s19, 1
    %p36 = por %p34, %p35
    %p37 = scmp.ne.s32.totalorder %s29, %s32
    %p38 = scmp.eq.s32.totalorder %s19, 0
    %p39 = por %p37, %p38
    %p40 = scmp.ne.s32.totalorder %s29, %s32
    %p41 = scmp.eq.s32.totalorder %s24, 1
    %p42 = por %p40, %p41
    %p43 = scmp.ne.s32.totalorder %s32, %s33
    %p44 = scmp.eq.s32.totalorder %s24, 0
    %p45 = por %p43, %p44
    %p46 = scmp.ne.s32.totalorder %s32, %s33
    %p47 = scmp.eq.s32.totalorder %s25, 1
    %p48 = por %p46, %p47
    %p50 = scmp.ne.s32.totalorder %s33, %s49
    %p51 = scmp.eq.s32.totalorder %s25, 0
    %p52 = por %p50, %p51
    %s53 = ssub.s32 %s19, %s26
    %p54 = scmp.eq.s32.totalorder %s53, 0
    %s56 = sadd.s32 %s55, 1
    %s57 = scalar_select %p54, %s55, %s56
    %p60 = pneg %p54
    %p61 = scmp.eq.s32.totalorder %s19, 1
    %p62 = por %p60, %p61
    %p63 = scmp.ne.s32.totalorder %s55, %s58
    %p64 = scmp.eq.s32.totalorder %s19, 0
    %p65 = por %p63, %p64
    %p66 = scmp.ne.s32.totalorder %s55, %s58
    %p67 = scmp.eq.s32.totalorder %s24, 1
    %p68 = por %p66, %p67
    %p69 = scmp.ne.s32.totalorder %s58, %s59
    %p70 = scmp.eq.s32.totalorder %s24, 0
    %p71 = por %p69, %p70
    %p72 = scmp.ne.s32.totalorder %s58, %s59
    %p73 = scmp.eq.s32.totalorder %s25, 1
    %p74 = por %p72, %p73
    %p76 = scmp.ne.s32.totalorder %s59, %s75
    %p77 = scmp.eq.s32.totalorder %s25, 0
    %p78 = por %p76, %p77
    %s80 = sadd.s32 %s79, 1
    %p83 = scmp.eq.s32.totalorder %s19, 1
    %p84 = scmp.ne.s32.totalorder %s79, %s81
    %p85 = scmp.eq.s32.totalorder %s19, 0
    %p86 = por %p84, %p85
    %p87 = scmp.ne.s32.totalorder %s79, %s81
    %p88 = scmp.eq.s32.totalorder %s24, 1
    %p89 = por %p87, %p88
    %p90 = scmp.ne.s32.totalorder %s81, %s82
    %p91 = scmp.eq.s32.totalorder %s24, 0
    %p92 = por %p90, %p91
    %p93 = scmp.ne.s32.totalorder %s81, %s82
    %p94 = scmp.eq.s32.totalorder %s25, 1
    %p95 = por %p93, %p94
    %p97 = scmp.ne.s32.totalorder %s82, %s96
    %p98 = scmp.eq.s32.totalorder %s25, 0
    %p99 = por %p97, %p98
    %s101 = sadd.s32 %s100, 1
    %p104 = scmp.eq.s32.totalorder %s19, 1
    %p105 = scmp.ne.s32.totalorder %s100, %s102
    %p106 = scmp.eq.s32.totalorder %s19, 0
    %p107 = por %p105, %p106
    %p108 = scmp.ne.s32.totalorder %s100, %s102
    %p109 = scmp.eq.s32.totalorder %s24, 1
    %p110 = por %p108, %p109
    %p111 = scmp.ne.s32.totalorder %s102, %s103
    %p112 = scmp.eq.s32.totalorder %s24, 0
    %p113 = por %p111, %p112
    %p114 = scmp.ne.s32.totalorder %s102, %s103
    %p115 = scmp.eq.s32.totalorder %s25, 1
    %p116 = por %p114, %p115
    %p118 = scmp.ne.s32.totalorder %s103, %s117
    %p119 = scmp.eq.s32.totalorder %s25, 0
    %p120 = por %p118, %p119
    %s122 = sadd.s32 %s121, 1
    %p125 = scmp.eq.s32.totalorder %s19, 1
    %p126 = scmp.ne.s32.totalorder %s121, %s123
    %p127 = scmp.eq.s32.totalorder %s19, 0
    %p128 = por %p126, %p127
    %p129 = scmp.ne.s32.totalorder %s121, %s123
    %p130 = scmp.eq.s32.totalorder %s24, 1
    %p131 = por %p129, %p130
    %p132 = scmp.ne.s32.totalorder %s123, %s124
    %p133 = scmp.eq.s32.totalorder %s24, 0
    %p134 = por %p132, %p133
    %p135 = scmp.ne.s32.totalorder %s123, %s124
    %p136 = scmp.eq.s32.totalorder %s25, 1
    %p137 = por %p135, %p136
    %p139 = scmp.ne.s32.totalorder %s124, %s138
    %p140 = scmp.eq.s32.totalorder %s25, 0
    %p141 = por %p139, %p140
    %s143 = sadd.s32 %s142, 1
    %p146 = scmp.eq.s32.totalorder %s19, 1
    %p147 = scmp.ne.s32.totalorder %s142, %s144
    %p148 = scmp.eq.s32.totalorder %s19, 0
    %p149 = por %p147, %p148
    %p150 = scmp.ne.s32.totalorder %s142, %s144
    %p151 = scmp.eq.s32.totalorder %s24, 1
    %p152 = por %p150, %p151
    %p153 = scmp.ne.s32.totalorder %s144, %s145
    %p154 = scmp.eq.s32.totalorder %s24, 0
    %p155 = por %p153, %p154
    %p156 = scmp.ne.s32.totalorder %s144, %s145
    %p157 = scmp.eq.s32.totalorder %s25, 1
    %p158 = por %p156, %p157
    %p160 = scmp.ne.s32.totalorder %s145, %s159
    %p161 = scmp.eq.s32.totalorder %s25, 0
    %p162 = por %p160, %p161
    %s164 = sadd.s32 %s163, 1
    %p167 = scmp.eq.s32.totalorder %s19, 1
    %p168 = scmp.ne.s32.totalorder %s163, %s165
    %p169 = scmp.eq.s32.totalorder %s19, 0
    %p170 = por %p168, %p169
    %p171 = scmp.ne.s32.totalorder %s163, %s165
    %p172 = scmp.eq.s32.totalorder %s24, 1
    %p173 = por %p171, %p172
    %p174 = scmp.ne.s32.totalorder %s165, %s166
    %p175 = scmp.eq.s32.totalorder %s24, 0
    %p176 = por %p174, %p175
    %p177 = scmp.ne.s32.totalorder %s165, %s166
    %p178 = scmp.eq.s32.totalorder %s25, 1
    %p179 = por %p177, %p178
    %p181 = scmp.ne.s32.totalorder %s166, %s180
    %p182 = scmp.eq.s32.totalorder %s25, 0
    %p183 = por %p181, %p182
    %s185 = sadd.s32 %s184, 1
    %p188 = scmp.eq.s32.totalorder %s19, 1
    %p189 = scmp.ne.s32.totalorder %s184, %s186
    %p190 = scmp.eq.s32.totalorder %s19, 0
    %p191 = por %p189, %p190
    %p192 = scmp.ne.s32.totalorder %s184, %s186
    %p193 = scmp.eq.s32.totalorder %s24, 1
    %p194 = por %p192, %p193
    %p195 = scmp.ne.s32.totalorder %s186, %s187
    %p196 = scmp.eq.s32.totalorder %s24, 0
    %p197 = por %p195, %p196
    %p198 = scmp.ne.s32.totalorder %s186, %s187
    %p199 = scmp.eq.s32.totalorder %s25, 1
    %p200 = por %p198, %p199
    %p202 = scmp.ne.s32.totalorder %s187, %s201
    %p203 = scmp.eq.s32.totalorder %s25, 0
    %p204 = por %p202, %p203
    %s206 = sadd.s32 %s205, 1
    %p209 = scmp.eq.s32.totalorder %s19, 1
    %p210 = scmp.ne.s32.totalorder %s205, %s207
    %p211 = scmp.eq.s32.totalorder %s19, 0
    %p212 = por %p210, %p211
    %p213 = scmp.ne.s32.totalorder %s205, %s207
    %p214 = scmp.eq.s32.totalorder %s24, 1
    %p215 = por %p213, %p214
    %p216 = scmp.ne.s32.totalorder %s207, %s208
    %p217 = scmp.eq.s32.totalorder %s24, 0
    %p218 = por %p216, %p217
    %p219 = scmp.ne.s32.totalorder %s207, %s208
    %p220 = scmp.eq.s32.totalorder %s25, 1
    %p221 = por %p219, %p220
    %p223 = scmp.ne.s32.totalorder %s208, %s222
    %p224 = scmp.eq.s32.totalorder %s25, 0
    %p225 = por %p223, %p224
    %s227 = sadd.s32 %s226, 1
    %p230 = scmp.eq.s32.totalorder %s19, 1
    %p231 = scmp.ne.s32.totalorder %s226, %s228
    %p232 = scmp.eq.s32.totalorder %s19, 0
    %p233 = por %p231, %p232
    %p234 = scmp.ne.s32.totalorder %s226, %s228
    %p235 = scmp.eq.s32.totalorder %s24, 1
    %p236 = por %p234, %p235
    %p237 = scmp.ne.s32.totalorder %s228, %s229
    %p238 = scmp.eq.s32.totalorder %s24, 0
    %p239 = por %p237, %p238
    %p240 = scmp.ne.s32.totalorder %s228, %s229
    %p241 = scmp.eq.s32.totalorder %s25, 1
    %p242 = por %p240, %p241
    %p244 = scmp.ne.s32.totalorder %s229, %s243
    %p245 = scmp.eq.s32.totalorder %s25, 0
    %p246 = por %p244, %p245
    %s248 = sadd.s32 %s247, 1
    %p251 = scmp.eq.s32.totalorder %s19, 1
    %p252 = scmp.ne.s32.totalorder %s247, %s249
    %p253 = scmp.eq.s32.totalorder %s19, 0
    %p254 = por %p252, %p253
    %p255 = scmp.ne.s32.totalorder %s247, %s249
    %p256 = scmp.eq.s32.totalorder %s24, 1
    %p257 = por %p255, %p256
    %p258 = scmp.ne.s32.totalorder %s249, %s250
    %p259 = scmp.eq.s32.totalorder %s24, 0
    %p260 = por %p258, %p259
    %p261 = scmp.ne.s32.totalorder %s249, %s250
    %p262 = scmp.eq.s32.totalorder %s25, 1
    %p263 = por %p261, %p262
    %p265 = scmp.ne.s32.totalorder %s250, %s264
    %p266 = scmp.eq.s32.totalorder %s25, 0
    %p267 = por %p265, %p266
    %s269 = sadd.s32 %s268, 1
    %p272 = scmp.eq.s32.totalorder %s19, 1
    %p273 = scmp.ne.s32.totalorder %s268, %s270
    %p274 = scmp.eq.s32.totalorder %s19, 0
    %p275 = por %p273, %p274
    %p276 = scmp.ne.s32.totalorder %s268, %s270
    %p277 = scmp.eq.s32.totalorder %s24, 1
    %p278 = por %p276, %p277
    %p279 = scmp.ne.s32.totalorder %s270, %s271
    %p280 = scmp.eq.s32.totalorder %s24, 0
    %p281 = por %p279, %p280
    %p282 = scmp.ne.s32.totalorder %s270, %s271
    %p283 = scmp.eq.s32.totalorder %s25, 1
    %p284 = por %p282, %p283
    %p286 = scmp.ne.s32.totalorder %s271, %s285
    %p287 = scmp.eq.s32.totalorder %s25, 0
    %p288 = por %p286, %p287
    %s290 = sadd.s32 %s289, 1
    %p293 = scmp.eq.s32.totalorder %s19, 1
    %p294 = scmp.ne.s32.totalorder %s289, %s291
    %p295 = scmp.eq.s32.totalorder %s19, 0
    %p296 = por %p294, %p295
    %p297 = scmp.ne.s32.totalorder %s289, %s291
    %p298 = scmp.eq.s32.totalorder %s24, 1
    %p299 = por %p297, %p298
    %p300 = scmp.ne.s32.totalorder %s291, %s292
    %p301 = scmp.eq.s32.totalorder %s24, 0
    %p302 = por %p300, %p301
    %p303 = scmp.ne.s32.totalorder %s291, %s292
    %p304 = scmp.eq.s32.totalorder %s25, 1
    %p305 = por %p303, %p304
    %p307 = scmp.ne.s32.totalorder %s292, %s306
    %p308 = scmp.eq.s32.totalorder %s25, 0
    %p309 = por %p307, %p308
    %s310 = ssub.s32 %s19, %s26
    %p311 = scmp.eq.s32.totalorder %s310, 0
    %s313 = sadd.s32 %s312, 1
    %s314 = scalar_select %p311, %s312, %s313
    %p317 = pneg %p311
    %p318 = scmp.eq.s32.totalorder %s19, 1
    %p319 = por %p317, %p318
    %p320 = scmp.ne.s32.totalorder %s312, %s315
    %p321 = scmp.eq.s32.totalorder %s19, 0
    %p322 = por %p320, %p321
    %p323 = scmp.ne.s32.totalorder %s312, %s315
    %p324 = scmp.eq.s32.totalorder %s24, 1
    %p325 = por %p323, %p324
    %p326 = scmp.ne.s32.totalorder %s315, %s316
    %p327 = scmp.eq.s32.totalorder %s24, 0
    %p328 = por %p326, %p327
    %p329 = scmp.ne.s32.totalorder %s315, %s316
    %p330 = scmp.eq.s32.totalorder %s25, 1
    %p331 = por %p329, %p330
    %p333 = scmp.ne.s32.totalorder %s316, %s332
    %p334 = scmp.eq.s32.totalorder %s25, 0
    %p335 = por %p333, %p334
    %p336 = scmp.le.s32.totalorder 1, %s19
    %p337 = scmp.lt.s32.totalorder %s19, 3
    %p338 = pnand %p336, %p337
    %p339 = pneg %p338
    // Predicated region
    $region9: #{ain_resblock_forward.1} parent=5 // pred_check
      _
    $region10: #{ain_resblock_forward.1} parent=5 // pred_check_branch
      %341 = sbr.rel (%p338) target = $region12
    $region11: #{ain_resblock_forward.1} parent=5 // pred_region
      %s342 = ssub.s32 %s19, 1
      // Predicated region
      $region13: #{ain_resblock_forward.1} parent=11 // pred_check
        %p343 = pneg %p92
      $region14: #{ain_resblock_forward.1} parent=11 // pred_check_branch
        %345 = sbr.rel (%p343) target = $region16
      $region15: #{ain_resblock_forward.1} parent=11 // pred_region
        _
      $region16: #{ain_resblock_forward.1} parent=11 // pred_fallthru
        _
      // Predicated region
      $region17: #{ain_resblock_forward.1} parent=11 // pred_check
        %p346 = pneg %p113
      $region18: #{ain_resblock_forward.1} parent=11 // pred_check_branch
        %348 = sbr.rel (%p346) target = $region20
      $region19: #{ain_resblock_forward.1} parent=11 // pred_region
        _
      $region20: #{ain_resblock_forward.1} parent=11 // pred_fallthru
        _
      // Predicated region
      $region21: #{ain_resblock_forward.1} parent=11 // pred_check
        %p349 = pneg %p134
      $region22: #{ain_resblock_forward.1} parent=11 // pred_check_branch
        %351 = sbr.rel (%p349) target = $region24
      $region23: #{ain_resblock_forward.1} parent=11 // pred_region
        _
      $region24: #{ain_resblock_forward.1} parent=11 // pred_fallthru
        _
      // Predicated region
      $region25: #{ain_resblock_forward.1} parent=11 // pred_check
        %p352 = pneg %p155
      $region26: #{ain_resblock_forward.1} parent=11 // pred_check_branch
        %354 = sbr.rel (%p352) target = $region28
      $region27: #{ain_resblock_forward.1} parent=11 // pred_region
        _
      $region28: #{ain_resblock_forward.1} parent=11 // pred_fallthru
        _
      // Predicated region
      $region29: #{ain_resblock_forward.1} parent=11 // pred_check
        %p355 = pneg %p176
      $region30: #{ain_resblock_forward.1} parent=11 // pred_check_branch
        %357 = sbr.rel (%p355) target = $region32
      $region31: #{ain_resblock_forward.1} parent=11 // pred_region
        _
      $region32: #{ain_resblock_forward.1} parent=11 // pred_fallthru
        _
      // Predicated region
      $region33: #{ain_resblock_forward.1} parent=11 // pred_check
        %p358 = pneg %p197
      $region34: #{ain_resblock_forward.1} parent=11 // pred_check_branch
        %360 = sbr.rel (%p358) target = $region36
      $region35: #{ain_resblock_forward.1} parent=11 // pred_region
        _
      $region36: #{ain_resblock_forward.1} parent=11 // pred_fallthru
        _
      // Predicated region
      $region37: #{ain_resblock_forward.1} parent=11 // pred_check
        %p361 = pneg %p218
      $region38: #{ain_resblock_forward.1} parent=11 // pred_check_branch
        %363 = sbr.rel (%p361) target = $region40
      $region39: #{ain_resblock_forward.1} parent=11 // pred_region
        _
      $region40: #{ain_resblock_forward.1} parent=11 // pred_fallthru
        _
      // Predicated region
      $region41: #{ain_resblock_forward.1} parent=11 // pred_check
        %p364 = pneg %p239
      $region42: #{ain_resblock_forward.1} parent=11 // pred_check_branch
        %366 = sbr.rel (%p364) target = $region44
      $region43: #{ain_resblock_forward.1} parent=11 // pred_region
        _
      $region44: #{ain_resblock_forward.1} parent=11 // pred_fallthru
        _
      // Predicated region
      $region45: #{ain_resblock_forward.1} parent=11 // pred_check
        %p367 = pneg %p260
      $region46: #{ain_resblock_forward.1} parent=11 // pred_check_branch
        %369 = sbr.rel (%p367) target = $region48
      $region47: #{ain_resblock_forward.1} parent=11 // pred_region
        _
      $region48: #{ain_resblock_forward.1} parent=11 // pred_fallthru
        _
      // Predicated region
      $region49: #{ain_resblock_forward.1} parent=11 // pred_check
        %p370 = pneg %p281
      $region50: #{ain_resblock_forward.1} parent=11 // pred_check_branch
        %372 = sbr.rel (%p370) target = $region52
      $region51: #{ain_resblock_forward.1} parent=11 // pred_region
        _
      $region52: #{ain_resblock_forward.1} parent=11 // pred_fallthru
        _
      // Predicated region
      $region53: #{ain_resblock_forward.1} parent=11 // pred_check
        %p373 = pneg %p302
      $region54: #{ain_resblock_forward.1} parent=11 // pred_check_branch
        %375 = sbr.rel (%p373) target = $region56
      $region55: #{ain_resblock_forward.1} parent=11 // pred_region
        _
      $region56: #{ain_resblock_forward.1} parent=11 // pred_fallthru
        _
    $region12: #{ain_resblock_forward.1} parent=5 // pred_fallthru
      _
    %p376 = scmp.lt.s32.totalorder %s19, 2
    // Predicated region
    $region57: #{ain_resblock_forward.1} parent=5 // pred_check
      %p377 = pneg %p376
    $region58: #{ain_resblock_forward.1} parent=5 // pred_check_branch
      %379 = sbr.rel (%p377) target = $region60
    $region59: #{ain_resblock_forward.1} parent=5 // pred_region
      // Predicated region
      $region61: #{ain_resblock_forward.1} parent=59 // pred_check
        %p380 = pneg %p39
      $region62: #{ain_resblock_forward.1} parent=59 // pred_check_branch
        %382 = sbr.rel (%p380) target = $region64
      $region63: #{ain_resblock_forward.1} parent=59 // pred_region
        %p383 = scmp.lt.s32.totalorder %s19, 1
        %s384 = scalar_select %p383, %s19, 1
        %s385 = smul.addr %s384, 2
        %s386 = smul.addr %s385, 4
        %s387 = scalar_lea.vmem %s0, %s386
      $region64: #{ain_resblock_forward.1} parent=59 // pred_fallthru
        _
      // Predicated region
      $region65: #{ain_resblock_forward.1} parent=59 // pred_check
        %p388 = pneg %p65
      $region66: #{ain_resblock_forward.1} parent=59 // pred_check_branch
        %390 = sbr.rel (%p388) target = $region68
      $region67: #{ain_resblock_forward.1} parent=59 // pred_region
        %p391 = scmp.lt.s32.totalorder %s19, 1
        %s392 = scalar_select %p391, %s19, 1
        %s393 = smul.addr %s392, 2
        %s394 = scalar_lea.vmem %s1, %s393
      $region68: #{ain_resblock_forward.1} parent=59 // pred_fallthru
        _
    $region60: #{ain_resblock_forward.1} parent=5 // pred_fallthru
      _
    %p395 = scmp.le.s32.totalorder 1, %s19
    %p396 = scmp.lt.s32.totalorder %s19, 3
    %p397 = pnand %p395, %p396
    %p398 = pneg %p397
    // Predicated region
    $region69: #{ain_resblock_forward.1} parent=5 // pred_check
      _
    $region70: #{ain_resblock_forward.1} parent=5 // pred_check_branch
      %400 = sbr.rel (%p397) target = $region72
    $region71: #{ain_resblock_forward.1} parent=5 // pred_region
      %s401 = ssub.s32 %s19, 1
      %p402 = scmp.lt.s32.totalorder %s24, 1
      %s403 = scalar_select %p402, %s24, 1
      %s404 = smul.addr %s403, 2
      %s405 = smul.addr %s404, 4
      %s406 = scalar_lea.vmem %s0, %s405
      %p407 = pneg %p45
      %p408 = pneg %p42
      %p409 = scmp.lt.s32.totalorder %s24, 1
      %s410 = scalar_select %p409, %s24, 1
      %s411 = smul.addr %s410, 2
      %s412 = scalar_lea.vmem %s1, %s411
      %p413 = pneg %p71
      %p414 = pneg %p68
      %p415 = pneg %p92
      %p416 = pneg %p89
      %p417 = pneg %p113
      %p418 = pneg %p110
      %p419 = pneg %p134
      %p420 = pneg %p131
      %p421 = pneg %p155
      %p422 = pneg %p152
      %p423 = pneg %p176
      %p424 = pneg %p173
      %p425 = pneg %p197
      %p426 = pneg %p194
      %p427 = pneg %p218
      %p428 = pneg %p215
      %p429 = pneg %p239
      %p430 = pneg %p236
      %p431 = pneg %p260
      %p432 = pneg %p257
      %p433 = pneg %p281
      %p434 = pneg %p278
      %p435 = pneg %p302
      %p436 = pneg %p299
      %p437 = pneg %p328
      %p438 = pneg %p325
      %p439 = scmp.lt.s32.totalorder %s24, 1
      %s440 = scalar_select %p439, %s24, 1
      %s441 = smul.addr %s440, 2
      %s442 = smul.addr %s441, 4
      %s443 = scalar_lea.vmem %s13, %s442
      %p444 = scmp.lt.s32.totalorder %s24, 1
      %s445 = scalar_select %p444, %s24, 1
      %s446 = smul.addr %s445, 2
      %s447 = smul.addr %s446, 4
      %s448 = scalar_lea.vmem %s0, %s447
      %p449 = scmp.lt.s32.totalorder %s24, 1
      %s450 = scalar_select %p449, %s24, 1
      %s451 = smul.addr %s450, 2
      %s452 = scalar_lea.vmem %s1, %s451
      %p453 = scmp.lt.s32.totalorder %s24, 1
      %s454 = scalar_select %p453, %s24, 1
      %s455 = smul.addr %s454, 2
      %s456 = smul.addr %s455, 4
      %s457 = scalar_lea.vmem %s13, %s456
      %458 = vst [vmem:[#allocation2] sm:$0xff] 0.0
      %459 = vst [vmem:[#allocation2 + $0x8] sm:$0xff] 0.0
      %v460 = vld [vmem:[%s448] sm:$0xff]
      %v461 = vld [vmem:[%s452] sm:$0x3]
      %v462 = vlaneseq
      %vm463 = vcmp.ge.s32.totalorder %v462, 0
      %vm464 = vcmp.lt.s32.totalorder %v462, 256
      %vm465 = vmand %vm463, %vm464
      %s466 = scalar_lea.vmem [#allocation2], 4
      %467 = vst.msk [vmem:[%s466] ss:$4 sm:$0x3] %vm465, %v461
      %v468 = vld [vmem:[%s2] ss:$8 sm:$0x3]
      %v469 = vld [vmem:[#allocation2] ss:$4 sm:$0x7]
      %471 = vrot.lane.b32.xlu0 %v468, 94
      %v472 = vpop.permute.xlu0 %471
      %v473 = vrot.slane %v472, 7
      %vm474 = vcmask 769024
      %v475 = vsel %vm474, %v473, %v472
      %v477 = vmul.f32 %v469, %v475
      %v478 = vld [vmem:[%s3] sm:$0xf]
      %480 = vset.pattern.permute.xlu0 0
      %481 = vperm.xlu0 %480, %v478
      %v482 = vpop.permute.xlu0 %481
      %v485 = vlaneseq
      %v486 = vshrl.u32 %v485, 7
      %v487 = vsub.s32 0, %v486
      %v488 = vrot.slane %v477, %v487
      %v489 = vlaneseq
      %v490 = vshrl.u32 %v489, 7
      %v491 = vsub.s32 1, %v490
      %v492 = vrot.slane %v477, %v491
      %v493 = vlaneseq
      %v494 = vshrl.u32 %v493, 7
      %v495 = vsub.s32 2, %v494
      %v496 = vrot.slane %v477, %v495
      %v500 = vmul.f32 %v482, %v488
      %v501 = vmul.f32 %v482, %v492
      %v502 = vmul.f32 %v482, %v496
      %s503 = scalar_lea.vmem %s2, 1
      %v504 = vld [vmem:[%s503] ss:$8 sm:$0x3]
      %506 = vrot.lane.b32.xlu0 %v504, 95
      %v507 = vpop.permute.xlu0 %506
      %v508 = vrot.slane %v507, 7
      %vm509 = vcmask 777216
      %v510 = vsel %vm509, %v508, %v507
      %v512 = vmul.f32 %v469, %v510
      %s513 = scalar_lea.vmem %s3, 4
      %v514 = vld [vmem:[%s513] sm:$0xf]
      %516 = vset.pattern.permute.xlu0 0
      %517 = vperm.xlu0 %516, %v514
      %v518 = vpop.permute.xlu0 %517
      %v521 = vlaneseq
      %v522 = vshrl.u32 %v521, 7
      %v523 = vsub.s32 0, %v522
      %v524 = vrot.slane %v512, %v523
      %v525 = vlaneseq
      %v526 = vshrl.u32 %v525, 7
      %v527 = vsub.s32 1, %v526
      %v528 = vrot.slane %v512, %v527
      %v529 = vlaneseq
      %v530 = vshrl.u32 %v529, 7
      %v531 = vsub.s32 2, %v530
      %v532 = vrot.slane %v512, %v531
      %v536 = vmul.f32 %v518, %v524
      %v537 = vmul.f32 %v518, %v528
      %v538 = vmul.f32 %v518, %v532
      %542 = vrot.lane.b32.xlu0 %v536, 127
      %v543 = vpop.permute.xlu0 %542
      %544 = vrot.lane.b32.xlu0 %v537, 127
      %v545 = vpop.permute.xlu0 %544
      %546 = vrot.lane.b32.xlu0 %v538, 127
      %v547 = vpop.permute.xlu0 %546
      %vm548 = vcmask 1039360
      %v549 = vsel %vm548, %v543, %v545
      %v550 = vsel %vm548, %v545, %v547
      %v554 = vadd.f32 %v500, %v549
      %v555 = vadd.f32 %v501, %v550
      %v556 = vadd.f32 %v502, %v547
      %s557 = scalar_lea.vmem %s2, 2
      %v558 = vld [vmem:[%s557] ss:$8 sm:$0x3]
      %560 = vrot.lane.b32.xlu0 %v558, 96
      %v561 = vpop.permute.xlu0 %560
      %v562 = vrot.slane %v561, 7
      %vm563 = vcmask 785408
      %v564 = vsel %vm563, %v562, %v561
      %v566 = vmul.f32 %v469, %v564
      %s567 = scalar_lea.vmem %s3, 8
      %v568 = vld [vmem:[%s567] sm:$0xf]
      %570 = vset.pattern.permute.xlu0 0
      %571 = vperm.xlu0 %570, %v568
      %v572 = vpop.permute.xlu0 %571
      %v575 = vlaneseq
      %v576 = vshrl.u32 %v575, 7
      %v577 = vsub.s32 0, %v576
      %v578 = vrot.slane %v566, %v577
      %v579 = vlaneseq
      %v580 = vshrl.u32 %v579, 7
      %v581 = vsub.s32 1, %v580
      %v582 = vrot.slane %v566, %v581
      %v583 = vlaneseq
      %v584 = vshrl.u32 %v583, 7
      %v585 = vsub.s32 2, %v584
      %v586 = vrot.slane %v566, %v585
      %v590 = vmul.f32 %v572, %v578
      %v591 = vmul.f32 %v572, %v582
      %v592 = vmul.f32 %v572, %v586
      %596 = vrot.lane.b32.xlu0 %v590, 126
      %v597 = vpop.permute.xlu0 %596
      %598 = vrot.lane.b32.xlu0 %v591, 126
      %v599 = vpop.permute.xlu0 %598
      %600 = vrot.lane.b32.xlu0 %v592, 126
      %v601 = vpop.permute.xlu0 %600
      %vm602 = vcmask 1031168
      %v603 = vsel %vm602, %v597, %v599
      %v604 = vsel %vm602, %v599, %v601
      %v608 = vadd.f32 %v554, %v603
      %v609 = vadd.f32 %v555, %v604
      %v610 = vadd.f32 %v556, %v601
      %s611 = scalar_lea.vmem %s2, 3
      %v612 = vld [vmem:[%s611] ss:$8 sm:$0x3]
      %614 = vrot.lane.b32.xlu0 %v612, 97
      %v615 = vpop.permute.xlu0 %614
      %v616 = vrot.slane %v615, 7
      %vm617 = vcmask 793600
      %v618 = vsel %vm617, %v616, %v615
      %v620 = vmul.f32 %v469, %v618
      %s621 = scalar_lea.vmem %s3, 12
      %v622 = vld [vmem:[%s621] sm:$0xf]
      %624 = vset.pattern.permute.xlu0 0
      %625 = vperm.xlu0 %624, %v622
      %v626 = vpop.permute.xlu0 %625
      %v629 = vlaneseq
      %v630 = vshrl.u32 %v629, 7
      %v631 = vsub.s32 0, %v630
      %v632 = vrot.slane %v620, %v631
      %v633 = vlaneseq
      %v634 = vshrl.u32 %v633, 7
      %v635 = vsub.s32 1, %v634
      %v636 = vrot.slane %v620, %v635
      %v637 = vlaneseq
      %v638 = vshrl.u32 %v637, 7
      %v639 = vsub.s32 2, %v638
      %v640 = vrot.slane %v620, %v639
      %v644 = vmul.f32 %v626, %v632
      %v645 = vmul.f32 %v626, %v636
      %v646 = vmul.f32 %v626, %v640
      %650 = vrot.lane.b32.xlu0 %v644, 125
      %v651 = vpop.permute.xlu0 %650
      %652 = vrot.lane.b32.xlu0 %v645, 125
      %v653 = vpop.permute.xlu0 %652
      %654 = vrot.lane.b32.xlu0 %v646, 125
      %v655 = vpop.permute.xlu0 %654
      %vm656 = vcmask 1022976
      %v657 = vsel %vm656, %v651, %v653
      %v658 = vsel %vm656, %v653, %v655
      %v662 = vadd.f32 %v608, %v657
      %v663 = vadd.f32 %v609, %v658
      %v664 = vadd.f32 %v610, %v655
      %s665 = scalar_lea.vmem %s2, 4
      %v666 = vld [vmem:[%s665] ss:$8 sm:$0x3]
      %668 = vrot.lane.b32.xlu0 %v666, 98
      %v669 = vpop.permute.xlu0 %668
      %v670 = vrot.slane %v669, 7
      %vm671 = vcmask 801792
      %v672 = vsel %vm671, %v670, %v669
      %v674 = vmul.f32 %v469, %v672
      %s675 = scalar_lea.vmem %s3, 16
      %v676 = vld [vmem:[%s675] sm:$0xf]
      %678 = vset.pattern.permute.xlu0 0
      %679 = vperm.xlu0 %678, %v676
      %v680 = vpop.permute.xlu0 %679
      %v683 = vlaneseq
      %v684 = vshrl.u32 %v683, 7
      %v685 = vsub.s32 0, %v684
      %v686 = vrot.slane %v674, %v685
      %v687 = vlaneseq
      %v688 = vshrl.u32 %v687, 7
      %v689 = vsub.s32 1, %v688
      %v690 = vrot.slane %v674, %v689
      %v691 = vlaneseq
      %v692 = vshrl.u32 %v691, 7
      %v693 = vsub.s32 2, %v692
      %v694 = vrot.slane %v674, %v693
      %v698 = vmul.f32 %v680, %v686
      %v699 = vmul.f32 %v680, %v690
      %v700 = vmul.f32 %v680, %v694
      %704 = vrot.lane.b32.xlu0 %v698, 124
      %v705 = vpop.permute.xlu0 %704
      %706 = vrot.lane.b32.xlu0 %v699, 124
      %v707 = vpop.permute.xlu0 %706
      %708 = vrot.lane.b32.xlu0 %v700, 124
      %v709 = vpop.permute.xlu0 %708
      %vm710 = vcmask 1014784
      %v711 = vsel %vm710, %v705, %v707
      %v712 = vsel %vm710, %v707, %v709
      %v716 = vadd.f32 %v662, %v711
      %v717 = vadd.f32 %v663, %v712
      %v718 = vadd.f32 %v664, %v709
      %719 = vrot.lane.b32.xlu0 %v468, 110
      %v720 = vpop.permute.xlu0 %719
      %v721 = vrot.slane %v720, 7
      %vm722 = vcmask 900096
      %v723 = vsel %vm722, %v721, %v720
      %v725 = vmul.f32 %v469, %v723
      %s726 = scalar_lea.vmem %s3, 20
      %v727 = vld [vmem:[%s726] sm:$0xf]
      %729 = vset.pattern.permute.xlu0 0
      %730 = vperm.xlu0 %729, %v727
      %v731 = vpop.permute.xlu0 %730
      %v734 = vlaneseq
      %v735 = vshrl.u32 %v734, 7
      %v736 = vsub.s32 0, %v735
      %v737 = vrot.slane %v725, %v736
      %v738 = vlaneseq
      %v739 = vshrl.u32 %v738, 7
      %v740 = vsub.s32 1, %v739
      %v741 = vrot.slane %v725, %v740
      %v742 = vlaneseq
      %v743 = vshrl.u32 %v742, 7
      %v744 = vsub.s32 2, %v743
      %v745 = vrot.slane %v725, %v744
      %v749 = vmul.f32 %v731, %v737
      %v750 = vmul.f32 %v731, %v741
      %v751 = vmul.f32 %v731, %v745
      %755 = vrot.lane.b32.xlu0 %v749, 112
      %v756 = vpop.permute.xlu0 %755
      %757 = vrot.lane.b32.xlu0 %v750, 112
      %v758 = vpop.permute.xlu0 %757
      %759 = vrot.lane.b32.xlu0 %v751, 112
      %v760 = vpop.permute.xlu0 %759
      %vm761 = vcmask 916480
      %v762 = vsel %vm761, %v756, %v758
      %v763 = vsel %vm761, %v758, %v760
      %v767 = vadd.f32 %v716, %v762
      %v768 = vadd.f32 %v717, %v763
      %v769 = vadd.f32 %v718, %v760
      %770 = vrot.lane.b32.xlu0 %v504, 111
      %v771 = vpop.permute.xlu0 %770
      %v772 = vrot.slane %v771, 7
      %vm773 = vcmask 908288
      %v774 = vsel %vm773, %v772, %v771
      %v776 = vmul.f32 %v469, %v774
      %s777 = scalar_lea.vmem %s3, 24
      %v778 = vld [vmem:[%s777] sm:$0xf]
      %780 = vset.pattern.permute.xlu0 0
      %781 = vperm.xlu0 %780, %v778
      %v782 = vpop.permute.xlu0 %781
      %v785 = vlaneseq
      %v786 = vshrl.u32 %v785, 7
      %v787 = vsub.s32 0, %v786
      %v788 = vrot.slane %v776, %v787
      %v789 = vlaneseq
      %v790 = vshrl.u32 %v789, 7
      %v791 = vsub.s32 1, %v790
      %v792 = vrot.slane %v776, %v791
      %v793 = vlaneseq
      %v794 = vshrl.u32 %v793, 7
      %v795 = vsub.s32 2, %v794
      %v796 = vrot.slane %v776, %v795
      %v800 = vmul.f32 %v782, %v788
      %v801 = vmul.f32 %v782, %v792
      %v802 = vmul.f32 %v782, %v796
      %806 = vrot.lane.b32.xlu0 %v800, 111
      %v807 = vpop.permute.xlu0 %806
      %808 = vrot.lane.b32.xlu0 %v801, 111
      %v809 = vpop.permute.xlu0 %808
      %810 = vrot.lane.b32.xlu0 %v802, 111
      %v811 = vpop.permute.xlu0 %810
      %v812 = vsel %vm773, %v807, %v809
      %v813 = vsel %vm773, %v809, %v811
      %v817 = vadd.f32 %v767, %v812
      %v818 = vadd.f32 %v768, %v813
      %v819 = vadd.f32 %v769, %v811
      %820 = vrot.lane.b32.xlu0 %v558, 112
      %v821 = vpop.permute.xlu0 %820
      %v822 = vrot.slane %v821, 7
      %v823 = vsel %vm761, %v822, %v821
      %v825 = vmul.f32 %v469, %v823
      %s826 = scalar_lea.vmem %s3, 28
      %v827 = vld [vmem:[%s826] sm:$0xf]
      %829 = vset.pattern.permute.xlu0 0
      %830 = vperm.xlu0 %829, %v827
      %v831 = vpop.permute.xlu0 %830
      %v834 = vlaneseq
      %v835 = vshrl.u32 %v834, 7
      %v836 = vsub.s32 0, %v835
      %v837 = vrot.slane %v825, %v836
      %v838 = vlaneseq
      %v839 = vshrl.u32 %v838, 7
      %v840 = vsub.s32 1, %v839
      %v841 = vrot.slane %v825, %v840
      %v842 = vlaneseq
      %v843 = vshrl.u32 %v842, 7
      %v844 = vsub.s32 2, %v843
      %v845 = vrot.slane %v825, %v844
      %v849 = vmul.f32 %v831, %v837
      %v850 = vmul.f32 %v831, %v841
      %v851 = vmul.f32 %v831, %v845
      %855 = vrot.lane.b32.xlu0 %v849, 110
      %v856 = vpop.permute.xlu0 %855
      %857 = vrot.lane.b32.xlu0 %v850, 110
      %v858 = vpop.permute.xlu0 %857
      %859 = vrot.lane.b32.xlu0 %v851, 110
      %v860 = vpop.permute.xlu0 %859
      %v861 = vsel %vm722, %v856, %v858
      %v862 = vsel %vm722, %v858, %v860
      %v866 = vadd.f32 %v817, %v861
      %v867 = vadd.f32 %v818, %v862
      %v868 = vadd.f32 %v819, %v860
      %869 = vrot.lane.b32.xlu0 %v612, 113
      %v870 = vpop.permute.xlu0 %869
      %v871 = vrot.slane %v870, 7
      %vm872 = vcmask 924672
      %v873 = vsel %vm872, %v871, %v870
      %v875 = vmul.f32 %v469, %v873
      %s876 = scalar_lea.vmem %s3, 32
      %v877 = vld [vmem:[%s876] sm:$0xf]
      %879 = vset.pattern.permute.xlu0 0
      %880 = vperm.xlu0 %879, %v877
      %v881 = vpop.permute.xlu0 %880
      %v884 = vlaneseq
      %v885 = vshrl.u32 %v884, 7
      %v886 = vsub.s32 0, %v885
      %v887 = vrot.slane %v875, %v886
      %v888 = vlaneseq
      %v889 = vshrl.u32 %v888, 7
      %v890 = vsub.s32 1, %v889
      %v891 = vrot.slane %v875, %v890
      %v892 = vlaneseq
      %v893 = vshrl.u32 %v892, 7
      %v894 = vsub.s32 2, %v893
      %v895 = vrot.slane %v875, %v894
      %v899 = vmul.f32 %v881, %v887
      %v900 = vmul.f32 %v881, %v891
      %v901 = vmul.f32 %v881, %v895
      %905 = vrot.lane.b32.xlu0 %v899, 109
      %v906 = vpop.permute.xlu0 %905
      %907 = vrot.lane.b32.xlu0 %v900, 109
      %v908 = vpop.permute.xlu0 %907
      %909 = vrot.lane.b32.xlu0 %v901, 109
      %v910 = vpop.permute.xlu0 %909
      %vm911 = vcmask 891904
      %v912 = vsel %vm911, %v906, %v908
      %v913 = vsel %vm911, %v908, %v910
      %v917 = vadd.f32 %v866, %v912
      %v918 = vadd.f32 %v867, %v913
      %v919 = vadd.f32 %v868, %v910
      %920 = vrot.lane.b32.xlu0 %v666, 114
      %v921 = vpop.permute.xlu0 %920
      %v922 = vrot.slane %v921, 7
      %vm923 = vcmask 932864
      %v924 = vsel %vm923, %v922, %v921
      %v926 = vmul.f32 %v469, %v924
      %s927 = scalar_lea.vmem %s3, 36
      %v928 = vld [vmem:[%s927] sm:$0xf]
      %930 = vset.pattern.permute.xlu0 0
      %931 = vperm.xlu0 %930, %v928
      %v932 = vpop.permute.xlu0 %931
      %v935 = vlaneseq
      %v936 = vshrl.u32 %v935, 7
      %v937 = vsub.s32 0, %v936
      %v938 = vrot.slane %v926, %v937
      %v939 = vlaneseq
      %v940 = vshrl.u32 %v939, 7
      %v941 = vsub.s32 1, %v940
      %v942 = vrot.slane %v926, %v941
      %v943 = vlaneseq
      %v944 = vshrl.u32 %v943, 7
      %v945 = vsub.s32 2, %v944
      %v946 = vrot.slane %v926, %v945
      %v950 = vmul.f32 %v932, %v938
      %v951 = vmul.f32 %v932, %v942
      %v952 = vmul.f32 %v932, %v946
      %956 = vrot.lane.b32.xlu0 %v950, 108
      %v957 = vpop.permute.xlu0 %956
      %958 = vrot.lane.b32.xlu0 %v951, 108
      %v959 = vpop.permute.xlu0 %958
      %960 = vrot.lane.b32.xlu0 %v952, 108
      %v961 = vpop.permute.xlu0 %960
      %vm962 = vcmask 883712
      %v963 = vsel %vm962, %v957, %v959
      %v964 = vsel %vm962, %v959, %v961
      %v968 = vadd.f32 %v917, %v963
      %v969 = vadd.f32 %v918, %v964
      %v970 = vadd.f32 %v919, %v961
      %971 = vrot.lane.b32.xlu0 %v468, 126
      %v972 = vpop.permute.xlu0 %971
      %v973 = vrot.slane %v972, 7
      %v974 = vsel %vm602, %v973, %v972
      %v976 = vmul.f32 %v469, %v974
      %s977 = scalar_lea.vmem %s3, 40
      %v978 = vld [vmem:[%s977] sm:$0xf]
      %980 = vset.pattern.permute.xlu0 0
      %981 = vperm.xlu0 %980, %v978
      %v982 = vpop.permute.xlu0 %981
      %v985 = vlaneseq
      %v986 = vshrl.u32 %v985, 7
      %v987 = vsub.s32 0, %v986
      %v988 = vrot.slane %v976, %v987
      %v989 = vlaneseq
      %v990 = vshrl.u32 %v989, 7
      %v991 = vsub.s32 1, %v990
      %v992 = vrot.slane %v976, %v991
      %v993 = vlaneseq
      %v994 = vshrl.u32 %v993, 7
      %v995 = vsub.s32 2, %v994
      %v996 = vrot.slane %v976, %v995
      %v1000 = vmul.f32 %v982, %v988
      %v1001 = vmul.f32 %v982, %v992
      %v1002 = vmul.f32 %v982, %v996
      %1006 = vrot.lane.b32.xlu0 %v1000, 96
      %v1007 = vpop.permute.xlu0 %1006
      %1008 = vrot.lane.b32.xlu0 %v1001, 96
      %v1009 = vpop.permute.xlu0 %1008
      %1010 = vrot.lane.b32.xlu0 %v1002, 96
      %v1011 = vpop.permute.xlu0 %1010
      %v1012 = vsel %vm563, %v1007, %v1009
      %v1013 = vsel %vm563, %v1009, %v1011
      %v1017 = vadd.f32 %v968, %v1012
      %v1018 = vadd.f32 %v969, %v1013
      %v1019 = vadd.f32 %v970, %v1011
      %1020 = vrot.lane.b32.xlu0 %v504, 127
      %v1021 = vpop.permute.xlu0 %1020
      %v1022 = vrot.slane %v1021, 7
      %v1023 = vsel %vm548, %v1022, %v1021
      %v1025 = vmul.f32 %v469, %v1023
      %s1026 = scalar_lea.vmem %s3, 44
      %v1027 = vld [vmem:[%s1026] sm:$0xf]
      %1029 = vset.pattern.permute.xlu0 0
      %1030 = vperm.xlu0 %1029, %v1027
      %v1031 = vpop.permute.xlu0 %1030
      %v1034 = vlaneseq
      %v1035 = vshrl.u32 %v1034, 7
      %v1036 = vsub.s32 0, %v1035
      %v1037 = vrot.slane %v1025, %v1036
      %v1038 = vlaneseq
      %v1039 = vshrl.u32 %v1038, 7
      %v1040 = vsub.s32 1, %v1039
      %v1041 = vrot.slane %v1025, %v1040
      %v1042 = vlaneseq
      %v1043 = vshrl.u32 %v1042, 7
      %v1044 = vsub.s32 2, %v1043
      %v1045 = vrot.slane %v1025, %v1044
      %v1049 = vmul.f32 %v1031, %v1037
      %v1050 = vmul.f32 %v1031, %v1041
      %v1051 = vmul.f32 %v1031, %v1045
      %1055 = vrot.lane.b32.xlu0 %v1049, 95
      %v1056 = vpop.permute.xlu0 %1055
      %1057 = vrot.lane.b32.xlu0 %v1050, 95
      %v1058 = vpop.permute.xlu0 %1057
      %1059 = vrot.lane.b32.xlu0 %v1051, 95
      %v1060 = vpop.permute.xlu0 %1059
      %v1061 = vsel %vm509, %v1056, %v1058
      %v1062 = vsel %vm509, %v1058, %v1060
      %v1066 = vadd.f32 %v1017, %v1061
      %v1067 = vadd.f32 %v1018, %v1062
      %v1068 = vadd.f32 %v1019, %v1060
      %v1069 = vld [vmem:[%s466] ss:$4 sm:$0x3]
      %v1070 = vmul.f32 %v1069, %v558
      %s1071 = scalar_lea.vmem %s3, 48
      %v1072 = vld [vmem:[%s1071] sm:$0xf]
      %1074 = vset.pattern.permute.xlu0 0
      %1075 = vperm.xlu0 %1074, %v1072
      %v1076 = vpop.permute.xlu0 %1075
      %v1079 = vlaneseq
      %v1080 = vshrl.u32 %v1079, 7
      %v1081 = vsub.s32 0, %v1080
      %v1082 = vrot.slane %v1070, %v1081
      %v1083 = vlaneseq
      %v1084 = vshrl.u32 %v1083, 7
      %v1085 = vsub.s32 1, %v1084
      %v1086 = vrot.slane %v1070, %v1085
      %v1089 = vmul.f32 %v1076, %v1082
      %v1090 = vmul.f32 %v1076, %v1086
      %1093 = vrot.lane.b32.xlu0 %v1089, 94
      %v1094 = vpop.permute.xlu0 %1093
      %1095 = vrot.lane.b32.xlu0 %v1090, 94
      %v1096 = vpop.permute.xlu0 %1095
      %v1097 = vsel %vm474, %v1094, %v1096
      %v1101 = vadd.f32 %v1066, %v1094
      %v1102 = vadd.f32 %v1067, %v1097
      %v1103 = vadd.f32 %v1068, %v1096
      %s1104 = scalar_lea.vmem [#allocation2], 4
      %v1105 = vld [vmem:[%s1104] ss:$4 sm:$0x7]
      %1106 = vrot.lane.b32.xlu0 %v612, 1
      %v1107 = vpop.permute.xlu0 %1106
      %v1108 = vrot.slane %v1107, 7
      %vm1109 = vcmask 7168
      %v1110 = vsel %vm1109, %v1108, %v1107
      %v1112 = vmul.f32 %v1105, %v1110
      %s1113 = scalar_lea.vmem %s3, 52
      %v1114 = vld [vmem:[%s1113] sm:$0xf]
      %1116 = vset.pattern.permute.xlu0 0
      %1117 = vperm.xlu0 %1116, %v1114
      %v1118 = vpop.permute.xlu0 %1117
      %v1121 = vlaneseq
      %v1122 = vshrl.u32 %v1121, 7
      %v1123 = vsub.s32 0, %v1122
      %v1124 = vrot.slane %v1112, %v1123
      %v1125 = vlaneseq
      %v1126 = vshrl.u32 %v1125, 7
      %v1127 = vsub.s32 1, %v1126
      %v1128 = vrot.slane %v1112, %v1127
      %v1129 = vlaneseq
      %v1130 = vshrl.u32 %v1129, 7
      %v1131 = vsub.s32 2, %v1130
      %v1132 = vrot.slane %v1112, %v1131
      %v1136 = vmul.f32 %v1118, %v1124
      %v1137 = vmul.f32 %v1118, %v1128
      %v1138 = vmul.f32 %v1118, %v1132
      %1142 = vrot.lane.b32.xlu0 %v1136, 93
      %v1143 = vpop.permute.xlu0 %1142
      %1144 = vrot.lane.b32.xlu0 %v1137, 93
      %v1145 = vpop.permute.xlu0 %1144
      %1146 = vrot.lane.b32.xlu0 %v1138, 93
      %v1147 = vpop.permute.xlu0 %1146
      %vm1148 = vcmask 760832
      %v1149 = vsel %vm1148, %v1143, %v1145
      %v1150 = vsel %vm1148, %v1145, %v1147
      %v1154 = vadd.f32 %v1101, %v1143
      %v1155 = vadd.f32 %v1102, %v1149
      %v1156 = vadd.f32 %v1103, %v1150
      %1157 = vrot.lane.b32.xlu0 %v666, 2
      %v1158 = vpop.permute.xlu0 %1157
      %v1159 = vrot.slane %v1158, 7
      %vm1160 = vcmask 15360
      %v1161 = vsel %vm1160, %v1159, %v1158
      %v1163 = vmul.f32 %v1105, %v1161
      %s1164 = scalar_lea.vmem %s3, 56
      %v1165 = vld [vmem:[%s1164] sm:$0xf]
      %1167 = vset.pattern.permute.xlu0 0
      %1168 = vperm.xlu0 %1167, %v1165
      %v1169 = vpop.permute.xlu0 %1168
      %v1172 = vlaneseq
      %v1173 = vshrl.u32 %v1172, 7
      %v1174 = vsub.s32 0, %v1173
      %v1175 = vrot.slane %v1163, %v1174
      %v1176 = vlaneseq
      %v1177 = vshrl.u32 %v1176, 7
      %v1178 = vsub.s32 1, %v1177
      %v1179 = vrot.slane %v1163, %v1178
      %v1180 = vlaneseq
      %v1181 = vshrl.u32 %v1180, 7
      %v1182 = vsub.s32 2, %v1181
      %v1183 = vrot.slane %v1163, %v1182
      %v1187 = vmul.f32 %v1169, %v1175
      %v1188 = vmul.f32 %v1169, %v1179
      %v1189 = vmul.f32 %v1169, %v1183
      %1193 = vrot.lane.b32.xlu0 %v1187, 92
      %v1194 = vpop.permute.xlu0 %1193
      %1195 = vrot.lane.b32.xlu0 %v1188, 92
      %v1196 = vpop.permute.xlu0 %1195
      %1197 = vrot.lane.b32.xlu0 %v1189, 92
      %v1198 = vpop.permute.xlu0 %1197
      %vm1199 = vcmask 752640
      %v1200 = vsel %vm1199, %v1194, %v1196
      %v1201 = vsel %vm1199, %v1196, %v1198
      %v1205 = vadd.f32 %v1154, %v1194
      %v1206 = vadd.f32 %v1155, %v1200
      %v1207 = vadd.f32 %v1156, %v1201
      %1208 = vrot.lane.b32.xlu0 %v468, 14
      %v1209 = vpop.permute.xlu0 %1208
      %v1210 = vrot.slane %v1209, 7
      %vm1211 = vcmask 113664
      %v1212 = vsel %vm1211, %v1210, %v1209
      %v1214 = vmul.f32 %v1105, %v1212
      %s1215 = scalar_lea.vmem %s3, 60
      %v1216 = vld [vmem:[%s1215] sm:$0xf]
      %1218 = vset.pattern.permute.xlu0 0
      %1219 = vperm.xlu0 %1218, %v1216
      %v1220 = vpop.permute.xlu0 %1219
      %v1223 = vlaneseq
      %v1224 = vshrl.u32 %v1223, 7
      %v1225 = vsub.s32 0, %v1224
      %v1226 = vrot.slane %v1214, %v1225
      %v1227 = vlaneseq
      %v1228 = vshrl.u32 %v1227, 7
      %v1229 = vsub.s32 1, %v1228
      %v1230 = vrot.slane %v1214, %v1229
      %v1231 = vlaneseq
      %v1232 = vshrl.u32 %v1231, 7
      %v1233 = vsub.s32 2, %v1232
      %v1234 = vrot.slane %v1214, %v1233
      %v1238 = vmul.f32 %v1220, %v1226
      %v1239 = vmul.f32 %v1220, %v1230
      %v1240 = vmul.f32 %v1220, %v1234
      %1244 = vrot.lane.b32.xlu0 %v1238, 80
      %v1245 = vpop.permute.xlu0 %1244
      %1246 = vrot.lane.b32.xlu0 %v1239, 80
      %v1247 = vpop.permute.xlu0 %1246
      %1248 = vrot.lane.b32.xlu0 %v1240, 80
      %v1249 = vpop.permute.xlu0 %1248
      %vm1250 = vcmask 654336
      %v1251 = vsel %vm1250, %v1245, %v1247
      %v1252 = vsel %vm1250, %v1247, %v1249
      %v1256 = vadd.f32 %v1205, %v1245
      %v1257 = vadd.f32 %v1206, %v1251
      %v1258 = vadd.f32 %v1207, %v1252
      %1259 = vrot.lane.b32.xlu0 %v504, 15
      %v1260 = vpop.permute.xlu0 %1259
      %v1261 = vrot.slane %v1260, 7
      %vm1262 = vcmask 121856
      %v1263 = vsel %vm1262, %v1261, %v1260
      %v1265 = vmul.f32 %v1105, %v1263
      %s1266 = scalar_lea.vmem %s3, 64
      %v1267 = vld [vmem:[%s1266] sm:$0xf]
      %1269 = vset.pattern.permute.xlu0 0
      %1270 = vperm.xlu0 %1269, %v1267
      %v1271 = vpop.permute.xlu0 %1270
      %v1274 = vlaneseq
      %v1275 = vshrl.u32 %v1274, 7
      %v1276 = vsub.s32 0, %v1275
      %v1277 = vrot.slane %v1265, %v1276
      %v1278 = vlaneseq
      %v1279 = vshrl.u32 %v1278, 7
      %v1280 = vsub.s32 1, %v1279
      %v1281 = vrot.slane %v1265, %v1280
      %v1282 = vlaneseq
      %v1283 = vshrl.u32 %v1282, 7
      %v1284 = vsub.s32 2, %v1283
      %v1285 = vrot.slane %v1265, %v1284
      %v1289 = vmul.f32 %v1271, %v1277
      %v1290 = vmul.f32 %v1271, %v1281
      %v1291 = vmul.f32 %v1271, %v1285
      %1295 = vrot.lane.b32.xlu0 %v1289, 79
      %v1296 = vpop.permute.xlu0 %1295
      %1297 = vrot.lane.b32.xlu0 %v1290, 79
      %v1298 = vpop.permute.xlu0 %1297
      %1299 = vrot.lane.b32.xlu0 %v1291, 79
      %v1300 = vpop.permute.xlu0 %1299
      %vm1301 = vcmask 646144
      %v1302 = vsel %vm1301, %v1296, %v1298
      %v1303 = vsel %vm1301, %v1298, %v1300
      %v1307 = vadd.f32 %v1256, %v1296
      %v1308 = vadd.f32 %v1257, %v1302
      %v1309 = vadd.f32 %v1258, %v1303
      %1310 = vrot.lane.b32.xlu0 %v558, 16
      %v1311 = vpop.permute.xlu0 %1310
      %v1312 = vrot.slane %v1311, 7
      %vm1313 = vcmask 130048
      %v1314 = vsel %vm1313, %v1312, %v1311
      %v1316 = vmul.f32 %v1105, %v1314
      %s1317 = scalar_lea.vmem %s3, 68
      %v1318 = vld [vmem:[%s1317] sm:$0xf]
      %1320 = vset.pattern.permute.xlu0 0
      %1321 = vperm.xlu0 %1320, %v1318
      %v1322 = vpop.permute.xlu0 %1321
      %v1325 = vlaneseq
      %v1326 = vshrl.u32 %v1325, 7
      %v1327 = vsub.s32 0, %v1326
      %v1328 = vrot.slane %v1316, %v1327
      %v1329 = vlaneseq
      %v1330 = vshrl.u32 %v1329, 7
      %v1331 = vsub.s32 1, %v1330
      %v1332 = vrot.slane %v1316, %v1331
      %v1333 = vlaneseq
      %v1334 = vshrl.u32 %v1333, 7
      %v1335 = vsub.s32 2, %v1334
      %v1336 = vrot.slane %v1316, %v1335
      %v1340 = vmul.f32 %v1322, %v1328
      %v1341 = vmul.f32 %v1322, %v1332
      %v1342 = vmul.f32 %v1322, %v1336
      %1346 = vrot.lane.b32.xlu0 %v1340, 78
      %v1347 = vpop.permute.xlu0 %1346
      %1348 = vrot.lane.b32.xlu0 %v1341, 78
      %v1349 = vpop.permute.xlu0 %1348
      %1350 = vrot.lane.b32.xlu0 %v1342, 78
      %v1351 = vpop.permute.xlu0 %1350
      %vm1352 = vcmask 637952
      %v1353 = vsel %vm1352, %v1347, %v1349
      %v1354 = vsel %vm1352, %v1349, %v1351
      %v1358 = vadd.f32 %v1307, %v1347
      %v1359 = vadd.f32 %v1308, %v1353
      %v1360 = vadd.f32 %v1309, %v1354
      %1361 = vrot.lane.b32.xlu0 %v612, 17
      %v1362 = vpop.permute.xlu0 %1361
      %v1363 = vrot.slane %v1362, 7
      %vm1364 = vcmask 138240
      %v1365 = vsel %vm1364, %v1363, %v1362
      %v1367 = vmul.f32 %v1105, %v1365
      %s1368 = scalar_lea.vmem %s3, 72
      %v1369 = vld [vmem:[%s1368] sm:$0xf]
      %1371 = vset.pattern.permute.xlu0 0
      %1372 = vperm.xlu0 %1371, %v1369
      %v1373 = vpop.permute.xlu0 %1372
      %v1376 = vlaneseq
      %v1377 = vshrl.u32 %v1376, 7
      %v1378 = vsub.s32 0, %v1377
      %v1379 = vrot.slane %v1367, %v1378
      %v1380 = vlaneseq
      %v1381 = vshrl.u32 %v1380, 7
      %v1382 = vsub.s32 1, %v1381
      %v1383 = vrot.slane %v1367, %v1382
      %v1384 = vlaneseq
      %v1385 = vshrl.u32 %v1384, 7
      %v1386 = vsub.s32 2, %v1385
      %v1387 = vrot.slane %v1367, %v1386
      %v1391 = vmul.f32 %v1373, %v1379
      %v1392 = vmul.f32 %v1373, %v1383
      %v1393 = vmul.f32 %v1373, %v1387
      %1397 = vrot.lane.b32.xlu0 %v1391, 77
      %v1398 = vpop.permute.xlu0 %1397
      %1399 = vrot.lane.b32.xlu0 %v1392, 77
      %v1400 = vpop.permute.xlu0 %1399
      %1401 = vrot.lane.b32.xlu0 %v1393, 77
      %v1402 = vpop.permute.xlu0 %1401
      %vm1403 = vcmask 629760
      %v1404 = vsel %vm1403, %v1398, %v1400
      %v1405 = vsel %vm1403, %v1400, %v1402
      %v1409 = vadd.f32 %v1358, %v1398
      %v1410 = vadd.f32 %v1359, %v1404
      %v1411 = vadd.f32 %v1360, %v1405
      %1412 = vrot.lane.b32.xlu0 %v666, 18
      %v1413 = vpop.permute.xlu0 %1412
      %v1414 = vrot.slane %v1413, 7
      %vm1415 = vcmask 146432
      %v1416 = vsel %vm1415, %v1414, %v1413
      %v1418 = vmul.f32 %v1105, %v1416
      %s1419 = scalar_lea.vmem %s3, 76
      %v1420 = vld [vmem:[%s1419] sm:$0xf]
      %1422 = vset.pattern.permute.xlu0 0
      %1423 = vperm.xlu0 %1422, %v1420
      %v1424 = vpop.permute.xlu0 %1423
      %v1427 = vlaneseq
      %v1428 = vshrl.u32 %v1427, 7
      %v1429 = vsub.s32 0, %v1428
      %v1430 = vrot.slane %v1418, %v1429
      %v1431 = vlaneseq
      %v1432 = vshrl.u32 %v1431, 7
      %v1433 = vsub.s32 1, %v1432
      %v1434 = vrot.slane %v1418, %v1433
      %v1435 = vlaneseq
      %v1436 = vshrl.u32 %v1435, 7
      %v1437 = vsub.s32 2, %v1436
      %v1438 = vrot.slane %v1418, %v1437
      %v1442 = vmul.f32 %v1424, %v1430
      %v1443 = vmul.f32 %v1424, %v1434
      %v1444 = vmul.f32 %v1424, %v1438
      %1448 = vrot.lane.b32.xlu0 %v1442, 76
      %v1449 = vpop.permute.xlu0 %1448
      %1450 = vrot.lane.b32.xlu0 %v1443, 76
      %v1451 = vpop.permute.xlu0 %1450
      %1452 = vrot.lane.b32.xlu0 %v1444, 76
      %v1453 = vpop.permute.xlu0 %1452
      %vm1454 = vcmask 621568
      %v1455 = vsel %vm1454, %v1449, %v1451
      %v1456 = vsel %vm1454, %v1451, %v1453
      %v1460 = vadd.f32 %v1409, %v1449
      %v1461 = vadd.f32 %v1410, %v1455
      %v1462 = vadd.f32 %v1411, %v1456
      %1463 = vrot.lane.b32.xlu0 %v468, 30
      %v1464 = vpop.permute.xlu0 %1463
      %v1465 = vrot.slane %v1464, 7
      %vm1466 = vcmask 244736
      %v1467 = vsel %vm1466, %v1465, %v1464
      %v1469 = vmul.f32 %v1105, %v1467
      %s1470 = scalar_lea.vmem %s3, 80
      %v1471 = vld [vmem:[%s1470] sm:$0xf]
      %1473 = vset.pattern.permute.xlu0 0
      %1474 = vperm.xlu0 %1473, %v1471
      %v1475 = vpop.permute.xlu0 %1474
      %v1478 = vlaneseq
      %v1479 = vshrl.u32 %v1478, 7
      %v1480 = vsub.s32 0, %v1479
      %v1481 = vrot.slane %v1469, %v1480
      %v1482 = vlaneseq
      %v1483 = vshrl.u32 %v1482, 7
      %v1484 = vsub.s32 1, %v1483
      %v1485 = vrot.slane %v1469, %v1484
      %v1486 = vlaneseq
      %v1487 = vshrl.u32 %v1486, 7
      %v1488 = vsub.s32 2, %v1487
      %v1489 = vrot.slane %v1469, %v1488
      %v1493 = vmul.f32 %v1475, %v1481
      %v1494 = vmul.f32 %v1475, %v1485
      %v1495 = vmul.f32 %v1475, %v1489
      %1499 = vrot.lane.b32.xlu0 %v1493, 64
      %v1500 = vpop.permute.xlu0 %1499
      %1501 = vrot.lane.b32.xlu0 %v1494, 64
      %v1502 = vpop.permute.xlu0 %1501
      %1503 = vrot.lane.b32.xlu0 %v1495, 64
      %v1504 = vpop.permute.xlu0 %1503
      %vm1505 = vcmask 523264
      %v1506 = vsel %vm1505, %v1500, %v1502
      %v1507 = vsel %vm1505, %v1502, %v1504
      %v1511 = vadd.f32 %v1460, %v1500
      %v1512 = vadd.f32 %v1461, %v1506
      %v1513 = vadd.f32 %v1462, %v1507
      %1514 = vrot.lane.b32.xlu0 %v504, 31
      %v1515 = vpop.permute.xlu0 %1514
      %v1516 = vrot.slane %v1515, 7
      %vm1517 = vcmask 252928
      %v1518 = vsel %vm1517, %v1516, %v1515
      %v1520 = vmul.f32 %v1105, %v1518
      %s1521 = scalar_lea.vmem %s3, 84
      %v1522 = vld [vmem:[%s1521] sm:$0xf]
      %1524 = vset.pattern.permute.xlu0 0
      %1525 = vperm.xlu0 %1524, %v1522
      %v1526 = vpop.permute.xlu0 %1525
      %v1529 = vlaneseq
      %v1530 = vshrl.u32 %v1529, 7
      %v1531 = vsub.s32 0, %v1530
      %v1532 = vrot.slane %v1520, %v1531
      %v1533 = vlaneseq
      %v1534 = vshrl.u32 %v1533, 7
      %v1535 = vsub.s32 1, %v1534
      %v1536 = vrot.slane %v1520, %v1535
      %v1537 = vlaneseq
      %v1538 = vshrl.u32 %v1537, 7
      %v1539 = vsub.s32 2, %v1538
      %v1540 = vrot.slane %v1520, %v1539
      %v1544 = vmul.f32 %v1526, %v1532
      %v1545 = vmul.f32 %v1526, %v1536
      %v1546 = vmul.f32 %v1526, %v1540
      %1550 = vrot.lane.b32.xlu0 %v1544, 63
      %v1551 = vpop.permute.xlu0 %1550
      %1552 = vrot.lane.b32.xlu0 %v1545, 63
      %v1553 = vpop.permute.xlu0 %1552
      %1554 = vrot.lane.b32.xlu0 %v1546, 63
      %v1555 = vpop.permute.xlu0 %1554
      %vm1556 = vcmask 515072
      %v1557 = vsel %vm1556, %v1551, %v1553
      %v1558 = vsel %vm1556, %v1553, %v1555
      %v1562 = vadd.f32 %v1511, %v1551
      %v1563 = vadd.f32 %v1512, %v1557
      %v1564 = vadd.f32 %v1513, %v1558
      %1565 = vrot.lane.b32.xlu0 %v558, 32
      %v1566 = vpop.permute.xlu0 %1565
      %v1567 = vrot.slane %v1566, 7
      %vm1568 = vcmask 261120
      %v1569 = vsel %vm1568, %v1567, %v1566
      %v1571 = vmul.f32 %v1105, %v1569
      %s1572 = scalar_lea.vmem %s3, 88
      %v1573 = vld [vmem:[%s1572] sm:$0xf]
      %1575 = vset.pattern.permute.xlu0 0
      %1576 = vperm.xlu0 %1575, %v1573
      %v1577 = vpop.permute.xlu0 %1576
      %v1580 = vlaneseq
      %v1581 = vshrl.u32 %v1580, 7
      %v1582 = vsub.s32 0, %v1581
      %v1583 = vrot.slane %v1571, %v1582
      %v1584 = vlaneseq
      %v1585 = vshrl.u32 %v1584, 7
      %v1586 = vsub.s32 1, %v1585
      %v1587 = vrot.slane %v1571, %v1586
      %v1588 = vlaneseq
      %v1589 = vshrl.u32 %v1588, 7
      %v1590 = vsub.s32 2, %v1589
      %v1591 = vrot.slane %v1571, %v1590
      %v1595 = vmul.f32 %v1577, %v1583
      %v1596 = vmul.f32 %v1577, %v1587
      %v1597 = vmul.f32 %v1577, %v1591
      %1601 = vrot.lane.b32.xlu0 %v1595, 62
      %v1602 = vpop.permute.xlu0 %1601
      %1603 = vrot.lane.b32.xlu0 %v1596, 62
      %v1604 = vpop.permute.xlu0 %1603
      %1605 = vrot.lane.b32.xlu0 %v1597, 62
      %v1606 = vpop.permute.xlu0 %1605
      %vm1607 = vcmask 506880
      %v1608 = vsel %vm1607, %v1602, %v1604
      %v1609 = vsel %vm1607, %v1604, %v1606
      %v1613 = vadd.f32 %v1562, %v1602
      %v1614 = vadd.f32 %v1563, %v1608
      %v1615 = vadd.f32 %v1564, %v1609
      %1616 = vrot.lane.b32.xlu0 %v612, 33
      %v1617 = vpop.permute.xlu0 %1616
      %v1618 = vrot.slane %v1617, 7
      %vm1619 = vcmask 269312
      %v1620 = vsel %vm1619, %v1618, %v1617
      %v1622 = vmul.f32 %v1105, %v1620
      %s1623 = scalar_lea.vmem %s3, 92
      %v1624 = vld [vmem:[%s1623] sm:$0xf]
      %1626 = vset.pattern.permute.xlu0 0
      %1627 = vperm.xlu0 %1626, %v1624
      %v1628 = vpop.permute.xlu0 %1627
      %v1631 = vlaneseq
      %v1632 = vshrl.u32 %v1631, 7
      %v1633 = vsub.s32 0, %v1632
      %v1634 = vrot.slane %v1622, %v1633
      %v1635 = vlaneseq
      %v1636 = vshrl.u32 %v1635, 7
      %v1637 = vsub.s32 1, %v1636
      %v1638 = vrot.slane %v1622, %v1637
      %v1639 = vlaneseq
      %v1640 = vshrl.u32 %v1639, 7
      %v1641 = vsub.s32 2, %v1640
      %v1642 = vrot.slane %v1622, %v1641
      %v1646 = vmul.f32 %v1628, %v1634
      %v1647 = vmul.f32 %v1628, %v1638
      %v1648 = vmul.f32 %v1628, %v1642
      %1652 = vrot.lane.b32.xlu0 %v1646, 61
      %v1653 = vpop.permute.xlu0 %1652
      %1654 = vrot.lane.b32.xlu0 %v1647, 61
      %v1655 = vpop.permute.xlu0 %1654
      %1656 = vrot.lane.b32.xlu0 %v1648, 61
      %v1657 = vpop.permute.xlu0 %1656
      %vm1658 = vcmask 498688
      %v1659 = vsel %vm1658, %v1653, %v1655
      %v1660 = vsel %vm1658, %v1655, %v1657
      %v1664 = vadd.f32 %v1613, %v1653
      %v1665 = vadd.f32 %v1614, %v1659
      %v1666 = vadd.f32 %v1615, %v1660
      %1667 = vrot.lane.b32.xlu0 %v666, 34
      %v1668 = vpop.permute.xlu0 %1667
      %v1669 = vrot.slane %v1668, 7
      %vm1670 = vcmask 277504
      %v1671 = vsel %vm1670, %v1669, %v1668
      %v1673 = vmul.f32 %v1105, %v1671
      %s1674 = scalar_lea.vmem %s3, 96
      %v1675 = vld [vmem:[%s1674] sm:$0xf]
      %1677 = vset.pattern.permute.xlu0 0
      %1678 = vperm.xlu0 %1677, %v1675
      %v1679 = vpop.permute.xlu0 %1678
      %v1682 = vlaneseq
      %v1683 = vshrl.u32 %v1682, 7
      %v1684 = vsub.s32 0, %v1683
      %v1685 = vrot.slane %v1673, %v1684
      %v1686 = vlaneseq
      %v1687 = vshrl.u32 %v1686, 7
      %v1688 = vsub.s32 1, %v1687
      %v1689 = vrot.slane %v1673, %v1688
      %v1690 = vlaneseq
      %v1691 = vshrl.u32 %v1690, 7
      %v1692 = vsub.s32 2, %v1691
      %v1693 = vrot.slane %v1673, %v1692
      %v1697 = vmul.f32 %v1679, %v1685
      %v1698 = vmul.f32 %v1679, %v1689
      %v1699 = vmul.f32 %v1679, %v1693
      %1703 = vrot.lane.b32.xlu0 %v1697, 60
      %v1704 = vpop.permute.xlu0 %1703
      %1705 = vrot.lane.b32.xlu0 %v1698, 60
      %v1706 = vpop.permute.xlu0 %1705
      %1707 = vrot.lane.b32.xlu0 %v1699, 60
      %v1708 = vpop.permute.xlu0 %1707
      %vm1709 = vcmask 490496
      %v1710 = vsel %vm1709, %v1704, %v1706
      %v1711 = vsel %vm1709, %v1706, %v1708
      %v1715 = vadd.f32 %v1664, %v1704
      %v1716 = vadd.f32 %v1665, %v1710
      %v1717 = vadd.f32 %v1666, %v1711
      %v1718 = vld [vmem:[%s4] sm:$0xf]
      %1720 = vset.pattern.permute.xlu0 0
      %1721 = vperm.xlu0 %1720, %v1718
      %v1722 = vpop.permute.xlu0 %1721
      %v1724 = vadd.f32 %v1715, %v1722
      %v1725 = vadd.f32 %v1716, %v1722
      %v1726 = vadd.f32 %v1717, %v1722
      %v1727 = vmax.f32 %v1724, 0.0
      %v1728 = vmax.f32 %v1725, 0.0
      %v1729 = vmax.f32 %v1726, 0.0
      %v1733 = vcombine.low %v1727, %v1728
      %1734 = vrot.lane.b32.xlu0 %v1733, 34
      %v1735 = vpop.permute.xlu0 %1734
      %1736 = vrot.lane.b32.xlu0 %v1729, 34
      %v1737 = vpop.permute.xlu0 %1736
      %v1738 = vrot.slane %v1735, 4
      %v1739 = vrot.slane %v1737, 4
      %vm1740 = vcmask 1043456
      %v1741 = vsel %vm1740, %v1738, %v1739
      %v1742 = vsel %vm1670, %v1735, %v1741
      %1744 = vst [vmem:[#allocation2 + $0x4] sm:$0xff] %v1742
      %v1745 = vld [vmem:[%s503] ss:$8 sm:$0x3]
      %v1746 = vld [vmem:[#allocation2] sm:$0xff]
      %v1747 = vld [vmem:[#allocation2 + $0x8] sm:$0xf]
      %v1749 = vlaneseq
      %v1750 = vshrl.u32 %v1749, 7
      %v1751 = vsub.s32 0, %v1750
      %v1752 = vrot.slane %v1745, %v1751
      %v1753 = vlaneseq
      %v1754 = vshrl.u32 %v1753, 7
      %v1755 = vsub.s32 1, %v1754
      %v1756 = vrot.slane %v1745, %v1755
      %v1757 = vcombine.low %v1752, %v1756
      %1758 = vrot.lane.b32.xlu0 %v1757, 111
      %v1759 = vpop.permute.xlu0 %1758
      %v1760 = vrot.slane %v1759, 4
      %v1761 = vsel %vm773, %v1760, %v1759
      %v1764 = vmul.f32 %v1746, %v1761
      %v1765 = vmul.f32 %v1747, %v1760
      %v1766 = vld [vmem:[%s5] sm:$0xf]
      %v1767 = vld [vmem:[%s557] ss:$8 sm:$0x3]
      %v1769 = vlaneseq
      %v1770 = vshrl.u32 %v1769, 7
      %v1771 = vsub.s32 0, %v1770
      %v1772 = vrot.slane %v1767, %v1771
      %v1773 = vlaneseq
      %v1774 = vshrl.u32 %v1773, 7
      %v1775 = vsub.s32 1, %v1774
      %v1776 = vrot.slane %v1767, %v1775
      %v1777 = vcombine.low %v1772, %v1776
      %1778 = vrot.lane.b32.xlu0 %v1777, 112
      %v1779 = vpop.permute.xlu0 %1778
      %v1780 = vrot.slane %v1779, 4
      %v1781 = vsel %vm761, %v1780, %v1779
      %v1784 = vmul.f32 %v1746, %v1781
      %v1785 = vmul.f32 %v1747, %v1780
      %s1786 = scalar_lea.vmem %s5, 4
      %v1787 = vld [vmem:[%s1786] sm:$0xf]
      %v1790 = vcombine.high %v1784, %v1784
      %1791 = vrot.lane.b32.xlu0 %v1784, 16
      %v1792 = vpop.permute.xlu0 %1791
      %1793 = vrot.lane.b32.xlu0 %v1790, 16
      %v1794 = vpop.permute.xlu0 %1793
      %1795 = vrot.lane.b32.xlu0 %v1785, 16
      %v1796 = vpop.permute.xlu0 %1795
      %v1797 = vsel %vm1313, %v1792, %v1794
      %v1798 = vsel %vm1313, %v1794, %v1796
      %vm1799 = vcmask 31744
      %v1801 = vsel %vm1799, %v1787, 0
      %v1803 = vsel %vm1740, %v1797, 0
      %v1805 = vsel %vm1740, %v1798, 0
      %1807 = vmatprep.subr.mxu0 %v1805
      %1808 = vmatpush1.msra.mxu0 %v1803
      %1809 = vmatprep.subr.mxu0 0.0
      %1810 = vmatpush1.msra.mxu0 0.0
      %1811 = vmatprep.subr.mxu0 0.0
      %1812 = vmatpush1.msra.mxu0 0.0
      %1813 = vmatprep.subr.mxu0 0.0
      %1814 = vmatpush1.msra.mxu0 0.0
      %1815 = vmatprep.subr.mxu0 0.0
      %1816 = vmatpush1.msra.mxu0 0.0
      %1817 = vmatprep.subr.mxu0 0.0
      %1818 = vmatpush1.msra.mxu0 0.0
      %1819 = vmatprep.subr.mxu0 0.0
      %1820 = vmatpush1.msra.mxu0 0.0
      %1821 = vmatprep.subr.mxu0 0.0
      %1822 = vmatpush1.msra.mxu0 0.0
      %1823 = vmatprep.subr.mxu0 0.0
      %1824 = vmatpush1.msra.mxu0 0.0
      %1825 = vmatprep.subr.mxu0 0.0
      %1826 = vmatpush1.msra.mxu0 0.0
      %1827 = vmatprep.subr.mxu0 0.0
      %1828 = vmatpush1.msra.mxu0 0.0
      %1829 = vmatprep.subr.mxu0 0.0
      %1830 = vmatpush1.msra.mxu0 0.0
      %1831 = vmatprep.subr.mxu0 0.0
      %1832 = vmatpush1.msra.mxu0 0.0
      %1833 = vmatprep.subr.mxu0 0.0
      %1834 = vmatpush1.msra.mxu0 0.0
      %1835 = vmatprep.subr.mxu0 0.0
      %1836 = vmatpush1.msra.mxu0 0.0
      %1837 = vmatprep.subr.mxu0 0.0
      %1838 = vmatpush1.msra.mxu0 0.0
      %1839 = vmatprep.subr.mxu0 0.0
      %1840 = vmatpush1.msra.mxu0 0.0
      %1841 = vmatprep.subr.mxu0 0.0
      %1842 = vmatpush1.msra.mxu0 0.0
      %1843 = vmatprep.subr.mxu0 0.0
      %1844 = vmatpush1.msra.mxu0 0.0
      %1845 = vmatprep.subr.mxu0 0.0
      %1846 = vmatpush1.msra.mxu0 0.0
      %1847 = vmatprep.subr.mxu0 0.0
      %1848 = vmatpush1.msra.mxu0 0.0
      %1849 = vmatprep.subr.mxu0 0.0
      %1850 = vmatpush1.msra.mxu0 0.0
      %1851 = vmatprep.subr.mxu0 0.0
      %1852 = vmatpush1.msra.mxu0 0.0
      %1853 = vmatprep.subr.mxu0 0.0
      %1854 = vmatpush1.msra.mxu0 0.0
      %1855 = vmatprep.subr.mxu0 0.0
      %1856 = vmatpush1.msra.mxu0 0.0
      %1857 = vmatprep.subr.mxu0 0.0
      %1858 = vmatpush1.msra.mxu0 0.0
      %1859 = vmatprep.subr.mxu0 0.0
      %1860 = vmatpush1.msra.mxu0 0.0
      %1861 = vmatprep.subr.mxu0 0.0
      %1862 = vmatpush1.msra.mxu0 0.0
      %1863 = vmatprep.subr.mxu0 0.0
      %1864 = vmatpush1.msra.mxu0 0.0
      %1865 = vmatprep.subr.mxu0 0.0
      %1866 = vmatpush1.msra.mxu0 0.0
      %1867 = vmatprep.subr.mxu0 0.0
      %1868 = vmatpush1.msra.mxu0 0.0
      %1869 = vmatprep.subr.mxu0 0.0
      %1870 = vmatpush1.msra.mxu0 0.0
      %1871 = vmatprep.mubr.f32.mxu0 0.0
      %1872 = vmatmul.mubr.f32.gmra.mrb[0].mxu0 %v1801
      %v1873 = vpop.f32.mrb[0].mxu0
      %v1874 = vadd.f32 0.0, %v1873
      %v1875 = vpop.f32.mrb[0].mxu0
      %v1876 = vadd.f32 0.0, %v1875
      %1877 = vdwg.mxu0
      %v1880 = vcombine.high %v1764, %v1764
      %1881 = vrot.lane.b32.xlu0 %v1764, 17
      %v1882 = vpop.permute.xlu0 %1881
      %1883 = vrot.lane.b32.xlu0 %v1880, 17
      %v1884 = vpop.permute.xlu0 %1883
      %1885 = vrot.lane.b32.xlu0 %v1765, 17
      %v1886 = vpop.permute.xlu0 %1885
      %v1887 = vsel %vm1364, %v1882, %v1884
      %v1888 = vsel %vm1364, %v1884, %v1886
      %v1890 = vsel %vm1799, %v1766, 0
      %v1892 = vsel %vm1740, %v1887, 0
      %v1894 = vsel %vm1740, %v1888, 0
      %1896 = vmatprep.subr.mxu0 %v1894
      %1897 = vmatpush1.msra.mxu0 %v1892
      %1898 = vmatprep.subr.mxu0 0.0
      %1899 = vmatpush1.msra.mxu0 0.0
      %1900 = vmatprep.subr.mxu0 0.0
      %1901 = vmatpush1.msra.mxu0 0.0
      %1902 = vmatprep.subr.mxu0 0.0
      %1903 = vmatpush1.msra.mxu0 0.0
      %1904 = vmatprep.subr.mxu0 0.0
      %1905 = vmatpush1.msra.mxu0 0.0
      %1906 = vmatprep.subr.mxu0 0.0
      %1907 = vmatpush1.msra.mxu0 0.0
      %1908 = vmatprep.subr.mxu0 0.0
      %1909 = vmatpush1.msra.mxu0 0.0
      %1910 = vmatprep.subr.mxu0 0.0
      %1911 = vmatpush1.msra.mxu0 0.0
      %1912 = vmatprep.subr.mxu0 0.0
      %1913 = vmatpush1.msra.mxu0 0.0
      %1914 = vmatprep.subr.mxu0 0.0
      %1915 = vmatpush1.msra.mxu0 0.0
      %1916 = vmatprep.subr.mxu0 0.0
      %1917 = vmatpush1.msra.mxu0 0.0
      %1918 = vmatprep.subr.mxu0 0.0
      %1919 = vmatpush1.msra.mxu0 0.0
      %1920 = vmatprep.subr.mxu0 0.0
      %1921 = vmatpush1.msra.mxu0 0.0
      %1922 = vmatprep.subr.mxu0 0.0
      %1923 = vmatpush1.msra.mxu0 0.0
      %1924 = vmatprep.subr.mxu0 0.0
      %1925 = vmatpush1.msra.mxu0 0.0
      %1926 = vmatprep.subr.mxu0 0.0
      %1927 = vmatpush1.msra.mxu0 0.0
      %1928 = vmatprep.subr.mxu0 0.0
      %1929 = vmatpush1.msra.mxu0 0.0
      %1930 = vmatprep.subr.mxu0 0.0
      %1931 = vmatpush1.msra.mxu0 0.0
      %1932 = vmatprep.subr.mxu0 0.0
      %1933 = vmatpush1.msra.mxu0 0.0
      %1934 = vmatprep.subr.mxu0 0.0
      %1935 = vmatpush1.msra.mxu0 0.0
      %1936 = vmatprep.subr.mxu0 0.0
      %1937 = vmatpush1.msra.mxu0 0.0
      %1938 = vmatprep.subr.mxu0 0.0
      %1939 = vmatpush1.msra.mxu0 0.0
      %1940 = vmatprep.subr.mxu0 0.0
      %1941 = vmatpush1.msra.mxu0 0.0
      %1942 = vmatprep.subr.mxu0 0.0
      %1943 = vmatpush1.msra.mxu0 0.0
      %1944 = vmatprep.subr.mxu0 0.0
      %1945 = vmatpush1.msra.mxu0 0.0
      %1946 = vmatprep.subr.mxu0 0.0
      %1947 = vmatpush1.msra.mxu0 0.0
      %1948 = vmatprep.subr.mxu0 0.0
      %1949 = vmatpush1.msra.mxu0 0.0
      %1950 = vmatprep.subr.mxu0 0.0
      %1951 = vmatpush1.msra.mxu0 0.0
      %1952 = vmatprep.subr.mxu0 0.0
      %1953 = vmatpush1.msra.mxu0 0.0
      %1954 = vmatprep.subr.mxu0 0.0
      %1955 = vmatpush1.msra.mxu0 0.0
      %1956 = vmatprep.subr.mxu0 0.0
      %1957 = vmatpush1.msra.mxu0 0.0
      %1958 = vmatprep.subr.mxu0 0.0
      %1959 = vmatpush1.msra.mxu0 0.0
      %1960 = vmatprep.mubr.f32.mxu0 0.0
      %1961 = vmatmul.mubr.f32.gmra.mrb[0].mxu0 %v1890
      %v1962 = vpop.f32.mrb[0].mxu0
      %v1963 = vadd.f32 %v1874, %v1962
      %v1964 = vpop.f32.mrb[0].mxu0
      %v1965 = vadd.f32 %v1876, %v1964
      %1966 = vdwg.mxu0
      %v1967 = vld [vmem:[%s611] ss:$8 sm:$0x3]
      %v1968 = vld [vmem:[#allocation2] sm:$0xff]
      %v1969 = vld [vmem:[#allocation2 + $0x8] sm:$0xf]
      %v1971 = vlaneseq
      %v1972 = vshrl.u32 %v1971, 7
      %v1973 = vsub.s32 0, %v1972
      %v1974 = vrot.slane %v1967, %v1973
      %v1975 = vlaneseq
      %v1976 = vshrl.u32 %v1975, 7
      %v1977 = vsub.s32 1, %v1976
      %v1978 = vrot.slane %v1967, %v1977
      %v1979 = vcombine.low %v1974, %v1978
      %1980 = vrot.lane.b32.xlu0 %v1979, 113
      %v1981 = vpop.permute.xlu0 %1980
      %v1982 = vrot.slane %v1981, 4
      %v1983 = vsel %vm872, %v1982, %v1981
      %v1986 = vmul.f32 %v1968, %v1983
      %v1987 = vmul.f32 %v1969, %v1982
      %s1988 = scalar_lea.vmem %s5, 8
      %v1989 = vld [vmem:[%s1988] sm:$0xf]
      %v1992 = vcombine.high %v1986, %v1986
      %1993 = vrot.lane.b32.xlu0 %v1986, 15
      %v1994 = vpop.permute.xlu0 %1993
      %1995 = vrot.lane.b32.xlu0 %v1992, 15
      %v1996 = vpop.permute.xlu0 %1995
      %1997 = vrot.lane.b32.xlu0 %v1987, 15
      %v1998 = vpop.permute.xlu0 %1997
      %v1999 = vsel %vm1262, %v1994, %v1996
      %v2000 = vsel %vm1262, %v1996, %v1998
      %v2002 = vsel %vm1799, %v1989, 0
      %v2004 = vsel %vm1740, %v1999, 0
      %v2006 = vsel %vm1740, %v2000, 0
      %2008 = vmatprep.subr.mxu0 %v2006
      %2009 = vmatpush1.msra.mxu0 %v2004
      %2010 = vmatprep.subr.mxu0 0.0
      %2011 = vmatpush1.msra.mxu0 0.0
      %2012 = vmatprep.subr.mxu0 0.0
      %2013 = vmatpush1.msra.mxu0 0.0
      %2014 = vmatprep.subr.mxu0 0.0
      %2015 = vmatpush1.msra.mxu0 0.0
      %2016 = vmatprep.subr.mxu0 0.0
      %2017 = vmatpush1.msra.mxu0 0.0
      %2018 = vmatprep.subr.mxu0 0.0
      %2019 = vmatpush1.msra.mxu0 0.0
      %2020 = vmatprep.subr.mxu0 0.0
      %2021 = vmatpush1.msra.mxu0 0.0
      %2022 = vmatprep.subr.mxu0 0.0
      %2023 = vmatpush1.msra.mxu0 0.0
      %2024 = vmatprep.subr.mxu0 0.0
      %2025 = vmatpush1.msra.mxu0 0.0
      %2026 = vmatprep.subr.mxu0 0.0
      %2027 = vmatpush1.msra.mxu0 0.0
      %2028 = vmatprep.subr.mxu0 0.0
      %2029 = vmatpush1.msra.mxu0 0.0
      %2030 = vmatprep.subr.mxu0 0.0
      %2031 = vmatpush1.msra.mxu0 0.0
      %2032 = vmatprep.subr.mxu0 0.0
      %2033 = vmatpush1.msra.mxu0 0.0
      %2034 = vmatprep.subr.mxu0 0.0
      %2035 = vmatpush1.msra.mxu0 0.0
      %2036 = vmatprep.subr.mxu0 0.0
      %2037 = vmatpush1.msra.mxu0 0.0
      %2038 = vmatprep.subr.mxu0 0.0
      %2039 = vmatpush1.msra.mxu0 0.0
      %2040 = vmatprep.subr.mxu0 0.0
      %2041 = vmatpush1.msra.mxu0 0.0
      %2042 = vmatprep.subr.mxu0 0.0
      %2043 = vmatpush1.msra.mxu0 0.0
      %2044 = vmatprep.subr.mxu0 0.0
      %2045 = vmatpush1.msra.mxu0 0.0
      %2046 = vmatprep.subr.mxu0 0.0
      %2047 = vmatpush1.msra.mxu0 0.0
      %2048 = vmatprep.subr.mxu0 0.0
      %2049 = vmatpush1.msra.mxu0 0.0
      %2050 = vmatprep.subr.mxu0 0.0
      %2051 = vmatpush1.msra.mxu0 0.0
      %2052 = vmatprep.subr.mxu0 0.0
      %2053 = vmatpush1.msra.mxu0 0.0
      %2054 = vmatprep.subr.mxu0 0.0
      %2055 = vmatpush1.msra.mxu0 0.0
      %2056 = vmatprep.subr.mxu0 0.0
      %2057 = vmatpush1.msra.mxu0 0.0
      %2058 = vmatprep.subr.mxu0 0.0
      %2059 = vmatpush1.msra.mxu0 0.0
      %2060 = vmatprep.subr.mxu0 0.0
      %2061 = vmatpush1.msra.mxu0 0.0
      %2062 = vmatprep.subr.mxu0 0.0
      %2063 = vmatpush1.msra.mxu0 0.0
      %2064 = vmatprep.subr.mxu0 0.0
      %2065 = vmatpush1.msra.mxu0 0.0
      %2066 = vmatprep.subr.mxu0 0.0
      %2067 = vmatpush1.msra.mxu0 0.0
      %2068 = vmatprep.subr.mxu0 0.0
      %2069 = vmatpush1.msra.mxu0 0.0
      %2070 = vmatprep.subr.mxu0 0.0
      %2071 = vmatpush1.msra.mxu0 0.0
      %2072 = vmatprep.mubr.f32.mxu0 0.0
      %2073 = vmatmul.mubr.f32.gmra.mrb[0].mxu0 %v2002
      %v2074 = vpop.f32.mrb[0].mxu0
      %v2075 = vadd.f32 0.0, %v2074
      %v2076 = vpop.f32.mrb[0].mxu0
      %v2077 = vadd.f32 0.0, %v2076
      %2078 = vdwg.mxu0
      %v2079 = vadd.f32 %v1963, %v2075
      %v2080 = vadd.f32 %v1965, %v2077
      %v2081 = vld [vmem:[#allocation2] sm:$0xff]
      %v2082 = vld [vmem:[#allocation2 + $0x8] sm:$0xf]
      %2083 = vrot.lane.b32.xlu0 %v1757, 127
      %v2084 = vpop.permute.xlu0 %2083
      %v2085 = vrot.slane %v2084, 4
      %v2086 = vsel %vm548, %v2085, %v2084
      %v2089 = vmul.f32 %v2081, %v2086
      %v2090 = vmul.f32 %v2082, %v2085
      %s2091 = scalar_lea.vmem %s5, 12
      %v2092 = vld [vmem:[%s2091] sm:$0xf]
      %v2095 = vcombine.high %v2089, %v2089
      %2096 = vrot.lane.b32.xlu0 %v2089, 1
      %v2097 = vpop.permute.xlu0 %2096
      %2098 = vrot.lane.b32.xlu0 %v2095, 1
      %v2099 = vpop.permute.xlu0 %2098
      %2100 = vrot.lane.b32.xlu0 %v2090, 1
      %v2101 = vpop.permute.xlu0 %2100
      %v2102 = vsel %vm1109, %v2097, %v2099
      %v2103 = vsel %vm1109, %v2099, %v2101
      %v2105 = vsel %vm1799, %v2092, 0
      %v2107 = vsel %vm1740, %v2102, 0
      %v2109 = vsel %vm1740, %v2103, 0
      %2111 = vmatprep.subr.mxu0 %v2109
      %2112 = vmatpush1.msra.mxu0 %v2107
      %2113 = vmatprep.subr.mxu0 0.0
      %2114 = vmatpush1.msra.mxu0 0.0
      %2115 = vmatprep.subr.mxu0 0.0
      %2116 = vmatpush1.msra.mxu0 0.0
      %2117 = vmatprep.subr.mxu0 0.0
      %2118 = vmatpush1.msra.mxu0 0.0
      %2119 = vmatprep.subr.mxu0 0.0
      %2120 = vmatpush1.msra.mxu0 0.0
      %2121 = vmatprep.subr.mxu0 0.0
      %2122 = vmatpush1.msra.mxu0 0.0
      %2123 = vmatprep.subr.mxu0 0.0
      %2124 = vmatpush1.msra.mxu0 0.0
      %2125 = vmatprep.subr.mxu0 0.0
      %2126 = vmatpush1.msra.mxu0 0.0
      %2127 = vmatprep.subr.mxu0 0.0
      %2128 = vmatpush1.msra.mxu0 0.0
      %2129 = vmatprep.subr.mxu0 0.0
      %2130 = vmatpush1.msra.mxu0 0.0
      %2131 = vmatprep.subr.mxu0 0.0
      %2132 = vmatpush1.msra.mxu0 0.0
      %2133 = vmatprep.subr.mxu0 0.0
      %2134 = vmatpush1.msra.mxu0 0.0
      %2135 = vmatprep.subr.mxu0 0.0
      %2136 = vmatpush1.msra.mxu0 0.0
      %2137 = vmatprep.subr.mxu0 0.0
      %2138 = vmatpush1.msra.mxu0 0.0
      %2139 = vmatprep.subr.mxu0 0.0
      %2140 = vmatpush1.msra.mxu0 0.0
      %2141 = vmatprep.subr.mxu0 0.0
      %2142 = vmatpush1.msra.mxu0 0.0
      %2143 = vmatprep.subr.mxu0 0.0
      %2144 = vmatpush1.msra.mxu0 0.0
      %2145 = vmatprep.subr.mxu0 0.0
      %2146 = vmatpush1.msra.mxu0 0.0
      %2147 = vmatprep.subr.mxu0 0.0
      %2148 = vmatpush1.msra.mxu0 0.0
      %2149 = vmatprep.subr.mxu0 0.0
      %2150 = vmatpush1.msra.mxu0 0.0
      %2151 = vmatprep.subr.mxu0 0.0
      %2152 = vmatpush1.msra.mxu0 0.0
      %2153 = vmatprep.subr.mxu0 0.0
      %2154 = vmatpush1.msra.mxu0 0.0
      %2155 = vmatprep.subr.mxu0 0.0
      %2156 = vmatpush1.msra.mxu0 0.0
      %2157 = vmatprep.subr.mxu0 0.0
      %2158 = vmatpush1.msra.mxu0 0.0
      %2159 = vmatprep.subr.mxu0 0.0
      %2160 = vmatpush1.msra.mxu0 0.0
      %2161 = vmatprep.subr.mxu0 0.0
      %2162 = vmatpush1.msra.mxu0 0.0
      %2163 = vmatprep.subr.mxu0 0.0
      %2164 = vmatpush1.msra.mxu0 0.0
      %2165 = vmatprep.subr.mxu0 0.0
      %2166 = vmatpush1.msra.mxu0 0.0
      %2167 = vmatprep.subr.mxu0 0.0
      %2168 = vmatpush1.msra.mxu0 0.0
      %2169 = vmatprep.subr.mxu0 0.0
      %2170 = vmatpush1.msra.mxu0 0.0
      %2171 = vmatprep.subr.mxu0 0.0
      %2172 = vmatpush1.msra.mxu0 0.0
      %2173 = vmatprep.subr.mxu0 0.0
      %2174 = vmatpush1.msra.mxu0 0.0
      %2175 = vmatprep.mubr.f32.mxu0 0.0
      %2176 = vmatmul.mubr.f32.gmra.mrb[0].mxu0 %v2105
      %v2177 = vpop.f32.mrb[0].mxu0
      %v2178 = vadd.f32 0.0, %v2177
      %v2179 = vpop.f32.mrb[0].mxu0
      %v2180 = vadd.f32 0.0, %v2179
      %2181 = vdwg.mxu0
      %v2182 = vadd.f32 %v2079, %v2178
      %v2183 = vadd.f32 %v2080, %v2180
      %v2184 = vld [vmem:[#allocation2 + $0x4] sm:$0xff]
      %v2186 = vmul.f32 %v2184, %v1777
      %s2187 = scalar_lea.vmem %s5, 16
      %v2188 = vld [vmem:[%s2187] sm:$0xf]
      %v2190 = vcombine.high %v2186, %v2186
      %v2192 = vsel %vm1799, %v2188, 0
      %v2194 = vsel %vm1740, %v2186, 0
      %v2196 = vsel %vm1740, %v2190, 0
      %2198 = vmatprep.subr.mxu0 %v2196
      %2199 = vmatpush1.msra.mxu0 %v2194
      %2200 = vmatprep.subr.mxu0 0.0
      %2201 = vmatpush1.msra.mxu0 0.0
      %2202 = vmatprep.subr.mxu0 0.0
      %2203 = vmatpush1.msra.mxu0 0.0
      %2204 = vmatprep.subr.mxu0 0.0
      %2205 = vmatpush1.msra.mxu0 0.0
      %2206 = vmatprep.subr.mxu0 0.0
      %2207 = vmatpush1.msra.mxu0 0.0
      %2208 = vmatprep.subr.mxu0 0.0
      %2209 = vmatpush1.msra.mxu0 0.0
      %2210 = vmatprep.subr.mxu0 0.0
      %2211 = vmatpush1.msra.mxu0 0.0
      %2212 = vmatprep.subr.mxu0 0.0
      %2213 = vmatpush1.msra.mxu0 0.0
      %2214 = vmatprep.subr.mxu0 0.0
      %2215 = vmatpush1.msra.mxu0 0.0
      %2216 = vmatprep.subr.mxu0 0.0
      %2217 = vmatpush1.msra.mxu0 0.0
      %2218 = vmatprep.subr.mxu0 0.0
      %2219 = vmatpush1.msra.mxu0 0.0
      %2220 = vmatprep.subr.mxu0 0.0
      %2221 = vmatpush1.msra.mxu0 0.0
      %2222 = vmatprep.subr.mxu0 0.0
      %2223 = vmatpush1.msra.mxu0 0.0
      %2224 = vmatprep.subr.mxu0 0.0
      %2225 = vmatpush1.msra.mxu0 0.0
      %2226 = vmatprep.subr.mxu0 0.0
      %2227 = vmatpush1.msra.mxu0 0.0
      %2228 = vmatprep.subr.mxu0 0.0
      %2229 = vmatpush1.msra.mxu0 0.0
      %2230 = vmatprep.subr.mxu0 0.0
      %2231 = vmatpush1.msra.mxu0 0.0
      %2232 = vmatprep.subr.mxu0 0.0
      %2233 = vmatpush1.msra.mxu0 0.0
      %2234 = vmatprep.subr.mxu0 0.0
      %2235 = vmatpush1.msra.mxu0 0.0
      %2236 = vmatprep.subr.mxu0 0.0
      %2237 = vmatpush1.msra.mxu0 0.0
      %2238 = vmatprep.subr.mxu0 0.0
      %2239 = vmatpush1.msra.mxu0 0.0
      %2240 = vmatprep.subr.mxu0 0.0
      %2241 = vmatpush1.msra.mxu0 0.0
      %2242 = vmatprep.subr.mxu0 0.0
      %2243 = vmatpush1.msra.mxu0 0.0
      %2244 = vmatprep.subr.mxu0 0.0
      %2245 = vmatpush1.msra.mxu0 0.0
      %2246 = vmatprep.subr.mxu0 0.0
      %2247 = vmatpush1.msra.mxu0 0.0
      %2248 = vmatprep.subr.mxu0 0.0
      %2249 = vmatpush1.msra.mxu0 0.0
      %2250 = vmatprep.subr.mxu0 0.0
      %2251 = vmatpush1.msra.mxu0 0.0
      %2252 = vmatprep.subr.mxu0 0.0
      %2253 = vmatpush1.msra.mxu0 0.0
      %2254 = vmatprep.subr.mxu0 0.0
      %2255 = vmatpush1.msra.mxu0 0.0
      %2256 = vmatprep.subr.mxu0 0.0
      %2257 = vmatpush1.msra.mxu0 0.0
      %2258 = vmatprep.subr.mxu0 0.0
      %2259 = vmatpush1.msra.mxu0 0.0
      %2260 = vmatprep.subr.mxu0 0.0
      %2261 = vmatpush1.msra.mxu0 0.0
      %2262 = vmatprep.mubr.f32.mxu0 0.0
      %2263 = vmatmul.mubr.f32.gmra.mrb[0].mxu0 %v2192
      %v2264 = vpop.f32.mrb[0].mxu0
      %v2265 = vadd.f32 0.0, %v2264
      %v2266 = vpop.f32.mrb[0].mxu0
      %v2267 = vadd.f32 0.0, %v2266
      %2268 = vdwg.mxu0
      %v2269 = vadd.f32 %v2182, %v2265
      %v2270 = vadd.f32 %v2183, %v2267
      %v2271 = vld [vmem:[#allocation2 + $0x4] sm:$0xff]
      %v2272 = vld [vmem:[#allocation2 + $0xc] sm:$0xf]
      %2273 = vrot.lane.b32.xlu0 %v1979, 1
      %v2274 = vpop.permute.xlu0 %2273
      %v2275 = vrot.slane %v2274, 4
      %v2276 = vsel %vm1109, %v2275, %v2274
      %v2279 = vmul.f32 %v2271, %v2276
      %v2280 = vmul.f32 %v2272, %v2275
      %s2281 = scalar_lea.vmem %s5, 20
      %v2282 = vld [vmem:[%s2281] sm:$0xf]
      %v2285 = vcombine.high %v2279, %v2279
      %2286 = vrot.lane.b32.xlu0 %v2279, 127
      %v2287 = vpop.permute.xlu0 %2286
      %2288 = vrot.lane.b32.xlu0 %v2285, 127
      %v2289 = vpop.permute.xlu0 %2288
      %2290 = vrot.lane.b32.xlu0 %v2280, 127
      %v2291 = vpop.permute.xlu0 %2290
      %v2292 = vsel %vm548, %v2287, %v2289
      %v2293 = vsel %vm548, %v2289, %v2291
      %v2295 = vsel %vm1799, %v2282, 0
      %v2297 = vsel %vm1740, %v2292, 0
      %v2299 = vsel %vm1740, %v2293, 0
      %2301 = vmatprep.subr.mxu0 %v2299
      %2302 = vmatpush1.msra.mxu0 %v2297
      %2303 = vmatprep.subr.mxu0 0.0
      %2304 = vmatpush1.msra.mxu0 0.0
      %2305 = vmatprep.subr.mxu0 0.0
      %2306 = vmatpush1.msra.mxu0 0.0
      %2307 = vmatprep.subr.mxu0 0.0
      %2308 = vmatpush1.msra.mxu0 0.0
      %2309 = vmatprep.subr.mxu0 0.0
      %2310 = vmatpush1.msra.mxu0 0.0
      %2311 = vmatprep.subr.mxu0 0.0
      %2312 = vmatpush1.msra.mxu0 0.0
      %2313 = vmatprep.subr.mxu0 0.0
      %2314 = vmatpush1.msra.mxu0 0.0
      %2315 = vmatprep.subr.mxu0 0.0
      %2316 = vmatpush1.msra.mxu0 0.0
      %2317 = vmatprep.subr.mxu0 0.0
      %2318 = vmatpush1.msra.mxu0 0.0
      %2319 = vmatprep.subr.mxu0 0.0
      %2320 = vmatpush1.msra.mxu0 0.0
      %2321 = vmatprep.subr.mxu0 0.0
      %2322 = vmatpush1.msra.mxu0 0.0
      %2323 = vmatprep.subr.mxu0 0.0
      %2324 = vmatpush1.msra.mxu0 0.0
      %2325 = vmatprep.subr.mxu0 0.0
      %2326 = vmatpush1.msra.mxu0 0.0
      %2327 = vmatprep.subr.mxu0 0.0
      %2328 = vmatpush1.msra.mxu0 0.0
      %2329 = vmatprep.subr.mxu0 0.0
      %2330 = vmatpush1.msra.mxu0 0.0
      %2331 = vmatprep.subr.mxu0 0.0
      %2332 = vmatpush1.msra.mxu0 0.0
      %2333 = vmatprep.subr.mxu0 0.0
      %2334 = vmatpush1.msra.mxu0 0.0
      %2335 = vmatprep.subr.mxu0 0.0
      %2336 = vmatpush1.msra.mxu0 0.0
      %2337 = vmatprep.subr.mxu0 0.0
      %2338 = vmatpush1.msra.mxu0 0.0
      %2339 = vmatprep.subr.mxu0 0.0
      %2340 = vmatpush1.msra.mxu0 0.0
      %2341 = vmatprep.subr.mxu0 0.0
      %2342 = vmatpush1.msra.mxu0 0.0
      %2343 = vmatprep.subr.mxu0 0.0
      %2344 = vmatpush1.msra.mxu0 0.0
      %2345 = vmatprep.subr.mxu0 0.0
      %2346 = vmatpush1.msra.mxu0 0.0
      %2347 = vmatprep.subr.mxu0 0.0
      %2348 = vmatpush1.msra.mxu0 0.0
      %2349 = vmatprep.subr.mxu0 0.0
      %2350 = vmatpush1.msra.mxu0 0.0
      %2351 = vmatprep.subr.mxu0 0.0
      %2352 = vmatpush1.msra.mxu0 0.0
      %2353 = vmatprep.subr.mxu0 0.0
      %2354 = vmatpush1.msra.mxu0 0.0
      %2355 = vmatprep.subr.mxu0 0.0
      %2356 = vmatpush1.msra.mxu0 0.0
      %2357 = vmatprep.subr.mxu0 0.0
      %2358 = vmatpush1.msra.mxu0 0.0
      %2359 = vmatprep.subr.mxu0 0.0
      %2360 = vmatpush1.msra.mxu0 0.0
      %2361 = vmatprep.subr.mxu0 0.0
      %2362 = vmatpush1.msra.mxu0 0.0
      %2363 = vmatprep.subr.mxu0 0.0
      %2364 = vmatpush1.msra.mxu0 0.0
      %2365 = vmatprep.mubr.f32.mxu0 0.0
      %2366 = vmatmul.mubr.f32.gmra.mrb[0].mxu0 %v2295
      %v2367 = vpop.f32.mrb[0].mxu0
      %v2368 = vadd.f32 0.0, %v2367
      %v2369 = vpop.f32.mrb[0].mxu0
      %v2370 = vadd.f32 0.0, %v2369
      %2371 = vdwg.mxu0
      %v2372 = vadd.f32 %v2269, %v2368
      %v2373 = vadd.f32 %v2270, %v2370
      %v2374 = vld [vmem:[#allocation2 + $0x4] sm:$0xff]
      %v2375 = vld [vmem:[#allocation2 + $0xc] sm:$0xf]
      %2376 = vrot.lane.b32.xlu0 %v1757, 15
      %v2377 = vpop.permute.xlu0 %2376
      %v2378 = vrot.slane %v2377, 4
      %v2379 = vsel %vm1262, %v2378, %v2377
      %v2382 = vmul.f32 %v2374, %v2379
      %v2383 = vmul.f32 %v2375, %v2378
      %s2384 = scalar_lea.vmem %s5, 24
      %v2385 = vld [vmem:[%s2384] sm:$0xf]
      %v2388 = vcombine.high %v2382, %v2382
      %2389 = vrot.lane.b32.xlu0 %v2382, 113
      %v2390 = vpop.permute.xlu0 %2389
      %2391 = vrot.lane.b32.xlu0 %v2388, 113
      %v2392 = vpop.permute.xlu0 %2391
      %2393 = vrot.lane.b32.xlu0 %v2383, 113
      %v2394 = vpop.permute.xlu0 %2393
      %v2395 = vsel %vm872, %v2390, %v2392
      %v2396 = vsel %vm872, %v2392, %v2394
      %v2398 = vsel %vm1799, %v2385, 0
      %v2400 = vsel %vm1740, %v2395, 0
      %v2402 = vsel %vm1740, %v2396, 0
      %2404 = vmatprep.subr.mxu0 %v2402
      %2405 = vmatpush1.msra.mxu0 %v2400
      %2406 = vmatprep.subr.mxu0 0.0
      %2407 = vmatpush1.msra.mxu0 0.0
      %2408 = vmatprep.subr.mxu0 0.0
      %2409 = vmatpush1.msra.mxu0 0.0
      %2410 = vmatprep.subr.mxu0 0.0
      %2411 = vmatpush1.msra.mxu0 0.0
      %2412 = vmatprep.subr.mxu0 0.0
      %2413 = vmatpush1.msra.mxu0 0.0
      %2414 = vmatprep.subr.mxu0 0.0
      %2415 = vmatpush1.msra.mxu0 0.0
      %2416 = vmatprep.subr.mxu0 0.0
      %2417 = vmatpush1.msra.mxu0 0.0
      %2418 = vmatprep.subr.mxu0 0.0
      %2419 = vmatpush1.msra.mxu0 0.0
      %2420 = vmatprep.subr.mxu0 0.0
      %2421 = vmatpush1.msra.mxu0 0.0
      %2422 = vmatprep.subr.mxu0 0.0
      %2423 = vmatpush1.msra.mxu0 0.0
      %2424 = vmatprep.subr.mxu0 0.0
      %2425 = vmatpush1.msra.mxu0 0.0
      %2426 = vmatprep.subr.mxu0 0.0
      %2427 = vmatpush1.msra.mxu0 0.0
      %2428 = vmatprep.subr.mxu0 0.0
      %2429 = vmatpush1.msra.mxu0 0.0
      %2430 = vmatprep.subr.mxu0 0.0
      %2431 = vmatpush1.msra.mxu0 0.0
      %2432 = vmatprep.subr.mxu0 0.0
      %2433 = vmatpush1.msra.mxu0 0.0
      %2434 = vmatprep.subr.mxu0 0.0
      %2435 = vmatpush1.msra.mxu0 0.0
      %2436 = vmatprep.subr.mxu0 0.0
      %2437 = vmatpush1.msra.mxu0 0.0
      %2438 = vmatprep.subr.mxu0 0.0
      %2439 = vmatpush1.msra.mxu0 0.0
      %2440 = vmatprep.subr.mxu0 0.0
      %2441 = vmatpush1.msra.mxu0 0.0
      %2442 = vmatprep.subr.mxu0 0.0
      %2443 = vmatpush1.msra.mxu0 0.0
      %2444 = vmatprep.subr.mxu0 0.0
      %2445 = vmatpush1.msra.mxu0 0.0
      %2446 = vmatprep.subr.mxu0 0.0
      %2447 = vmatpush1.msra.mxu0 0.0
      %2448 = vmatprep.subr.mxu0 0.0
      %2449 = vmatpush1.msra.mxu0 0.0
      %2450 = vmatprep.subr.mxu0 0.0
      %2451 = vmatpush1.msra.mxu0 0.0
      %2452 = vmatprep.subr.mxu0 0.0
      %2453 = vmatpush1.msra.mxu0 0.0
      %2454 = vmatprep.subr.mxu0 0.0
      %2455 = vmatpush1.msra.mxu0 0.0
      %2456 = vmatprep.subr.mxu0 0.0
      %2457 = vmatpush1.msra.mxu0 0.0
      %2458 = vmatprep.subr.mxu0 0.0
      %2459 = vmatpush1.msra.mxu0 0.0
      %2460 = vmatprep.subr.mxu0 0.0
      %2461 = vmatpush1.msra.mxu0 0.0
      %2462 = vmatprep.subr.mxu0 0.0
      %2463 = vmatpush1.msra.mxu0 0.0
      %2464 = vmatprep.subr.mxu0 0.0
      %2465 = vmatpush1.msra.mxu0 0.0
      %2466 = vmatprep.subr.mxu0 0.0
      %2467 = vmatpush1.msra.mxu0 0.0
      %2468 = vmatprep.mubr.f32.mxu0 0.0
      %2469 = vmatmul.mubr.f32.gmra.mrb[0].mxu0 %v2398
      %v2470 = vpop.f32.mrb[0].mxu0
      %v2471 = vadd.f32 0.0, %v2470
      %v2472 = vpop.f32.mrb[0].mxu0
      %v2473 = vadd.f32 0.0, %v2472
      %2474 = vdwg.mxu0
      %v2475 = vadd.f32 %v2372, %v2471
      %v2476 = vadd.f32 %v2373, %v2473
      %v2477 = vld [vmem:[#allocation2 + $0x4] sm:$0xff]
      %v2478 = vld [vmem:[#allocation2 + $0xc] sm:$0xf]
      %2479 = vrot.lane.b32.xlu0 %v1777, 16
      %v2480 = vpop.permute.xlu0 %2479
      %v2481 = vrot.slane %v2480, 4
      %v2482 = vsel %vm1313, %v2481, %v2480
      %v2485 = vmul.f32 %v2477, %v2482
      %v2486 = vmul.f32 %v2478, %v2481
      %s2487 = scalar_lea.vmem %s5, 28
      %v2488 = vld [vmem:[%s2487] sm:$0xf]
      %v2491 = vcombine.high %v2485, %v2485
      %2492 = vrot.lane.b32.xlu0 %v2485, 112
      %v2493 = vpop.permute.xlu0 %2492
      %2494 = vrot.lane.b32.xlu0 %v2491, 112
      %v2495 = vpop.permute.xlu0 %2494
      %2496 = vrot.lane.b32.xlu0 %v2486, 112
      %v2497 = vpop.permute.xlu0 %2496
      %v2498 = vsel %vm761, %v2493, %v2495
      %v2499 = vsel %vm761, %v2495, %v2497
      %v2501 = vsel %vm1799, %v2488, 0
      %v2503 = vsel %vm1740, %v2498, 0
      %v2505 = vsel %vm1740, %v2499, 0
      %2507 = vmatprep.subr.mxu0 %v2505
      %2508 = vmatpush1.msra.mxu0 %v2503
      %2509 = vmatprep.subr.mxu0 0.0
      %2510 = vmatpush1.msra.mxu0 0.0
      %2511 = vmatprep.subr.mxu0 0.0
      %2512 = vmatpush1.msra.mxu0 0.0
      %2513 = vmatprep.subr.mxu0 0.0
      %2514 = vmatpush1.msra.mxu0 0.0
      %2515 = vmatprep.subr.mxu0 0.0
      %2516 = vmatpush1.msra.mxu0 0.0
      %2517 = vmatprep.subr.mxu0 0.0
      %2518 = vmatpush1.msra.mxu0 0.0
      %2519 = vmatprep.subr.mxu0 0.0
      %2520 = vmatpush1.msra.mxu0 0.0
      %2521 = vmatprep.subr.mxu0 0.0
      %2522 = vmatpush1.msra.mxu0 0.0
      %2523 = vmatprep.subr.mxu0 0.0
      %2524 = vmatpush1.msra.mxu0 0.0
      %2525 = vmatprep.subr.mxu0 0.0
      %2526 = vmatpush1.msra.mxu0 0.0
      %2527 = vmatprep.subr.mxu0 0.0
      %2528 = vmatpush1.msra.mxu0 0.0
      %2529 = vmatprep.subr.mxu0 0.0
      %2530 = vmatpush1.msra.mxu0 0.0
      %2531 = vmatprep.subr.mxu0 0.0
      %2532 = vmatpush1.msra.mxu0 0.0
      %2533 = vmatprep.subr.mxu0 0.0
      %2534 = vmatpush1.msra.mxu0 0.0
      %2535 = vmatprep.subr.mxu0 0.0
      %2536 = vmatpush1.msra.mxu0 0.0
      %2537 = vmatprep.subr.mxu0 0.0
      %2538 = vmatpush1.msra.mxu0 0.0
      %2539 = vmatprep.subr.mxu0 0.0
      %2540 = vmatpush1.msra.mxu0 0.0
      %2541 = vmatprep.subr.mxu0 0.0
      %2542 = vmatpush1.msra.mxu0 0.0
      %2543 = vmatprep.subr.mxu0 0.0
      %2544 = vmatpush1.msra.mxu0 0.0
      %2545 = vmatprep.subr.mxu0 0.0
      %2546 = vmatpush1.msra.mxu0 0.0
      %2547 = vmatprep.subr.mxu0 0.0
      %2548 = vmatpush1.msra.mxu0 0.0
      %2549 = vmatprep.subr.mxu0 0.0
      %2550 = vmatpush1.msra.mxu0 0.0
      %2551 = vmatprep.subr.mxu0 0.0
      %2552 = vmatpush1.msra.mxu0 0.0
      %2553 = vmatprep.subr.mxu0 0.0
      %2554 = vmatpush1.msra.mxu0 0.0
      %2555 = vmatprep.subr.mxu0 0.0
      %2556 = vmatpush1.msra.mxu0 0.0
      %2557 = vmatprep.subr.mxu0 0.0
      %2558 = vmatpush1.msra.mxu0 0.0
      %2559 = vmatprep.subr.mxu0 0.0
      %2560 = vmatpush1.msra.mxu0 0.0
      %2561 = vmatprep.subr.mxu0 0.0
      %2562 = vmatpush1.msra.mxu0 0.0
      %2563 = vmatprep.subr.mxu0 0.0
      %2564 = vmatpush1.msra.mxu0 0.0
      %2565 = vmatprep.subr.mxu0 0.0
      %2566 = vmatpush1.msra.mxu0 0.0
      %2567 = vmatprep.subr.mxu0 0.0
      %2568 = vmatpush1.msra.mxu0 0.0
      %2569 = vmatprep.subr.mxu0 0.0
      %2570 = vmatpush1.msra.mxu0 0.0
      %2571 = vmatprep.mubr.f32.mxu0 0.0
      %2572 = vmatmul.mubr.f32.gmra.mrb[0].mxu0 %v2501
      %v2573 = vpop.f32.mrb[0].mxu0
      %v2574 = vadd.f32 0.0, %v2573
      %v2575 = vpop.f32.mrb[0].mxu0
      %v2576 = vadd.f32 0.0, %v2575
      %2577 = vdwg.mxu0
      %v2578 = vadd.f32 %v2475, %v2574
      %v2579 = vadd.f32 %v2476, %v2576
      %v2580 = vld [vmem:[#allocation2 + $0x4] sm:$0xff]
      %v2581 = vld [vmem:[#allocation2 + $0xc] sm:$0xf]
      %2582 = vrot.lane.b32.xlu0 %v1979, 17
      %v2583 = vpop.permute.xlu0 %2582
      %v2584 = vrot.slane %v2583, 4
      %v2585 = vsel %vm1364, %v2584, %v2583
      %v2588 = vmul.f32 %v2580, %v2585
      %v2589 = vmul.f32 %v2581, %v2584
      %s2590 = scalar_lea.vmem %s5, 32
      %v2591 = vld [vmem:[%s2590] sm:$0xf]
      %v2594 = vcombine.high %v2588, %v2588
      %2595 = vrot.lane.b32.xlu0 %v2588, 111
      %v2596 = vpop.permute.xlu0 %2595
      %2597 = vrot.lane.b32.xlu0 %v2594, 111
      %v2598 = vpop.permute.xlu0 %2597
      %2599 = vrot.lane.b32.xlu0 %v2589, 111
      %v2600 = vpop.permute.xlu0 %2599
      %v2601 = vsel %vm773, %v2596, %v2598
      %v2602 = vsel %vm773, %v2598, %v2600
      %v2604 = vsel %vm1799, %v2591, 0
      %v2606 = vsel %vm1740, %v2601, 0
      %v2608 = vsel %vm1740, %v2602, 0
      %2610 = vmatprep.subr.mxu0 %v2608
      %2611 = vmatpush1.msra.mxu0 %v2606
      %2612 = vmatprep.subr.mxu0 0.0
      %2613 = vmatpush1.msra.mxu0 0.0
      %2614 = vmatprep.subr.mxu0 0.0
      %2615 = vmatpush1.msra.mxu0 0.0
      %2616 = vmatprep.subr.mxu0 0.0
      %2617 = vmatpush1.msra.mxu0 0.0
      %2618 = vmatprep.subr.mxu0 0.0
      %2619 = vmatpush1.msra.mxu0 0.0
      %2620 = vmatprep.subr.mxu0 0.0
      %2621 = vmatpush1.msra.mxu0 0.0
      %2622 = vmatprep.subr.mxu0 0.0
      %2623 = vmatpush1.msra.mxu0 0.0
      %2624 = vmatprep.subr.mxu0 0.0
      %2625 = vmatpush1.msra.mxu0 0.0
      %2626 = vmatprep.subr.mxu0 0.0
      %2627 = vmatpush1.msra.mxu0 0.0
      %2628 = vmatprep.subr.mxu0 0.0
      %2629 = vmatpush1.msra.mxu0 0.0
      %2630 = vmatprep.subr.mxu0 0.0
      %2631 = vmatpush1.msra.mxu0 0.0
      %2632 = vmatprep.subr.mxu0 0.0
      %2633 = vmatpush1.msra.mxu0 0.0
      %2634 = vmatprep.subr.mxu0 0.0
      %2635 = vmatpush1.msra.mxu0 0.0
      %2636 = vmatprep.subr.mxu0 0.0
      %2637 = vmatpush1.msra.mxu0 0.0
      %2638 = vmatprep.subr.mxu0 0.0
      %2639 = vmatpush1.msra.mxu0 0.0
      %2640 = vmatprep.subr.mxu0 0.0
      %2641 = vmatpush1.msra.mxu0 0.0
      %2642 = vmatprep.subr.mxu0 0.0
      %2643 = vmatpush1.msra.mxu0 0.0
      %2644 = vmatprep.subr.mxu0 0.0
      %2645 = vmatpush1.msra.mxu0 0.0
      %2646 = vmatprep.subr.mxu0 0.0
      %2647 = vmatpush1.msra.mxu0 0.0
      %2648 = vmatprep.subr.mxu0 0.0
      %2649 = vmatpush1.msra.mxu0 0.0
      %2650 = vmatprep.subr.mxu0 0.0
      %2651 = vmatpush1.msra.mxu0 0.0
      %2652 = vmatprep.subr.mxu0 0.0
      %2653 = vmatpush1.msra.mxu0 0.0
      %2654 = vmatprep.subr.mxu0 0.0
      %2655 = vmatpush1.msra.mxu0 0.0
      %2656 = vmatprep.subr.mxu0 0.0
      %2657 = vmatpush1.msra.mxu0 0.0
      %2658 = vmatprep.subr.mxu0 0.0
      %2659 = vmatpush1.msra.mxu0 0.0
      %2660 = vmatprep.subr.mxu0 0.0
      %2661 = vmatpush1.msra.mxu0 0.0
      %2662 = vmatprep.subr.mxu0 0.0
      %2663 = vmatpush1.msra.mxu0 0.0
      %2664 = vmatprep.subr.mxu0 0.0
      %2665 = vmatpush1.msra.mxu0 0.0
      %2666 = vmatprep.subr.mxu0 0.0
      %2667 = vmatpush1.msra.mxu0 0.0
      %2668 = vmatprep.subr.mxu0 0.0
      %2669 = vmatpush1.msra.mxu0 0.0
      %2670 = vmatprep.subr.mxu0 0.0
      %2671 = vmatpush1.msra.mxu0 0.0
      %2672 = vmatprep.subr.mxu0 0.0
      %2673 = vmatpush1.msra.mxu0 0.0
      %2674 = vmatprep.mubr.f32.mxu0 0.0
      %2675 = vmatmul.mubr.f32.gmra.mrb[0].mxu0 %v2604
      %v2676 = vpop.f32.mrb[0].mxu0
      %v2677 = vadd.f32 0.0, %v2676
      %v2678 = vpop.f32.mrb[0].mxu0
      %v2679 = vadd.f32 0.0, %v2678
      %2680 = vdwg.mxu0
      %v2681 = vadd.f32 %v2578, %v2677
      %v2682 = vadd.f32 %v2579, %v2679
      %v2683 = vld [vmem:[%s6] sm:$0xf]
      %2685 = vset.pattern.permute.xlu0 0
      %2686 = vperm.xlu0 %2685, %v2683
      %v2687 = vpop.permute.xlu0 %2686
      %v2689 = vadd.f32 %v2681, %v2687
      %v2690 = vadd.f32 %v2682, %v2687
      %v2693 = vcombine.low %v2689, %v2690
      %2695 = vst [vmem:[#allocation2 + $0x4] sm:$0xff] %v2693
      %v2696 = vld [vmem:[%s503] ss:$8 sm:$0x3]
      %v2697 = vld [vmem:[#allocation2] sm:$0xff]
      %v2698 = vld [vmem:[#allocation2 + $0x8] sm:$0xf]
      %v2700 = vlaneseq
      %v2701 = vshrl.u32 %v2700, 7
      %v2702 = vsub.s32 0, %v2701
      %v2703 = vrot.slane %v2696, %v2702
      %v2704 = vlaneseq
      %v2705 = vshrl.u32 %v2704, 7
      %v2706 = vsub.s32 1, %v2705
      %v2707 = vrot.slane %v2696, %v2706
      %v2708 = vcombine.low %v2703, %v2707
      %2709 = vrot.lane.b32.xlu0 %v2708, 111
      %v2710 = vpop.permute.xlu0 %2709
      %v2711 = vrot.slane %v2710, 4
      %v2712 = vsel %vm773, %v2711, %v2710
      %v2715 = vmul.f32 %v2697, %v2712
      %v2716 = vmul.f32 %v2698, %v2711
      %v2717 = vld [vmem:[%s7] sm:$0xf]
      %v2718 = vld [vmem:[%s557] ss:$8 sm:$0x3]
      %v2720 = vlaneseq
      %v2721 = vshrl.u32 %v2720, 7
      %v2722 = vsub.s32 0, %v2721
      %v2723 = vrot.slane %v2718, %v2722
      %v2724 = vlaneseq
      %v2725 = vshrl.u32 %v2724, 7
      %v2726 = vsub.s32 1, %v2725
      %v2727 = vrot.slane %v2718, %v2726
      %v2728 = vcombine.low %v2723, %v2727
      %2729 = vrot.lane.b32.xlu0 %v2728, 112
      %v2730 = vpop.permute.xlu0 %2729
      %v2731 = vrot.slane %v2730, 4
      %v2732 = vsel %vm761, %v2731, %v2730
      %v2735 = vmul.f32 %v2697, %v2732
      %v2736 = vmul.f32 %v2698, %v2731
      %s2737 = scalar_lea.vmem %s7, 4
      %v2738 = vld [vmem:[%s2737] sm:$0xf]
      %v2741 = vcombine.high %v2735, %v2735
      %2742 = vrot.lane.b32.xlu0 %v2735, 16
      %v2743 = vpop.permute.xlu0 %2742
      %2744 = vrot.lane.b32.xlu0 %v2741, 16
      %v2745 = vpop.permute.xlu0 %2744
      %2746 = vrot.lane.b32.xlu0 %v2736, 16
      %v2747 = vpop.permute.xlu0 %2746
      %v2748 = vsel %vm1313, %v2743, %v2745
      %v2749 = vsel %vm1313, %v2745, %v2747
      %v2751 = vsel %vm1799, %v2738, 0
      %v2753 = vsel %vm1740, %v2748, 0
      %v2755 = vsel %vm1740, %v2749, 0
      %2757 = vmatprep.subr.mxu0 %v2755
      %2758 = vmatpush1.msra.mxu0 %v2753
      %2759 = vmatprep.subr.mxu0 0.0
      %2760 = vmatpush1.msra.mxu0 0.0
      %2761 = vmatprep.subr.mxu0 0.0
      %2762 = vmatpush1.msra.mxu0 0.0
      %2763 = vmatprep.subr.mxu0 0.0
      %2764 = vmatpush1.msra.mxu0 0.0
      %2765 = vmatprep.subr.mxu0 0.0
      %2766 = vmatpush1.msra.mxu0 0.0
      %2767 = vmatprep.subr.mxu0 0.0
      %2768 = vmatpush1.msra.mxu0 0.0
      %2769 = vmatprep.subr.mxu0 0.0
      %2770 = vmatpush1.msra.mxu0 0.0
      %2771 = vmatprep.subr.mxu0 0.0
      %2772 = vmatpush1.msra.mxu0 0.0
      %2773 = vmatprep.subr.mxu0 0.0
      %2774 = vmatpush1.msra.mxu0 0.0
      %2775 = vmatprep.subr.mxu0 0.0
      %2776 = vmatpush1.msra.mxu0 0.0
      %2777 = vmatprep.subr.mxu0 0.0
      %2778 = vmatpush1.msra.mxu0 0.0
      %2779 = vmatprep.subr.mxu0 0.0
      %2780 = vmatpush1.msra.mxu0 0.0
      %2781 = vmatprep.subr.mxu0 0.0
      %2782 = vmatpush1.msra.mxu0 0.0
      %2783 = vmatprep.subr.mxu0 0.0
      %2784 = vmatpush1.msra.mxu0 0.0
      %2785 = vmatprep.subr.mxu0 0.0
      %2786 = vmatpush1.msra.mxu0 0.0
      %2787 = vmatprep.subr.mxu0 0.0
      %2788 = vmatpush1.msra.mxu0 0.0
      %2789 = vmatprep.subr.mxu0 0.0
      %2790 = vmatpush1.msra.mxu0 0.0
      %2791 = vmatprep.subr.mxu0 0.0
      %2792 = vmatpush1.msra.mxu0 0.0
      %2793 = vmatprep.subr.mxu0 0.0
      %2794 = vmatpush1.msra.mxu0 0.0
      %2795 = vmatprep.subr.mxu0 0.0
      %2796 = vmatpush1.msra.mxu0 0.0
      %2797 = vmatprep.subr.mxu0 0.0
      %2798 = vmatpush1.msra.mxu0 0.0
      %2799 = vmatprep.subr.mxu0 0.0
      %2800 = vmatpush1.msra.mxu0 0.0
      %2801 = vmatprep.subr.mxu0 0.0
      %2802 = vmatpush1.msra.mxu0 0.0
      %2803 = vmatprep.subr.mxu0 0.0
      %2804 = vmatpush1.msra.mxu0 0.0
      %2805 = vmatprep.subr.mxu0 0.0
      %2806 = vmatpush1.msra.mxu0 0.0
      %2807 = vmatprep.subr.mxu0 0.0
      %2808 = vmatpush1.msra.mxu0 0.0
      %2809 = vmatprep.subr.mxu0 0.0
      %2810 = vmatpush1.msra.mxu0 0.0
      %2811 = vmatprep.subr.mxu0 0.0
      %2812 = vmatpush1.msra.mxu0 0.0
      %2813 = vmatprep.subr.mxu0 0.0
      %2814 = vmatpush1.msra.mxu0 0.0
      %2815 = vmatprep.subr.mxu0 0.0
      %2816 = vmatpush1.msra.mxu0 0.0
      %2817 = vmatprep.subr.mxu0 0.0
      %2818 = vmatpush1.msra.mxu0 0.0
      %2819 = vmatprep.subr.mxu0 0.0
      %2820 = vmatpush1.msra.mxu0 0.0
      %2821 = vmatprep.mubr.f32.mxu0 0.0
      %2822 = vmatmul.mubr.f32.gmra.mrb[0].mxu0 %v2751
      %v2823 = vpop.f32.mrb[0].mxu0
      %v2824 = vadd.f32 0.0, %v2823
      %v2825 = vpop.f32.mrb[0].mxu0
      %v2826 = vadd.f32 0.0, %v2825
      %2827 = vdwg.mxu0
      %v2830 = vcombine.high %v2715, %v2715
      %2831 = vrot.lane.b32.xlu0 %v2715, 17
      %v2832 = vpop.permute.xlu0 %2831
      %2833 = vrot.lane.b32.xlu0 %v2830, 17
      %v2834 = vpop.permute.xlu0 %2833
      %2835 = vrot.lane.b32.xlu0 %v2716, 17
      %v2836 = vpop.permute.xlu0 %2835
      %v2837 = vsel %vm1364, %v2832, %v2834
      %v2838 = vsel %vm1364, %v2834, %v2836
      %v2840 = vsel %vm1799, %v2717, 0
      %v2842 = vsel %vm1740, %v2837, 0
      %v2844 = vsel %vm1740, %v2838, 0
      %2846 = vmatprep.subr.mxu0 %v2844
      %2847 = vmatpush1.msra.mxu0 %v2842
      %2848 = vmatprep.subr.mxu0 0.0
      %2849 = vmatpush1.msra.mxu0 0.0
      %2850 = vmatprep.subr.mxu0 0.0
      %2851 = vmatpush1.msra.mxu0 0.0
      %2852 = vmatprep.subr.mxu0 0.0
      %2853 = vmatpush1.msra.mxu0 0.0
      %2854 = vmatprep.subr.mxu0 0.0
      %2855 = vmatpush1.msra.mxu0 0.0
      %2856 = vmatprep.subr.mxu0 0.0
      %2857 = vmatpush1.msra.mxu0 0.0
      %2858 = vmatprep.subr.mxu0 0.0
      %2859 = vmatpush1.msra.mxu0 0.0
      %2860 = vmatprep.subr.mxu0 0.0
      %2861 = vmatpush1.msra.mxu0 0.0
      %2862 = vmatprep.subr.mxu0 0.0
      %2863 = vmatpush1.msra.mxu0 0.0
      %2864 = vmatprep.subr.mxu0 0.0
      %2865 = vmatpush1.msra.mxu0 0.0
      %2866 = vmatprep.subr.mxu0 0.0
      %2867 = vmatpush1.msra.mxu0 0.0
      %2868 = vmatprep.subr.mxu0 0.0
      %2869 = vmatpush1.msra.mxu0 0.0
      %2870 = vmatprep.subr.mxu0 0.0
      %2871 = vmatpush1.msra.mxu0 0.0
      %2872 = vmatprep.subr.mxu0 0.0
      %2873 = vmatpush1.msra.mxu0 0.0
      %2874 = vmatprep.subr.mxu0 0.0
      %2875 = vmatpush1.msra.mxu0 0.0
      %2876 = vmatprep.subr.mxu0 0.0
      %2877 = vmatpush1.msra.mxu0 0.0
      %2878 = vmatprep.subr.mxu0 0.0
      %2879 = vmatpush1.msra.mxu0 0.0
      %2880 = vmatprep.subr.mxu0 0.0
      %2881 = vmatpush1.msra.mxu0 0.0
      %2882 = vmatprep.subr.mxu0 0.0
      %2883 = vmatpush1.msra.mxu0 0.0
      %2884 = vmatprep.subr.mxu0 0.0
      %2885 = vmatpush1.msra.mxu0 0.0
      %2886 = vmatprep.subr.mxu0 0.0
      %2887 = vmatpush1.msra.mxu0 0.0
      %2888 = vmatprep.subr.mxu0 0.0
      %2889 = vmatpush1.msra.mxu0 0.0
      %2890 = vmatprep.subr.mxu0 0.0
      %2891 = vmatpush1.msra.mxu0 0.0
      %2892 = vmatprep.subr.mxu0 0.0
      %2893 = vmatpush1.msra.mxu0 0.0
      %2894 = vmatprep.subr.mxu0 0.0
      %2895 = vmatpush1.msra.mxu0 0.0
      %2896 = vmatprep.subr.mxu0 0.0
      %2897 = vmatpush1.msra.mxu0 0.0
      %2898 = vmatprep.subr.mxu0 0.0
      %2899 = vmatpush1.msra.mxu0 0.0
      %2900 = vmatprep.subr.mxu0 0.0
      %2901 = vmatpush1.msra.mxu0 0.0
      %2902 = vmatprep.subr.mxu0 0.0
      %2903 = vmatpush1.msra.mxu0 0.0
      %2904 = vmatprep.subr.mxu0 0.0
      %2905 = vmatpush1.msra.mxu0 0.0
      %2906 = vmatprep.subr.mxu0 0.0
      %2907 = vmatpush1.msra.mxu0 0.0
      %2908 = vmatprep.subr.mxu0 0.0
      %2909 = vmatpush1.msra.mxu0 0.0
      %2910 = vmatprep.mubr.f32.mxu0 0.0
      %2911 = vmatmul.mubr.f32.gmra.mrb[0].mxu0 %v2840
      %v2912 = vpop.f32.mrb[0].mxu0
      %v2913 = vadd.f32 %v2824, %v2912
      %v2914 = vpop.f32.mrb[0].mxu0
      %v2915 = vadd.f32 %v2826, %v2914
      %2916 = vdwg.mxu0
      %v2917 = vld [vmem:[%s611] ss:$8 sm:$0x3]
      %v2918 = vld [vmem:[#allocation2] sm:$0xff]
      %v2919 = vld [vmem:[#allocation2 + $0x8] sm:$0xf]
      %v2921 = vlaneseq
      %v2922 = vshrl.u32 %v2921, 7
      %v2923 = vsub.s32 0, %v2922
      %v2924 = vrot.slane %v2917, %v2923
      %v2925 = vlaneseq
      %v2926 = vshrl.u32 %v2925, 7
      %v2927 = vsub.s32 1, %v2926
      %v2928 = vrot.slane %v2917, %v2927
      %v2929 = vcombine.low %v2924, %v2928
      %2930 = vrot.lane.b32.xlu0 %v2929, 113
      %v2931 = vpop.permute.xlu0 %2930
      %v2932 = vrot.slane %v2931, 4
      %v2933 = vsel %vm872, %v2932, %v2931
      %v2936 = vmul.f32 %v2918, %v2933
      %v2937 = vmul.f32 %v2919, %v2932
      %s2938 = scalar_lea.vmem %s7, 8
      %v2939 = vld [vmem:[%s2938] sm:$0xf]
      %v2942 = vcombine.high %v2936, %v2936
      %2943 = vrot.lane.b32.xlu0 %v2936, 15
      %v2944 = vpop.permute.xlu0 %2943
      %2945 = vrot.lane.b32.xlu0 %v2942, 15
      %v2946 = vpop.permute.xlu0 %2945
      %2947 = vrot.lane.b32.xlu0 %v2937, 15
      %v2948 = vpop.permute.xlu0 %2947
      %v2949 = vsel %vm1262, %v2944, %v2946
      %v2950 = vsel %vm1262, %v2946, %v2948
      %v2952 = vsel %vm1799, %v2939, 0
      %v2954 = vsel %vm1740, %v2949, 0
      %v2956 = vsel %vm1740, %v2950, 0
      %2958 = vmatprep.subr.mxu0 %v2956
      %2959 = vmatpush1.msra.mxu0 %v2954
      %2960 = vmatprep.subr.mxu0 0.0
      %2961 = vmatpush1.msra.mxu0 0.0
      %2962 = vmatprep.subr.mxu0 0.0
      %2963 = vmatpush1.msra.mxu0 0.0
      %2964 = vmatprep.subr.mxu0 0.0
      %2965 = vmatpush1.msra.mxu0 0.0
      %2966 = vmatprep.subr.mxu0 0.0
      %2967 = vmatpush1.msra.mxu0 0.0
      %2968 = vmatprep.subr.mxu0 0.0
      %2969 = vmatpush1.msra.mxu0 0.0
      %2970 = vmatprep.subr.mxu0 0.0
      %2971 = vmatpush1.msra.mxu0 0.0
      %2972 = vmatprep.subr.mxu0 0.0
      %2973 = vmatpush1.msra.mxu0 0.0
      %2974 = vmatprep.subr.mxu0 0.0
      %2975 = vmatpush1.msra.mxu0 0.0
      %2976 = vmatprep.subr.mxu0 0.0
      %2977 = vmatpush1.msra.mxu0 0.0
      %2978 = vmatprep.subr.mxu0 0.0
      %2979 = vmatpush1.msra.mxu0 0.0
      %2980 = vmatprep.subr.mxu0 0.0
      %2981 = vmatpush1.msra.mxu0 0.0
      %2982 = vmatprep.subr.mxu0 0.0
      %2983 = vmatpush1.msra.mxu0 0.0
      %2984 = vmatprep.subr.mxu0 0.0
      %2985 = vmatpush1.msra.mxu0 0.0
      %2986 = vmatprep.subr.mxu0 0.0
      %2987 = vmatpush1.msra.mxu0 0.0
      %2988 = vmatprep.subr.mxu0 0.0
      %2989 = vmatpush1.msra.mxu0 0.0
      %2990 = vmatprep.subr.mxu0 0.0
      %2991 = vmatpush1.msra.mxu0 0.0
      %2992 = vmatprep.subr.mxu0 0.0
      %2993 = vmatpush1.msra.mxu0 0.0
      %2994 = vmatprep.subr.mxu0 0.0
      %2995 = vmatpush1.msra.mxu0 0.0
      %2996 = vmatprep.subr.mxu0 0.0
      %2997 = vmatpush1.msra.mxu0 0.0
      %2998 = vmatprep.subr.mxu0 0.0
      %2999 = vmatpush1.msra.mxu0 0.0
      %3000 = vmatprep.subr.mxu0 0.0
      %3001 = vmatpush1.msra.mxu0 0.0
      %3002 = vmatprep.subr.mxu0 0.0
      %3003 = vmatpush1.msra.mxu0 0.0
      %3004 = vmatprep.subr.mxu0 0.0
      %3005 = vmatpush1.msra.mxu0 0.0
      %3006 = vmatprep.subr.mxu0 0.0
      %3007 = vmatpush1.msra.mxu0 0.0
      %3008 = vmatprep.subr.mxu0 0.0
      %3009 = vmatpush1.msra.mxu0 0.0
      %3010 = vmatprep.subr.mxu0 0.0
      %3011 = vmatpush1.msra.mxu0 0.0
      %3012 = vmatprep.subr.mxu0 0.0
      %3013 = vmatpush1.msra.mxu0 0.0
      %3014 = vmatprep.subr.mxu0 0.0
      %3015 = vmatpush1.msra.mxu0 0.0
      %3016 = vmatprep.subr.mxu0 0.0
      %3017 = vmatpush1.msra.mxu0 0.0
      %3018 = vmatprep.subr.mxu0 0.0
      %3019 = vmatpush1.msra.mxu0 0.0
      %3020 = vmatprep.subr.mxu0 0.0
      %3021 = vmatpush1.msra.mxu0 0.0
      %3022 = vmatprep.mubr.f32.mxu0 0.0
      %3023 = vmatmul.mubr.f32.gmra.mrb[0].mxu0 %v2952
      %v3024 = vpop.f32.mrb[0].mxu0
      %v3025 = vadd.f32 0.0, %v3024
      %v3026 = vpop.f32.mrb[0].mxu0
      %v3027 = vadd.f32 0.0, %v3026
      %3028 = vdwg.mxu0
      %v3029 = vadd.f32 %v2913, %v3025
      %v3030 = vadd.f32 %v2915, %v3027
      %v3031 = vld [vmem:[#allocation2] sm:$0xff]
      %v3032 = vld [vmem:[#allocation2 + $0x8] sm:$0xf]
      %3033 = vrot.lane.b32.xlu0 %v2708, 127
      %v3034 = vpop.permute.xlu0 %3033
      %v3035 = vrot.slane %v3034, 4
      %v3036 = vsel %vm548, %v3035, %v3034
      %v3039 = vmul.f32 %v3031, %v3036
      %v3040 = vmul.f32 %v3032, %v3035
      %s3041 = scalar_lea.vmem %s7, 12
      %v3042 = vld [vmem:[%s3041] sm:$0xf]
      %v3045 = vcombine.high %v3039, %v3039
      %3046 = vrot.lane.b32.xlu0 %v3039, 1
      %v3047 = vpop.permute.xlu0 %3046
      %3048 = vrot.lane.b32.xlu0 %v3045, 1
      %v3049 = vpop.permute.xlu0 %3048
      %3050 = vrot.lane.b32.xlu0 %v3040, 1
      %v3051 = vpop.permute.xlu0 %3050
      %v3052 = vsel %vm1109, %v3047, %v3049
      %v3053 = vsel %vm1109, %v3049, %v3051
      %v3055 = vsel %vm1799, %v3042, 0
      %v3057 = vsel %vm1740, %v3052, 0
      %v3059 = vsel %vm1740, %v3053, 0
      %3061 = vmatprep.subr.mxu0 %v3059
      %3062 = vmatpush1.msra.mxu0 %v3057
      %3063 = vmatprep.subr.mxu0 0.0
      %3064 = vmatpush1.msra.mxu0 0.0
      %3065 = vmatprep.subr.mxu0 0.0
      %3066 = vmatpush1.msra.mxu0 0.0
      %3067 = vmatprep.subr.mxu0 0.0
      %3068 = vmatpush1.msra.mxu0 0.0
      %3069 = vmatprep.subr.mxu0 0.0
      %3070 = vmatpush1.msra.mxu0 0.0
      %3071 = vmatprep.subr.mxu0 0.0
      %3072 = vmatpush1.msra.mxu0 0.0
      %3073 = vmatprep.subr.mxu0 0.0
      %3074 = vmatpush1.msra.mxu0 0.0
      %3075 = vmatprep.subr.mxu0 0.0
      %3076 = vmatpush1.msra.mxu0 0.0
      %3077 = vmatprep.subr.mxu0 0.0
      %3078 = vmatpush1.msra.mxu0 0.0
      %3079 = vmatprep.subr.mxu0 0.0
      %3080 = vmatpush1.msra.mxu0 0.0
      %3081 = vmatprep.subr.mxu0 0.0
      %3082 = vmatpush1.msra.mxu0 0.0
      %3083 = vmatprep.subr.mxu0 0.0
      %3084 = vmatpush1.msra.mxu0 0.0
      %3085 = vmatprep.subr.mxu0 0.0
      %3086 = vmatpush1.msra.mxu0 0.0
      %3087 = vmatprep.subr.mxu0 0.0
      %3088 = vmatpush1.msra.mxu0 0.0
      %3089 = vmatprep.subr.mxu0 0.0
      %3090 = vmatpush1.msra.mxu0 0.0
      %3091 = vmatprep.subr.mxu0 0.0
      %3092 = vmatpush1.msra.mxu0 0.0
      %3093 = vmatprep.subr.mxu0 0.0
      %3094 = vmatpush1.msra.mxu0 0.0
      %3095 = vmatprep.subr.mxu0 0.0
      %3096 = vmatpush1.msra.mxu0 0.0
      %3097 = vmatprep.subr.mxu0 0.0
      %3098 = vmatpush1.msra.mxu0 0.0
      %3099 = vmatprep.subr.mxu0 0.0
      %3100 = vmatpush1.msra.mxu0 0.0
      %3101 = vmatprep.subr.mxu0 0.0
      %3102 = vmatpush1.msra.mxu0 0.0
      %3103 = vmatprep.subr.mxu0 0.0
      %3104 = vmatpush1.msra.mxu0 0.0
      %3105 = vmatprep.subr.mxu0 0.0
      %3106 = vmatpush1.msra.mxu0 0.0
      %3107 = vmatprep.subr.mxu0 0.0
      %3108 = vmatpush1.msra.mxu0 0.0
      %3109 = vmatprep.subr.mxu0 0.0
      %3110 = vmatpush1.msra.mxu0 0.0
      %3111 = vmatprep.subr.mxu0 0.0
      %3112 = vmatpush1.msra.mxu0 0.0
      %3113 = vmatprep.subr.mxu0 0.0
      %3114 = vmatpush1.msra.mxu0 0.0
      %3115 = vmatprep.subr.mxu0 0.0
      %3116 = vmatpush1.msra.mxu0 0.0
      %3117 = vmatprep.subr.mxu0 0.0
      %3118 = vmatpush1.msra.mxu0 0.0
      %3119 = vmatprep.subr.mxu0 0.0
      %3120 = vmatpush1.msra.mxu0 0.0
      %3121 = vmatprep.subr.mxu0 0.0
      %3122 = vmatpush1.msra.mxu0 0.0
      %3123 = vmatprep.subr.mxu0 0.0
      %3124 = vmatpush1.msra.mxu0 0.0
      %3125 = vmatprep.mubr.f32.mxu0 0.0
      %3126 = vmatmul.mubr.f32.gmra.mrb[0].mxu0 %v3055
      %v3127 = vpop.f32.mrb[0].mxu0
      %v3128 = vadd.f32 0.0, %v3127
      %v3129 = vpop.f32.mrb[0].mxu0
      %v3130 = vadd.f32 0.0, %v3129
      %3131 = vdwg.mxu0
      %v3132 = vadd.f32 %v3029, %v3128
      %v3133 = vadd.f32 %v3030, %v3130
      %v3134 = vld [vmem:[#allocation2 + $0x4] sm:$0xff]
      %v3136 = vmul.f32 %v3134, %v2728
      %s3137 = scalar_lea.vmem %s7, 16
      %v3138 = vld [vmem:[%s3137] sm:$0xf]
      %v3140 = vcombine.high %v3136, %v3136
      %v3142 = vsel %vm1799, %v3138, 0
      %v3144 = vsel %vm1740, %v3136, 0
      %v3146 = vsel %vm1740, %v3140, 0
      %3148 = vmatprep.subr.mxu0 %v3146
      %3149 = vmatpush1.msra.mxu0 %v3144
      %3150 = vmatprep.subr.mxu0 0.0
      %3151 = vmatpush1.msra.mxu0 0.0
      %3152 = vmatprep.subr.mxu0 0.0
      %3153 = vmatpush1.msra.mxu0 0.0
      %3154 = vmatprep.subr.mxu0 0.0
      %3155 = vmatpush1.msra.mxu0 0.0
      %3156 = vmatprep.subr.mxu0 0.0
      %3157 = vmatpush1.msra.mxu0 0.0
      %3158 = vmatprep.subr.mxu0 0.0
      %3159 = vmatpush1.msra.mxu0 0.0
      %3160 = vmatprep.subr.mxu0 0.0
      %3161 = vmatpush1.msra.mxu0 0.0
      %3162 = vmatprep.subr.mxu0 0.0
      %3163 = vmatpush1.msra.mxu0 0.0
      %3164 = vmatprep.subr.mxu0 0.0
      %3165 = vmatpush1.msra.mxu0 0.0
      %3166 = vmatprep.subr.mxu0 0.0
      %3167 = vmatpush1.msra.mxu0 0.0
      %3168 = vmatprep.subr.mxu0 0.0
      %3169 = vmatpush1.msra.mxu0 0.0
      %3170 = vmatprep.subr.mxu0 0.0
      %3171 = vmatpush1.msra.mxu0 0.0
      %3172 = vmatprep.subr.mxu0 0.0
      %3173 = vmatpush1.msra.mxu0 0.0
      %3174 = vmatprep.subr.mxu0 0.0
      %3175 = vmatpush1.msra.mxu0 0.0
      %3176 = vmatprep.subr.mxu0 0.0
      %3177 = vmatpush1.msra.mxu0 0.0
      %3178 = vmatprep.subr.mxu0 0.0
      %3179 = vmatpush1.msra.mxu0 0.0
      %3180 = vmatprep.subr.mxu0 0.0
      %3181 = vmatpush1.msra.mxu0 0.0
      %3182 = vmatprep.subr.mxu0 0.0
      %3183 = vmatpush1.msra.mxu0 0.0
      %3184 = vmatprep.subr.mxu0 0.0
      %3185 = vmatpush1.msra.mxu0 0.0
      %3186 = vmatprep.subr.mxu0 0.0
      %3187 = vmatpush1.msra.mxu0 0.0
      %3188 = vmatprep.subr.mxu0 0.0
      %3189 = vmatpush1.msra.mxu0 0.0
      %3190 = vmatprep.subr.mxu0 0.0
      %3191 = vmatpush1.msra.mxu0 0.0
      %3192 = vmatprep.subr.mxu0 0.0
      %3193 = vmatpush1.msra.mxu0 0.0
      %3194 = vmatprep.subr.mxu0 0.0
      %3195 = vmatpush1.msra.mxu0 0.0
      %3196 = vmatprep.subr.mxu0 0.0
      %3197 = vmatpush1.msra.mxu0 0.0
      %3198 = vmatprep.subr.mxu0 0.0
      %3199 = vmatpush1.msra.mxu0 0.0
      %3200 = vmatprep.subr.mxu0 0.0
      %3201 = vmatpush1.msra.mxu0 0.0
      %3202 = vmatprep.subr.mxu0 0.0
      %3203 = vmatpush1.msra.mxu0 0.0
      %3204 = vmatprep.subr.mxu0 0.0
      %3205 = vmatpush1.msra.mxu0 0.0
      %3206 = vmatprep.subr.mxu0 0.0
      %3207 = vmatpush1.msra.mxu0 0.0
      %3208 = vmatprep.subr.mxu0 0.0
      %3209 = vmatpush1.msra.mxu0 0.0
      %3210 = vmatprep.subr.mxu0 0.0
      %3211 = vmatpush1.msra.mxu0 0.0
      %3212 = vmatprep.mubr.f32.mxu0 0.0
      %3213 = vmatmul.mubr.f32.gmra.mrb[0].mxu0 %v3142
      %v3214 = vpop.f32.mrb[0].mxu0
      %v3215 = vadd.f32 0.0, %v3214
      %v3216 = vpop.f32.mrb[0].mxu0
      %v3217 = vadd.f32 0.0, %v3216
      %3218 = vdwg.mxu0
      %v3219 = vadd.f32 %v3132, %v3215
      %v3220 = vadd.f32 %v3133, %v3217
      %v3221 = vld [vmem:[#allocation2 + $0x4] sm:$0xff]
      %v3222 = vld [vmem:[#allocation2 + $0xc] sm:$0xf]
      %3223 = vrot.lane.b32.xlu0 %v2929, 1
      %v3224 = vpop.permute.xlu0 %3223
      %v3225 = vrot.slane %v3224, 4
      %v3226 = vsel %vm1109, %v3225, %v3224
      %v3229 = vmul.f32 %v3221, %v3226
      %v3230 = vmul.f32 %v3222, %v3225
      %s3231 = scalar_lea.vmem %s7, 20
      %v3232 = vld [vmem:[%s3231] sm:$0xf]
      %v3235 = vcombine.high %v3229, %v3229
      %3236 = vrot.lane.b32.xlu0 %v3229, 127
      %v3237 = vpop.permute.xlu0 %3236
      %3238 = vrot.lane.b32.xlu0 %v3235, 127
      %v3239 = vpop.permute.xlu0 %3238
      %3240 = vrot.lane.b32.xlu0 %v3230, 127
      %v3241 = vpop.permute.xlu0 %3240
      %v3242 = vsel %vm548, %v3237, %v3239
      %v3243 = vsel %vm548, %v3239, %v3241
      %v3245 = vsel %vm1799, %v3232, 0
      %v3247 = vsel %vm1740, %v3242, 0
      %v3249 = vsel %vm1740, %v3243, 0
      %3251 = vmatprep.subr.mxu0 %v3249
      %3252 = vmatpush1.msra.mxu0 %v3247
      %3253 = vmatprep.subr.mxu0 0.0
      %3254 = vmatpush1.msra.mxu0 0.0
      %3255 = vmatprep.subr.mxu0 0.0
      %3256 = vmatpush1.msra.mxu0 0.0
      %3257 = vmatprep.subr.mxu0 0.0
      %3258 = vmatpush1.msra.mxu0 0.0
      %3259 = vmatprep.subr.mxu0 0.0
      %3260 = vmatpush1.msra.mxu0 0.0
      %3261 = vmatprep.subr.mxu0 0.0
      %3262 = vmatpush1.msra.mxu0 0.0
      %3263 = vmatprep.subr.mxu0 0.0
      %3264 = vmatpush1.msra.mxu0 0.0
      %3265 = vmatprep.subr.mxu0 0.0
      %3266 = vmatpush1.msra.mxu0 0.0
      %3267 = vmatprep.subr.mxu0 0.0
      %3268 = vmatpush1.msra.mxu0 0.0
      %3269 = vmatprep.subr.mxu0 0.0
      %3270 = vmatpush1.msra.mxu0 0.0
      %3271 = vmatprep.subr.mxu0 0.0
      %3272 = vmatpush1.msra.mxu0 0.0
      %3273 = vmatprep.subr.mxu0 0.0
      %3274 = vmatpush1.msra.mxu0 0.0
      %3275 = vmatprep.subr.mxu0 0.0
      %3276 = vmatpush1.msra.mxu0 0.0
      %3277 = vmatprep.subr.mxu0 0.0
      %3278 = vmatpush1.msra.mxu0 0.0
      %3279 = vmatprep.subr.mxu0 0.0
      %3280 = vmatpush1.msra.mxu0 0.0
      %3281 = vmatprep.subr.mxu0 0.0
      %3282 = vmatpush1.msra.mxu0 0.0
      %3283 = vmatprep.subr.mxu0 0.0
      %3284 = vmatpush1.msra.mxu0 0.0
      %3285 = vmatprep.subr.mxu0 0.0
      %3286 = vmatpush1.msra.mxu0 0.0
      %3287 = vmatprep.subr.mxu0 0.0
      %3288 = vmatpush1.msra.mxu0 0.0
      %3289 = vmatprep.subr.mxu0 0.0
      %3290 = vmatpush1.msra.mxu0 0.0
      %3291 = vmatprep.subr.mxu0 0.0
      %3292 = vmatpush1.msra.mxu0 0.0
      %3293 = vmatprep.subr.mxu0 0.0
      %3294 = vmatpush1.msra.mxu0 0.0
      %3295 = vmatprep.subr.mxu0 0.0
      %3296 = vmatpush1.msra.mxu0 0.0
      %3297 = vmatprep.subr.mxu0 0.0
      %3298 = vmatpush1.msra.mxu0 0.0
      %3299 = vmatprep.subr.mxu0 0.0
      %3300 = vmatpush1.msra.mxu0 0.0
      %3301 = vmatprep.subr.mxu0 0.0
      %3302 = vmatpush1.msra.mxu0 0.0
      %3303 = vmatprep.subr.mxu0 0.0
      %3304 = vmatpush1.msra.mxu0 0.0
      %3305 = vmatprep.subr.mxu0 0.0
      %3306 = vmatpush1.msra.mxu0 0.0
      %3307 = vmatprep.subr.mxu0 0.0
      %3308 = vmatpush1.msra.mxu0 0.0
      %3309 = vmatprep.subr.mxu0 0.0
      %3310 = vmatpush1.msra.mxu0 0.0
      %3311 = vmatprep.subr.mxu0 0.0
      %3312 = vmatpush1.msra.mxu0 0.0
      %3313 = vmatprep.subr.mxu0 0.0
      %3314 = vmatpush1.msra.mxu0 0.0
      %3315 = vmatprep.mubr.f32.mxu0 0.0
      %3316 = vmatmul.mubr.f32.gmra.mrb[0].mxu0 %v3245
      %v3317 = vpop.f32.mrb[0].mxu0
      %v3318 = vadd.f32 0.0, %v3317
      %v3319 = vpop.f32.mrb[0].mxu0
      %v3320 = vadd.f32 0.0, %v3319
      %3321 = vdwg.mxu0
      %v3322 = vadd.f32 %v3219, %v3318
      %v3323 = vadd.f32 %v3220, %v3320
      %v3324 = vld [vmem:[#allocation2 + $0x4] sm:$0xff]
      %v3325 = vld [vmem:[#allocation2 + $0xc] sm:$0xf]
      %3326 = vrot.lane.b32.xlu0 %v2708, 15
      %v3327 = vpop.permute.xlu0 %3326
      %v3328 = vrot.slane %v3327, 4
      %v3329 = vsel %vm1262, %v3328, %v3327
      %v3332 = vmul.f32 %v3324, %v3329
      %v3333 = vmul.f32 %v3325, %v3328
      %s3334 = scalar_lea.vmem %s7, 24
      %v3335 = vld [vmem:[%s3334] sm:$0xf]
      %v3338 = vcombine.high %v3332, %v3332
      %3339 = vrot.lane.b32.xlu0 %v3332, 113
      %v3340 = vpop.permute.xlu0 %3339
      %3341 = vrot.lane.b32.xlu0 %v3338, 113
      %v3342 = vpop.permute.xlu0 %3341
      %3343 = vrot.lane.b32.xlu0 %v3333, 113
      %v3344 = vpop.permute.xlu0 %3343
      %v3345 = vsel %vm872, %v3340, %v3342
      %v3346 = vsel %vm872, %v3342, %v3344
      %v3348 = vsel %vm1799, %v3335, 0
      %v3350 = vsel %vm1740, %v3345, 0
      %v3352 = vsel %vm1740, %v3346, 0
      %3354 = vmatprep.subr.mxu0 %v3352
      %3355 = vmatpush1.msra.mxu0 %v3350
      %3356 = vmatprep.subr.mxu0 0.0
      %3357 = vmatpush1.msra.mxu0 0.0
      %3358 = vmatprep.subr.mxu0 0.0
      %3359 = vmatpush1.msra.mxu0 0.0
      %3360 = vmatprep.subr.mxu0 0.0
      %3361 = vmatpush1.msra.mxu0 0.0
      %3362 = vmatprep.subr.mxu0 0.0
      %3363 = vmatpush1.msra.mxu0 0.0
      %3364 = vmatprep.subr.mxu0 0.0
      %3365 = vmatpush1.msra.mxu0 0.0
      %3366 = vmatprep.subr.mxu0 0.0
      %3367 = vmatpush1.msra.mxu0 0.0
      %3368 = vmatprep.subr.mxu0 0.0
      %3369 = vmatpush1.msra.mxu0 0.0
      %3370 = vmatprep.subr.mxu0 0.0
      %3371 = vmatpush1.msra.mxu0 0.0
      %3372 = vmatprep.subr.mxu0 0.0
      %3373 = vmatpush1.msra.mxu0 0.0
      %3374 = vmatprep.subr.mxu0 0.0
      %3375 = vmatpush1.msra.mxu0 0.0
      %3376 = vmatprep.subr.mxu0 0.0
      %3377 = vmatpush1.msra.mxu0 0.0
      %3378 = vmatprep.subr.mxu0 0.0
      %3379 = vmatpush1.msra.mxu0 0.0
      %3380 = vmatprep.subr.mxu0 0.0
      %3381 = vmatpush1.msra.mxu0 0.0
      %3382 = vmatprep.subr.mxu0 0.0
      %3383 = vmatpush1.msra.mxu0 0.0
      %3384 = vmatprep.subr.mxu0 0.0
      %3385 = vmatpush1.msra.mxu0 0.0
      %3386 = vmatprep.subr.mxu0 0.0
      %3387 = vmatpush1.msra.mxu0 0.0
      %3388 = vmatprep.subr.mxu0 0.0
      %3389 = vmatpush1.msra.mxu0 0.0
      %3390 = vmatprep.subr.mxu0 0.0
      %3391 = vmatpush1.msra.mxu0 0.0
      %3392 = vmatprep.subr.mxu0 0.0
      %3393 = vmatpush1.msra.mxu0 0.0
      %3394 = vmatprep.subr.mxu0 0.0
      %3395 = vmatpush1.msra.mxu0 0.0
      %3396 = vmatprep.subr.mxu0 0.0
      %3397 = vmatpush1.msra.mxu0 0.0
      %3398 = vmatprep.subr.mxu0 0.0
      %3399 = vmatpush1.msra.mxu0 0.0
      %3400 = vmatprep.subr.mxu0 0.0
      %3401 = vmatpush1.msra.mxu0 0.0
      %3402 = vmatprep.subr.mxu0 0.0
      %3403 = vmatpush1.msra.mxu0 0.0
      %3404 = vmatprep.subr.mxu0 0.0
      %3405 = vmatpush1.msra.mxu0 0.0
      %3406 = vmatprep.subr.mxu0 0.0
      %3407 = vmatpush1.msra.mxu0 0.0
      %3408 = vmatprep.subr.mxu0 0.0
      %3409 = vmatpush1.msra.mxu0 0.0
      %3410 = vmatprep.subr.mxu0 0.0
      %3411 = vmatpush1.msra.mxu0 0.0
      %3412 = vmatprep.subr.mxu0 0.0
      %3413 = vmatpush1.msra.mxu0 0.0
      %3414 = vmatprep.subr.mxu0 0.0
      %3415 = vmatpush1.msra.mxu0 0.0
      %3416 = vmatprep.subr.mxu0 0.0
      %3417 = vmatpush1.msra.mxu0 0.0
      %3418 = vmatprep.mubr.f32.mxu0 0.0
      %3419 = vmatmul.mubr.f32.gmra.mrb[0].mxu0 %v3348
      %v3420 = vpop.f32.mrb[0].mxu0
      %v3421 = vadd.f32 0.0, %v3420
      %v3422 = vpop.f32.mrb[0].mxu0
      %v3423 = vadd.f32 0.0, %v3422
      %3424 = vdwg.mxu0
      %v3425 = vadd.f32 %v3322, %v3421
      %v3426 = vadd.f32 %v3323, %v3423
      %v3427 = vld [vmem:[#allocation2 + $0x4] sm:$0xff]
      %v3428 = vld [vmem:[#allocation2 + $0xc] sm:$0xf]
      %3429 = vrot.lane.b32.xlu0 %v2728, 16
      %v3430 = vpop.permute.xlu0 %3429
      %v3431 = vrot.slane %v3430, 4
      %v3432 = vsel %vm1313, %v3431, %v3430
      %v3435 = vmul.f32 %v3427, %v3432
      %v3436 = vmul.f32 %v3428, %v3431
      %s3437 = scalar_lea.vmem %s7, 28
      %v3438 = vld [vmem:[%s3437] sm:$0xf]
      %v3441 = vcombine.high %v3435, %v3435
      %3442 = vrot.lane.b32.xlu0 %v3435, 112
      %v3443 = vpop.permute.xlu0 %3442
      %3444 = vrot.lane.b32.xlu0 %v3441, 112
      %v3445 = vpop.permute.xlu0 %3444
      %3446 = vrot.lane.b32.xlu0 %v3436, 112
      %v3447 = vpop.permute.xlu0 %3446
      %v3448 = vsel %vm761, %v3443, %v3445
      %v3449 = vsel %vm761, %v3445, %v3447
      %v3451 = vsel %vm1799, %v3438, 0
      %v3453 = vsel %vm1740, %v3448, 0
      %v3455 = vsel %vm1740, %v3449, 0
      %3457 = vmatprep.subr.mxu0 %v3455
      %3458 = vmatpush1.msra.mxu0 %v3453
      %3459 = vmatprep.subr.mxu0 0.0
      %3460 = vmatpush1.msra.mxu0 0.0
      %3461 = vmatprep.subr.mxu0 0.0
      %3462 = vmatpush1.msra.mxu0 0.0
      %3463 = vmatprep.subr.mxu0 0.0
      %3464 = vmatpush1.msra.mxu0 0.0
      %3465 = vmatprep.subr.mxu0 0.0
      %3466 = vmatpush1.msra.mxu0 0.0
      %3467 = vmatprep.subr.mxu0 0.0
      %3468 = vmatpush1.msra.mxu0 0.0
      %3469 = vmatprep.subr.mxu0 0.0
      %3470 = vmatpush1.msra.mxu0 0.0
      %3471 = vmatprep.subr.mxu0 0.0
      %3472 = vmatpush1.msra.mxu0 0.0
      %3473 = vmatprep.subr.mxu0 0.0
      %3474 = vmatpush1.msra.mxu0 0.0
      %3475 = vmatprep.subr.mxu0 0.0
      %3476 = vmatpush1.msra.mxu0 0.0
      %3477 = vmatprep.subr.mxu0 0.0
      %3478 = vmatpush1.msra.mxu0 0.0
      %3479 = vmatprep.subr.mxu0 0.0
      %3480 = vmatpush1.msra.mxu0 0.0
      %3481 = vmatprep.subr.mxu0 0.0
      %3482 = vmatpush1.msra.mxu0 0.0
      %3483 = vmatprep.subr.mxu0 0.0
      %3484 = vmatpush1.msra.mxu0 0.0
      %3485 = vmatprep.subr.mxu0 0.0
      %3486 = vmatpush1.msra.mxu0 0.0
      %3487 = vmatprep.subr.mxu0 0.0
      %3488 = vmatpush1.msra.mxu0 0.0
      %3489 = vmatprep.subr.mxu0 0.0
      %3490 = vmatpush1.msra.mxu0 0.0
      %3491 = vmatprep.subr.mxu0 0.0
      %3492 = vmatpush1.msra.mxu0 0.0
      %3493 = vmatprep.subr.mxu0 0.0
      %3494 = vmatpush1.msra.mxu0 0.0
      %3495 = vmatprep.subr.mxu0 0.0
      %3496 = vmatpush1.msra.mxu0 0.0
      %3497 = vmatprep.subr.mxu0 0.0
      %3498 = vmatpush1.msra.mxu0 0.0
      %3499 = vmatprep.subr.mxu0 0.0
      %3500 = vmatpush1.msra.mxu0 0.0
      %3501 = vmatprep.subr.mxu0 0.0
      %3502 = vmatpush1.msra.mxu0 0.0
      %3503 = vmatprep.subr.mxu0 0.0
      %3504 = vmatpush1.msra.mxu0 0.0
      %3505 = vmatprep.subr.mxu0 0.0
      %3506 = vmatpush1.msra.mxu0 0.0
      %3507 = vmatprep.subr.mxu0 0.0
      %3508 = vmatpush1.msra.mxu0 0.0
      %3509 = vmatprep.subr.mxu0 0.0
      %3510 = vmatpush1.msra.mxu0 0.0
      %3511 = vmatprep.subr.mxu0 0.0
      %3512 = vmatpush1.msra.mxu0 0.0
      %3513 = vmatprep.subr.mxu0 0.0
      %3514 = vmatpush1.msra.mxu0 0.0
      %3515 = vmatprep.subr.mxu0 0.0
      %3516 = vmatpush1.msra.mxu0 0.0
      %3517 = vmatprep.subr.mxu0 0.0
      %3518 = vmatpush1.msra.mxu0 0.0
      %3519 = vmatprep.subr.mxu0 0.0
      %3520 = vmatpush1.msra.mxu0 0.0
      %3521 = vmatprep.mubr.f32.mxu0 0.0
      %3522 = vmatmul.mubr.f32.gmra.mrb[0].mxu0 %v3451
      %v3523 = vpop.f32.mrb[0].mxu0
      %v3524 = vadd.f32 0.0, %v3523
      %v3525 = vpop.f32.mrb[0].mxu0
      %v3526 = vadd.f32 0.0, %v3525
      %3527 = vdwg.mxu0
      %v3528 = vadd.f32 %v3425, %v3524
      %v3529 = vadd.f32 %v3426, %v3526
      %v3530 = vld [vmem:[#allocation2 + $0x4] sm:$0xff]
      %v3531 = vld [vmem:[#allocation2 + $0xc] sm:$0xf]
      %3532 = vrot.lane.b32.xlu0 %v2929, 17
      %v3533 = vpop.permute.xlu0 %3532
      %v3534 = vrot.slane %v3533, 4
      %v3535 = vsel %vm1364, %v3534, %v3533
      %v3538 = vmul.f32 %v3530, %v3535
      %v3539 = vmul.f32 %v3531, %v3534
      %s3540 = scalar_lea.vmem %s7, 32
      %v3541 = vld [vmem:[%s3540] sm:$0xf]
      %v3544 = vcombine.high %v3538, %v3538
      %3545 = vrot.lane.b32.xlu0 %v3538, 111
      %v3546 = vpop.permute.xlu0 %3545
      %3547 = vrot.lane.b32.xlu0 %v3544, 111
      %v3548 = vpop.permute.xlu0 %3547
      %3549 = vrot.lane.b32.xlu0 %v3539, 111
      %v3550 = vpop.permute.xlu0 %3549
      %v3551 = vsel %vm773, %v3546, %v3548
      %v3552 = vsel %vm773, %v3548, %v3550
      %v3554 = vsel %vm1799, %v3541, 0
      %v3556 = vsel %vm1740, %v3551, 0
      %v3558 = vsel %vm1740, %v3552, 0
      %3560 = vmatprep.subr.mxu0 %v3558
      %3561 = vmatpush1.msra.mxu0 %v3556
      %3562 = vmatprep.subr.mxu0 0.0
      %3563 = vmatpush1.msra.mxu0 0.0
      %3564 = vmatprep.subr.mxu0 0.0
      %3565 = vmatpush1.msra.mxu0 0.0
      %3566 = vmatprep.subr.mxu0 0.0
      %3567 = vmatpush1.msra.mxu0 0.0
      %3568 = vmatprep.subr.mxu0 0.0
      %3569 = vmatpush1.msra.mxu0 0.0
      %3570 = vmatprep.subr.mxu0 0.0
      %3571 = vmatpush1.msra.mxu0 0.0
      %3572 = vmatprep.subr.mxu0 0.0
      %3573 = vmatpush1.msra.mxu0 0.0
      %3574 = vmatprep.subr.mxu0 0.0
      %3575 = vmatpush1.msra.mxu0 0.0
      %3576 = vmatprep.subr.mxu0 0.0
      %3577 = vmatpush1.msra.mxu0 0.0
      %3578 = vmatprep.subr.mxu0 0.0
      %3579 = vmatpush1.msra.mxu0 0.0
      %3580 = vmatprep.subr.mxu0 0.0
      %3581 = vmatpush1.msra.mxu0 0.0
      %3582 = vmatprep.subr.mxu0 0.0
      %3583 = vmatpush1.msra.mxu0 0.0
      %3584 = vmatprep.subr.mxu0 0.0
      %3585 = vmatpush1.msra.mxu0 0.0
      %3586 = vmatprep.subr.mxu0 0.0
      %3587 = vmatpush1.msra.mxu0 0.0
      %3588 = vmatprep.subr.mxu0 0.0
      %3589 = vmatpush1.msra.mxu0 0.0
      %3590 = vmatprep.subr.mxu0 0.0
      %3591 = vmatpush1.msra.mxu0 0.0
      %3592 = vmatprep.subr.mxu0 0.0
      %3593 = vmatpush1.msra.mxu0 0.0
      %3594 = vmatprep.subr.mxu0 0.0
      %3595 = vmatpush1.msra.mxu0 0.0
      %3596 = vmatprep.subr.mxu0 0.0
      %3597 = vmatpush1.msra.mxu0 0.0
      %3598 = vmatprep.subr.mxu0 0.0
      %3599 = vmatpush1.msra.mxu0 0.0
      %3600 = vmatprep.subr.mxu0 0.0
      %3601 = vmatpush1.msra.mxu0 0.0
      %3602 = vmatprep.subr.mxu0 0.0
      %3603 = vmatpush1.msra.mxu0 0.0
      %3604 = vmatprep.subr.mxu0 0.0
      %3605 = vmatpush1.msra.mxu0 0.0
      %3606 = vmatprep.subr.mxu0 0.0
      %3607 = vmatpush1.msra.mxu0 0.0
      %3608 = vmatprep.subr.mxu0 0.0
      %3609 = vmatpush1.msra.mxu0 0.0
      %3610 = vmatprep.subr.mxu0 0.0
      %3611 = vmatpush1.msra.mxu0 0.0
      %3612 = vmatprep.subr.mxu0 0.0
      %3613 = vmatpush1.msra.mxu0 0.0
      %3614 = vmatprep.subr.mxu0 0.0
      %3615 = vmatpush1.msra.mxu0 0.0
      %3616 = vmatprep.subr.mxu0 0.0
      %3617 = vmatpush1.msra.mxu0 0.0
      %3618 = vmatprep.subr.mxu0 0.0
      %3619 = vmatpush1.msra.mxu0 0.0
      %3620 = vmatprep.subr.mxu0 0.0
      %3621 = vmatpush1.msra.mxu0 0.0
      %3622 = vmatprep.subr.mxu0 0.0
      %3623 = vmatpush1.msra.mxu0 0.0
      %3624 = vmatprep.mubr.f32.mxu0 0.0
      %3625 = vmatmul.mubr.f32.gmra.mrb[0].mxu0 %v3554
      %v3626 = vpop.f32.mrb[0].mxu0
      %v3627 = vadd.f32 0.0, %v3626
      %v3628 = vpop.f32.mrb[0].mxu0
      %v3629 = vadd.f32 0.0, %v3628
      %3630 = vdwg.mxu0
      %v3631 = vadd.f32 %v3528, %v3627
      %v3632 = vadd.f32 %v3529, %v3629
      %v3633 = vld [vmem:[%s8] sm:$0xf]
      %3635 = vset.pattern.permute.xlu0 0
      %3636 = vperm.xlu0 %3635, %v3633
      %v3637 = vpop.permute.xlu0 %3636
      %v3639 = vadd.f32 %v3631, %v3637
      %v3640 = vadd.f32 %v3632, %v3637
      %3641 = vst [vmem:[#allocation2 + $0x4] sm:$0xff] %v460
      %v3642 = vld [vmem:[%s503] ss:$8 sm:$0x3]
      %v3643 = vld [vmem:[#allocation2] sm:$0xff]
      %v3644 = vld [vmem:[#allocation2 + $0x8] sm:$0xf]
      %v3646 = vlaneseq
      %v3647 = vshrl.u32 %v3646, 7
      %v3648 = vsub.s32 0, %v3647
      %v3649 = vrot.slane %v3642, %v3648
      %v3650 = vlaneseq
      %v3651 = vshrl.u32 %v3650, 7
      %v3652 = vsub.s32 1, %v3651
      %v3653 = vrot.slane %v3642, %v3652
      %v3654 = vcombine.low %v3649, %v3653
      %3655 = vrot.lane.b32.xlu0 %v3654, 111
      %v3656 = vpop.permute.xlu0 %3655
      %v3657 = vrot.slane %v3656, 4
      %v3658 = vsel %vm773, %v3657, %v3656
      %v3661 = vmul.f32 %v3643, %v3658
      %v3662 = vmul.f32 %v3644, %v3657
      %v3663 = vld [vmem:[%s9] sm:$0xf]
      %v3664 = vld [vmem:[%s557] ss:$8 sm:$0x3]
      %v3666 = vlaneseq
      %v3667 = vshrl.u32 %v3666, 7
      %v3668 = vsub.s32 0, %v3667
      %v3669 = vrot.slane %v3664, %v3668
      %v3670 = vlaneseq
      %v3671 = vshrl.u32 %v3670, 7
      %v3672 = vsub.s32 1, %v3671
      %v3673 = vrot.slane %v3664, %v3672
      %v3674 = vcombine.low %v3669, %v3673
      %3675 = vrot.lane.b32.xlu0 %v3674, 112
      %v3676 = vpop.permute.xlu0 %3675
      %v3677 = vrot.slane %v3676, 4
      %v3678 = vsel %vm761, %v3677, %v3676
      %v3681 = vmul.f32 %v3643, %v3678
      %v3682 = vmul.f32 %v3644, %v3677
      %s3683 = scalar_lea.vmem %s9, 4
      %v3684 = vld [vmem:[%s3683] sm:$0xf]
      %v3687 = vcombine.high %v3681, %v3681
      %3688 = vrot.lane.b32.xlu0 %v3681, 16
      %v3689 = vpop.permute.xlu0 %3688
      %3690 = vrot.lane.b32.xlu0 %v3687, 16
      %v3691 = vpop.permute.xlu0 %3690
      %3692 = vrot.lane.b32.xlu0 %v3682, 16
      %v3693 = vpop.permute.xlu0 %3692
      %v3694 = vsel %vm1313, %v3689, %v3691
      %v3695 = vsel %vm1313, %v3691, %v3693
      %v3697 = vsel %vm1799, %v3684, 0
      %v3699 = vsel %vm1740, %v3694, 0
      %v3701 = vsel %vm1740, %v3695, 0
      %3703 = vmatprep.subr.mxu0 %v3701
      %3704 = vmatpush1.msra.mxu0 %v3699
      %3705 = vmatprep.subr.mxu0 0.0
      %3706 = vmatpush1.msra.mxu0 0.0
      %3707 = vmatprep.subr.mxu0 0.0
      %3708 = vmatpush1.msra.mxu0 0.0
      %3709 = vmatprep.subr.mxu0 0.0
      %3710 = vmatpush1.msra.mxu0 0.0
      %3711 = vmatprep.subr.mxu0 0.0
      %3712 = vmatpush1.msra.mxu0 0.0
      %3713 = vmatprep.subr.mxu0 0.0
      %3714 = vmatpush1.msra.mxu0 0.0
      %3715 = vmatprep.subr.mxu0 0.0
      %3716 = vmatpush1.msra.mxu0 0.0
      %3717 = vmatprep.subr.mxu0 0.0
      %3718 = vmatpush1.msra.mxu0 0.0
      %3719 = vmatprep.subr.mxu0 0.0
      %3720 = vmatpush1.msra.mxu0 0.0
      %3721 = vmatprep.subr.mxu0 0.0
      %3722 = vmatpush1.msra.mxu0 0.0
      %3723 = vmatprep.subr.mxu0 0.0
      %3724 = vmatpush1.msra.mxu0 0.0
      %3725 = vmatprep.subr.mxu0 0.0
      %3726 = vmatpush1.msra.mxu0 0.0
      %3727 = vmatprep.subr.mxu0 0.0
      %3728 = vmatpush1.msra.mxu0 0.0
      %3729 = vmatprep.subr.mxu0 0.0
      %3730 = vmatpush1.msra.mxu0 0.0
      %3731 = vmatprep.subr.mxu0 0.0
      %3732 = vmatpush1.msra.mxu0 0.0
      %3733 = vmatprep.subr.mxu0 0.0
      %3734 = vmatpush1.msra.mxu0 0.0
      %3735 = vmatprep.subr.mxu0 0.0
      %3736 = vmatpush1.msra.mxu0 0.0
      %3737 = vmatprep.subr.mxu0 0.0
      %3738 = vmatpush1.msra.mxu0 0.0
      %3739 = vmatprep.subr.mxu0 0.0
      %3740 = vmatpush1.msra.mxu0 0.0
      %3741 = vmatprep.subr.mxu0 0.0
      %3742 = vmatpush1.msra.mxu0 0.0
      %3743 = vmatprep.subr.mxu0 0.0
      %3744 = vmatpush1.msra.mxu0 0.0
      %3745 = vmatprep.subr.mxu0 0.0
      %3746 = vmatpush1.msra.mxu0 0.0
      %3747 = vmatprep.subr.mxu0 0.0
      %3748 = vmatpush1.msra.mxu0 0.0
      %3749 = vmatprep.subr.mxu0 0.0
      %3750 = vmatpush1.msra.mxu0 0.0
      %3751 = vmatprep.subr.mxu0 0.0
      %3752 = vmatpush1.msra.mxu0 0.0
      %3753 = vmatprep.subr.mxu0 0.0
      %3754 = vmatpush1.msra.mxu0 0.0
      %3755 = vmatprep.subr.mxu0 0.0
      %3756 = vmatpush1.msra.mxu0 0.0
      %3757 = vmatprep.subr.mxu0 0.0
      %3758 = vmatpush1.msra.mxu0 0.0
      %3759 = vmatprep.subr.mxu0 0.0
      %3760 = vmatpush1.msra.mxu0 0.0
      %3761 = vmatprep.subr.mxu0 0.0
      %3762 = vmatpush1.msra.mxu0 0.0
      %3763 = vmatprep.subr.mxu0 0.0
      %3764 = vmatpush1.msra.mxu0 0.0
      %3765 = vmatprep.subr.mxu0 0.0
      %3766 = vmatpush1.msra.mxu0 0.0
      %3767 = vmatprep.mubr.f32.mxu0 0.0
      %3768 = vmatmul.mubr.f32.gmra.mrb[0].mxu0 %v3697
      %v3769 = vpop.f32.mrb[0].mxu0
      %v3770 = vadd.f32 0.0, %v3769
      %v3771 = vpop.f32.mrb[0].mxu0
      %v3772 = vadd.f32 0.0, %v3771
      %3773 = vdwg.mxu0
      %v3776 = vcombine.high %v3661, %v3661
      %3777 = vrot.lane.b32.xlu0 %v3661, 17
      %v3778 = vpop.permute.xlu0 %3777
      %3779 = vrot.lane.b32.xlu0 %v3776, 17
      %v3780 = vpop.permute.xlu0 %3779
      %3781 = vrot.lane.b32.xlu0 %v3662, 17
      %v3782 = vpop.permute.xlu0 %3781
      %v3783 = vsel %vm1364, %v3778, %v3780
      %v3784 = vsel %vm1364, %v3780, %v3782
      %v3786 = vsel %vm1799, %v3663, 0
      %v3788 = vsel %vm1740, %v3783, 0
      %v3790 = vsel %vm1740, %v3784, 0
      %3792 = vmatprep.subr.mxu0 %v3790
      %3793 = vmatpush1.msra.mxu0 %v3788
      %3794 = vmatprep.subr.mxu0 0.0
      %3795 = vmatpush1.msra.mxu0 0.0
      %3796 = vmatprep.subr.mxu0 0.0
      %3797 = vmatpush1.msra.mxu0 0.0
      %3798 = vmatprep.subr.mxu0 0.0
      %3799 = vmatpush1.msra.mxu0 0.0
      %3800 = vmatprep.subr.mxu0 0.0
      %3801 = vmatpush1.msra.mxu0 0.0
      %3802 = vmatprep.subr.mxu0 0.0
      %3803 = vmatpush1.msra.mxu0 0.0
      %3804 = vmatprep.subr.mxu0 0.0
      %3805 = vmatpush1.msra.mxu0 0.0
      %3806 = vmatprep.subr.mxu0 0.0
      %3807 = vmatpush1.msra.mxu0 0.0
      %3808 = vmatprep.subr.mxu0 0.0
      %3809 = vmatpush1.msra.mxu0 0.0
      %3810 = vmatprep.subr.mxu0 0.0
      %3811 = vmatpush1.msra.mxu0 0.0
      %3812 = vmatprep.subr.mxu0 0.0
      %3813 = vmatpush1.msra.mxu0 0.0
      %3814 = vmatprep.subr.mxu0 0.0
      %3815 = vmatpush1.msra.mxu0 0.0
      %3816 = vmatprep.subr.mxu0 0.0
      %3817 = vmatpush1.msra.mxu0 0.0
      %3818 = vmatprep.subr.mxu0 0.0
      %3819 = vmatpush1.msra.mxu0 0.0
      %3820 = vmatprep.subr.mxu0 0.0
      %3821 = vmatpush1.msra.mxu0 0.0
      %3822 = vmatprep.subr.mxu0 0.0
      %3823 = vmatpush1.msra.mxu0 0.0
      %3824 = vmatprep.subr.mxu0 0.0
      %3825 = vmatpush1.msra.mxu0 0.0
      %3826 = vmatprep.subr.mxu0 0.0
      %3827 = vmatpush1.msra.mxu0 0.0
      %3828 = vmatprep.subr.mxu0 0.0
      %3829 = vmatpush1.msra.mxu0 0.0
      %3830 = vmatprep.subr.mxu0 0.0
      %3831 = vmatpush1.msra.mxu0 0.0
      %3832 = vmatprep.subr.mxu0 0.0
      %3833 = vmatpush1.msra.mxu0 0.0
      %3834 = vmatprep.subr.mxu0 0.0
      %3835 = vmatpush1.msra.mxu0 0.0
      %3836 = vmatprep.subr.mxu0 0.0
      %3837 = vmatpush1.msra.mxu0 0.0
      %3838 = vmatprep.subr.mxu0 0.0
      %3839 = vmatpush1.msra.mxu0 0.0
      %3840 = vmatprep.subr.mxu0 0.0
      %3841 = vmatpush1.msra.mxu0 0.0
      %3842 = vmatprep.subr.mxu0 0.0
      %3843 = vmatpush1.msra.mxu0 0.0
      %3844 = vmatprep.subr.mxu0 0.0
      %3845 = vmatpush1.msra.mxu0 0.0
      %3846 = vmatprep.subr.mxu0 0.0
      %3847 = vmatpush1.msra.mxu0 0.0
      %3848 = vmatprep.subr.mxu0 0.0
      %3849 = vmatpush1.msra.mxu0 0.0
      %3850 = vmatprep.subr.mxu0 0.0
      %3851 = vmatpush1.msra.mxu0 0.0
      %3852 = vmatprep.subr.mxu0 0.0
      %3853 = vmatpush1.msra.mxu0 0.0
      %3854 = vmatprep.subr.mxu0 0.0
      %3855 = vmatpush1.msra.mxu0 0.0
      %3856 = vmatprep.mubr.f32.mxu0 0.0
      %3857 = vmatmul.mubr.f32.gmra.mrb[0].mxu0 %v3786
      %v3858 = vpop.f32.mrb[0].mxu0
      %v3859 = vadd.f32 %v3770, %v3858
      %v3860 = vpop.f32.mrb[0].mxu0
      %v3861 = vadd.f32 %v3772, %v3860
      %3862 = vdwg.mxu0
      %v3863 = vld [vmem:[%s611] ss:$8 sm:$0x3]
      %v3864 = vld [vmem:[#allocation2] sm:$0xff]
      %v3865 = vld [vmem:[#allocation2 + $0x8] sm:$0xf]
      %v3867 = vlaneseq
      %v3868 = vshrl.u32 %v3867, 7
      %v3869 = vsub.s32 0, %v3868
      %v3870 = vrot.slane %v3863, %v3869
      %v3871 = vlaneseq
      %v3872 = vshrl.u32 %v3871, 7
      %v3873 = vsub.s32 1, %v3872
      %v3874 = vrot.slane %v3863, %v3873
      %v3875 = vcombine.low %v3870, %v3874
      %3876 = vrot.lane.b32.xlu0 %v3875, 113
      %v3877 = vpop.permute.xlu0 %3876
      %v3878 = vrot.slane %v3877, 4
      %v3879 = vsel %vm872, %v3878, %v3877
      %v3882 = vmul.f32 %v3864, %v3879
      %v3883 = vmul.f32 %v3865, %v3878
      %s3884 = scalar_lea.vmem %s9, 8
      %v3885 = vld [vmem:[%s3884] sm:$0xf]
      %v3888 = vcombine.high %v3882, %v3882
      %3889 = vrot.lane.b32.xlu0 %v3882, 15
      %v3890 = vpop.permute.xlu0 %3889
      %3891 = vrot.lane.b32.xlu0 %v3888, 15
      %v3892 = vpop.permute.xlu0 %3891
      %3893 = vrot.lane.b32.xlu0 %v3883, 15
      %v3894 = vpop.permute.xlu0 %3893
      %v3895 = vsel %vm1262, %v3890, %v3892
      %v3896 = vsel %vm1262, %v3892, %v3894
      %v3898 = vsel %vm1799, %v3885, 0
      %v3900 = vsel %vm1740, %v3895, 0
      %v3902 = vsel %vm1740, %v3896, 0
      %3904 = vmatprep.subr.mxu0 %v3902
      %3905 = vmatpush1.msra.mxu0 %v3900
      %3906 = vmatprep.subr.mxu0 0.0
      %3907 = vmatpush1.msra.mxu0 0.0
      %3908 = vmatprep.subr.mxu0 0.0
      %3909 = vmatpush1.msra.mxu0 0.0
      %3910 = vmatprep.subr.mxu0 0.0
      %3911 = vmatpush1.msra.mxu0 0.0
      %3912 = vmatprep.subr.mxu0 0.0
      %3913 = vmatpush1.msra.mxu0 0.0
      %3914 = vmatprep.subr.mxu0 0.0
      %3915 = vmatpush1.msra.mxu0 0.0
      %3916 = vmatprep.subr.mxu0 0.0
      %3917 = vmatpush1.msra.mxu0 0.0
      %3918 = vmatprep.subr.mxu0 0.0
      %3919 = vmatpush1.msra.mxu0 0.0
      %3920 = vmatprep.subr.mxu0 0.0
      %3921 = vmatpush1.msra.mxu0 0.0
      %3922 = vmatprep.subr.mxu0 0.0
      %3923 = vmatpush1.msra.mxu0 0.0
      %3924 = vmatprep.subr.mxu0 0.0
      %3925 = vmatpush1.msra.mxu0 0.0
      %3926 = vmatprep.subr.mxu0 0.0
      %3927 = vmatpush1.msra.mxu0 0.0
      %3928 = vmatprep.subr.mxu0 0.0
      %3929 = vmatpush1.msra.mxu0 0.0
      %3930 = vmatprep.subr.mxu0 0.0
      %3931 = vmatpush1.msra.mxu0 0.0
      %3932 = vmatprep.subr.mxu0 0.0
      %3933 = vmatpush1.msra.mxu0 0.0
      %3934 = vmatprep.subr.mxu0 0.0
      %3935 = vmatpush1.msra.mxu0 0.0
      %3936 = vmatprep.subr.mxu0 0.0
      %3937 = vmatpush1.msra.mxu0 0.0
      %3938 = vmatprep.subr.mxu0 0.0
      %3939 = vmatpush1.msra.mxu0 0.0
      %3940 = vmatprep.subr.mxu0 0.0
      %3941 = vmatpush1.msra.mxu0 0.0
      %3942 = vmatprep.subr.mxu0 0.0
      %3943 = vmatpush1.msra.mxu0 0.0
      %3944 = vmatprep.subr.mxu0 0.0
      %3945 = vmatpush1.msra.mxu0 0.0
      %3946 = vmatprep.subr.mxu0 0.0
      %3947 = vmatpush1.msra.mxu0 0.0
      %3948 = vmatprep.subr.mxu0 0.0
      %3949 = vmatpush1.msra.mxu0 0.0
      %3950 = vmatprep.subr.mxu0 0.0
      %3951 = vmatpush1.msra.mxu0 0.0
      %3952 = vmatprep.subr.mxu0 0.0
      %3953 = vmatpush1.msra.mxu0 0.0
      %3954 = vmatprep.subr.mxu0 0.0
      %3955 = vmatpush1.msra.mxu0 0.0
      %3956 = vmatprep.subr.mxu0 0.0
      %3957 = vmatpush1.msra.mxu0 0.0
      %3958 = vmatprep.subr.mxu0 0.0
      %3959 = vmatpush1.msra.mxu0 0.0
      %3960 = vmatprep.subr.mxu0 0.0
      %3961 = vmatpush1.msra.mxu0 0.0
      %3962 = vmatprep.subr.mxu0 0.0
      %3963 = vmatpush1.msra.mxu0 0.0
      %3964 = vmatprep.subr.mxu0 0.0
      %3965 = vmatpush1.msra.mxu0 0.0
      %3966 = vmatprep.subr.mxu0 0.0
      %3967 = vmatpush1.msra.mxu0 0.0
      %3968 = vmatprep.mubr.f32.mxu0 0.0
      %3969 = vmatmul.mubr.f32.gmra.mrb[0].mxu0 %v3898
      %v3970 = vpop.f32.mrb[0].mxu0
      %v3971 = vadd.f32 0.0, %v3970
      %v3972 = vpop.f32.mrb[0].mxu0
      %v3973 = vadd.f32 0.0, %v3972
      %3974 = vdwg.mxu0
      %v3975 = vadd.f32 %v3859, %v3971
      %v3976 = vadd.f32 %v3861, %v3973
      %v3977 = vld [vmem:[#allocation2] sm:$0xff]
      %v3978 = vld [vmem:[#allocation2 + $0x8] sm:$0xf]
      %3979 = vrot.lane.b32.xlu0 %v3654, 127
      %v3980 = vpop.permute.xlu0 %3979
      %v3981 = vrot.slane %v3980, 4
      %v3982 = vsel %vm548, %v3981, %v3980
      %v3985 = vmul.f32 %v3977, %v3982
      %v3986 = vmul.f32 %v3978, %v3981
      %s3987 = scalar_lea.vmem %s9, 12
      %v3988 = vld [vmem:[%s3987] sm:$0xf]
      %v3991 = vcombine.high %v3985, %v3985
      %3992 = vrot.lane.b32.xlu0 %v3985, 1
      %v3993 = vpop.permute.xlu0 %3992
      %3994 = vrot.lane.b32.xlu0 %v3991, 1
      %v3995 = vpop.permute.xlu0 %3994
      %3996 = vrot.lane.b32.xlu0 %v3986, 1
      %v3997 = vpop.permute.xlu0 %3996
      %v3998 = vsel %vm1109, %v3993, %v3995
      %v3999 = vsel %vm1109, %v3995, %v3997
      %v4001 = vsel %vm1799, %v3988, 0
      %v4003 = vsel %vm1740, %v3998, 0
      %v4005 = vsel %vm1740, %v3999, 0
      %4007 = vmatprep.subr.mxu0 %v4005
      %4008 = vmatpush1.msra.mxu0 %v4003
      %4009 = vmatprep.subr.mxu0 0.0
      %4010 = vmatpush1.msra.mxu0 0.0
      %4011 = vmatprep.subr.mxu0 0.0
      %4012 = vmatpush1.msra.mxu0 0.0
      %4013 = vmatprep.subr.mxu0 0.0
      %4014 = vmatpush1.msra.mxu0 0.0
      %4015 = vmatprep.subr.mxu0 0.0
      %4016 = vmatpush1.msra.mxu0 0.0
      %4017 = vmatprep.subr.mxu0 0.0
      %4018 = vmatpush1.msra.mxu0 0.0
      %4019 = vmatprep.subr.mxu0 0.0
      %4020 = vmatpush1.msra.mxu0 0.0
      %4021 = vmatprep.subr.mxu0 0.0
      %4022 = vmatpush1.msra.mxu0 0.0
      %4023 = vmatprep.subr.mxu0 0.0
      %4024 = vmatpush1.msra.mxu0 0.0
      %4025 = vmatprep.subr.mxu0 0.0
      %4026 = vmatpush1.msra.mxu0 0.0
      %4027 = vmatprep.subr.mxu0 0.0
      %4028 = vmatpush1.msra.mxu0 0.0
      %4029 = vmatprep.subr.mxu0 0.0
      %4030 = vmatpush1.msra.mxu0 0.0
      %4031 = vmatprep.subr.mxu0 0.0
      %4032 = vmatpush1.msra.mxu0 0.0
      %4033 = vmatprep.subr.mxu0 0.0
      %4034 = vmatpush1.msra.mxu0 0.0
      %4035 = vmatprep.subr.mxu0 0.0
      %4036 = vmatpush1.msra.mxu0 0.0
      %4037 = vmatprep.subr.mxu0 0.0
      %4038 = vmatpush1.msra.mxu0 0.0
      %4039 = vmatprep.subr.mxu0 0.0
      %4040 = vmatpush1.msra.mxu0 0.0
      %4041 = vmatprep.subr.mxu0 0.0
      %4042 = vmatpush1.msra.mxu0 0.0
      %4043 = vmatprep.subr.mxu0 0.0
      %4044 = vmatpush1.msra.mxu0 0.0
      %4045 = vmatprep.subr.mxu0 0.0
      %4046 = vmatpush1.msra.mxu0 0.0
      %4047 = vmatprep.subr.mxu0 0.0
      %4048 = vmatpush1.msra.mxu0 0.0
      %4049 = vmatprep.subr.mxu0 0.0
      %4050 = vmatpush1.msra.mxu0 0.0
      %4051 = vmatprep.subr.mxu0 0.0
      %4052 = vmatpush1.msra.mxu0 0.0
      %4053 = vmatprep.subr.mxu0 0.0
      %4054 = vmatpush1.msra.mxu0 0.0
      %4055 = vmatprep.subr.mxu0 0.0
      %4056 = vmatpush1.msra.mxu0 0.0
      %4057 = vmatprep.subr.mxu0 0.0
      %4058 = vmatpush1.msra.mxu0 0.0
      %4059 = vmatprep.subr.mxu0 0.0
      %4060 = vmatpush1.msra.mxu0 0.0
      %4061 = vmatprep.subr.mxu0 0.0
      %4062 = vmatpush1.msra.mxu0 0.0
      %4063 = vmatprep.subr.mxu0 0.0
      %4064 = vmatpush1.msra.mxu0 0.0
      %4065 = vmatprep.subr.mxu0 0.0
      %4066 = vmatpush1.msra.mxu0 0.0
      %4067 = vmatprep.subr.mxu0 0.0
      %4068 = vmatpush1.msra.mxu0 0.0
      %4069 = vmatprep.subr.mxu0 0.0
      %4070 = vmatpush1.msra.mxu0 0.0
      %4071 = vmatprep.mubr.f32.mxu0 0.0
      %4072 = vmatmul.mubr.f32.gmra.mrb[0].mxu0 %v4001
      %v4073 = vpop.f32.mrb[0].mxu0
      %v4074 = vadd.f32 0.0, %v4073
      %v4075 = vpop.f32.mrb[0].mxu0
      %v4076 = vadd.f32 0.0, %v4075
      %4077 = vdwg.mxu0
      %v4078 = vadd.f32 %v3975, %v4074
      %v4079 = vadd.f32 %v3976, %v4076
      %v4080 = vld [vmem:[#allocation2 + $0x4] sm:$0xff]
      %v4082 = vmul.f32 %v4080, %v3674
      %s4083 = scalar_lea.vmem %s9, 16
      %v4084 = vld [vmem:[%s4083] sm:$0xf]
      %v4086 = vcombine.high %v4082, %v4082
      %v4088 = vsel %vm1799, %v4084, 0
      %v4090 = vsel %vm1740, %v4082, 0
      %v4092 = vsel %vm1740, %v4086, 0
      %4094 = vmatprep.subr.mxu0 %v4092
      %4095 = vmatpush1.msra.mxu0 %v4090
      %4096 = vmatprep.subr.mxu0 0.0
      %4097 = vmatpush1.msra.mxu0 0.0
      %4098 = vmatprep.subr.mxu0 0.0
      %4099 = vmatpush1.msra.mxu0 0.0
      %4100 = vmatprep.subr.mxu0 0.0
      %4101 = vmatpush1.msra.mxu0 0.0
      %4102 = vmatprep.subr.mxu0 0.0
      %4103 = vmatpush1.msra.mxu0 0.0
      %4104 = vmatprep.subr.mxu0 0.0
      %4105 = vmatpush1.msra.mxu0 0.0
      %4106 = vmatprep.subr.mxu0 0.0
      %4107 = vmatpush1.msra.mxu0 0.0
      %4108 = vmatprep.subr.mxu0 0.0
      %4109 = vmatpush1.msra.mxu0 0.0
      %4110 = vmatprep.subr.mxu0 0.0
      %4111 = vmatpush1.msra.mxu0 0.0
      %4112 = vmatprep.subr.mxu0 0.0
      %4113 = vmatpush1.msra.mxu0 0.0
      %4114 = vmatprep.subr.mxu0 0.0
      %4115 = vmatpush1.msra.mxu0 0.0
      %4116 = vmatprep.subr.mxu0 0.0
      %4117 = vmatpush1.msra.mxu0 0.0
      %4118 = vmatprep.subr.mxu0 0.0
      %4119 = vmatpush1.msra.mxu0 0.0
      %4120 = vmatprep.subr.mxu0 0.0
      %4121 = vmatpush1.msra.mxu0 0.0
      %4122 = vmatprep.subr.mxu0 0.0
      %4123 = vmatpush1.msra.mxu0 0.0
      %4124 = vmatprep.subr.mxu0 0.0
      %4125 = vmatpush1.msra.mxu0 0.0
      %4126 = vmatprep.subr.mxu0 0.0
      %4127 = vmatpush1.msra.mxu0 0.0
      %4128 = vmatprep.subr.mxu0 0.0
      %4129 = vmatpush1.msra.mxu0 0.0
      %4130 = vmatprep.subr.mxu0 0.0
      %4131 = vmatpush1.msra.mxu0 0.0
      %4132 = vmatprep.subr.mxu0 0.0
      %4133 = vmatpush1.msra.mxu0 0.0
      %4134 = vmatprep.subr.mxu0 0.0
      %4135 = vmatpush1.msra.mxu0 0.0
      %4136 = vmatprep.subr.mxu0 0.0
      %4137 = vmatpush1.msra.mxu0 0.0
      %4138 = vmatprep.subr.mxu0 0.0
      %4139 = vmatpush1.msra.mxu0 0.0
      %4140 = vmatprep.subr.mxu0 0.0
      %4141 = vmatpush1.msra.mxu0 0.0
      %4142 = vmatprep.subr.mxu0 0.0
      %4143 = vmatpush1.msra.mxu0 0.0
      %4144 = vmatprep.subr.mxu0 0.0
      %4145 = vmatpush1.msra.mxu0 0.0
      %4146 = vmatprep.subr.mxu0 0.0
      %4147 = vmatpush1.msra.mxu0 0.0
      %4148 = vmatprep.subr.mxu0 0.0
      %4149 = vmatpush1.msra.mxu0 0.0
      %4150 = vmatprep.subr.mxu0 0.0
      %4151 = vmatpush1.msra.mxu0 0.0
      %4152 = vmatprep.subr.mxu0 0.0
      %4153 = vmatpush1.msra.mxu0 0.0
      %4154 = vmatprep.subr.mxu0 0.0
      %4155 = vmatpush1.msra.mxu0 0.0
      %4156 = vmatprep.subr.mxu0 0.0
      %4157 = vmatpush1.msra.mxu0 0.0
      %4158 = vmatprep.mubr.f32.mxu0 0.0
      %4159 = vmatmul.mubr.f32.gmra.mrb[0].mxu0 %v4088
      %v4160 = vpop.f32.mrb[0].mxu0
      %v4161 = vadd.f32 0.0, %v4160
      %v4162 = vpop.f32.mrb[0].mxu0
      %v4163 = vadd.f32 0.0, %v4162
      %4164 = vdwg.mxu0
      %v4165 = vadd.f32 %v4078, %v4161
      %v4166 = vadd.f32 %v4079, %v4163
      %v4167 = vld [vmem:[#allocation2 + $0x4] sm:$0xff]
      %v4168 = vld [vmem:[#allocation2 + $0xc] sm:$0xf]
      %4169 = vrot.lane.b32.xlu0 %v3875, 1
      %v4170 = vpop.permute.xlu0 %4169
      %v4171 = vrot.slane %v4170, 4
      %v4172 = vsel %vm1109, %v4171, %v4170
      %v4175 = vmul.f32 %v4167, %v4172
      %v4176 = vmul.f32 %v4168, %v4171
      %s4177 = scalar_lea.vmem %s9, 20
      %v4178 = vld [vmem:[%s4177] sm:$0xf]
      %v4181 = vcombine.high %v4175, %v4175
      %4182 = vrot.lane.b32.xlu0 %v4175, 127
      %v4183 = vpop.permute.xlu0 %4182
      %4184 = vrot.lane.b32.xlu0 %v4181, 127
      %v4185 = vpop.permute.xlu0 %4184
      %4186 = vrot.lane.b32.xlu0 %v4176, 127
      %v4187 = vpop.permute.xlu0 %4186
      %v4188 = vsel %vm548, %v4183, %v4185
      %v4189 = vsel %vm548, %v4185, %v4187
      %v4191 = vsel %vm1799, %v4178, 0
      %v4193 = vsel %vm1740, %v4188, 0
      %v4195 = vsel %vm1740, %v4189, 0
      %4197 = vmatprep.subr.mxu0 %v4195
      %4198 = vmatpush1.msra.mxu0 %v4193
      %4199 = vmatprep.subr.mxu0 0.0
      %4200 = vmatpush1.msra.mxu0 0.0
      %4201 = vmatprep.subr.mxu0 0.0
      %4202 = vmatpush1.msra.mxu0 0.0
      %4203 = vmatprep.subr.mxu0 0.0
      %4204 = vmatpush1.msra.mxu0 0.0
      %4205 = vmatprep.subr.mxu0 0.0
      %4206 = vmatpush1.msra.mxu0 0.0
      %4207 = vmatprep.subr.mxu0 0.0
      %4208 = vmatpush1.msra.mxu0 0.0
      %4209 = vmatprep.subr.mxu0 0.0
      %4210 = vmatpush1.msra.mxu0 0.0
      %4211 = vmatprep.subr.mxu0 0.0
      %4212 = vmatpush1.msra.mxu0 0.0
      %4213 = vmatprep.subr.mxu0 0.0
      %4214 = vmatpush1.msra.mxu0 0.0
      %4215 = vmatprep.subr.mxu0 0.0
      %4216 = vmatpush1.msra.mxu0 0.0
      %4217 = vmatprep.subr.mxu0 0.0
      %4218 = vmatpush1.msra.mxu0 0.0
      %4219 = vmatprep.subr.mxu0 0.0
      %4220 = vmatpush1.msra.mxu0 0.0
      %4221 = vmatprep.subr.mxu0 0.0
      %4222 = vmatpush1.msra.mxu0 0.0
      %4223 = vmatprep.subr.mxu0 0.0
      %4224 = vmatpush1.msra.mxu0 0.0
      %4225 = vmatprep.subr.mxu0 0.0
      %4226 = vmatpush1.msra.mxu0 0.0
      %4227 = vmatprep.subr.mxu0 0.0
      %4228 = vmatpush1.msra.mxu0 0.0
      %4229 = vmatprep.subr.mxu0 0.0
      %4230 = vmatpush1.msra.mxu0 0.0
      %4231 = vmatprep.subr.mxu0 0.0
      %4232 = vmatpush1.msra.mxu0 0.0
      %4233 = vmatprep.subr.mxu0 0.0
      %4234 = vmatpush1.msra.mxu0 0.0
      %4235 = vmatprep.subr.mxu0 0.0
      %4236 = vmatpush1.msra.mxu0 0.0
      %4237 = vmatprep.subr.mxu0 0.0
      %4238 = vmatpush1.msra.mxu0 0.0
      %4239 = vmatprep.subr.mxu0 0.0
      %4240 = vmatpush1.msra.mxu0 0.0
      %4241 = vmatprep.subr.mxu0 0.0
      %4242 = vmatpush1.msra.mxu0 0.0
      %4243 = vmatprep.subr.mxu0 0.0
      %4244 = vmatpush1.msra.mxu0 0.0
      %4245 = vmatprep.subr.mxu0 0.0
      %4246 = vmatpush1.msra.mxu0 0.0
      %4247 = vmatprep.subr.mxu0 0.0
      %4248 = vmatpush1.msra.mxu0 0.0
      %4249 = vmatprep.subr.mxu0 0.0
      %4250 = vmatpush1.msra.mxu0 0.0
      %4251 = vmatprep.subr.mxu0 0.0
      %4252 = vmatpush1.msra.mxu0 0.0
      %4253 = vmatprep.subr.mxu0 0.0
      %4254 = vmatpush1.msra.mxu0 0.0
      %4255 = vmatprep.subr.mxu0 0.0
      %4256 = vmatpush1.msra.mxu0 0.0
      %4257 = vmatprep.subr.mxu0 0.0
      %4258 = vmatpush1.msra.mxu0 0.0
      %4259 = vmatprep.subr.mxu0 0.0
      %4260 = vmatpush1.msra.mxu0 0.0
      %4261 = vmatprep.mubr.f32.mxu0 0.0
      %4262 = vmatmul.mubr.f32.gmra.mrb[0].mxu0 %v4191
      %v4263 = vpop.f32.mrb[0].mxu0
      %v4264 = vadd.f32 0.0, %v4263
      %v4265 = vpop.f32.mrb[0].mxu0
      %v4266 = vadd.f32 0.0, %v4265
      %4267 = vdwg.mxu0
      %v4268 = vadd.f32 %v4165, %v4264
      %v4269 = vadd.f32 %v4166, %v4266
      %v4270 = vld [vmem:[#allocation2 + $0x4] sm:$0xff]
      %v4271 = vld [vmem:[#allocation2 + $0xc] sm:$0xf]
      %4272 = vrot.lane.b32.xlu0 %v3654, 15
      %v4273 = vpop.permute.xlu0 %4272
      %v4274 = vrot.slane %v4273, 4
      %v4275 = vsel %vm1262, %v4274, %v4273
      %v4278 = vmul.f32 %v4270, %v4275
      %v4279 = vmul.f32 %v4271, %v4274
      %s4280 = scalar_lea.vmem %s9, 24
      %v4281 = vld [vmem:[%s4280] sm:$0xf]
      %v4284 = vcombine.high %v4278, %v4278
      %4285 = vrot.lane.b32.xlu0 %v4278, 113
      %v4286 = vpop.permute.xlu0 %4285
      %4287 = vrot.lane.b32.xlu0 %v4284, 113
      %v4288 = vpop.permute.xlu0 %4287
      %4289 = vrot.lane.b32.xlu0 %v4279, 113
      %v4290 = vpop.permute.xlu0 %4289
      %v4291 = vsel %vm872, %v4286, %v4288
      %v4292 = vsel %vm872, %v4288, %v4290
      %v4294 = vsel %vm1799, %v4281, 0
      %v4296 = vsel %vm1740, %v4291, 0
      %v4298 = vsel %vm1740, %v4292, 0
      %4300 = vmatprep.subr.mxu0 %v4298
      %4301 = vmatpush1.msra.mxu0 %v4296
      %4302 = vmatprep.subr.mxu0 0.0
      %4303 = vmatpush1.msra.mxu0 0.0
      %4304 = vmatprep.subr.mxu0 0.0
      %4305 = vmatpush1.msra.mxu0 0.0
      %4306 = vmatprep.subr.mxu0 0.0
      %4307 = vmatpush1.msra.mxu0 0.0
      %4308 = vmatprep.subr.mxu0 0.0
      %4309 = vmatpush1.msra.mxu0 0.0
      %4310 = vmatprep.subr.mxu0 0.0
      %4311 = vmatpush1.msra.mxu0 0.0
      %4312 = vmatprep.subr.mxu0 0.0
      %4313 = vmatpush1.msra.mxu0 0.0
      %4314 = vmatprep.subr.mxu0 0.0
      %4315 = vmatpush1.msra.mxu0 0.0
      %4316 = vmatprep.subr.mxu0 0.0
      %4317 = vmatpush1.msra.mxu0 0.0
      %4318 = vmatprep.subr.mxu0 0.0
      %4319 = vmatpush1.msra.mxu0 0.0
      %4320 = vmatprep.subr.mxu0 0.0
      %4321 = vmatpush1.msra.mxu0 0.0
      %4322 = vmatprep.subr.mxu0 0.0
      %4323 = vmatpush1.msra.mxu0 0.0
      %4324 = vmatprep.subr.mxu0 0.0
      %4325 = vmatpush1.msra.mxu0 0.0
      %4326 = vmatprep.subr.mxu0 0.0
      %4327 = vmatpush1.msra.mxu0 0.0
      %4328 = vmatprep.subr.mxu0 0.0
      %4329 = vmatpush1.msra.mxu0 0.0
      %4330 = vmatprep.subr.mxu0 0.0
      %4331 = vmatpush1.msra.mxu0 0.0
      %4332 = vmatprep.subr.mxu0 0.0
      %4333 = vmatpush1.msra.mxu0 0.0
      %4334 = vmatprep.subr.mxu0 0.0
      %4335 = vmatpush1.msra.mxu0 0.0
      %4336 = vmatprep.subr.mxu0 0.0
      %4337 = vmatpush1.msra.mxu0 0.0
      %4338 = vmatprep.subr.mxu0 0.0
      %4339 = vmatpush1.msra.mxu0 0.0
      %4340 = vmatprep.subr.mxu0 0.0
      %4341 = vmatpush1.msra.mxu0 0.0
      %4342 = vmatprep.subr.mxu0 0.0
      %4343 = vmatpush1.msra.mxu0 0.0
      %4344 = vmatprep.subr.mxu0 0.0
      %4345 = vmatpush1.msra.mxu0 0.0
      %4346 = vmatprep.subr.mxu0 0.0
      %4347 = vmatpush1.msra.mxu0 0.0
      %4348 = vmatprep.subr.mxu0 0.0
      %4349 = vmatpush1.msra.mxu0 0.0
      %4350 = vmatprep.subr.mxu0 0.0
      %4351 = vmatpush1.msra.mxu0 0.0
      %4352 = vmatprep.subr.mxu0 0.0
      %4353 = vmatpush1.msra.mxu0 0.0
      %4354 = vmatprep.subr.mxu0 0.0
      %4355 = vmatpush1.msra.mxu0 0.0
      %4356 = vmatprep.subr.mxu0 0.0
      %4357 = vmatpush1.msra.mxu0 0.0
      %4358 = vmatprep.subr.mxu0 0.0
      %4359 = vmatpush1.msra.mxu0 0.0
      %4360 = vmatprep.subr.mxu0 0.0
      %4361 = vmatpush1.msra.mxu0 0.0
      %4362 = vmatprep.subr.mxu0 0.0
      %4363 = vmatpush1.msra.mxu0 0.0
      %4364 = vmatprep.mubr.f32.mxu0 0.0
      %4365 = vmatmul.mubr.f32.gmra.mrb[0].mxu0 %v4294
      %v4366 = vpop.f32.mrb[0].mxu0
      %v4367 = vadd.f32 0.0, %v4366
      %v4368 = vpop.f32.mrb[0].mxu0
      %v4369 = vadd.f32 0.0, %v4368
      %4370 = vdwg.mxu0
      %v4371 = vadd.f32 %v4268, %v4367
      %v4372 = vadd.f32 %v4269, %v4369
      %v4373 = vld [vmem:[#allocation2 + $0x4] sm:$0xff]
      %v4374 = vld [vmem:[#allocation2 + $0xc] sm:$0xf]
      %4375 = vrot.lane.b32.xlu0 %v3674, 16
      %v4376 = vpop.permute.xlu0 %4375
      %v4377 = vrot.slane %v4376, 4
      %v4378 = vsel %vm1313, %v4377, %v4376
      %v4381 = vmul.f32 %v4373, %v4378
      %v4382 = vmul.f32 %v4374, %v4377
      %s4383 = scalar_lea.vmem %s9, 28
      %v4384 = vld [vmem:[%s4383] sm:$0xf]
      %v4387 = vcombine.high %v4381, %v4381
      %4388 = vrot.lane.b32.xlu0 %v4381, 112
      %v4389 = vpop.permute.xlu0 %4388
      %4390 = vrot.lane.b32.xlu0 %v4387, 112
      %v4391 = vpop.permute.xlu0 %4390
      %4392 = vrot.lane.b32.xlu0 %v4382, 112
      %v4393 = vpop.permute.xlu0 %4392
      %v4394 = vsel %vm761, %v4389, %v4391
      %v4395 = vsel %vm761, %v4391, %v4393
      %v4397 = vsel %vm1799, %v4384, 0
      %v4399 = vsel %vm1740, %v4394, 0
      %v4401 = vsel %vm1740, %v4395, 0
      %4403 = vmatprep.subr.mxu0 %v4401
      %4404 = vmatpush1.msra.mxu0 %v4399
      %4405 = vmatprep.subr.mxu0 0.0
      %4406 = vmatpush1.msra.mxu0 0.0
      %4407 = vmatprep.subr.mxu0 0.0
      %4408 = vmatpush1.msra.mxu0 0.0
      %4409 = vmatprep.subr.mxu0 0.0
      %4410 = vmatpush1.msra.mxu0 0.0
      %4411 = vmatprep.subr.mxu0 0.0
      %4412 = vmatpush1.msra.mxu0 0.0
      %4413 = vmatprep.subr.mxu0 0.0
      %4414 = vmatpush1.msra.mxu0 0.0
      %4415 = vmatprep.subr.mxu0 0.0
      %4416 = vmatpush1.msra.mxu0 0.0
      %4417 = vmatprep.subr.mxu0 0.0
      %4418 = vmatpush1.msra.mxu0 0.0
      %4419 = vmatprep.subr.mxu0 0.0
      %4420 = vmatpush1.msra.mxu0 0.0
      %4421 = vmatprep.subr.mxu0 0.0
      %4422 = vmatpush1.msra.mxu0 0.0
      %4423 = vmatprep.subr.mxu0 0.0
      %4424 = vmatpush1.msra.mxu0 0.0
      %4425 = vmatprep.subr.mxu0 0.0
      %4426 = vmatpush1.msra.mxu0 0.0
      %4427 = vmatprep.subr.mxu0 0.0
      %4428 = vmatpush1.msra.mxu0 0.0
      %4429 = vmatprep.subr.mxu0 0.0
      %4430 = vmatpush1.msra.mxu0 0.0
      %4431 = vmatprep.subr.mxu0 0.0
      %4432 = vmatpush1.msra.mxu0 0.0
      %4433 = vmatprep.subr.mxu0 0.0
      %4434 = vmatpush1.msra.mxu0 0.0
      %4435 = vmatprep.subr.mxu0 0.0
      %4436 = vmatpush1.msra.mxu0 0.0
      %4437 = vmatprep.subr.mxu0 0.0
      %4438 = vmatpush1.msra.mxu0 0.0
      %4439 = vmatprep.subr.mxu0 0.0
      %4440 = vmatpush1.msra.mxu0 0.0
      %4441 = vmatprep.subr.mxu0 0.0
      %4442 = vmatpush1.msra.mxu0 0.0
      %4443 = vmatprep.subr.mxu0 0.0
      %4444 = vmatpush1.msra.mxu0 0.0
      %4445 = vmatprep.subr.mxu0 0.0
      %4446 = vmatpush1.msra.mxu0 0.0
      %4447 = vmatprep.subr.mxu0 0.0
      %4448 = vmatpush1.msra.mxu0 0.0
      %4449 = vmatprep.subr.mxu0 0.0
      %4450 = vmatpush1.msra.mxu0 0.0
      %4451 = vmatprep.subr.mxu0 0.0
      %4452 = vmatpush1.msra.mxu0 0.0
      %4453 = vmatprep.subr.mxu0 0.0
      %4454 = vmatpush1.msra.mxu0 0.0
      %4455 = vmatprep.subr.mxu0 0.0
      %4456 = vmatpush1.msra.mxu0 0.0
      %4457 = vmatprep.subr.mxu0 0.0
      %4458 = vmatpush1.msra.mxu0 0.0
      %4459 = vmatprep.subr.mxu0 0.0
      %4460 = vmatpush1.msra.mxu0 0.0
      %4461 = vmatprep.subr.mxu0 0.0
      %4462 = vmatpush1.msra.mxu0 0.0
      %4463 = vmatprep.subr.mxu0 0.0
      %4464 = vmatpush1.msra.mxu0 0.0
      %4465 = vmatprep.subr.mxu0 0.0
      %4466 = vmatpush1.msra.mxu0 0.0
      %4467 = vmatprep.mubr.f32.mxu0 0.0
      %4468 = vmatmul.mubr.f32.gmra.mrb[0].mxu0 %v4397
      %v4469 = vpop.f32.mrb[0].mxu0
      %v4470 = vadd.f32 0.0, %v4469
      %v4471 = vpop.f32.mrb[0].mxu0
      %v4472 = vadd.f32 0.0, %v4471
      %4473 = vdwg.mxu0
      %v4474 = vadd.f32 %v4371, %v4470
      %v4475 = vadd.f32 %v4372, %v4472
      %v4476 = vld [vmem:[#allocation2 + $0x4] sm:$0xff]
      %v4477 = vld [vmem:[#allocation2 + $0xc] sm:$0xf]
      %4478 = vrot.lane.b32.xlu0 %v3875, 17
      %v4479 = vpop.permute.xlu0 %4478
      %v4480 = vrot.slane %v4479, 4
      %v4481 = vsel %vm1364, %v4480, %v4479
      %v4484 = vmul.f32 %v4476, %v4481
      %v4485 = vmul.f32 %v4477, %v4480
      %s4486 = scalar_lea.vmem %s9, 32
      %v4487 = vld [vmem:[%s4486] sm:$0xf]
      %v4490 = vcombine.high %v4484, %v4484
      %4491 = vrot.lane.b32.xlu0 %v4484, 111
      %v4492 = vpop.permute.xlu0 %4491
      %4493 = vrot.lane.b32.xlu0 %v4490, 111
      %v4494 = vpop.permute.xlu0 %4493
      %4495 = vrot.lane.b32.xlu0 %v4485, 111
      %v4496 = vpop.permute.xlu0 %4495
      %v4497 = vsel %vm773, %v4492, %v4494
      %v4498 = vsel %vm773, %v4494, %v4496
      %v4500 = vsel %vm1799, %v4487, 0
      %v4502 = vsel %vm1740, %v4497, 0
      %v4504 = vsel %vm1740, %v4498, 0
      %4506 = vmatprep.subr.mxu0 %v4504
      %4507 = vmatpush1.msra.mxu0 %v4502
      %4508 = vmatprep.subr.mxu0 0.0
      %4509 = vmatpush1.msra.mxu0 0.0
      %4510 = vmatprep.subr.mxu0 0.0
      %4511 = vmatpush1.msra.mxu0 0.0
      %4512 = vmatprep.subr.mxu0 0.0
      %4513 = vmatpush1.msra.mxu0 0.0
      %4514 = vmatprep.subr.mxu0 0.0
      %4515 = vmatpush1.msra.mxu0 0.0
      %4516 = vmatprep.subr.mxu0 0.0
      %4517 = vmatpush1.msra.mxu0 0.0
      %4518 = vmatprep.subr.mxu0 0.0
      %4519 = vmatpush1.msra.mxu0 0.0
      %4520 = vmatprep.subr.mxu0 0.0
      %4521 = vmatpush1.msra.mxu0 0.0
      %4522 = vmatprep.subr.mxu0 0.0
      %4523 = vmatpush1.msra.mxu0 0.0
      %4524 = vmatprep.subr.mxu0 0.0
      %4525 = vmatpush1.msra.mxu0 0.0
      %4526 = vmatprep.subr.mxu0 0.0
      %4527 = vmatpush1.msra.mxu0 0.0
      %4528 = vmatprep.subr.mxu0 0.0
      %4529 = vmatpush1.msra.mxu0 0.0
      %4530 = vmatprep.subr.mxu0 0.0
      %4531 = vmatpush1.msra.mxu0 0.0
      %4532 = vmatprep.subr.mxu0 0.0
      %4533 = vmatpush1.msra.mxu0 0.0
      %4534 = vmatprep.subr.mxu0 0.0
      %4535 = vmatpush1.msra.mxu0 0.0
      %4536 = vmatprep.subr.mxu0 0.0
      %4537 = vmatpush1.msra.mxu0 0.0
      %4538 = vmatprep.subr.mxu0 0.0
      %4539 = vmatpush1.msra.mxu0 0.0
      %4540 = vmatprep.subr.mxu0 0.0
      %4541 = vmatpush1.msra.mxu0 0.0
      %4542 = vmatprep.subr.mxu0 0.0
      %4543 = vmatpush1.msra.mxu0 0.0
      %4544 = vmatprep.subr.mxu0 0.0
      %4545 = vmatpush1.msra.mxu0 0.0
      %4546 = vmatprep.subr.mxu0 0.0
      %4547 = vmatpush1.msra.mxu0 0.0
      %4548 = vmatprep.subr.mxu0 0.0
      %4549 = vmatpush1.msra.mxu0 0.0
      %4550 = vmatprep.subr.mxu0 0.0
      %4551 = vmatpush1.msra.mxu0 0.0
      %4552 = vmatprep.subr.mxu0 0.0
      %4553 = vmatpush1.msra.mxu0 0.0
      %4554 = vmatprep.subr.mxu0 0.0
      %4555 = vmatpush1.msra.mxu0 0.0
      %4556 = vmatprep.subr.mxu0 0.0
      %4557 = vmatpush1.msra.mxu0 0.0
      %4558 = vmatprep.subr.mxu0 0.0
      %4559 = vmatpush1.msra.mxu0 0.0
      %4560 = vmatprep.subr.mxu0 0.0
      %4561 = vmatpush1.msra.mxu0 0.0
      %4562 = vmatprep.subr.mxu0 0.0
      %4563 = vmatpush1.msra.mxu0 0.0
      %4564 = vmatprep.subr.mxu0 0.0
      %4565 = vmatpush1.msra.mxu0 0.0
      %4566 = vmatprep.subr.mxu0 0.0
      %4567 = vmatpush1.msra.mxu0 0.0
      %4568 = vmatprep.subr.mxu0 0.0
      %4569 = vmatpush1.msra.mxu0 0.0
      %4570 = vmatprep.mubr.f32.mxu0 0.0
      %4571 = vmatmul.mubr.f32.gmra.mrb[0].mxu0 %v4500
      %v4572 = vpop.f32.mrb[0].mxu0
      %v4573 = vadd.f32 0.0, %v4572
      %v4574 = vpop.f32.mrb[0].mxu0
      %v4575 = vadd.f32 0.0, %v4574
      %4576 = vdwg.mxu0
      %v4577 = vadd.f32 %v4474, %v4573
      %v4578 = vadd.f32 %v4475, %v4575
      %v4579 = vld [vmem:[%s10] sm:$0xf]
      %4581 = vset.pattern.permute.xlu0 0
      %4582 = vperm.xlu0 %4581, %v4579
      %v4583 = vpop.permute.xlu0 %4582
      %v4585 = vadd.f32 %v4577, %v4583
      %v4586 = vadd.f32 %v4578, %v4583
      %v4587 = vsel %vm1740, %v4585, 0.0
      %v4588 = vsel %vm1740, %v4586, 0.0
      %v4589 = vadd.f32 %v4587, %v4588
      %4590 = vadd.xlane.f32.xlu0 %v4589
      %v4591 = vpop.xlane.xlu0 %4590
      %v4592 = vrcp.pop 256.0
      %v4593 = vmul.f32 %v4591, %v4592
      %v4594 = vsub.f32 %v4585, %v4593
      %v4595 = vsub.f32 %v4586, %v4593
      %v4596 = vmul.f32 %v4594, %v4594
      %v4597 = vmul.f32 %v4595, %v4595
      %v4598 = vsel %vm1740, %v4596, 0.0
      %v4599 = vsel %vm1740, %v4597, 0.0
      %v4600 = vadd.f32 %v4598, %v4599
      %4601 = vadd.xlane.f32.xlu0 %v4600
      %v4602 = vpop.xlane.xlu0 %4601
      %v4603 = vmul.f32 %v4602, 0.003921569
      %v4604 = vrsqrt.pop %v4603
      %v4605 = vmul.f32 %v4594, %v4604
      %v4606 = vmul.f32 %v4595, %v4604
      %v4607 = vadd.f32 %v2689, 1.0
      %v4608 = vadd.f32 %v2690, 1.0
      %v4609 = vmul.f32 %v4605, %v4607
      %v4610 = vmul.f32 %v4606, %v4608
      %v4611 = vadd.f32 %v4609, %v3639
      %v4612 = vadd.f32 %v4610, %v3640
      %v4613 = vmax.f32 %v4611, 0.0
      %v4614 = vmax.f32 %v4612, 0.0
      %v4617 = vcombine.low %v4613, %v4614
      %4619 = vst [vmem:[#allocation2 + $0x4] sm:$0xff] %v4617
      %v4620 = vld [vmem:[%s503] ss:$8 sm:$0x3]
      %v4621 = vld [vmem:[#allocation2] sm:$0xff]
      %v4622 = vld [vmem:[#allocation2 + $0x8] sm:$0xf]
      %v4624 = vlaneseq
      %v4625 = vshrl.u32 %v4624, 7
      %v4626 = vsub.s32 0, %v4625
      %v4627 = vrot.slane %v4620, %v4626
      %v4628 = vlaneseq
      %v4629 = vshrl.u32 %v4628, 7
      %v4630 = vsub.s32 1, %v4629
      %v4631 = vrot.slane %v4620, %v4630
      %v4632 = vcombine.low %v4627, %v4631
      %4633 = vrot.lane.b32.xlu0 %v4632, 111
      %v4634 = vpop.permute.xlu0 %4633
      %v4635 = vrot.slane %v4634, 4
      %v4636 = vsel %vm773, %v4635, %v4634
      %v4639 = vmul.f32 %v4621, %v4636
      %v4640 = vmul.f32 %v4622, %v4635
      %v4641 = vld [vmem:[%s11] sm:$0xf]
      %v4642 = vld [vmem:[%s557] ss:$8 sm:$0x3]
      %v4644 = vlaneseq
      %v4645 = vshrl.u32 %v4644, 7
      %v4646 = vsub.s32 0, %v4645
      %v4647 = vrot.slane %v4642, %v4646
      %v4648 = vlaneseq
      %v4649 = vshrl.u32 %v4648, 7
      %v4650 = vsub.s32 1, %v4649
      %v4651 = vrot.slane %v4642, %v4650
      %v4652 = vcombine.low %v4647, %v4651
      %4653 = vrot.lane.b32.xlu0 %v4652, 112
      %v4654 = vpop.permute.xlu0 %4653
      %v4655 = vrot.slane %v4654, 4
      %v4656 = vsel %vm761, %v4655, %v4654
      %v4659 = vmul.f32 %v4621, %v4656
      %v4660 = vmul.f32 %v4622, %v4655
      %s4661 = scalar_lea.vmem %s11, 4
      %v4662 = vld [vmem:[%s4661] sm:$0xf]
      %v4665 = vcombine.high %v4659, %v4659
      %4666 = vrot.lane.b32.xlu0 %v4659, 16
      %v4667 = vpop.permute.xlu0 %4666
      %4668 = vrot.lane.b32.xlu0 %v4665, 16
      %v4669 = vpop.permute.xlu0 %4668
      %4670 = vrot.lane.b32.xlu0 %v4660, 16
      %v4671 = vpop.permute.xlu0 %4670
      %v4672 = vsel %vm1313, %v4667, %v4669
      %v4673 = vsel %vm1313, %v4669, %v4671
      %v4675 = vsel %vm1799, %v4662, 0
      %v4677 = vsel %vm1740, %v4672, 0
      %v4679 = vsel %vm1740, %v4673, 0
      %4681 = vmatprep.subr.mxu0 %v4679
      %4682 = vmatpush1.msra.mxu0 %v4677
      %4683 = vmatprep.subr.mxu0 0.0
      %4684 = vmatpush1.msra.mxu0 0.0
      %4685 = vmatprep.subr.mxu0 0.0
      %4686 = vmatpush1.msra.mxu0 0.0
      %4687 = vmatprep.subr.mxu0 0.0
      %4688 = vmatpush1.msra.mxu0 0.0
      %4689 = vmatprep.subr.mxu0 0.0
      %4690 = vmatpush1.msra.mxu0 0.0
      %4691 = vmatprep.subr.mxu0 0.0
      %4692 = vmatpush1.msra.mxu0 0.0
      %4693 = vmatprep.subr.mxu0 0.0
      %4694 = vmatpush1.msra.mxu0 0.0
      %4695 = vmatprep.subr.mxu0 0.0
      %4696 = vmatpush1.msra.mxu0 0.0
      %4697 = vmatprep.subr.mxu0 0.0
      %4698 = vmatpush1.msra.mxu0 0.0
      %4699 = vmatprep.subr.mxu0 0.0
      %4700 = vmatpush1.msra.mxu0 0.0
      %4701 = vmatprep.subr.mxu0 0.0
      %4702 = vmatpush1.msra.mxu0 0.0
      %4703 = vmatprep.subr.mxu0 0.0
      %4704 = vmatpush1.msra.mxu0 0.0
      %4705 = vmatprep.subr.mxu0 0.0
      %4706 = vmatpush1.msra.mxu0 0.0
      %4707 = vmatprep.subr.mxu0 0.0
      %4708 = vmatpush1.msra.mxu0 0.0
      %4709 = vmatprep.subr.mxu0 0.0
      %4710 = vmatpush1.msra.mxu0 0.0
      %4711 = vmatprep.subr.mxu0 0.0
      %4712 = vmatpush1.msra.mxu0 0.0
      %4713 = vmatprep.subr.mxu0 0.0
      %4714 = vmatpush1.msra.mxu0 0.0
      %4715 = vmatprep.subr.mxu0 0.0
      %4716 = vmatpush1.msra.mxu0 0.0
      %4717 = vmatprep.subr.mxu0 0.0
      %4718 = vmatpush1.msra.mxu0 0.0
      %4719 = vmatprep.subr.mxu0 0.0
      %4720 = vmatpush1.msra.mxu0 0.0
      %4721 = vmatprep.subr.mxu0 0.0
      %4722 = vmatpush1.msra.mxu0 0.0
      %4723 = vmatprep.subr.mxu0 0.0
      %4724 = vmatpush1.msra.mxu0 0.0
      %4725 = vmatprep.subr.mxu0 0.0
      %4726 = vmatpush1.msra.mxu0 0.0
      %4727 = vmatprep.subr.mxu0 0.0
      %4728 = vmatpush1.msra.mxu0 0.0
      %4729 = vmatprep.subr.mxu0 0.0
      %4730 = vmatpush1.msra.mxu0 0.0
      %4731 = vmatprep.subr.mxu0 0.0
      %4732 = vmatpush1.msra.mxu0 0.0
      %4733 = vmatprep.subr.mxu0 0.0
      %4734 = vmatpush1.msra.mxu0 0.0
      %4735 = vmatprep.subr.mxu0 0.0
      %4736 = vmatpush1.msra.mxu0 0.0
      %4737 = vmatprep.subr.mxu0 0.0
      %4738 = vmatpush1.msra.mxu0 0.0
      %4739 = vmatprep.subr.mxu0 0.0
      %4740 = vmatpush1.msra.mxu0 0.0
      %4741 = vmatprep.subr.mxu0 0.0
      %4742 = vmatpush1.msra.mxu0 0.0
      %4743 = vmatprep.subr.mxu0 0.0
      %4744 = vmatpush1.msra.mxu0 0.0
      %4745 = vmatprep.mubr.f32.mxu0 0.0
      %4746 = vmatmul.mubr.f32.gmra.mrb[0].mxu0 %v4675
      %v4747 = vpop.f32.mrb[0].mxu0
      %v4748 = vadd.f32 0.0, %v4747
      %v4749 = vpop.f32.mrb[0].mxu0
      %v4750 = vadd.f32 0.0, %v4749
      %4751 = vdwg.mxu0
      %v4754 = vcombine.high %v4639, %v4639
      %4755 = vrot.lane.b32.xlu0 %v4639, 17
      %v4756 = vpop.permute.xlu0 %4755
      %4757 = vrot.lane.b32.xlu0 %v4754, 17
      %v4758 = vpop.permute.xlu0 %4757
      %4759 = vrot.lane.b32.xlu0 %v4640, 17
      %v4760 = vpop.permute.xlu0 %4759
      %v4761 = vsel %vm1364, %v4756, %v4758
      %v4762 = vsel %vm1364, %v4758, %v4760
      %v4764 = vsel %vm1799, %v4641, 0
      %v4766 = vsel %vm1740, %v4761, 0
      %v4768 = vsel %vm1740, %v4762, 0
      %4770 = vmatprep.subr.mxu0 %v4768
      %4771 = vmatpush1.msra.mxu0 %v4766
      %4772 = vmatprep.subr.mxu0 0.0
      %4773 = vmatpush1.msra.mxu0 0.0
      %4774 = vmatprep.subr.mxu0 0.0
      %4775 = vmatpush1.msra.mxu0 0.0
      %4776 = vmatprep.subr.mxu0 0.0
      %4777 = vmatpush1.msra.mxu0 0.0
      %4778 = vmatprep.subr.mxu0 0.0
      %4779 = vmatpush1.msra.mxu0 0.0
      %4780 = vmatprep.subr.mxu0 0.0
      %4781 = vmatpush1.msra.mxu0 0.0
      %4782 = vmatprep.subr.mxu0 0.0
      %4783 = vmatpush1.msra.mxu0 0.0
      %4784 = vmatprep.subr.mxu0 0.0
      %4785 = vmatpush1.msra.mxu0 0.0
      %4786 = vmatprep.subr.mxu0 0.0
      %4787 = vmatpush1.msra.mxu0 0.0
      %4788 = vmatprep.subr.mxu0 0.0
      %4789 = vmatpush1.msra.mxu0 0.0
      %4790 = vmatprep.subr.mxu0 0.0
      %4791 = vmatpush1.msra.mxu0 0.0
      %4792 = vmatprep.subr.mxu0 0.0
      %4793 = vmatpush1.msra.mxu0 0.0
      %4794 = vmatprep.subr.mxu0 0.0
      %4795 = vmatpush1.msra.mxu0 0.0
      %4796 = vmatprep.subr.mxu0 0.0
      %4797 = vmatpush1.msra.mxu0 0.0
      %4798 = vmatprep.subr.mxu0 0.0
      %4799 = vmatpush1.msra.mxu0 0.0
      %4800 = vmatprep.subr.mxu0 0.0
      %4801 = vmatpush1.msra.mxu0 0.0
      %4802 = vmatprep.subr.mxu0 0.0
      %4803 = vmatpush1.msra.mxu0 0.0
      %4804 = vmatprep.subr.mxu0 0.0
      %4805 = vmatpush1.msra.mxu0 0.0
      %4806 = vmatprep.subr.mxu0 0.0
      %4807 = vmatpush1.msra.mxu0 0.0
      %4808 = vmatprep.subr.mxu0 0.0
      %4809 = vmatpush1.msra.mxu0 0.0
      %4810 = vmatprep.subr.mxu0 0.0
      %4811 = vmatpush1.msra.mxu0 0.0
      %4812 = vmatprep.subr.mxu0 0.0
      %4813 = vmatpush1.msra.mxu0 0.0
      %4814 = vmatprep.subr.mxu0 0.0
      %4815 = vmatpush1.msra.mxu0 0.0
      %4816 = vmatprep.subr.mxu0 0.0
      %4817 = vmatpush1.msra.mxu0 0.0
      %4818 = vmatprep.subr.mxu0 0.0
      %4819 = vmatpush1.msra.mxu0 0.0
      %4820 = vmatprep.subr.mxu0 0.0
      %4821 = vmatpush1.msra.mxu0 0.0
      %4822 = vmatprep.subr.mxu0 0.0
      %4823 = vmatpush1.msra.mxu0 0.0
      %4824 = vmatprep.subr.mxu0 0.0
      %4825 = vmatpush1.msra.mxu0 0.0
      %4826 = vmatprep.subr.mxu0 0.0
      %4827 = vmatpush1.msra.mxu0 0.0
      %4828 = vmatprep.subr.mxu0 0.0
      %4829 = vmatpush1.msra.mxu0 0.0
      %4830 = vmatprep.subr.mxu0 0.0
      %4831 = vmatpush1.msra.mxu0 0.0
      %4832 = vmatprep.subr.mxu0 0.0
      %4833 = vmatpush1.msra.mxu0 0.0
      %4834 = vmatprep.mubr.f32.mxu0 0.0
      %4835 = vmatmul.mubr.f32.gmra.mrb[0].mxu0 %v4764
      %v4836 = vpop.f32.mrb[0].mxu0
      %v4837 = vadd.f32 %v4748, %v4836
      %v4838 = vpop.f32.mrb[0].mxu0
      %v4839 = vadd.f32 %v4750, %v4838
      %4840 = vdwg.mxu0
      %v4841 = vld [vmem:[%s611] ss:$8 sm:$0x3]
      %v4842 = vld [vmem:[#allocation2] sm:$0xff]
      %v4843 = vld [vmem:[#allocation2 + $0x8] sm:$0xf]
      %v4845 = vlaneseq
      %v4846 = vshrl.u32 %v4845, 7
      %v4847 = vsub.s32 0, %v4846
      %v4848 = vrot.slane %v4841, %v4847
      %v4849 = vlaneseq
      %v4850 = vshrl.u32 %v4849, 7
      %v4851 = vsub.s32 1, %v4850
      %v4852 = vrot.slane %v4841, %v4851
      %v4853 = vcombine.low %v4848, %v4852
      %4854 = vrot.lane.b32.xlu0 %v4853, 113
      %v4855 = vpop.permute.xlu0 %4854
      %v4856 = vrot.slane %v4855, 4
      %v4857 = vsel %vm872, %v4856, %v4855
      %v4860 = vmul.f32 %v4842, %v4857
      %v4861 = vmul.f32 %v4843, %v4856
      %s4862 = scalar_lea.vmem %s11, 8
      %v4863 = vld [vmem:[%s4862] sm:$0xf]
      %v4866 = vcombine.high %v4860, %v4860
      %4867 = vrot.lane.b32.xlu0 %v4860, 15
      %v4868 = vpop.permute.xlu0 %4867
      %4869 = vrot.lane.b32.xlu0 %v4866, 15
      %v4870 = vpop.permute.xlu0 %4869
      %4871 = vrot.lane.b32.xlu0 %v4861, 15
      %v4872 = vpop.permute.xlu0 %4871
      %v4873 = vsel %vm1262, %v4868, %v4870
      %v4874 = vsel %vm1262, %v4870, %v4872
      %v4876 = vsel %vm1799, %v4863, 0
      %v4878 = vsel %vm1740, %v4873, 0
      %v4880 = vsel %vm1740, %v4874, 0
      %4882 = vmatprep.subr.mxu0 %v4880
      %4883 = vmatpush1.msra.mxu0 %v4878
      %4884 = vmatprep.subr.mxu0 0.0
      %4885 = vmatpush1.msra.mxu0 0.0
      %4886 = vmatprep.subr.mxu0 0.0
      %4887 = vmatpush1.msra.mxu0 0.0
      %4888 = vmatprep.subr.mxu0 0.0
      %4889 = vmatpush1.msra.mxu0 0.0
      %4890 = vmatprep.subr.mxu0 0.0
      %4891 = vmatpush1.msra.mxu0 0.0
      %4892 = vmatprep.subr.mxu0 0.0
      %4893 = vmatpush1.msra.mxu0 0.0
      %4894 = vmatprep.subr.mxu0 0.0
      %4895 = vmatpush1.msra.mxu0 0.0
      %4896 = vmatprep.subr.mxu0 0.0
      %4897 = vmatpush1.msra.mxu0 0.0
      %4898 = vmatprep.subr.mxu0 0.0
      %4899 = vmatpush1.msra.mxu0 0.0
      %4900 = vmatprep.subr.mxu0 0.0
      %4901 = vmatpush1.msra.mxu0 0.0
      %4902 = vmatprep.subr.mxu0 0.0
      %4903 = vmatpush1.msra.mxu0 0.0
      %4904 = vmatprep.subr.mxu0 0.0
      %4905 = vmatpush1.msra.mxu0 0.0
      %4906 = vmatprep.subr.mxu0 0.0
      %4907 = vmatpush1.msra.mxu0 0.0
      %4908 = vmatprep.subr.mxu0 0.0
      %4909 = vmatpush1.msra.mxu0 0.0
      %4910 = vmatprep.subr.mxu0 0.0
      %4911 = vmatpush1.msra.mxu0 0.0
      %4912 = vmatprep.subr.mxu0 0.0
      %4913 = vmatpush1.msra.mxu0 0.0
      %4914 = vmatprep.subr.mxu0 0.0
      %4915 = vmatpush1.msra.mxu0 0.0
      %4916 = vmatprep.subr.mxu0 0.0
      %4917 = vmatpush1.msra.mxu0 0.0
      %4918 = vmatprep.subr.mxu0 0.0
      %4919 = vmatpush1.msra.mxu0 0.0
      %4920 = vmatprep.subr.mxu0 0.0
      %4921 = vmatpush1.msra.mxu0 0.0
      %4922 = vmatprep.subr.mxu0 0.0
      %4923 = vmatpush1.msra.mxu0 0.0
      %4924 = vmatprep.subr.mxu0 0.0
      %4925 = vmatpush1.msra.mxu0 0.0
      %4926 = vmatprep.subr.mxu0 0.0
      %4927 = vmatpush1.msra.mxu0 0.0
      %4928 = vmatprep.subr.mxu0 0.0
      %4929 = vmatpush1.msra.mxu0 0.0
      %4930 = vmatprep.subr.mxu0 0.0
      %4931 = vmatpush1.msra.mxu0 0.0
      %4932 = vmatprep.subr.mxu0 0.0
      %4933 = vmatpush1.msra.mxu0 0.0
      %4934 = vmatprep.subr.mxu0 0.0
      %4935 = vmatpush1.msra.mxu0 0.0
      %4936 = vmatprep.subr.mxu0 0.0
      %4937 = vmatpush1.msra.mxu0 0.0
      %4938 = vmatprep.subr.mxu0 0.0
      %4939 = vmatpush1.msra.mxu0 0.0
      %4940 = vmatprep.subr.mxu0 0.0
      %4941 = vmatpush1.msra.mxu0 0.0
      %4942 = vmatprep.subr.mxu0 0.0
      %4943 = vmatpush1.msra.mxu0 0.0
      %4944 = vmatprep.subr.mxu0 0.0
      %4945 = vmatpush1.msra.mxu0 0.0
      %4946 = vmatprep.mubr.f32.mxu0 0.0
      %4947 = vmatmul.mubr.f32.gmra.mrb[0].mxu0 %v4876
      %v4948 = vpop.f32.mrb[0].mxu0
      %v4949 = vadd.f32 0.0, %v4948
      %v4950 = vpop.f32.mrb[0].mxu0
      %v4951 = vadd.f32 0.0, %v4950
      %4952 = vdwg.mxu0
      %v4953 = vadd.f32 %v4837, %v4949
      %v4954 = vadd.f32 %v4839, %v4951
      %v4955 = vld [vmem:[#allocation2] sm:$0xff]
      %v4956 = vld [vmem:[#allocation2 + $0x8] sm:$0xf]
      %4957 = vrot.lane.b32.xlu0 %v4632, 127
      %v4958 = vpop.permute.xlu0 %4957
      %v4959 = vrot.slane %v4958, 4
      %v4960 = vsel %vm548, %v4959, %v4958
      %v4963 = vmul.f32 %v4955, %v4960
      %v4964 = vmul.f32 %v4956, %v4959
      %s4965 = scalar_lea.vmem %s11, 12
      %v4966 = vld [vmem:[%s4965] sm:$0xf]
      %v4969 = vcombine.high %v4963, %v4963
      %4970 = vrot.lane.b32.xlu0 %v4963, 1
      %v4971 = vpop.permute.xlu0 %4970
      %4972 = vrot.lane.b32.xlu0 %v4969, 1
      %v4973 = vpop.permute.xlu0 %4972
      %4974 = vrot.lane.b32.xlu0 %v4964, 1
      %v4975 = vpop.permute.xlu0 %4974
      %v4976 = vsel %vm1109, %v4971, %v4973
      %v4977 = vsel %vm1109, %v4973, %v4975
      %v4979 = vsel %vm1799, %v4966, 0
      %v4981 = vsel %vm1740, %v4976, 0
      %v4983 = vsel %vm1740, %v4977, 0
      %4985 = vmatprep.subr.mxu0 %v4983
      %4986 = vmatpush1.msra.mxu0 %v4981
      %4987 = vmatprep.subr.mxu0 0.0
      %4988 = vmatpush1.msra.mxu0 0.0
      %4989 = vmatprep.subr.mxu0 0.0
      %4990 = vmatpush1.msra.mxu0 0.0
      %4991 = vmatprep.subr.mxu0 0.0
      %4992 = vmatpush1.msra.mxu0 0.0
      %4993 = vmatprep.subr.mxu0 0.0
      %4994 = vmatpush1.msra.mxu0 0.0
      %4995 = vmatprep.subr.mxu0 0.0
      %4996 = vmatpush1.msra.mxu0 0.0
      %4997 = vmatprep.subr.mxu0 0.0
      %4998 = vmatpush1.msra.mxu0 0.0
      %4999 = vmatprep.subr.mxu0 0.0
      %5000 = vmatpush1.msra.mxu0 0.0
      %5001 = vmatprep.subr.mxu0 0.0
      %5002 = vmatpush1.msra.mxu0 0.0
      %5003 = vmatprep.subr.mxu0 0.0
      %5004 = vmatpush1.msra.mxu0 0.0
      %5005 = vmatprep.subr.mxu0 0.0
      %5006 = vmatpush1.msra.mxu0 0.0
      %5007 = vmatprep.subr.mxu0 0.0
      %5008 = vmatpush1.msra.mxu0 0.0
      %5009 = vmatprep.subr.mxu0 0.0
      %5010 = vmatpush1.msra.mxu0 0.0
      %5011 = vmatprep.subr.mxu0 0.0
      %5012 = vmatpush1.msra.mxu0 0.0
      %5013 = vmatprep.subr.mxu0 0.0
      %5014 = vmatpush1.msra.mxu0 0.0
      %5015 = vmatprep.subr.mxu0 0.0
      %5016 = vmatpush1.msra.mxu0 0.0
      %5017 = vmatprep.subr.mxu0 0.0
      %5018 = vmatpush1.msra.mxu0 0.0
      %5019 = vmatprep.subr.mxu0 0.0
      %5020 = vmatpush1.msra.mxu0 0.0
      %5021 = vmatprep.subr.mxu0 0.0
      %5022 = vmatpush1.msra.mxu0 0.0
      %5023 = vmatprep.subr.mxu0 0.0
      %5024 = vmatpush1.msra.mxu0 0.0
      %5025 = vmatprep.subr.mxu0 0.0
      %5026 = vmatpush1.msra.mxu0 0.0
      %5027 = vmatprep.subr.mxu0 0.0
      %5028 = vmatpush1.msra.mxu0 0.0
      %5029 = vmatprep.subr.mxu0 0.0
      %5030 = vmatpush1.msra.mxu0 0.0
      %5031 = vmatprep.subr.mxu0 0.0
      %5032 = vmatpush1.msra.mxu0 0.0
      %5033 = vmatprep.subr.mxu0 0.0
      %5034 = vmatpush1.msra.mxu0 0.0
      %5035 = vmatprep.subr.mxu0 0.0
      %5036 = vmatpush1.msra.mxu0 0.0
      %5037 = vmatprep.subr.mxu0 0.0
      %5038 = vmatpush1.msra.mxu0 0.0
      %5039 = vmatprep.subr.mxu0 0.0
      %5040 = vmatpush1.msra.mxu0 0.0
      %5041 = vmatprep.subr.mxu0 0.0
      %5042 = vmatpush1.msra.mxu0 0.0
      %5043 = vmatprep.subr.mxu0 0.0
      %5044 = vmatpush1.msra.mxu0 0.0
      %5045 = vmatprep.subr.mxu0 0.0
      %5046 = vmatpush1.msra.mxu0 0.0
      %5047 = vmatprep.subr.mxu0 0.0
      %5048 = vmatpush1.msra.mxu0 0.0
      %5049 = vmatprep.mubr.f32.mxu0 0.0
      %5050 = vmatmul.mubr.f32.gmra.mrb[0].mxu0 %v4979
      %v5051 = vpop.f32.mrb[0].mxu0
      %v5052 = vadd.f32 0.0, %v5051
      %v5053 = vpop.f32.mrb[0].mxu0
      %v5054 = vadd.f32 0.0, %v5053
      %5055 = vdwg.mxu0
      %v5056 = vadd.f32 %v4953, %v5052
      %v5057 = vadd.f32 %v4954, %v5054
      %v5058 = vld [vmem:[#allocation2 + $0x4] sm:$0xff]
      %v5060 = vmul.f32 %v5058, %v4652
      %s5061 = scalar_lea.vmem %s11, 16
      %v5062 = vld [vmem:[%s5061] sm:$0xf]
      %v5064 = vcombine.high %v5060, %v5060
      %v5066 = vsel %vm1799, %v5062, 0
      %v5068 = vsel %vm1740, %v5060, 0
      %v5070 = vsel %vm1740, %v5064, 0
      %5072 = vmatprep.subr.mxu0 %v5070
      %5073 = vmatpush1.msra.mxu0 %v5068
      %5074 = vmatprep.subr.mxu0 0.0
      %5075 = vmatpush1.msra.mxu0 0.0
      %5076 = vmatprep.subr.mxu0 0.0
      %5077 = vmatpush1.msra.mxu0 0.0
      %5078 = vmatprep.subr.mxu0 0.0
      %5079 = vmatpush1.msra.mxu0 0.0
      %5080 = vmatprep.subr.mxu0 0.0
      %5081 = vmatpush1.msra.mxu0 0.0
      %5082 = vmatprep.subr.mxu0 0.0
      %5083 = vmatpush1.msra.mxu0 0.0
      %5084 = vmatprep.subr.mxu0 0.0
      %5085 = vmatpush1.msra.mxu0 0.0
      %5086 = vmatprep.subr.mxu0 0.0
      %5087 = vmatpush1.msra.mxu0 0.0
      %5088 = vmatprep.subr.mxu0 0.0
      %5089 = vmatpush1.msra.mxu0 0.0
      %5090 = vmatprep.subr.mxu0 0.0
      %5091 = vmatpush1.msra.mxu0 0.0
      %5092 = vmatprep.subr.mxu0 0.0
      %5093 = vmatpush1.msra.mxu0 0.0
      %5094 = vmatprep.subr.mxu0 0.0
      %5095 = vmatpush1.msra.mxu0 0.0
      %5096 = vmatprep.subr.mxu0 0.0
      %5097 = vmatpush1.msra.mxu0 0.0
      %5098 = vmatprep.subr.mxu0 0.0
      %5099 = vmatpush1.msra.mxu0 0.0
      %5100 = vmatprep.subr.mxu0 0.0
      %5101 = vmatpush1.msra.mxu0 0.0
      %5102 = vmatprep.subr.mxu0 0.0
      %5103 = vmatpush1.msra.mxu0 0.0
      %5104 = vmatprep.subr.mxu0 0.0
      %5105 = vmatpush1.msra.mxu0 0.0
      %5106 = vmatprep.subr.mxu0 0.0
      %5107 = vmatpush1.msra.mxu0 0.0
      %5108 = vmatprep.subr.mxu0 0.0
      %5109 = vmatpush1.msra.mxu0 0.0
      %5110 = vmatprep.subr.mxu0 0.0
      %5111 = vmatpush1.msra.mxu0 0.0
      %5112 = vmatprep.subr.mxu0 0.0
      %5113 = vmatpush1.msra.mxu0 0.0
      %5114 = vmatprep.subr.mxu0 0.0
      %5115 = vmatpush1.msra.mxu0 0.0
      %5116 = vmatprep.subr.mxu0 0.0
      %5117 = vmatpush1.msra.mxu0 0.0
      %5118 = vmatprep.subr.mxu0 0.0
      %5119 = vmatpush1.msra.mxu0 0.0
      %5120 = vmatprep.subr.mxu0 0.0
      %5121 = vmatpush1.msra.mxu0 0.0
      %5122 = vmatprep.subr.mxu0 0.0
      %5123 = vmatpush1.msra.mxu0 0.0
      %5124 = vmatprep.subr.mxu0 0.0
      %5125 = vmatpush1.msra.mxu0 0.0
      %5126 = vmatprep.subr.mxu0 0.0
      %5127 = vmatpush1.msra.mxu0 0.0
      %5128 = vmatprep.subr.mxu0 0.0
      %5129 = vmatpush1.msra.mxu0 0.0
      %5130 = vmatprep.subr.mxu0 0.0
      %5131 = vmatpush1.msra.mxu0 0.0
      %5132 = vmatprep.subr.mxu0 0.0
      %5133 = vmatpush1.msra.mxu0 0.0
      %5134 = vmatprep.subr.mxu0 0.0
      %5135 = vmatpush1.msra.mxu0 0.0
      %5136 = vmatprep.mubr.f32.mxu0 0.0
      %5137 = vmatmul.mubr.f32.gmra.mrb[0].mxu0 %v5066
      %v5138 = vpop.f32.mrb[0].mxu0
      %v5139 = vadd.f32 0.0, %v5138
      %v5140 = vpop.f32.mrb[0].mxu0
      %v5141 = vadd.f32 0.0, %v5140
      %5142 = vdwg.mxu0
      %v5143 = vadd.f32 %v5056, %v5139
      %v5144 = vadd.f32 %v5057, %v5141
      %v5145 = vld [vmem:[#allocation2 + $0x4] sm:$0xff]
      %v5146 = vld [vmem:[#allocation2 + $0xc] sm:$0xf]
      %5147 = vrot.lane.b32.xlu0 %v4853, 1
      %v5148 = vpop.permute.xlu0 %5147
      %v5149 = vrot.slane %v5148, 4
      %v5150 = vsel %vm1109, %v5149, %v5148
      %v5153 = vmul.f32 %v5145, %v5150
      %v5154 = vmul.f32 %v5146, %v5149
      %s5155 = scalar_lea.vmem %s11, 20
      %v5156 = vld [vmem:[%s5155] sm:$0xf]
      %v5159 = vcombine.high %v5153, %v5153
      %5160 = vrot.lane.b32.xlu0 %v5153, 127
      %v5161 = vpop.permute.xlu0 %5160
      %5162 = vrot.lane.b32.xlu0 %v5159, 127
      %v5163 = vpop.permute.xlu0 %5162
      %5164 = vrot.lane.b32.xlu0 %v5154, 127
      %v5165 = vpop.permute.xlu0 %5164
      %v5166 = vsel %vm548, %v5161, %v5163
      %v5167 = vsel %vm548, %v5163, %v5165
      %v5169 = vsel %vm1799, %v5156, 0
      %v5171 = vsel %vm1740, %v5166, 0
      %v5173 = vsel %vm1740, %v5167, 0
      %5175 = vmatprep.subr.mxu0 %v5173
      %5176 = vmatpush1.msra.mxu0 %v5171
      %5177 = vmatprep.subr.mxu0 0.0
      %5178 = vmatpush1.msra.mxu0 0.0
      %5179 = vmatprep.subr.mxu0 0.0
      %5180 = vmatpush1.msra.mxu0 0.0
      %5181 = vmatprep.subr.mxu0 0.0
      %5182 = vmatpush1.msra.mxu0 0.0
      %5183 = vmatprep.subr.mxu0 0.0
      %5184 = vmatpush1.msra.mxu0 0.0
      %5185 = vmatprep.subr.mxu0 0.0
      %5186 = vmatpush1.msra.mxu0 0.0
      %5187 = vmatprep.subr.mxu0 0.0
      %5188 = vmatpush1.msra.mxu0 0.0
      %5189 = vmatprep.subr.mxu0 0.0
      %5190 = vmatpush1.msra.mxu0 0.0
      %5191 = vmatprep.subr.mxu0 0.0
      %5192 = vmatpush1.msra.mxu0 0.0
      %5193 = vmatprep.subr.mxu0 0.0
      %5194 = vmatpush1.msra.mxu0 0.0
      %5195 = vmatprep.subr.mxu0 0.0
      %5196 = vmatpush1.msra.mxu0 0.0
      %5197 = vmatprep.subr.mxu0 0.0
      %5198 = vmatpush1.msra.mxu0 0.0
      %5199 = vmatprep.subr.mxu0 0.0
      %5200 = vmatpush1.msra.mxu0 0.0
      %5201 = vmatprep.subr.mxu0 0.0
      %5202 = vmatpush1.msra.mxu0 0.0
      %5203 = vmatprep.subr.mxu0 0.0
      %5204 = vmatpush1.msra.mxu0 0.0
      %5205 = vmatprep.subr.mxu0 0.0
      %5206 = vmatpush1.msra.mxu0 0.0
      %5207 = vmatprep.subr.mxu0 0.0
      %5208 = vmatpush1.msra.mxu0 0.0
      %5209 = vmatprep.subr.mxu0 0.0
      %5210 = vmatpush1.msra.mxu0 0.0
      %5211 = vmatprep.subr.mxu0 0.0
      %5212 = vmatpush1.msra.mxu0 0.0
      %5213 = vmatprep.subr.mxu0 0.0
      %5214 = vmatpush1.msra.mxu0 0.0
      %5215 = vmatprep.subr.mxu0 0.0
      %5216 = vmatpush1.msra.mxu0 0.0
      %5217 = vmatprep.subr.mxu0 0.0
      %5218 = vmatpush1.msra.mxu0 0.0
      %5219 = vmatprep.subr.mxu0 0.0
      %5220 = vmatpush1.msra.mxu0 0.0
      %5221 = vmatprep.subr.mxu0 0.0
      %5222 = vmatpush1.msra.mxu0 0.0
      %5223 = vmatprep.subr.mxu0 0.0
      %5224 = vmatpush1.msra.mxu0 0.0
      %5225 = vmatprep.subr.mxu0 0.0
      %5226 = vmatpush1.msra.mxu0 0.0
      %5227 = vmatprep.subr.mxu0 0.0
      %5228 = vmatpush1.msra.mxu0 0.0
      %5229 = vmatprep.subr.mxu0 0.0
      %5230 = vmatpush1.msra.mxu0 0.0
      %5231 = vmatprep.subr.mxu0 0.0
      %5232 = vmatpush1.msra.mxu0 0.0
      %5233 = vmatprep.subr.mxu0 0.0
      %5234 = vmatpush1.msra.mxu0 0.0
      %5235 = vmatprep.subr.mxu0 0.0
      %5236 = vmatpush1.msra.mxu0 0.0
      %5237 = vmatprep.subr.mxu0 0.0
      %5238 = vmatpush1.msra.mxu0 0.0
      %5239 = vmatprep.mubr.f32.mxu0 0.0
      %5240 = vmatmul.mubr.f32.gmra.mrb[0].mxu0 %v5169
      %v5241 = vpop.f32.mrb[0].mxu0
      %v5242 = vadd.f32 0.0, %v5241
      %v5243 = vpop.f32.mrb[0].mxu0
      %v5244 = vadd.f32 0.0, %v5243
      %5245 = vdwg.mxu0
      %v5246 = vadd.f32 %v5143, %v5242
      %v5247 = vadd.f32 %v5144, %v5244
      %v5248 = vld [vmem:[#allocation2 + $0x4] sm:$0xff]
      %v5249 = vld [vmem:[#allocation2 + $0xc] sm:$0xf]
      %5250 = vrot.lane.b32.xlu0 %v4632, 15
      %v5251 = vpop.permute.xlu0 %5250
      %v5252 = vrot.slane %v5251, 4
      %v5253 = vsel %vm1262, %v5252, %v5251
      %v5256 = vmul.f32 %v5248, %v5253
      %v5257 = vmul.f32 %v5249, %v5252
      %s5258 = scalar_lea.vmem %s11, 24
      %v5259 = vld [vmem:[%s5258] sm:$0xf]
      %v5262 = vcombine.high %v5256, %v5256
      %5263 = vrot.lane.b32.xlu0 %v5256, 113
      %v5264 = vpop.permute.xlu0 %5263
      %5265 = vrot.lane.b32.xlu0 %v5262, 113
      %v5266 = vpop.permute.xlu0 %5265
      %5267 = vrot.lane.b32.xlu0 %v5257, 113
      %v5268 = vpop.permute.xlu0 %5267
      %v5269 = vsel %vm872, %v5264, %v5266
      %v5270 = vsel %vm872, %v5266, %v5268
      %v5272 = vsel %vm1799, %v5259, 0
      %v5274 = vsel %vm1740, %v5269, 0
      %v5276 = vsel %vm1740, %v5270, 0
      %5278 = vmatprep.subr.mxu0 %v5276
      %5279 = vmatpush1.msra.mxu0 %v5274
      %5280 = vmatprep.subr.mxu0 0.0
      %5281 = vmatpush1.msra.mxu0 0.0
      %5282 = vmatprep.subr.mxu0 0.0
      %5283 = vmatpush1.msra.mxu0 0.0
      %5284 = vmatprep.subr.mxu0 0.0
      %5285 = vmatpush1.msra.mxu0 0.0
      %5286 = vmatprep.subr.mxu0 0.0
      %5287 = vmatpush1.msra.mxu0 0.0
      %5288 = vmatprep.subr.mxu0 0.0
      %5289 = vmatpush1.msra.mxu0 0.0
      %5290 = vmatprep.subr.mxu0 0.0
      %5291 = vmatpush1.msra.mxu0 0.0
      %5292 = vmatprep.subr.mxu0 0.0
      %5293 = vmatpush1.msra.mxu0 0.0
      %5294 = vmatprep.subr.mxu0 0.0
      %5295 = vmatpush1.msra.mxu0 0.0
      %5296 = vmatprep.subr.mxu0 0.0
      %5297 = vmatpush1.msra.mxu0 0.0
      %5298 = vmatprep.subr.mxu0 0.0
      %5299 = vmatpush1.msra.mxu0 0.0
      %5300 = vmatprep.subr.mxu0 0.0
      %5301 = vmatpush1.msra.mxu0 0.0
      %5302 = vmatprep.subr.mxu0 0.0
      %5303 = vmatpush1.msra.mxu0 0.0
      %5304 = vmatprep.subr.mxu0 0.0
      %5305 = vmatpush1.msra.mxu0 0.0
      %5306 = vmatprep.subr.mxu0 0.0
      %5307 = vmatpush1.msra.mxu0 0.0
      %5308 = vmatprep.subr.mxu0 0.0
      %5309 = vmatpush1.msra.mxu0 0.0
      %5310 = vmatprep.subr.mxu0 0.0
      %5311 = vmatpush1.msra.mxu0 0.0
      %5312 = vmatprep.subr.mxu0 0.0
      %5313 = vmatpush1.msra.mxu0 0.0
      %5314 = vmatprep.subr.mxu0 0.0
      %5315 = vmatpush1.msra.mxu0 0.0
      %5316 = vmatprep.subr.mxu0 0.0
      %5317 = vmatpush1.msra.mxu0 0.0
      %5318 = vmatprep.subr.mxu0 0.0
      %5319 = vmatpush1.msra.mxu0 0.0
      %5320 = vmatprep.subr.mxu0 0.0
      %5321 = vmatpush1.msra.mxu0 0.0
      %5322 = vmatprep.subr.mxu0 0.0
      %5323 = vmatpush1.msra.mxu0 0.0
      %5324 = vmatprep.subr.mxu0 0.0
      %5325 = vmatpush1.msra.mxu0 0.0
      %5326 = vmatprep.subr.mxu0 0.0
      %5327 = vmatpush1.msra.mxu0 0.0
      %5328 = vmatprep.subr.mxu0 0.0
      %5329 = vmatpush1.msra.mxu0 0.0
      %5330 = vmatprep.subr.mxu0 0.0
      %5331 = vmatpush1.msra.mxu0 0.0
      %5332 = vmatprep.subr.mxu0 0.0
      %5333 = vmatpush1.msra.mxu0 0.0
      %5334 = vmatprep.subr.mxu0 0.0
      %5335 = vmatpush1.msra.mxu0 0.0
      %5336 = vmatprep.subr.mxu0 0.0
      %5337 = vmatpush1.msra.mxu0 0.0
      %5338 = vmatprep.subr.mxu0 0.0
      %5339 = vmatpush1.msra.mxu0 0.0
      %5340 = vmatprep.subr.mxu0 0.0
      %5341 = vmatpush1.msra.mxu0 0.0
      %5342 = vmatprep.mubr.f32.mxu0 0.0
      %5343 = vmatmul.mubr.f32.gmra.mrb[0].mxu0 %v5272
      %v5344 = vpop.f32.mrb[0].mxu0
      %v5345 = vadd.f32 0.0, %v5344
      %v5346 = vpop.f32.mrb[0].mxu0
      %v5347 = vadd.f32 0.0, %v5346
      %5348 = vdwg.mxu0
      %v5349 = vadd.f32 %v5246, %v5345
      %v5350 = vadd.f32 %v5247, %v5347
      %v5351 = vld [vmem:[#allocation2 + $0x4] sm:$0xff]
      %v5352 = vld [vmem:[#allocation2 + $0xc] sm:$0xf]
      %5353 = vrot.lane.b32.xlu0 %v4652, 16
      %v5354 = vpop.permute.xlu0 %5353
      %v5355 = vrot.slane %v5354, 4
      %v5356 = vsel %vm1313, %v5355, %v5354
      %v5359 = vmul.f32 %v5351, %v5356
      %v5360 = vmul.f32 %v5352, %v5355
      %s5361 = scalar_lea.vmem %s11, 28
      %v5362 = vld [vmem:[%s5361] sm:$0xf]
      %v5365 = vcombine.high %v5359, %v5359
      %5366 = vrot.lane.b32.xlu0 %v5359, 112
      %v5367 = vpop.permute.xlu0 %5366
      %5368 = vrot.lane.b32.xlu0 %v5365, 112
      %v5369 = vpop.permute.xlu0 %5368
      %5370 = vrot.lane.b32.xlu0 %v5360, 112
      %v5371 = vpop.permute.xlu0 %5370
      %v5372 = vsel %vm761, %v5367, %v5369
      %v5373 = vsel %vm761, %v5369, %v5371
      %v5375 = vsel %vm1799, %v5362, 0
      %v5377 = vsel %vm1740, %v5372, 0
      %v5379 = vsel %vm1740, %v5373, 0
      %5381 = vmatprep.subr.mxu0 %v5379
      %5382 = vmatpush1.msra.mxu0 %v5377
      %5383 = vmatprep.subr.mxu0 0.0
      %5384 = vmatpush1.msra.mxu0 0.0
      %5385 = vmatprep.subr.mxu0 0.0
      %5386 = vmatpush1.msra.mxu0 0.0
      %5387 = vmatprep.subr.mxu0 0.0
      %5388 = vmatpush1.msra.mxu0 0.0
      %5389 = vmatprep.subr.mxu0 0.0
      %5390 = vmatpush1.msra.mxu0 0.0
      %5391 = vmatprep.subr.mxu0 0.0
      %5392 = vmatpush1.msra.mxu0 0.0
      %5393 = vmatprep.subr.mxu0 0.0
      %5394 = vmatpush1.msra.mxu0 0.0
      %5395 = vmatprep.subr.mxu0 0.0
      %5396 = vmatpush1.msra.mxu0 0.0
      %5397 = vmatprep.subr.mxu0 0.0
      %5398 = vmatpush1.msra.mxu0 0.0
      %5399 = vmatprep.subr.mxu0 0.0
      %5400 = vmatpush1.msra.mxu0 0.0
      %5401 = vmatprep.subr.mxu0 0.0
      %5402 = vmatpush1.msra.mxu0 0.0
      %5403 = vmatprep.subr.mxu0 0.0
      %5404 = vmatpush1.msra.mxu0 0.0
      %5405 = vmatprep.subr.mxu0 0.0
      %5406 = vmatpush1.msra.mxu0 0.0
      %5407 = vmatprep.subr.mxu0 0.0
      %5408 = vmatpush1.msra.mxu0 0.0
      %5409 = vmatprep.subr.mxu0 0.0
      %5410 = vmatpush1.msra.mxu0 0.0
      %5411 = vmatprep.subr.mxu0 0.0
      %5412 = vmatpush1.msra.mxu0 0.0
      %5413 = vmatprep.subr.mxu0 0.0
      %5414 = vmatpush1.msra.mxu0 0.0
      %5415 = vmatprep.subr.mxu0 0.0
      %5416 = vmatpush1.msra.mxu0 0.0
      %5417 = vmatprep.subr.mxu0 0.0
      %5418 = vmatpush1.msra.mxu0 0.0
      %5419 = vmatprep.subr.mxu0 0.0
      %5420 = vmatpush1.msra.mxu0 0.0
      %5421 = vmatprep.subr.mxu0 0.0
      %5422 = vmatpush1.msra.mxu0 0.0
      %5423 = vmatprep.subr.mxu0 0.0
      %5424 = vmatpush1.msra.mxu0 0.0
      %5425 = vmatprep.subr.mxu0 0.0
      %5426 = vmatpush1.msra.mxu0 0.0
      %5427 = vmatprep.subr.mxu0 0.0
      %5428 = vmatpush1.msra.mxu0 0.0
      %5429 = vmatprep.subr.mxu0 0.0
      %5430 = vmatpush1.msra.mxu0 0.0
      %5431 = vmatprep.subr.mxu0 0.0
      %5432 = vmatpush1.msra.mxu0 0.0
      %5433 = vmatprep.subr.mxu0 0.0
      %5434 = vmatpush1.msra.mxu0 0.0
      %5435 = vmatprep.subr.mxu0 0.0
      %5436 = vmatpush1.msra.mxu0 0.0
      %5437 = vmatprep.subr.mxu0 0.0
      %5438 = vmatpush1.msra.mxu0 0.0
      %5439 = vmatprep.subr.mxu0 0.0
      %5440 = vmatpush1.msra.mxu0 0.0
      %5441 = vmatprep.subr.mxu0 0.0
      %5442 = vmatpush1.msra.mxu0 0.0
      %5443 = vmatprep.subr.mxu0 0.0
      %5444 = vmatpush1.msra.mxu0 0.0
      %5445 = vmatprep.mubr.f32.mxu0 0.0
      %5446 = vmatmul.mubr.f32.gmra.mrb[0].mxu0 %v5375
      %v5447 = vpop.f32.mrb[0].mxu0
      %v5448 = vadd.f32 0.0, %v5447
      %v5449 = vpop.f32.mrb[0].mxu0
      %v5450 = vadd.f32 0.0, %v5449
      %5451 = vdwg.mxu0
      %v5452 = vadd.f32 %v5349, %v5448
      %v5453 = vadd.f32 %v5350, %v5450
      %v5454 = vld [vmem:[#allocation2 + $0x4] sm:$0xff]
      %v5455 = vld [vmem:[#allocation2 + $0xc] sm:$0xf]
      %5456 = vrot.lane.b32.xlu0 %v4853, 17
      %v5457 = vpop.permute.xlu0 %5456
      %v5458 = vrot.slane %v5457, 4
      %v5459 = vsel %vm1364, %v5458, %v5457
      %v5462 = vmul.f32 %v5454, %v5459
      %v5463 = vmul.f32 %v5455, %v5458
      %s5464 = scalar_lea.vmem %s11, 32
      %v5465 = vld [vmem:[%s5464] sm:$0xf]
      %v5468 = vcombine.high %v5462, %v5462
      %5469 = vrot.lane.b32.xlu0 %v5462, 111
      %v5470 = vpop.permute.xlu0 %5469
      %5471 = vrot.lane.b32.xlu0 %v5468, 111
      %v5472 = vpop.permute.xlu0 %5471
      %5473 = vrot.lane.b32.xlu0 %v5463, 111
      %v5474 = vpop.permute.xlu0 %5473
      %v5475 = vsel %vm773, %v5470, %v5472
      %v5476 = vsel %vm773, %v5472, %v5474
      %v5478 = vsel %vm1799, %v5465, 0
      %v5480 = vsel %vm1740, %v5475, 0
      %v5482 = vsel %vm1740, %v5476, 0
      %5484 = vmatprep.subr.mxu0 %v5482
      %5485 = vmatpush1.msra.mxu0 %v5480
      %5486 = vmatprep.subr.mxu0 0.0
      %5487 = vmatpush1.msra.mxu0 0.0
      %5488 = vmatprep.subr.mxu0 0.0
      %5489 = vmatpush1.msra.mxu0 0.0
      %5490 = vmatprep.subr.mxu0 0.0
      %5491 = vmatpush1.msra.mxu0 0.0
      %5492 = vmatprep.subr.mxu0 0.0
      %5493 = vmatpush1.msra.mxu0 0.0
      %5494 = vmatprep.subr.mxu0 0.0
      %5495 = vmatpush1.msra.mxu0 0.0
      %5496 = vmatprep.subr.mxu0 0.0
      %5497 = vmatpush1.msra.mxu0 0.0
      %5498 = vmatprep.subr.mxu0 0.0
      %5499 = vmatpush1.msra.mxu0 0.0
      %5500 = vmatprep.subr.mxu0 0.0
      %5501 = vmatpush1.msra.mxu0 0.0
      %5502 = vmatprep.subr.mxu0 0.0
      %5503 = vmatpush1.msra.mxu0 0.0
      %5504 = vmatprep.subr.mxu0 0.0
      %5505 = vmatpush1.msra.mxu0 0.0
      %5506 = vmatprep.subr.mxu0 0.0
      %5507 = vmatpush1.msra.mxu0 0.0
      %5508 = vmatprep.subr.mxu0 0.0
      %5509 = vmatpush1.msra.mxu0 0.0
      %5510 = vmatprep.subr.mxu0 0.0
      %5511 = vmatpush1.msra.mxu0 0.0
      %5512 = vmatprep.subr.mxu0 0.0
      %5513 = vmatpush1.msra.mxu0 0.0
      %5514 = vmatprep.subr.mxu0 0.0
      %5515 = vmatpush1.msra.mxu0 0.0
      %5516 = vmatprep.subr.mxu0 0.0
      %5517 = vmatpush1.msra.mxu0 0.0
      %5518 = vmatprep.subr.mxu0 0.0
      %5519 = vmatpush1.msra.mxu0 0.0
      %5520 = vmatprep.subr.mxu0 0.0
      %5521 = vmatpush1.msra.mxu0 0.0
      %5522 = vmatprep.subr.mxu0 0.0
      %5523 = vmatpush1.msra.mxu0 0.0
      %5524 = vmatprep.subr.mxu0 0.0
      %5525 = vmatpush1.msra.mxu0 0.0
      %5526 = vmatprep.subr.mxu0 0.0
      %5527 = vmatpush1.msra.mxu0 0.0
      %5528 = vmatprep.subr.mxu0 0.0
      %5529 = vmatpush1.msra.mxu0 0.0
      %5530 = vmatprep.subr.mxu0 0.0
      %5531 = vmatpush1.msra.mxu0 0.0
      %5532 = vmatprep.subr.mxu0 0.0
      %5533 = vmatpush1.msra.mxu0 0.0
      %5534 = vmatprep.subr.mxu0 0.0
      %5535 = vmatpush1.msra.mxu0 0.0
      %5536 = vmatprep.subr.mxu0 0.0
      %5537 = vmatpush1.msra.mxu0 0.0
      %5538 = vmatprep.subr.mxu0 0.0
      %5539 = vmatpush1.msra.mxu0 0.0
      %5540 = vmatprep.subr.mxu0 0.0
      %5541 = vmatpush1.msra.mxu0 0.0
      %5542 = vmatprep.subr.mxu0 0.0
      %5543 = vmatpush1.msra.mxu0 0.0
      %5544 = vmatprep.subr.mxu0 0.0
      %5545 = vmatpush1.msra.mxu0 0.0
      %5546 = vmatprep.subr.mxu0 0.0
      %5547 = vmatpush1.msra.mxu0 0.0
      %5548 = vmatprep.mubr.f32.mxu0 0.0
      %5549 = vmatmul.mubr.f32.gmra.mrb[0].mxu0 %v5478
      %v5550 = vpop.f32.mrb[0].mxu0
      %v5551 = vadd.f32 0.0, %v5550
      %v5552 = vpop.f32.mrb[0].mxu0
      %v5553 = vadd.f32 0.0, %v5552
      %5554 = vdwg.mxu0
      %v5555 = vadd.f32 %v5452, %v5551
      %v5556 = vadd.f32 %v5453, %v5553
      %v5557 = vld [vmem:[%s12] sm:$0xf]
      %5559 = vset.pattern.permute.xlu0 0
      %5560 = vperm.xlu0 %5559, %v5557
      %v5561 = vpop.permute.xlu0 %5560
      %v5563 = vadd.f32 %v5555, %v5561
      %v5564 = vadd.f32 %v5556, %v5561
      %v5565 = vsel %vm1740, %v5563, 0.0
      %v5566 = vsel %vm1740, %v5564, 0.0
      %v5567 = vadd.f32 %v5565, %v5566
      %5568 = vadd.xlane.f32.xlu0 %v5567
      %v5569 = vpop.xlane.xlu0 %5568
      %v5570 = vmul.f32 %v5569, %v4592
      %v5571 = vsub.f32 %v5563, %v5570
      %v5572 = vsub.f32 %v5564, %v5570
      %v5573 = vmul.f32 %v5571, %v5571
      %v5574 = vmul.f32 %v5572, %v5572
      %v5575 = vsel %vm1740, %v5573, 0.0
      %v5576 = vsel %vm1740, %v5574, 0.0
      %v5577 = vadd.f32 %v5575, %v5576
      %5578 = vadd.xlane.f32.xlu0 %v5577
      %v5579 = vpop.xlane.xlu0 %5578
      %v5580 = vmul.f32 %v5579, 0.003921569
      %v5581 = vrsqrt.pop %v5580
      %v5582 = vmul.f32 %v5571, %v5581
      %v5583 = vmul.f32 %v5572, %v5581
      %v5584 = vmul.f32 %v5582, %v4607
      %v5585 = vmul.f32 %v5583, %v4608
      %v5586 = vadd.f32 %v5584, %v3639
      %v5587 = vadd.f32 %v5585, %v3640
      %v5590 = vcombine.low %v5586, %v5587
      %v5592 = vadd.f32 %v460, %v5590
      %v5593 = vmax.f32 %v5592, 0.0
      %5594 = vst [vmem:[%s457] sm:$0xff] %v5593
      %p5595 = scmp.lt.s32.totalorder %s24, 1
      %s5596 = scalar_select %p5595, %s24, 1
      %s5597 = smul.addr %s5596, 2
      %s5598 = smul.addr %s5597, 4
      %s5599 = scalar_lea.vmem %s13, %s5598
      // Predicated region
      $region73: #{ain_resblock_forward.1} parent=71 // pred_check
        %p5600 = pneg %p325
      $region74: #{ain_resblock_forward.1} parent=71 // pred_check_branch
        %5602 = sbr.rel (%p5600) target = $region76
      $region75: #{ain_resblock_forward.1} parent=71 // pred_region
        _
      $region76: #{ain_resblock_forward.1} parent=71 // pred_fallthru
        _
    $region72: #{ain_resblock_forward.1} parent=5 // pred_fallthru
      _
    %p5603 = scmp.le.s32.totalorder 2, %s19
    // Predicated region
    $region77: #{ain_resblock_forward.1} parent=5 // pred_check
      %p5604 = pneg %p5603
    $region78: #{ain_resblock_forward.1} parent=5 // pred_check_branch
      %5606 = sbr.rel (%p5604) target = $region80
    $region79: #{ain_resblock_forward.1} parent=5 // pred_region
      %s5607 = ssub.s32 %s19, 2
      // Predicated region
      $region81: #{ain_resblock_forward.1} parent=79 // pred_check
        %p5608 = pneg %p331
      $region82: #{ain_resblock_forward.1} parent=79 // pred_check_branch
        %5610 = sbr.rel (%p5608) target = $region84
      $region83: #{ain_resblock_forward.1} parent=79 // pred_region
        %p5611 = scmp.lt.s32.totalorder %s25, 1
        %s5612 = scalar_select %p5611, %s25, 1
        %s5613 = smul.addr %s5612, 2
        %s5614 = smul.addr %s5613, 4
        %s5615 = scalar_lea.vmem %s13, %s5614
      $region84: #{ain_resblock_forward.1} parent=79 // pred_fallthru
        _
    $region80: #{ain_resblock_forward.1} parent=5 // pred_fallthru
      _
  $region6: #{ain_resblock_forward.1} parent=0 // loop_footer
    %s23 = sadd.s32 1, %s19
  $region7: #{ain_resblock_forward.1} parent=0 // loop_footer_branch
    %18 = sbr.rel target = $region3
  $region8: #{ain_resblock_forward.1} parent=0 // loop_exit
    _

</llo_original>
